<compile_context>
chip_gen: v7x
topology: tpu7x:2x2x1
jax: 0.10.0
libtpu: 0.0.40
codegen_flags: <defaults>
</compile_context>

<pallas_src>
import jax
import jax.numpy as jnp
from jax import lax
from jax.experimental import pallas as pl
from jax.experimental.pallas import tpu as pltpu

_EPS = 1e-5


def _round_up(x, m):
    return (x + m - 1) // m * m


def _choose_m_tiling(M):
    """Pick (Mp, tm) for the pixel axis.  Never collapses to tiny tiles; prefers >=2
    parallel M tiles so megacore (v7x) can engage both TensorCores."""
    if M > 512:
        tm = 256
        Mp = _round_up(M, tm)
    else:
        Mp = _round_up(M, 8)
        tm = Mp // 2 if (Mp % 16 == 0 and Mp >= 32) else Mp
    return Mp, tm


def _partial_row_sums(y):
    """(R, C) f32 -> (8, C) partial per-channel sums using only aligned (8, C) slices and
    adds (lane/sublane-dense stats stores, no in-kernel cross-sublane reduction)."""
    r, c = y.shape
    if r % 8 == 0:
        out = y[0:8, :]
        for j in range(1, r // 8):
            out = out + y[j * 8:(j + 1) * 8, :]
        return out
    s = jnp.sum(y, axis=0, keepdims=True)
    return jnp.concatenate([s, jnp.zeros((7, c), s.dtype)], axis=0)


def _finish_stats(sum_arr, sq_arr, m):
    """Finish mean / biased var from (…, 8, C) partial sums (tiny XLA reduction).
    TODO(synk): single-pass E[x^2]-mean^2 can lose precision vs torch's two-pass var."""
    c = sum_arr.shape[-1]
    s = sum_arr.reshape(-1, c).sum(axis=0)
    q = sq_arr.reshape(-1, c).sum(axis=0)
    mean = s / m
    var = jnp.maximum(q / m - mean * mean, 0.0)
    return mean, var


# ---------------------------------------------------------------------------
# Kernel 1: per-channel sum / sum-of-squares of the input (bn3 statistics)
# ---------------------------------------------------------------------------

def _bn_stats_kernel(x_ref, sum_ref, sq_ref):
    @pl.when(pl.program_id(0) == 0)
    def _init():
        sum_ref[...] = jnp.zeros_like(sum_ref)
        sq_ref[...] = jnp.zeros_like(sq_ref)

    x = x_ref[...].astype(jnp.float32)
    sum_ref[...] += _partial_row_sums(x)
    sq_ref[...] += _partial_row_sums(x * x)


def bn_input_stats(x2d, m_true, tm):
    """Global batch mean / biased var per channel (zero pad rows contribute nothing)."""
    Mp, C = x2d.shape
    sums, sqs = pl.pallas_call(
        _bn_stats_kernel,
        out_shape=(jax.ShapeDtypeStruct((8, C), jnp.float32),
                   jax.ShapeDtypeStruct((8, C), jnp.float32)),
        grid=(Mp // tm,),
        in_specs=[pl.BlockSpec((tm, C), lambda i: (i, 0))],
        out_specs=(pl.BlockSpec((8, C), lambda i: (0, 0)),
                   pl.BlockSpec((8, C), lambda i: (0, 0))),
        compiler_params=pltpu.CompilerParams(dimension_semantics=("arbitrary",)),
    )(x2d)
    return _finish_stats(sums, sqs, m_true)


# ---------------------------------------------------------------------------
# Kernel 2: fused (BN-normalize -> 1x1 convT matmul -> [+residual] -> relu [-> stats])
# ---------------------------------------------------------------------------

def _make_matmul_kernel(has_norm, has_res, collect_stats, tm, m_true, mp):
    def kernel(*refs):
        idx = 0
        a_ref = refs[idx]; idx += 1
        s_ref = t_ref = r_ref = sum_ref = sq_ref = None
        if has_norm:
            s_ref, t_ref = refs[idx], refs[idx + 1]; idx += 2
        b_ref = refs[idx]; idx += 1
        if has_res:
            r_ref = refs[idx]; idx += 1
        o_ref = refs[idx]; idx += 1
        if collect_stats:
            sum_ref, sq_ref = refs[idx], refs[idx + 1]; idx += 2
        acc_ref = refs[idx]

        k = pl.program_id(1)

        @pl.when(k == 0)
        def _init():
            acc_ref[...] = jnp.zeros_like(acc_ref)

        a = a_ref[...]
        if has_norm:
            # BN normalize folded into the LHS (exact for 1x1 convs: no spatial padding).
            a = a.astype(jnp.float32) * s_ref[...] + t_ref[...]
        acc_ref[...] += jnp.dot(a.astype(jnp.bfloat16), b_ref[...],
                                preferred_element_type=jnp.float32)

        @pl.when(k == pl.num_programs(1) - 1)
        def _finalize():
            acc = acc_ref[...]
            if has_res:
                acc = acc + r_ref[...].astype(jnp.float32)
            y = jnp.maximum(acc, 0.0)
            o_ref[...] = y.astype(o_ref.dtype)
            if collect_stats:
                ys = y
                if mp > m_true:  # mask pad rows out of the batch statistics (static branch)
                    row = lax.broadcasted_iota(jnp.int32, y.shape, 0)
                    ys = jnp.where(row + pl.program_id(0) * tm < m_true, y, 0.0)
                sum_ref[0, :, :] = _partial_row_sums(ys)
                sq_ref[0, :, :] = _partial_row_sums(ys * ys)

    return kernel


def fused_matmul_bn(a, b, *, scale=None, shift=None, residual=None,
                    out_dtype=jnp.bfloat16, collect_stats=False, tm, m_true):
    """relu(((a*scale+shift) @ b) [+ residual]), optionally also emitting per-channel
    sum / sum-of-squares of the relu'd result (BN stats of the next layer).

    a: (Mp, K) f32/bf16, b: (K, N), scale/shift: (K,) f32, residual: (Mp, N) f32.
    Full-dim K/N blocks (no channel padding); f32 VMEM accumulator over the K grid axis.
    """
    Mp, K = a.shape
    K2, N = b.shape
    assert K == K2 and Mp % tm == 0
    has_norm = scale is not None
    has_res = residual is not None

    tk = K if K <= 2048 else next((t for t in (1024, 512, 256, 128) if K % t == 0), K)
    nk = K // tk
    n_m = Mp // tm

    in_specs = [pl.BlockSpec((tm, tk), lambda i, k: (i, k))]
    args = [a]
    if has_norm:
        in_specs += [pl.BlockSpec((1, tk), lambda i, k: (0, k)),
                     pl.BlockSpec((1, tk), lambda i, k: (0, k))]
        args += [scale.reshape(1, K).astype(jnp.float32),
                 shift.reshape(1, K).astype(jnp.float32)]
    in_specs.append(pl.BlockSpec((tk, N), lambda i, k: (k, 0)))
    args.append(b.astype(jnp.bfloat16))
    if has_res:
        in_specs.append(pl.BlockSpec((tm, N), lambda i, k: (i, 0)))
        args.append(residual.astype(jnp.float32))

    o_spec = pl.BlockSpec((tm, N), lambda i, k: (i, 0))
    if collect_stats:
        st_spec = pl.BlockSpec((1, 8, N), lambda i, k: (i, 0, 0))
        out_shape = (jax.ShapeDtypeStruct((Mp, N), out_dtype),
                     jax.ShapeDtypeStruct((n_m, 8, N), jnp.float32),
                     jax.ShapeDtypeStruct((n_m, 8, N), jnp.float32))
        out_specs = (o_spec, st_spec, st_spec)
    else:
        out_shape = jax.ShapeDtypeStruct((Mp, N), out_dtype)
        out_specs = o_spec

    bytes_accessed = sum(int(x.size) * x.dtype.itemsize for x in args)
    bytes_accessed += Mp * N * jnp.dtype(out_dtype).itemsize

    return pl.pallas_call(
        _make_matmul_kernel(has_norm, has_res, collect_stats, tm, m_true, Mp),
        out_shape=out_shape,
        grid=(n_m, nk),
        in_specs=in_specs,
        out_specs=out_specs,
        scratch_shapes=[pltpu.VMEM((tm, N), jnp.float32)],
        compiler_params=pltpu.CompilerParams(
            dimension_semantics=("parallel", "arbitrary")),
        cost_estimate=pl.CostEstimate(flops=2 * Mp * N * K, transcendentals=0,
                                      bytes_accessed=int(bytes_accessed)),
    )(*args)


# ---------------------------------------------------------------------------
# Kernel 3: fused (bn2-normalize -> 3x3 convT (stride=1, pad=1) -> relu -> bn1 stats)
#           one image per grid step, no im2col in HBM.
# ---------------------------------------------------------------------------

def _make_conv3x3_kernel(H, W, C):
    def kernel(x_ref, s_ref, t_ref, w_ref, o_ref, sum_ref, sq_ref, xpad_ref, acc_ref):
        # Write the bn2-normalized activation into the interior of a zeroed VMEM pad
        # buffer; padding stays exactly zero (the BN shift must not leak into it).
        xpad_ref[...] = jnp.zeros_like(xpad_ref)
        s = s_ref[...]  # (1, C)
        t = t_ref[...]
        for h in range(H):
            row = x_ref[pl.ds(h * W, W), :].astype(jnp.float32)
            xpad_ref[1 + h, pl.ds(1, W), :] = row * s + t

        # convT(3x3, stride=1, pad=1) == SAME conv with the flipped kernel:
        # out[y, x] += xpad[y+a, x+b] @ wf[a, b]   (wf rows pre-flipped host-side).
        acc_ref[...] = jnp.zeros_like(acc_ref)
        for a in range(3):
            for b in range(3):
                wt = w_ref[pl.ds((a * 3 + b) * C, C), :]          # (C, C) bf16
                for y in range(H):
                    lhs = xpad_ref[y + a, pl.ds(b, W), :].astype(jnp.bfloat16)
                    acc_ref[pl.ds(y * W, W), :] += jnp.dot(
                        lhs, wt, preferred_element_type=jnp.float32)

        out = jnp.maximum(acc_ref[...], 0.0)
        o_ref[...] = out.astype(o_ref.dtype)
        # bn1 statistics of the relu'd output, per image (summed over images in XLA).
        sum_ref[0, :, :] = _partial_row_sums(out)
        sq_ref[0, :, :] = _partial_row_sums(out * out)

    return kernel


def conv3x3_bn_relu(h3, w2_flat, scale, shift, n_img, H, W, m_pad):
    """bn2 normalize -> 3x3 transposed conv (stride=1, padding=1) -> relu, plus per-image
    per-channel sum / sum-of-squares of the output (bn1 statistics).  h3: (m_pad, C)."""
    C = w2_flat.shape[1]
    HW = H * W
    return pl.pallas_call(
        _make_conv3x3_kernel(H, W, C),
        out_shape=(jax.ShapeDtypeStruct((m_pad, C), jnp.bfloat16),
                   jax.ShapeDtypeStruct((n_img, 8, C), jnp.float32),
                   jax.ShapeDtypeStruct((n_img, 8, C), jnp.float32)),
        grid=(n_img,),
        in_specs=[pl.BlockSpec((HW, C), lambda n: (n, 0)),
                  pl.BlockSpec((1, C), lambda n: (0, 0)),
                  pl.BlockSpec((1, C), lambda n: (0, 0)),
                  pl.BlockSpec((9 * C, C), lambda n: (0, 0))],
        out_specs=(pl.BlockSpec((HW, C), lambda n: (n, 0)),
                   pl.BlockSpec((1, 8, C), lambda n: (n, 0, 0)),
                   pl.BlockSpec((1, 8, C), lambda n: (n, 0, 0))),
        scratch_shapes=[pltpu.VMEM((H + 2, W + 2, C), jnp.float32),
                        pltpu.VMEM((HW, C), jnp.float32)],
        compiler_params=pltpu.CompilerParams(dimension_semantics=("parallel",)),
        cost_estimate=pl.CostEstimate(flops=2 * n_img * HW * 9 * C * C, transcendentals=0,
                                      bytes_accessed=int(4 * n_img * HW * C + 18 * C * C)),
    )(h3, scale.reshape(1, C).astype(jnp.float32),
      shift.reshape(1, C).astype(jnp.float32), w2_flat.astype(jnp.bfloat16))


# ---------------------------------------------------------------------------
# Parameters (torch ConvTranspose2d layout -> matmul-ready layouts)
# ---------------------------------------------------------------------------

def init_params(key, inplanes, planes, base_width=256, groups=1, expansion=4):
    width = int(planes * (base_width / 64.0)) * groups
    c3 = planes * expansion
    k1, k2, k3 = jax.random.split(key, 3)

    def w_init(k, shape, fan_in):
        return jax.random.normal(k, shape, jnp.float32) * (1.0 / fan_in) ** 0.5

    w3_t = w_init(k3, (width, c3, 1, 1), width)          # conv3: width -> planes*expansion
    w2_t = w_init(k2, (width, width, 3, 3), 9 * width)   # conv2: width -> width (3x3, pad=1)
    w1_t = w_init(k1, (width, inplanes, 1, 1), width)    # conv1: width -> inplanes

    # convT(k=1): out[.., co] = sum_ci in[.., ci] * w[ci, co, 0, 0]
    w3 = w3_t[:, :, 0, 0]
    w1 = w1_t[:, :, 0, 0]
    # convT(k=3, s=1, p=1) == conv with the spatially flipped kernel; rows ordered (kh, kw, cin)
    w2_flat = jnp.transpose(w2_t[:, :, ::-1, ::-1], (2, 3, 0, 1)).reshape(9 * width, width)

    return {
        'w3': w3, 'w2_flat': w2_flat, 'w1': w1,
        'bn3_g': jnp.ones((c3,), jnp.float32), 'bn3_b': jnp.zeros((c3,), jnp.float32),
        'bn2_g': jnp.ones((width,), jnp.float32), 'bn2_b': jnp.zeros((width,), jnp.float32),
        # bn1: affine=False -> no parameters
    }


# ---------------------------------------------------------------------------
# BottleneckT forward
# ---------------------------------------------------------------------------

def bottleneck_t_forward(x_nchw, params, *, stride=1):
    """out = relu(conv1(bn1(relu(conv2(bn2(relu(conv3(bn3(x)))))))) + identity)."""
    assert stride == 1  # TODO(synk): stride>1 (spatial upsampling) convT path + upsample branch
    w3, w2f, w1 = params['w3'], params['w2_flat'], params['w1']
    width, c3 = w3.shape
    inplanes = w1.shape[1]

    N, C, H, W = x_nchw.shape
    assert C == c3 == width and inplanes == C, \
        "BottleneckT.forward only shape-checks when width == planes*expansion == inplanes == C_in"

    M = N * H * W
    Mp, tm = _choose_m_tiling(M)

    # One f32 (Mp, C) activation image, reused as bn3-stats input, conv3 LHS and the
    # exact (un-quantized) residual for the final add.
    x2d = jnp.transpose(x_nchw, (0, 2, 3, 1)).reshape(M, C).astype(jnp.float32)
    if Mp > M:
        x2d = jnp.pad(x2d, ((0, Mp - M), (0, 0)))

    # ---- bn3 (affine): one stats pass over x; normalize folded into conv3's prologue.
    mean3, var3 = bn_input_stats(x2d, M, tm)
    scale3 = params['bn3_g'] * lax.rsqrt(var3 + _EPS)
    shift3 = params['bn3_b'] - mean3 * scale3

    # ---- conv3 (1x1 convT == matmul) + relu; bn2 statistics fused into the epilogue.
    h3, sum2, sq2 = fused_matmul_bn(x2d, w3, scale=scale3, shift=shift3,
                                    collect_stats=True, tm=tm, m_true=M)

    # ---- bn2 (affine) fused into conv2's in-VMEM prologue; conv2 = 3x3 convT with the
    #      9 taps looped in VMEM (no HBM im2col); relu + bn1 statistics fused.
    mean2, var2 = _finish_stats(sum2, sq2, M)
    scale2 = params['bn2_g'] * lax.rsqrt(var2 + _EPS)
    shift2 = params['bn2_b'] - mean2 * scale2
    h2, sum1, sq1 = conv3x3_bn_relu(h3, w2f, scale2, shift2, N, H, W, Mp)

    # ---- bn1 (affine=False) folded into conv1's prologue; f32 residual add + relu fused.
    mean1, var1 = _finish_stats(sum1, sq1, M)
    scale1 = lax.rsqrt(var1 + _EPS)
    shift1 = -mean1 * scale1
    out2d = fused_matmul_bn(h2, w1, scale=scale1, shift=shift1, residual=x2d,
                            out_dtype=jnp.float32, tm=tm, m_true=M)

    out = out2d[:M].reshape(N, H, W, inplanes)
    return jnp.transpose(out, (0, 3, 1, 2))               # back to NCHW


if __name__ == "__main__":
    key = jax.random.PRNGKey(0)
    kp, kx = jax.random.split(key)
    # inplanes=64, planes=16, expansion=4, base_width=256 -> width = planes*expansion = 64,
    # the configuration under which BottleneckT.forward shape-checks (upsample=None).
    params = init_params(kp, inplanes=64, planes=16, base_width=256)
    x = jax.random.normal(kx, (2, 64, 8, 8), jnp.float32)  # NCHW
    fwd = jax.jit(bottleneck_t_forward)
    out = fwd(x, params)
    jax.block_until_ready(out)
    assert out.shape == (2, 64, 8, 8), out.shape
    assert bool(jnp.isfinite(out).all())
    print("KERNEL_OK")
</pallas_src>

<mosaic_0001>
module attributes {stable_mosaic.version = 11 : i64} {
  func.func @_bn_stats_kernel(%arg0: i32, %arg1: memref<64x64xf32, #tpu.memory_space<vmem>>, %arg2: memref<8x64xf32, #tpu.memory_space<vmem>>, %arg3: memref<8x64xf32, #tpu.memory_space<vmem>>) attributes {dimension_semantics = [#tpu.dimension_semantics<arbitrary>], iteration_bounds = array<i64: 2>, scalar_prefetch = 0 : i64, scratch_operands = 0 : i64, tpu.core_type = #tpu.core_type<tc>, window_params = [{transform_indices = @transform_0, window_bounds = array<i64: 64, 64>}, {pipeline_mode = #tpu.pipeline_mode<synchronous>, transform_indices = @transform_1, window_bounds = array<i64: 8, 64>}, {pipeline_mode = #tpu.pipeline_mode<synchronous>, transform_indices = @transform_2, window_bounds = array<i64: 8, 64>}]} {
    %c0_i32 = arith.constant 0 : i32
    %0 = arith.cmpi eq, %arg0, %c0_i32 : i32
    %1 = arith.extui %0 : i1 to i32
    %c0_i32_0 = arith.constant 0 : i32
    %2 = arith.cmpi ne, %1, %c0_i32_0 : i32
    scf.if %2 {
      %cst = arith.constant 0.000000e+00 : f32
      %41 = vector.broadcast %cst : f32 to vector<8x64xf32>
      %c0_10 = arith.constant 0 : index
      %c0_11 = arith.constant 0 : index
      %42 = vector.load %arg2[%c0_10, %c0_11] : memref<8x64xf32, #tpu.memory_space<vmem>>, vector<8x64xf32>
      tpu.vector_store %arg2[%c0_10, %c0_11], %41 {strides = array<i32>} : memref<8x64xf32, #tpu.memory_space<vmem>>, vector<8x64xf32>,
      %cst_12 = arith.constant 0.000000e+00 : f32
      %43 = vector.broadcast %cst_12 : f32 to vector<8x64xf32>
      %c0_13 = arith.constant 0 : index
      %c0_14 = arith.constant 0 : index
      %44 = vector.load %arg3[%c0_13, %c0_14] : memref<8x64xf32, #tpu.memory_space<vmem>>, vector<8x64xf32>
      tpu.vector_store %arg3[%c0_13, %c0_14], %43 {strides = array<i32>} : memref<8x64xf32, #tpu.memory_space<vmem>>, vector<8x64xf32>,
    } else {
    }
    %c0 = arith.constant 0 : index
    %c0_1 = arith.constant 0 : index
    %3 = vector.load %arg1[%c0, %c0_1] : memref<64x64xf32, #tpu.memory_space<vmem>>, vector<64x64xf32>
    %c0_2 = arith.constant 0 : index
    %c0_3 = arith.constant 0 : index
    %4 = vector.load %arg2[%c0_2, %c0_3] : memref<8x64xf32, #tpu.memory_space<vmem>>, vector<8x64xf32>
    %5 = vector.extract_strided_slice %3 {offsets = [0, 0], sizes = [8, 64], strides = [1, 1]} : vector<64x64xf32> to vector<8x64xf32>
    %6 = vector.extract_strided_slice %3 {offsets = [8, 0], sizes = [8, 64], strides = [1, 1]} : vector<64x64xf32> to vector<8x64xf32>
    %7 = arith.addf %5, %6 : vector<8x64xf32>
    %8 = vector.extract_strided_slice %3 {offsets = [16, 0], sizes = [8, 64], strides = [1, 1]} : vector<64x64xf32> to vector<8x64xf32>
    %9 = arith.addf %7, %8 : vector<8x64xf32>
    %10 = vector.extract_strided_slice %3 {offsets = [24, 0], sizes = [8, 64], strides = [1, 1]} : vector<64x64xf32> to vector<8x64xf32>
    %11 = arith.addf %9, %10 : vector<8x64xf32>
    %12 = vector.extract_strided_slice %3 {offsets = [32, 0], sizes = [8, 64], strides = [1, 1]} : vector<64x64xf32> to vector<8x64xf32>
    %13 = arith.addf %11, %12 : vector<8x64xf32>
    %14 = vector.extract_strided_slice %3 {offsets = [40, 0], sizes = [8, 64], strides = [1, 1]} : vector<64x64xf32> to vector<8x64xf32>
    %15 = arith.addf %13, %14 : vector<8x64xf32>
    %16 = vector.extract_strided_slice %3 {offsets = [48, 0], sizes = [8, 64], strides = [1, 1]} : vector<64x64xf32> to vector<8x64xf32>
    %17 = arith.addf %15, %16 : vector<8x64xf32>
    %18 = vector.extract_strided_slice %3 {offsets = [56, 0], sizes = [8, 64], strides = [1, 1]} : vector<64x64xf32> to vector<8x64xf32>
    %19 = arith.addf %17, %18 : vector<8x64xf32>
    %20 = arith.addf %4, %19 : vector<8x64xf32>
    %c0_4 = arith.constant 0 : index
    %c0_5 = arith.constant 0 : index
    %21 = vector.load %arg2[%c0_4, %c0_5] : memref<8x64xf32, #tpu.memory_space<vmem>>, vector<8x64xf32>
    tpu.vector_store %arg2[%c0_4, %c0_5], %20 {strides = array<i32>} : memref<8x64xf32, #tpu.memory_space<vmem>>, vector<8x64xf32>,
    %c0_6 = arith.constant 0 : index
    %c0_7 = arith.constant 0 : index
    %22 = vector.load %arg3[%c0_6, %c0_7] : memref<8x64xf32, #tpu.memory_space<vmem>>, vector<8x64xf32>
    %23 = arith.mulf %3, %3 : vector<64x64xf32>
    %24 = vector.extract_strided_slice %23 {offsets = [0, 0], sizes = [8, 64], strides = [1, 1]} : vector<64x64xf32> to vector<8x64xf32>
    %25 = vector.extract_strided_slice %23 {offsets = [8, 0], sizes = [8, 64], strides = [1, 1]} : vector<64x64xf32> to vector<8x64xf32>
    %26 = arith.addf %24, %25 : vector<8x64xf32>
    %27 = vector.extract_strided_slice %23 {offsets = [16, 0], sizes = [8, 64], strides = [1, 1]} : vector<64x64xf32> to vector<8x64xf32>
    %28 = arith.addf %26, %27 : vector<8x64xf32>
    %29 = vector.extract_strided_slice %23 {offsets = [24, 0], sizes = [8, 64], strides = [1, 1]} : vector<64x64xf32> to vector<8x64xf32>
    %30 = arith.addf %28, %29 : vector<8x64xf32>
    %31 = vector.extract_strided_slice %23 {offsets = [32, 0], sizes = [8, 64], strides = [1, 1]} : vector<64x64xf32> to vector<8x64xf32>
    %32 = arith.addf %30, %31 : vector<8x64xf32>
    %33 = vector.extract_strided_slice %23 {offsets = [40, 0], sizes = [8, 64], strides = [1, 1]} : vector<64x64xf32> to vector<8x64xf32>
    %34 = arith.addf %32, %33 : vector<8x64xf32>
    %35 = vector.extract_strided_slice %23 {offsets = [48, 0], sizes = [8, 64], strides = [1, 1]} : vector<64x64xf32> to vector<8x64xf32>
    %36 = arith.addf %34, %35 : vector<8x64xf32>
    %37 = vector.extract_strided_slice %23 {offsets = [56, 0], sizes = [8, 64], strides = [1, 1]} : vector<64x64xf32> to vector<8x64xf32>
    %38 = arith.addf %36, %37 : vector<8x64xf32>
    %39 = arith.addf %22, %38 : vector<8x64xf32>
    %c0_8 = arith.constant 0 : index
    %c0_9 = arith.constant 0 : index
    %40 = vector.load %arg3[%c0_8, %c0_9] : memref<8x64xf32, #tpu.memory_space<vmem>>, vector<8x64xf32>
    tpu.vector_store %arg3[%c0_8, %c0_9], %39 {strides = array<i32>} : memref<8x64xf32, #tpu.memory_space<vmem>>, vector<8x64xf32>,
    return
  }
  func.func @transform_0(%arg0: i32) -> (i32, i32) {
    %c0_i32 = arith.constant 0 : i32
    %c0_i32_0 = arith.constant 0 : i32
    return %arg0, %c0_i32 : i32, i32
  }
  func.func @transform_1(%arg0: i32) -> (i32, i32) {
    %c0_i32 = arith.constant 0 : i32
    %c0_i32_0 = arith.constant 0 : i32
    %c0_i32_1 = arith.constant 0 : i32
    return %c0_i32, %c0_i32_0 : i32, i32
  }
  func.func @transform_2(%arg0: i32) -> (i32, i32) {
    %c0_i32 = arith.constant 0 : i32
    %c0_i32_0 = arith.constant 0 : i32
    %c0_i32_1 = arith.constant 0 : i32
    return %c0_i32, %c0_i32_0 : i32, i32
  }
}

module attributes {stable_mosaic.version = 11 : i64} {
  func.func @kernel(%arg0: i32, %arg1: i32, %arg2: memref<64x64xf32, #tpu.memory_space<vmem>>, %arg3: memref<1x64xf32, #tpu.memory_space<vmem>>, %arg4: memref<1x64xf32, #tpu.memory_space<vmem>>, %arg5: memref<64x64xbf16, #tpu.memory_space<vmem>>, %arg6: memref<64x64xbf16, #tpu.memory_space<vmem>>, %arg7: memref<1x8x64xf32, #tpu.memory_space<vmem>>, %arg8: memref<1x8x64xf32, #tpu.memory_space<vmem>>, %arg9: memref<64x64xf32, #tpu.memory_space<vmem>>) attributes {dimension_semantics = [#tpu.dimension_semantics<parallel>, #tpu.dimension_semantics<arbitrary>], iteration_bounds = array<i64: 2, 1>, scalar_prefetch = 0 : i64, scratch_operands = 1 : i64, tpu.core_type = #tpu.core_type<tc>, window_params = [{transform_indices = @transform_0, window_bounds = array<i64: 64, 64>}, {transform_indices = @transform_1, window_bounds = array<i64: 1, 64>}, {transform_indices = @transform_2, window_bounds = array<i64: 1, 64>}, {transform_indices = @transform_3, window_bounds = array<i64: 64, 64>}, {transform_indices = @transform_4, window_bounds = array<i64: 64, 64>}, {transform_indices = @transform_5, window_bounds = array<i64: 1, 8, 64>}, {transform_indices = @transform_6, window_bounds = array<i64: 1, 8, 64>}]} {
    %c0_i32 = arith.constant 0 : i32
    %0 = arith.cmpi eq, %arg1, %c0_i32 : i32
    %1 = arith.extui %0 : i1 to i32
    %c0_i32_0 = arith.constant 0 : i32
    %2 = arith.cmpi ne, %1, %c0_i32_0 : i32
    scf.if %2 {
      %cst_14 = arith.constant 0.000000e+00 : f32
      %19 = vector.broadcast %cst_14 : f32 to vector<64x64xf32>
      %c0_15 = arith.constant 0 : index
      %c0_16 = arith.constant 0 : index
      %20 = vector.load %arg9[%c0_15, %c0_16] : memref<64x64xf32, #tpu.memory_space<vmem>>, vector<64x64xf32>
      tpu.vector_store %arg9[%c0_15, %c0_16], %19 {strides = array<i32>} : memref<64x64xf32, #tpu.memory_space<vmem>>, vector<64x64xf32>,
    } else {
    }
    %c0 = arith.constant 0 : index
    %c0_1 = arith.constant 0 : index
    %3 = vector.load %arg2[%c0, %c0_1] : memref<64x64xf32, #tpu.memory_space<vmem>>, vector<64x64xf32>
    %c0_2 = arith.constant 0 : index
    %c0_3 = arith.constant 0 : index
    %4 = vector.load %arg3[%c0_2, %c0_3] : memref<1x64xf32, #tpu.memory_space<vmem>>, vector<1x64xf32>
    %5 = vector.broadcast %4 : vector<1x64xf32> to vector<64x64xf32>
    %6 = arith.mulf %3, %5 : vector<64x64xf32>
    %c0_4 = arith.constant 0 : index
    %c0_5 = arith.constant 0 : index
    %7 = vector.load %arg4[%c0_4, %c0_5] : memref<1x64xf32, #tpu.memory_space<vmem>>, vector<1x64xf32>
    %8 = vector.broadcast %7 : vector<1x64xf32> to vector<64x64xf32>
    %9 = arith.addf %6, %8 : vector<64x64xf32>
    %c0_6 = arith.constant 0 : index
    %c0_7 = arith.constant 0 : index
    %10 = vector.load %arg9[%c0_6, %c0_7] : memref<64x64xf32, #tpu.memory_space<vmem>>, vector<64x64xf32>
    %11 = arith.truncf %9 : vector<64x64xf32> to vector<64x64xbf16>
    %c0_8 = arith.constant 0 : index
    %c0_9 = arith.constant 0 : index
    %12 = vector.load %arg5[%c0_8, %c0_9] : memref<64x64xbf16, #tpu.memory_space<vmem>>, vector<64x64xbf16>
    %cst = arith.constant dense<0.000000e+00> : vector<64x64xf32>
    %13 = tpu.matmul %11, %12, %cst {dimension_numbers = #tpu.dot_dimension_numbers<[1], [0], [0], [1], [0, 0, 1, 1], [], []>} : vector<64x64xbf16>, vector<64x64xbf16>, vector<64x64xf32> -> vector<64x64xf32>
    %14 = arith.addf %10, %13 : vector<64x64xf32>
    %c0_10 = arith.constant 0 : index
    %c0_11 = arith.constant 0 : index
    %15 = vector.load %arg9[%c0_10, %c0_11] : memref<64x64xf32, #tpu.memory_space<vmem>>, vector<64x64xf32>
    tpu.vector_store %arg9[%c0_10, %c0_11], %14 {strides = array<i32>} : memref<64x64xf32, #tpu.memory_space<vmem>>, vector<64x64xf32>,
    %c0_i32_12 = arith.constant 0 : i32
    %16 = arith.cmpi eq, %arg1, %c0_i32_12 : i32
    %17 = arith.extui %16 : i1 to i32
    %c0_i32_13 = arith.constant 0 : i32
    %18 = arith.cmpi ne, %17, %c0_i32_13 : i32
    scf.if %18 {
      %c0_14 = arith.constant 0 : index
      %c0_15 = arith.constant 0 : index
      %19 = vector.load %arg9[%c0_14, %c0_15] : memref<64x64xf32, #tpu.memory_space<vmem>>, vector<64x64xf32>
      %cst_16 = arith.constant 0.000000e+00 : f32
      %20 = vector.broadcast %cst_16 : f32 to vector<64x64xf32>
      %21 = arith.maximumf %19, %20 : vector<64x64xf32>
      %22 = arith.truncf %21 : vector<64x64xf32> to vector<64x64xbf16>
      %c0_17 = arith.constant 0 : index
      %c0_18 = arith.constant 0 : index
      %23 = vector.load %arg6[%c0_17, %c0_18] : memref<64x64xbf16, #tpu.memory_space<vmem>>, vector<64x64xbf16>
      tpu.vector_store %arg6[%c0_17, %c0_18], %22 {strides = array<i32>} : memref<64x64xbf16, #tpu.memory_space<vmem>>, vector<64x64xbf16>,
      %24 = vector.extract_strided_slice %21 {offsets = [0, 0], sizes = [8, 64], strides = [1, 1]} : vector<64x64xf32> to vector<8x64xf32>
      %25 = vector.extract_strided_slice %21 {offsets = [8, 0], sizes = [8, 64], strides = [1, 1]} : vector<64x64xf32> to vector<8x64xf32>
      %26 = arith.addf %24, %25 : vector<8x64xf32>
      %27 = vector.extract_strided_slice %21 {offsets = [16, 0], sizes = [8, 64], strides = [1, 1]} : vector<64x64xf32> to vector<8x64xf32>
      %28 = arith.addf %26, %27 : vector<8x64xf32>
      %29 = vector.extract_strided_slice %21 {offsets = [24, 0], sizes = [8, 64], strides = [1, 1]} : vector<64x64xf32> to vector<8x64xf32>
      %30 = arith.addf %28, %29 : vector<8x64xf32>
      %31 = vector.extract_strided_slice %21 {offsets = [32, 0], sizes = [8, 64], strides = [1, 1]} : vector<64x64xf32> to vector<8x64xf32>
      %32 = arith.addf %30, %31 : vector<8x64xf32>
      %33 = vector.extract_strided_slice %21 {offsets = [40, 0], sizes = [8, 64], strides = [1, 1]} : vector<64x64xf32> to vector<8x64xf32>
      %34 = arith.addf %32, %33 : vector<8x64xf32>
      %35 = vector.extract_strided_slice %21 {offsets = [48, 0], sizes = [8, 64], strides = [1, 1]} : vector<64x64xf32> to vector<8x64xf32>
      %36 = arith.addf %34, %35 : vector<8x64xf32>
      %37 = vector.extract_strided_slice %21 {offsets = [56, 0], sizes = [8, 64], strides = [1, 1]} : vector<64x64xf32> to vector<8x64xf32>
      %38 = arith.addf %36, %37 : vector<8x64xf32>
      %c0_19 = arith.constant 0 : index
      %c0_20 = arith.constant 0 : index
      %c0_21 = arith.constant 0 : index
      %39 = vector.load %arg7[%c0_19, %c0_20, %c0_21] : memref<1x8x64xf32, #tpu.memory_space<vmem>>, vector<1x8x64xf32>
      %40 = vector.shape_cast %39 : vector<1x8x64xf32> to vector<8x64xf32>
      %41 = vector.shape_cast %38 : vector<8x64xf32> to vector<1x8x64xf32>
      tpu.vector_store %arg7[%c0_19, %c0_20, %c0_21], %41 {strides = array<i32>} : memref<1x8x64xf32, #tpu.memory_space<vmem>>, vector<1x8x64xf32>,
      %42 = arith.mulf %21, %21 : vector<64x64xf32>
      %43 = vector.extract_strided_slice %42 {offsets = [0, 0], sizes = [8, 64], strides = [1, 1]} : vector<64x64xf32> to vector<8x64xf32>
      %44 = vector.extract_strided_slice %42 {offsets = [8, 0], sizes = [8, 64], strides = [1, 1]} : vector<64x64xf32> to vector<8x64xf32>
      %45 = arith.addf %43, %44 : vector<8x64xf32>
      %46 = vector.extract_strided_slice %42 {offsets = [16, 0], sizes = [8, 64], strides = [1, 1]} : vector<64x64xf32> to vector<8x64xf32>
      %47 = arith.addf %45, %46 : vector<8x64xf32>
      %48 = vector.extract_strided_slice %42 {offsets = [24, 0], sizes = [8, 64], strides = [1, 1]} : vector<64x64xf32> to vector<8x64xf32>
      %49 = arith.addf %47, %48 : vector<8x64xf32>
      %50 = vector.extract_strided_slice %42 {offsets = [32, 0], sizes = [8, 64], strides = [1, 1]} : vector<64x64xf32> to vector<8x64xf32>
      %51 = arith.addf %49, %50 : vector<8x64xf32>
      %52 = vector.extract_strided_slice %42 {offsets = [40, 0], sizes = [8, 64], strides = [1, 1]} : vector<64x64xf32> to vector<8x64xf32>
      %53 = arith.addf %51, %52 : vector<8x64xf32>
      %54 = vector.extract_strided_slice %42 {offsets = [48, 0], sizes = [8, 64], strides = [1, 1]} : vector<64x64xf32> to vector<8x64xf32>
      %55 = arith.addf %53, %54 : vector<8x64xf32>
      %56 = vector.extract_strided_slice %42 {offsets = [56, 0], sizes = [8, 64], strides = [1, 1]} : vector<64x64xf32> to vector<8x64xf32>
      %57 = arith.addf %55, %56 : vector<8x64xf32>
      %c0_22 = arith.constant 0 : index
      %c0_23 = arith.constant 0 : index
      %c0_24 = arith.constant 0 : index
      %58 = vector.load %arg8[%c0_22, %c0_23, %c0_24] : memref<1x8x64xf32, #tpu.memory_space<vmem>>, vector<1x8x64xf32>
      %59 = vector.shape_cast %58 : vector<1x8x64xf32> to vector<8x64xf32>
      %60 = vector.shape_cast %57 : vector<8x64xf32> to vector<1x8x64xf32>
      tpu.vector_store %arg8[%c0_22, %c0_23, %c0_24], %60 {strides = array<i32>} : memref<1x8x64xf32, #tpu.memory_space<vmem>>, vector<1x8x64xf32>,
    } else {
    }
    return
  }
  func.func @transform_0(%arg0: i32, %arg1: i32) -> (i32, i32) {
    %c0_i32 = arith.constant 0 : i32
    return %arg0, %arg1 : i32, i32
  }
  func.func @transform_1(%arg0: i32, %arg1: i32) -> (i32, i32) {
    %c0_i32 = arith.constant 0 : i32
    %c0_i32_0 = arith.constant 0 : i32
    return %c0_i32, %arg1 : i32, i32
  }
  func.func @transform_2(%arg0: i32, %arg1: i32) -> (i32, i32) {
    %c0_i32 = arith.constant 0 : i32
    %c0_i32_0 = arith.constant 0 : i32
    return %c0_i32, %arg1 : i32, i32
  }
  func.func @transform_3(%arg0: i32, %arg1: i32) -> (i32, i32) {
    %c0_i32 = arith.constant 0 : i32
    %c0_i32_0 = arith.constant 0 : i32
    return %arg1, %c0_i32 : i32, i32
  }
  func.func @transform_4(%arg0: i32, %arg1: i32) -> (i32, i32) {
    %c0_i32 = arith.constant 0 : i32
    %c0_i32_0 = arith.constant 0 : i32
    return %arg0, %c0_i32 : i32, i32
  }
  func.func @transform_5(%arg0: i32, %arg1: i32) -> (i32, i32, i32) {
    %c0_i32 = arith.constant 0 : i32
    %c0_i32_0 = arith.constant 0 : i32
    %c0_i32_1 = arith.constant 0 : i32
    return %arg0, %c0_i32, %c0_i32_0 : i32, i32, i32
  }
  func.func @transform_6(%arg0: i32, %arg1: i32) -> (i32, i32, i32) {
    %c0_i32 = arith.constant 0 : i32
    %c0_i32_0 = arith.constant 0 : i32
    %c0_i32_1 = arith.constant 0 : i32
    return %arg0, %c0_i32, %c0_i32_0 : i32, i32, i32
  }
}

module attributes {stable_mosaic.version = 11 : i64} {
  func.func @kernel(%arg0: i32, %arg1: i32, %arg2: memref<64x64xbf16, #tpu.memory_space<vmem>>, %arg3: memref<1x64xf32, #tpu.memory_space<vmem>>, %arg4: memref<1x64xf32, #tpu.memory_space<vmem>>, %arg5: memref<64x64xbf16, #tpu.memory_space<vmem>>, %arg6: memref<64x64xf32, #tpu.memory_space<vmem>>, %arg7: memref<64x64xf32, #tpu.memory_space<vmem>>, %arg8: memref<64x64xf32, #tpu.memory_space<vmem>>) attributes {dimension_semantics = [#tpu.dimension_semantics<parallel>, #tpu.dimension_semantics<arbitrary>], iteration_bounds = array<i64: 2, 1>, scalar_prefetch = 0 : i64, scratch_operands = 1 : i64, tpu.core_type = #tpu.core_type<tc>, window_params = [{transform_indices = @transform_0, window_bounds = array<i64: 64, 64>}, {transform_indices = @transform_1, window_bounds = array<i64: 1, 64>}, {transform_indices = @transform_2, window_bounds = array<i64: 1, 64>}, {transform_indices = @transform_3, window_bounds = array<i64: 64, 64>}, {transform_indices = @transform_4, window_bounds = array<i64: 64, 64>}, {transform_indices = @transform_5, window_bounds = array<i64: 64, 64>}]} {
    %c0_i32 = arith.constant 0 : i32
    %0 = arith.cmpi eq, %arg1, %c0_i32 : i32
    %1 = arith.extui %0 : i1 to i32
    %c0_i32_0 = arith.constant 0 : i32
    %2 = arith.cmpi ne, %1, %c0_i32_0 : i32
    scf.if %2 {
      %cst_14 = arith.constant 0.000000e+00 : f32
      %20 = vector.broadcast %cst_14 : f32 to vector<64x64xf32>
      %c0_15 = arith.constant 0 : index
      %c0_16 = arith.constant 0 : index
      %21 = vector.load %arg8[%c0_15, %c0_16] : memref<64x64xf32, #tpu.memory_space<vmem>>, vector<64x64xf32>
      tpu.vector_store %arg8[%c0_15, %c0_16], %20 {strides = array<i32>} : memref<64x64xf32, #tpu.memory_space<vmem>>, vector<64x64xf32>,
    } else {
    }
    %c0 = arith.constant 0 : index
    %c0_1 = arith.constant 0 : index
    %3 = vector.load %arg2[%c0, %c0_1] : memref<64x64xbf16, #tpu.memory_space<vmem>>, vector<64x64xbf16>
    %4 = arith.extf %3 : vector<64x64xbf16> to vector<64x64xf32>
    %c0_2 = arith.constant 0 : index
    %c0_3 = arith.constant 0 : index
    %5 = vector.load %arg3[%c0_2, %c0_3] : memref<1x64xf32, #tpu.memory_space<vmem>>, vector<1x64xf32>
    %6 = vector.broadcast %5 : vector<1x64xf32> to vector<64x64xf32>
    %7 = arith.mulf %4, %6 : vector<64x64xf32>
    %c0_4 = arith.constant 0 : index
    %c0_5 = arith.constant 0 : index
    %8 = vector.load %arg4[%c0_4, %c0_5] : memref<1x64xf32, #tpu.memory_space<vmem>>, vector<1x64xf32>
    %9 = vector.broadcast %8 : vector<1x64xf32> to vector<64x64xf32>
    %10 = arith.addf %7, %9 : vector<64x64xf32>
    %c0_6 = arith.constant 0 : index
    %c0_7 = arith.constant 0 : index
    %11 = vector.load %arg8[%c0_6, %c0_7] : memref<64x64xf32, #tpu.memory_space<vmem>>, vector<64x64xf32>
    %12 = arith.truncf %10 : vector<64x64xf32> to vector<64x64xbf16>
    %c0_8 = arith.constant 0 : index
    %c0_9 = arith.constant 0 : index
    %13 = vector.load %arg5[%c0_8, %c0_9] : memref<64x64xbf16, #tpu.memory_space<vmem>>, vector<64x64xbf16>
    %cst = arith.constant dense<0.000000e+00> : vector<64x64xf32>
    %14 = tpu.matmul %12, %13, %cst {dimension_numbers = #tpu.dot_dimension_numbers<[1], [0], [0], [1], [0, 0, 1, 1], [], []>} : vector<64x64xbf16>, vector<64x64xbf16>, vector<64x64xf32> -> vector<64x64xf32>
    %15 = arith.addf %11, %14 : vector<64x64xf32>
    %c0_10 = arith.constant 0 : index
    %c0_11 = arith.constant 0 : index
    %16 = vector.load %arg8[%c0_10, %c0_11] : memref<64x64xf32, #tpu.memory_space<vmem>>, vector<64x64xf32>
    tpu.vector_store %arg8[%c0_10, %c0_11], %15 {strides = array<i32>} : memref<64x64xf32, #tpu.memory_space<vmem>>, vector<64x64xf32>,
    %c0_i32_12 = arith.constant 0 : i32
    %17 = arith.cmpi eq, %arg1, %c0_i32_12 : i32
    %18 = arith.extui %17 : i1 to i32
    %c0_i32_13 = arith.constant 0 : i32
    %19 = arith.cmpi ne, %18, %c0_i32_13 : i32
    scf.if %19 {
      %c0_14 = arith.constant 0 : index
      %c0_15 = arith.constant 0 : index
      %20 = vector.load %arg8[%c0_14, %c0_15] : memref<64x64xf32, #tpu.memory_space<vmem>>, vector<64x64xf32>
      %c0_16 = arith.constant 0 : index
      %c0_17 = arith.constant 0 : index
      %21 = vector.load %arg6[%c0_16, %c0_17] : memref<64x64xf32, #tpu.memory_space<vmem>>, vector<64x64xf32>
      %22 = arith.addf %20, %21 : vector<64x64xf32>
      %cst_18 = arith.constant 0.000000e+00 : f32
      %23 = vector.broadcast %cst_18 : f32 to vector<64x64xf32>
      %24 = arith.maximumf %22, %23 : vector<64x64xf32>
      %c0_19 = arith.constant 0 : index
      %c0_20 = arith.constant 0 : index
      %25 = vector.load %arg7[%c0_19, %c0_20] : memref<64x64xf32, #tpu.memory_space<vmem>>, vector<64x64xf32>
      tpu.vector_store %arg7[%c0_19, %c0_20], %24 {strides = array<i32>} : memref<64x64xf32, #tpu.memory_space<vmem>>, vector<64x64xf32>,
    } else {
    }
    return
  }
  func.func @transform_0(%arg0: i32, %arg1: i32) -> (i32, i32) {
    %c0_i32 = arith.constant 0 : i32
    return %arg0, %arg1 : i32, i32
  }
  func.func @transform_1(%arg0: i32, %arg1: i32) -> (i32, i32) {
    %c0_i32 = arith.constant 0 : i32
    %c0_i32_0 = arith.constant 0 : i32
    return %c0_i32, %arg1 : i32, i32
  }
  func.func @transform_2(%arg0: i32, %arg1: i32) -> (i32, i32) {
    %c0_i32 = arith.constant 0 : i32
    %c0_i32_0 = arith.constant 0 : i32
    return %c0_i32, %arg1 : i32, i32
  }
  func.func @transform_3(%arg0: i32, %arg1: i32) -> (i32, i32) {
    %c0_i32 = arith.constant 0 : i32
    %c0_i32_0 = arith.constant 0 : i32
    return %arg1, %c0_i32 : i32, i32
  }
  func.func @transform_4(%arg0: i32, %arg1: i32) -> (i32, i32) {
    %c0_i32 = arith.constant 0 : i32
    %c0_i32_0 = arith.constant 0 : i32
    return %arg0, %c0_i32 : i32, i32
  }
  func.func @transform_5(%arg0: i32, %arg1: i32) -> (i32, i32) {
    %c0_i32 = arith.constant 0 : i32
    %c0_i32_0 = arith.constant 0 : i32
    return %arg0, %c0_i32 : i32, i32
  }
}

module attributes {stable_mosaic.version = 11 : i64} {
  func.func @kernel(%arg0: i32, %arg1: memref<64x64xbf16, #tpu.memory_space<vmem>>, %arg2: memref<1x64xf32, #tpu.memory_space<vmem>>, %arg3: memref<1x64xf32, #tpu.memory_space<vmem>>, %arg4: memref<576x64xbf16, #tpu.memory_space<vmem>>, %arg5: memref<64x64xbf16, #tpu.memory_space<vmem>>, %arg6: memref<1x8x64xf32, #tpu.memory_space<vmem>>, %arg7: memref<1x8x64xf32, #tpu.memory_space<vmem>>, %arg8: memref<10x10x64xf32, #tpu.memory_space<vmem>>, %arg9: memref<64x64xf32, #tpu.memory_space<vmem>>) attributes {dimension_semantics = [#tpu.dimension_semantics<parallel>], iteration_bounds = array<i64: 2>, scalar_prefetch = 0 : i64, scratch_operands = 2 : i64, tpu.core_type = #tpu.core_type<tc>, window_params = [{transform_indices = @transform_0, window_bounds = array<i64: 64, 64>}, {pipeline_mode = #tpu.pipeline_mode<synchronous>, transform_indices = @transform_1, window_bounds = array<i64: 1, 64>}, {pipeline_mode = #tpu.pipeline_mode<synchronous>, transform_indices = @transform_2, window_bounds = array<i64: 1, 64>}, {pipeline_mode = #tpu.pipeline_mode<synchronous>, transform_indices = @transform_3, window_bounds = array<i64: 576, 64>}, {transform_indices = @transform_4, window_bounds = array<i64: 64, 64>}, {transform_indices = @transform_5, window_bounds = array<i64: 1, 8, 64>}, {transform_indices = @transform_6, window_bounds = array<i64: 1, 8, 64>}]} {
    %cst = arith.constant 0.000000e+00 : f32
    %0 = vector.broadcast %cst : f32 to vector<10x10x64xf32>
    %c0 = arith.constant 0 : index
    %c0_0 = arith.constant 0 : index
    %c0_1 = arith.constant 0 : index
    %1 = vector.load %arg8[%c0, %c0_0, %c0_1] : memref<10x10x64xf32, #tpu.memory_space<vmem>>, vector<10x10x64xf32>
    tpu.vector_store %arg8[%c0, %c0_0, %c0_1], %0 {strides = array<i32>} : memref<10x10x64xf32, #tpu.memory_space<vmem>>, vector<10x10x64xf32>,
    %c0_2 = arith.constant 0 : index
    %c0_3 = arith.constant 0 : index
    %2 = vector.load %arg2[%c0_2, %c0_3] : memref<1x64xf32, #tpu.memory_space<vmem>>, vector<1x64xf32>
    %c0_4 = arith.constant 0 : index
    %c0_5 = arith.constant 0 : index
    %3 = vector.load %arg3[%c0_4, %c0_5] : memref<1x64xf32, #tpu.memory_space<vmem>>, vector<1x64xf32>
    %c0_6 = arith.constant 0 : index
    %c0_7 = arith.constant 0 : index
    %4 = vector.load %arg1[%c0_6, %c0_7] : memref<64x64xbf16, #tpu.memory_space<vmem>>, vector<8x64xbf16>
    %5 = arith.extf %4 : vector<8x64xbf16> to vector<8x64xf32>
    %6 = vector.broadcast %2 : vector<1x64xf32> to vector<8x64xf32>
    %7 = arith.mulf %5, %6 : vector<8x64xf32>
    %8 = vector.broadcast %3 : vector<1x64xf32> to vector<8x64xf32>
    %9 = arith.addf %7, %8 : vector<8x64xf32>
    %c1 = arith.constant 1 : index
    %c1_8 = arith.constant 1 : index
    %c0_9 = arith.constant 0 : index
    %10 = vector.load %arg8[%c1, %c1_8, %c0_9] : memref<10x10x64xf32, #tpu.memory_space<vmem>>, vector<1x8x64xf32>
    %11 = vector.shape_cast %10 : vector<1x8x64xf32> to vector<8x64xf32>
    %12 = vector.shape_cast %9 : vector<8x64xf32> to vector<1x8x64xf32>
    tpu.vector_store %arg8[%c1, %c1_8, %c0_9], %12 {strides = array<i32>} : memref<10x10x64xf32, #tpu.memory_space<vmem>>, vector<1x8x64xf32>,
    %c8 = arith.constant 8 : index
    %c0_10 = arith.constant 0 : index
    %13 = vector.load %arg1[%c8, %c0_10] : memref<64x64xbf16, #tpu.memory_space<vmem>>, vector<8x64xbf16>
    %14 = arith.extf %13 : vector<8x64xbf16> to vector<8x64xf32>
    %15 = vector.broadcast %2 : vector<1x64xf32> to vector<8x64xf32>
    %16 = arith.mulf %14, %15 : vector<8x64xf32>
    %17 = vector.broadcast %3 : vector<1x64xf32> to vector<8x64xf32>
    %18 = arith.addf %16, %17 : vector<8x64xf32>
    %c2 = arith.constant 2 : index
    %c1_11 = arith.constant 1 : index
    %c0_12 = arith.constant 0 : index
    %19 = vector.load %arg8[%c2, %c1_11, %c0_12] : memref<10x10x64xf32, #tpu.memory_space<vmem>>, vector<1x8x64xf32>
    %20 = vector.shape_cast %19 : vector<1x8x64xf32> to vector<8x64xf32>
    %21 = vector.shape_cast %18 : vector<8x64xf32> to vector<1x8x64xf32>
    tpu.vector_store %arg8[%c2, %c1_11, %c0_12], %21 {strides = array<i32>} : memref<10x10x64xf32, #tpu.memory_space<vmem>>, vector<1x8x64xf32>,
    %c16 = arith.constant 16 : index
    %c0_13 = arith.constant 0 : index
    %22 = vector.load %arg1[%c16, %c0_13] : memref<64x64xbf16, #tpu.memory_space<vmem>>, vector<8x64xbf16>
    %23 = arith.extf %22 : vector<8x64xbf16> to vector<8x64xf32>
    %24 = vector.broadcast %2 : vector<1x64xf32> to vector<8x64xf32>
    %25 = arith.mulf %23, %24 : vector<8x64xf32>
    %26 = vector.broadcast %3 : vector<1x64xf32> to vector<8x64xf32>
    %27 = arith.addf %25, %26 : vector<8x64xf32>
    %c3 = arith.constant 3 : index
    %c1_14 = arith.constant 1 : index
    %c0_15 = arith.constant 0 : index
    %28 = vector.load %arg8[%c3, %c1_14, %c0_15] : memref<10x10x64xf32, #tpu.memory_space<vmem>>, vector<1x8x64xf32>
    %29 = vector.shape_cast %28 : vector<1x8x64xf32> to vector<8x64xf32>
    %30 = vector.shape_cast %27 : vector<8x64xf32> to vector<1x8x64xf32>
    tpu.vector_store %arg8[%c3, %c1_14, %c0_15], %30 {strides = array<i32>} : memref<10x10x64xf32, #tpu.memory_space<vmem>>, vector<1x8x64xf32>,
    %c24 = arith.constant 24 : index
    %c0_16 = arith.constant 0 : index
    %31 = vector.load %arg1[%c24, %c0_16] : memref<64x64xbf16, #tpu.memory_space<vmem>>, vector<8x64xbf16>
    %32 = arith.extf %31 : vector<8x64xbf16> to vector<8x64xf32>
    %33 = vector.broadcast %2 : vector<1x64xf32> to vector<8x64xf32>
    %34 = arith.mulf %32, %33 : vector<8x64xf32>
    %35 = vector.broadcast %3 : vector<1x64xf32> to vector<8x64xf32>
    %36 = arith.addf %34, %35 : vector<8x64xf32>
    %c4 = arith.constant 4 : index
    %c1_17 = arith.constant 1 : index
    %c0_18 = arith.constant 0 : index
    %37 = vector.load %arg8[%c4, %c1_17, %c0_18] : memref<10x10x64xf32, #tpu.memory_space<vmem>>, vector<1x8x64xf32>
    %38 = vector.shape_cast %37 : vector<1x8x64xf32> to vector<8x64xf32>
    %39 = vector.shape_cast %36 : vector<8x64xf32> to vector<1x8x64xf32>
    tpu.vector_store %arg8[%c4, %c1_17, %c0_18], %39 {strides = array<i32>} : memref<10x10x64xf32, #tpu.memory_space<vmem>>, vector<1x8x64xf32>,
    %c32 = arith.constant 32 : index
    %c0_19 = arith.constant 0 : index
    %40 = vector.load %arg1[%c32, %c0_19] : memref<64x64xbf16, #tpu.memory_space<vmem>>, vector<8x64xbf16>
    %41 = arith.extf %40 : vector<8x64xbf16> to vector<8x64xf32>
    %42 = vector.broadcast %2 : vector<1x64xf32> to vector<8x64xf32>
    %43 = arith.mulf %41, %42 : vector<8x64xf32>
    %44 = vector.broadcast %3 : vector<1x64xf32> to vector<8x64xf32>
    %45 = arith.addf %43, %44 : vector<8x64xf32>
    %c5 = arith.constant 5 : index
    %c1_20 = arith.constant 1 : index
    %c0_21 = arith.constant 0 : index
    %46 = vector.load %arg8[%c5, %c1_20, %c0_21] : memref<10x10x64xf32, #tpu.memory_space<vmem>>, vector<1x8x64xf32>
    %47 = vector.shape_cast %46 : vector<1x8x64xf32> to vector<8x64xf32>
    %48 = vector.shape_cast %45 : vector<8x64xf32> to vector<1x8x64xf32>
    tpu.vector_store %arg8[%c5, %c1_20, %c0_21], %48 {strides = array<i32>} : memref<10x10x64xf32, #tpu.memory_space<vmem>>, vector<1x8x64xf32>,
    %c40 = arith.constant 40 : index
    %c0_22 = arith.constant 0 : index
    %49 = vector.load %arg1[%c40, %c0_22] : memref<64x64xbf16, #tpu.memory_space<vmem>>, vector<8x64xbf16>
    %50 = arith.extf %49 : vector<8x64xbf16> to vector<8x64xf32>
    %51 = vector.broadcast %2 : vector<1x64xf32> to vector<8x64xf32>
    %52 = arith.mulf %50, %51 : vector<8x64xf32>
    %53 = vector.broadcast %3 : vector<1x64xf32> to vector<8x64xf32>
    %54 = arith.addf %52, %53 : vector<8x64xf32>
    %c6 = arith.constant 6 : index
    %c1_23 = arith.constant 1 : index
    %c0_24 = arith.constant 0 : index
    %55 = vector.load %arg8[%c6, %c1_23, %c0_24] : memref<10x10x64xf32, #tpu.memory_space<vmem>>, vector<1x8x64xf32>
    %56 = vector.shape_cast %55 : vector<1x8x64xf32> to vector<8x64xf32>
    %57 = vector.shape_cast %54 : vector<8x64xf32> to vector<1x8x64xf32>
    tpu.vector_store %arg8[%c6, %c1_23, %c0_24], %57 {strides = array<i32>} : memref<10x10x64xf32, #tpu.memory_space<vmem>>, vector<1x8x64xf32>,
    %c48 = arith.constant 48 : index
    %c0_25 = arith.constant 0 : index
    %58 = vector.load %arg1[%c48, %c0_25] : memref<64x64xbf16, #tpu.memory_space<vmem>>, vector<8x64xbf16>
    %59 = arith.extf %58 : vector<8x64xbf16> to vector<8x64xf32>
    %60 = vector.broadcast %2 : vector<1x64xf32> to vector<8x64xf32>
    %61 = arith.mulf %59, %60 : vector<8x64xf32>
    %62 = vector.broadcast %3 : vector<1x64xf32> to vector<8x64xf32>
    %63 = arith.addf %61, %62 : vector<8x64xf32>
    %c7 = arith.constant 7 : index
    %c1_26 = arith.constant 1 : index
    %c0_27 = arith.constant 0 : index
    %64 = vector.load %arg8[%c7, %c1_26, %c0_27] : memref<10x10x64xf32, #tpu.memory_space<vmem>>, vector<1x8x64xf32>
    %65 = vector.shape_cast %64 : vector<1x8x64xf32> to vector<8x64xf32>
    %66 = vector.shape_cast %63 : vector<8x64xf32> to vector<1x8x64xf32>
    tpu.vector_store %arg8[%c7, %c1_26, %c0_27], %66 {strides = array<i32>} : memref<10x10x64xf32, #tpu.memory_space<vmem>>, vector<1x8x64xf32>,
    %c56 = arith.constant 56 : index
    %c0_28 = arith.constant 0 : index
    %67 = vector.load %arg1[%c56, %c0_28] : memref<64x64xbf16, #tpu.memory_space<vmem>>, vector<8x64xbf16>
    %68 = arith.extf %67 : vector<8x64xbf16> to vector<8x64xf32>
    %69 = vector.broadcast %2 : vector<1x64xf32> to vector<8x64xf32>
    %70 = arith.mulf %68, %69 : vector<8x64xf32>
    %71 = vector.broadcast %3 : vector<1x64xf32> to vector<8x64xf32>
    %72 = arith.addf %70, %71 : vector<8x64xf32>
    %c8_29 = arith.constant 8 : index
    %c1_30 = arith.constant 1 : index
    %c0_31 = arith.constant 0 : index
    %73 = vector.load %arg8[%c8_29, %c1_30, %c0_31] : memref<10x10x64xf32, #tpu.memory_space<vmem>>, vector<1x8x64xf32>
    %74 = vector.shape_cast %73 : vector<1x8x64xf32> to vector<8x64xf32>
    %75 = vector.shape_cast %72 : vector<8x64xf32> to vector<1x8x64xf32>
    tpu.vector_store %arg8[%c8_29, %c1_30, %c0_31], %75 {strides = array<i32>} : memref<10x10x64xf32, #tpu.memory_space<vmem>>, vector<1x8x64xf32>,
    %cst_32 = arith.constant 0.000000e+00 : f32
    %76 = vector.broadcast %cst_32 : f32 to vector<64x64xf32>
    %c0_33 = arith.constant 0 : index
    %c0_34 = arith.constant 0 : index
    %77 = vector.load %arg9[%c0_33, %c0_34] : memref<64x64xf32, #tpu.memory_space<vmem>>, vector<64x64xf32>
    tpu.vector_store %arg9[%c0_33, %c0_34], %76 {strides = array<i32>} : memref<64x64xf32, #tpu.memory_space<vmem>>, vector<64x64xf32>,
    %c0_35 = arith.constant 0 : index
    %c0_36 = arith.constant 0 : index
    %78 = vector.load %arg4[%c0_35, %c0_36] : memref<576x64xbf16, #tpu.memory_space<vmem>>, vector<64x64xbf16>
    %c0_37 = arith.constant 0 : index
    %c0_38 = arith.constant 0 : index
    %c0_39 = arith.constant 0 : index
    %79 = vector.load %arg8[%c0_37, %c0_38, %c0_39] : memref<10x10x64xf32, #tpu.memory_space<vmem>>, vector<1x8x64xf32>
    %80 = vector.shape_cast %79 : vector<1x8x64xf32> to vector<8x64xf32>
    %81 = arith.truncf %80 : vector<8x64xf32> to vector<8x64xbf16>
    %c0_40 = arith.constant 0 : index
    %c0_41 = arith.constant 0 : index
    %82 = vector.load %arg9[%c0_40, %c0_41] : memref<64x64xf32, #tpu.memory_space<vmem>>, vector<8x64xf32>
    %cst_42 = arith.constant dense<0.000000e+00> : vector<8x64xf32>
    %83 = tpu.matmul %81, %78, %cst_42 {dimension_numbers = #tpu.dot_dimension_numbers<[1], [0], [0], [1], [0, 0, 1, 1], [], []>} : vector<8x64xbf16>, vector<64x64xbf16>, vector<8x64xf32> -> vector<8x64xf32>
    %84 = arith.addf %82, %83 : vector<8x64xf32>
    %c0_43 = arith.constant 0 : index
    %c0_44 = arith.constant 0 : index
    %85 = vector.load %arg9[%c0_43, %c0_44] : memref<64x64xf32, #tpu.memory_space<vmem>>, vector<8x64xf32>
    tpu.vector_store %arg9[%c0_43, %c0_44], %84 {strides = array<i32>} : memref<64x64xf32, #tpu.memory_space<vmem>>, vector<8x64xf32>,
    %c1_45 = arith.constant 1 : index
    %c0_46 = arith.constant 0 : index
    %c0_47 = arith.constant 0 : index
    %86 = vector.load %arg8[%c1_45, %c0_46, %c0_47] : memref<10x10x64xf32, #tpu.memory_space<vmem>>, vector<1x8x64xf32>
    %87 = vector.shape_cast %86 : vector<1x8x64xf32> to vector<8x64xf32>
    %88 = arith.truncf %87 : vector<8x64xf32> to vector<8x64xbf16>
    %c8_48 = arith.constant 8 : index
    %c0_49 = arith.constant 0 : index
    %89 = vector.load %arg9[%c8_48, %c0_49] : memref<64x64xf32, #tpu.memory_space<vmem>>, vector<8x64xf32>
    %cst_50 = arith.constant dense<0.000000e+00> : vector<8x64xf32>
    %90 = tpu.matmul %88, %78, %cst_50 {dimension_numbers = #tpu.dot_dimension_numbers<[1], [0], [0], [1], [0, 0, 1, 1], [], []>} : vector<8x64xbf16>, vector<64x64xbf16>, vector<8x64xf32> -> vector<8x64xf32>
    %91 = arith.addf %89, %90 : vector<8x64xf32>
    %c8_51 = arith.constant 8 : index
    %c0_52 = arith.constant 0 : index
    %92 = vector.load %arg9[%c8_51, %c0_52] : memref<64x64xf32, #tpu.memory_space<vmem>>, vector<8x64xf32>
    tpu.vector_store %arg9[%c8_51, %c0_52], %91 {strides = array<i32>} : memref<64x64xf32, #tpu.memory_space<vmem>>, vector<8x64xf32>,
    %c2_53 = arith.constant 2 : index
    %c0_54 = arith.constant 0 : index
    %c0_55 = arith.constant 0 : index
    %93 = vector.load %arg8[%c2_53, %c0_54, %c0_55] : memref<10x10x64xf32, #tpu.memory_space<vmem>>, vector<1x8x64xf32>
    %94 = vector.shape_cast %93 : vector<1x8x64xf32> to vector<8x64xf32>
    %95 = arith.truncf %94 : vector<8x64xf32> to vector<8x64xbf16>
    %c16_56 = arith.constant 16 : index
    %c0_57 = arith.constant 0 : index
    %96 = vector.load %arg9[%c16_56, %c0_57] : memref<64x64xf32, #tpu.memory_space<vmem>>, vector<8x64xf32>
    %cst_58 = arith.constant dense<0.000000e+00> : vector<8x64xf32>
    %97 = tpu.matmul %95, %78, %cst_58 {dimension_numbers = #tpu.dot_dimension_numbers<[1], [0], [0], [1], [0, 0, 1, 1], [], []>} : vector<8x64xbf16>, vector<64x64xbf16>, vector<8x64xf32> -> vector<8x64xf32>
    %98 = arith.addf %96, %97 : vector<8x64xf32>
    %c16_59 = arith.constant 16 : index
    %c0_60 = arith.constant 0 : index
    %99 = vector.load %arg9[%c16_59, %c0_60] : memref<64x64xf32, #tpu.memory_space<vmem>>, vector<8x64xf32>
    tpu.vector_store %arg9[%c16_59, %c0_60], %98 {strides = array<i32>} : memref<64x64xf32, #tpu.memory_space<vmem>>, vector<8x64xf32>,
    %c3_61 = arith.constant 3 : index
    %c0_62 = arith.constant 0 : index
    %c0_63 = arith.constant 0 : index
    %100 = vector.load %arg8[%c3_61, %c0_62, %c0_63] : memref<10x10x64xf32, #tpu.memory_space<vmem>>, vector<1x8x64xf32>
    %101 = vector.shape_cast %100 : vector<1x8x64xf32> to vector<8x64xf32>
    %102 = arith.truncf %101 : vector<8x64xf32> to vector<8x64xbf16>
    %c24_64 = arith.constant 24 : index
    %c0_65 = arith.constant 0 : index
    %103 = vector.load %arg9[%c24_64, %c0_65] : memref<64x64xf32, #tpu.memory_space<vmem>>, vector<8x64xf32>
    %cst_66 = arith.constant dense<0.000000e+00> : vector<8x64xf32>
    %104 = tpu.matmul %102, %78, %cst_66 {dimension_numbers = #tpu.dot_dimension_numbers<[1], [0], [0], [1], [0, 0, 1, 1], [], []>} : vector<8x64xbf16>, vector<64x64xbf16>, vector<8x64xf32> -> vector<8x64xf32>
    %105 = arith.addf %103, %104 : vector<8x64xf32>
    %c24_67 = arith.constant 24 : index
    %c0_68 = arith.constant 0 : index
    %106 = vector.load %arg9[%c24_67, %c0_68] : memref<64x64xf32, #tpu.memory_space<vmem>>, vector<8x64xf32>
    tpu.vector_store %arg9[%c24_67, %c0_68], %105 {strides = array<i32>} : memref<64x64xf32, #tpu.memory_space<vmem>>, vector<8x64xf32>,
    %c4_69 = arith.constant 4 : index
    %c0_70 = arith.constant 0 : index
    %c0_71 = arith.constant 0 : index
    %107 = vector.load %arg8[%c4_69, %c0_70, %c0_71] : memref<10x10x64xf32, #tpu.memory_space<vmem>>, vector<1x8x64xf32>
    %108 = vector.shape_cast %107 : vector<1x8x64xf32> to vector<8x64xf32>
    %109 = arith.truncf %108 : vector<8x64xf32> to vector<8x64xbf16>
    %c32_72 = arith.constant 32 : index
    %c0_73 = arith.constant 0 : index
    %110 = vector.load %arg9[%c32_72, %c0_73] : memref<64x64xf32, #tpu.memory_space<vmem>>, vector<8x64xf32>
    %cst_74 = arith.constant dense<0.000000e+00> : vector<8x64xf32>
    %111 = tpu.matmul %109, %78, %cst_74 {dimension_numbers = #tpu.dot_dimension_numbers<[1], [0], [0], [1], [0, 0, 1, 1], [], []>} : vector<8x64xbf16>, vector<64x64xbf16>, vector<8x64xf32> -> vector<8x64xf32>
    %112 = arith.addf %110, %111 : vector<8x64xf32>
    %c32_75 = arith.constant 32 : index
    %c0_76 = arith.constant 0 : index
    %113 = vector.load %arg9[%c32_75, %c0_76] : memref<64x64xf32, #tpu.memory_space<vmem>>, vector<8x64xf32>
    tpu.vector_store %arg9[%c32_75, %c0_76], %112 {strides = array<i32>} : memref<64x64xf32, #tpu.memory_space<vmem>>, vector<8x64xf32>,
    %c5_77 = arith.constant 5 : index
    %c0_78 = arith.constant 0 : index
    %c0_79 = arith.constant 0 : index
    %114 = vector.load %arg8[%c5_77, %c0_78, %c0_79] : memref<10x10x64xf32, #tpu.memory_space<vmem>>, vector<1x8x64xf32>
    %115 = vector.shape_cast %114 : vector<1x8x64xf32> to vector<8x64xf32>
    %116 = arith.truncf %115 : vector<8x64xf32> to vector<8x64xbf16>
    %c40_80 = arith.constant 40 : index
    %c0_81 = arith.constant 0 : index
    %117 = vector.load %arg9[%c40_80, %c0_81] : memref<64x64xf32, #tpu.memory_space<vmem>>, vector<8x64xf32>
    %cst_82 = arith.constant dense<0.000000e+00> : vector<8x64xf32>
    %118 = tpu.matmul %116, %78, %cst_82 {dimension_numbers = #tpu.dot_dimension_numbers<[1], [0], [0], [1], [0, 0, 1, 1], [], []>} : vector<8x64xbf16>, vector<64x64xbf16>, vector<8x64xf32> -> vector<8x64xf32>
    %119 = arith.addf %117, %118 : vector<8x64xf32>
    %c40_83 = arith.constant 40 : index
    %c0_84 = arith.constant 0 : index
    %120 = vector.load %arg9[%c40_83, %c0_84] : memref<64x64xf32, #tpu.memory_space<vmem>>, vector<8x64xf32>
    tpu.vector_store %arg9[%c40_83, %c0_84], %119 {strides = array<i32>} : memref<64x64xf32, #tpu.memory_space<vmem>>, vector<8x64xf32>,
    %c6_85 = arith.constant 6 : index
    %c0_86 = arith.constant 0 : index
    %c0_87 = arith.constant 0 : index
    %121 = vector.load %arg8[%c6_85, %c0_86, %c0_87] : memref<10x10x64xf32, #tpu.memory_space<vmem>>, vector<1x8x64xf32>
    %122 = vector.shape_cast %121 : vector<1x8x64xf32> to vector<8x64xf32>
    %123 = arith.truncf %122 : vector<8x64xf32> to vector<8x64xbf16>
    %c48_88 = arith.constant 48 : index
    %c0_89 = arith.constant 0 : index
    %124 = vector.load %arg9[%c48_88, %c0_89] : memref<64x64xf32, #tpu.memory_space<vmem>>, vector<8x64xf32>
    %cst_90 = arith.constant dense<0.000000e+00> : vector<8x64xf32>
    %125 = tpu.matmul %123, %78, %cst_90 {dimension_numbers = #tpu.dot_dimension_numbers<[1], [0], [0], [1], [0, 0, 1, 1], [], []>} : vector<8x64xbf16>, vector<64x64xbf16>, vector<8x64xf32> -> vector<8x64xf32>
    %126 = arith.addf %124, %125 : vector<8x64xf32>
    %c48_91 = arith.constant 48 : index
    %c0_92 = arith.constant 0 : index
    %127 = vector.load %arg9[%c48_91, %c0_92] : memref<64x64xf32, #tpu.memory_space<vmem>>, vector<8x64xf32>
    tpu.vector_store %arg9[%c48_91, %c0_92], %126 {strides = array<i32>} : memref<64x64xf32, #tpu.memory_space<vmem>>, vector<8x64xf32>,
    %c7_93 = arith.constant 7 : index
    %c0_94 = arith.constant 0 : index
    %c0_95 = arith.constant 0 : index
    %128 = vector.load %arg8[%c7_93, %c0_94, %c0_95] : memref<10x10x64xf32, #tpu.memory_space<vmem>>, vector<1x8x64xf32>
    %129 = vector.shape_cast %128 : vector<1x8x64xf32> to vector<8x64xf32>
    %130 = arith.truncf %129 : vector<8x64xf32> to vector<8x64xbf16>
    %c56_96 = arith.constant 56 : index
    %c0_97 = arith.constant 0 : index
    %131 = vector.load %arg9[%c56_96, %c0_97] : memref<64x64xf32, #tpu.memory_space<vmem>>, vector<8x64xf32>
    %cst_98 = arith.constant dense<0.000000e+00> : vector<8x64xf32>
    %132 = tpu.matmul %130, %78, %cst_98 {dimension_numbers = #tpu.dot_dimension_numbers<[1], [0], [0], [1], [0, 0, 1, 1], [], []>} : vector<8x64xbf16>, vector<64x64xbf16>, vector<8x64xf32> -> vector<8x64xf32>
    %133 = arith.addf %131, %132 : vector<8x64xf32>
    %c56_99 = arith.constant 56 : index
    %c0_100 = arith.constant 0 : index
    %134 = vector.load %arg9[%c56_99, %c0_100] : memref<64x64xf32, #tpu.memory_space<vmem>>, vector<8x64xf32>
    tpu.vector_store %arg9[%c56_99, %c0_100], %133 {strides = array<i32>} : memref<64x64xf32, #tpu.memory_space<vmem>>, vector<8x64xf32>,
    %c64 = arith.constant 64 : index
    %c0_101 = arith.constant 0 : index
    %135 = vector.load %arg4[%c64, %c0_101] : memref<576x64xbf16, #tpu.memory_space<vmem>>, vector<64x64xbf16>
    %c0_102 = arith.constant 0 : index
    %c1_103 = arith.constant 1 : index
    %c0_104 = arith.constant 0 : index
    %136 = vector.load %arg8[%c0_102, %c1_103, %c0_104] : memref<10x10x64xf32, #tpu.memory_space<vmem>>, vector<1x8x64xf32>
    %137 = vector.shape_cast %136 : vector<1x8x64xf32> to vector<8x64xf32>
    %138 = arith.truncf %137 : vector<8x64xf32> to vector<8x64xbf16>
    %c0_105 = arith.constant 0 : index
    %c0_106 = arith.constant 0 : index
    %139 = vector.load %arg9[%c0_105, %c0_106] : memref<64x64xf32, #tpu.memory_space<vmem>>, vector<8x64xf32>
    %cst_107 = arith.constant dense<0.000000e+00> : vector<8x64xf32>
    %140 = tpu.matmul %138, %135, %cst_107 {dimension_numbers = #tpu.dot_dimension_numbers<[1], [0], [0], [1], [0, 0, 1, 1], [], []>} : vector<8x64xbf16>, vector<64x64xbf16>, vector<8x64xf32> -> vector<8x64xf32>
    %141 = arith.addf %139, %140 : vector<8x64xf32>
    %c0_108 = arith.constant 0 : index
    %c0_109 = arith.constant 0 : index
    %142 = vector.load %arg9[%c0_108, %c0_109] : memref<64x64xf32, #tpu.memory_space<vmem>>, vector<8x64xf32>
    tpu.vector_store %arg9[%c0_108, %c0_109], %141 {strides = array<i32>} : memref<64x64xf32, #tpu.memory_space<vmem>>, vector<8x64xf32>,
    %c1_110 = arith.constant 1 : index
    %c1_111 = arith.constant 1 : index
    %c0_112 = arith.constant 0 : index
    %143 = vector.load %arg8[%c1_110, %c1_111, %c0_112] : memref<10x10x64xf32, #tpu.memory_space<vmem>>, vector<1x8x64xf32>
    %144 = vector.shape_cast %143 : vector<1x8x64xf32> to vector<8x64xf32>
    %145 = arith.truncf %144 : vector<8x64xf32> to vector<8x64xbf16>
    %c8_113 = arith.constant 8 : index
    %c0_114 = arith.constant 0 : index
    %146 = vector.load %arg9[%c8_113, %c0_114] : memref<64x64xf32, #tpu.memory_space<vmem>>, vector<8x64xf32>
    %cst_115 = arith.constant dense<0.000000e+00> : vector<8x64xf32>
    %147 = tpu.matmul %145, %135, %cst_115 {dimension_numbers = #tpu.dot_dimension_numbers<[1], [0], [0], [1], [0, 0, 1, 1], [], []>} : vector<8x64xbf16>, vector<64x64xbf16>, vector<8x64xf32> -> vector<8x64xf32>
    %148 = arith.addf %146, %147 : vector<8x64xf32>
    %c8_116 = arith.constant 8 : index
    %c0_117 = arith.constant 0 : index
    %149 = vector.load %arg9[%c8_116, %c0_117] : memref<64x64xf32, #tpu.memory_space<vmem>>, vector<8x64xf32>
    tpu.vector_store %arg9[%c8_116, %c0_117], %148 {strides = array<i32>} : memref<64x64xf32, #tpu.memory_space<vmem>>, vector<8x64xf32>,
    %c2_118 = arith.constant 2 : index
    %c1_119 = arith.constant 1 : index
    %c0_120 = arith.constant 0 : index
    %150 = vector.load %arg8[%c2_118, %c1_119, %c0_120] : memref<10x10x64xf32, #tpu.memory_space<vmem>>, vector<1x8x64xf32>
    %151 = vector.shape_cast %150 : vector<1x8x64xf32> to vector<8x64xf32>
    %152 = arith.truncf %151 : vector<8x64xf32> to vector<8x64xbf16>
    %c16_121 = arith.constant 16 : index
    %c0_122 = arith.constant 0 : index
    %153 = vector.load %arg9[%c16_121, %c0_122] : memref<64x64xf32, #tpu.memory_space<vmem>>, vector<8x64xf32>
    %cst_123 = arith.constant dense<0.000000e+00> : vector<8x64xf32>
    %154 = tpu.matmul %152, %135, %cst_123 {dimension_numbers = #tpu.dot_dimension_numbers<[1], [0], [0], [1], [0, 0, 1, 1], [], []>} : vector<8x64xbf16>, vector<64x64xbf16>, vector<8x64xf32> -> vector<8x64xf32>
    %155 = arith.addf %153, %154 : vector<8x64xf32>
    %c16_124 = arith.constant 16 : index
    %c0_125 = arith.constant 0 : index
    %156 = vector.load %arg9[%c16_124, %c0_125] : memref<64x64xf32, #tpu.memory_space<vmem>>, vector<8x64xf32>
    tpu.vector_store %arg9[%c16_124, %c0_125], %155 {strides = array<i32>} : memref<64x64xf32, #tpu.memory_space<vmem>>, vector<8x64xf32>,
    %c3_126 = arith.constant 3 : index
    %c1_127 = arith.constant 1 : index
    %c0_128 = arith.constant 0 : index
    %157 = vector.load %arg8[%c3_126, %c1_127, %c0_128] : memref<10x10x64xf32, #tpu.memory_space<vmem>>, vector<1x8x64xf32>
    %158 = vector.shape_cast %157 : vector<1x8x64xf32> to vector<8x64xf32>
    %159 = arith.truncf %158 : vector<8x64xf32> to vector<8x64xbf16>
    %c24_129 = arith.constant 24 : index
    %c0_130 = arith.constant 0 : index
    %160 = vector.load %arg9[%c24_129, %c0_130] : memref<64x64xf32, #tpu.memory_space<vmem>>, vector<8x64xf32>
    %cst_131 = arith.constant dense<0.000000e+00> : vector<8x64xf32>
    %161 = tpu.matmul %159, %135, %cst_131 {dimension_numbers = #tpu.dot_dimension_numbers<[1], [0], [0], [1], [0, 0, 1, 1], [], []>} : vector<8x64xbf16>, vector<64x64xbf16>, vector<8x64xf32> -> vector<8x64xf32>
    %162 = arith.addf %160, %161 : vector<8x64xf32>
    %c24_132 = arith.constant 24 : index
    %c0_133 = arith.constant 0 : index
    %163 = vector.load %arg9[%c24_132, %c0_133] : memref<64x64xf32, #tpu.memory_space<vmem>>, vector<8x64xf32>
    tpu.vector_store %arg9[%c24_132, %c0_133], %162 {strides = array<i32>} : memref<64x64xf32, #tpu.memory_space<vmem>>, vector<8x64xf32>,
    %c4_134 = arith.constant 4 : index
    %c1_135 = arith.constant 1 : index
    %c0_136 = arith.constant 0 : index
    %164 = vector.load %arg8[%c4_134, %c1_135, %c0_136] : memref<10x10x64xf32, #tpu.memory_space<vmem>>, vector<1x8x64xf32>
    %165 = vector.shape_cast %164 : vector<1x8x64xf32> to vector<8x64xf32>
    %166 = arith.truncf %165 : vector<8x64xf32> to vector<8x64xbf16>
    %c32_137 = arith.constant 32 : index
    %c0_138 = arith.constant 0 : index
    %167 = vector.load %arg9[%c32_137, %c0_138] : memref<64x64xf32, #tpu.memory_space<vmem>>, vector<8x64xf32>
    %cst_139 = arith.constant dense<0.000000e+00> : vector<8x64xf32>
    %168 = tpu.matmul %166, %135, %cst_139 {dimension_numbers = #tpu.dot_dimension_numbers<[1], [0], [0], [1], [0, 0, 1, 1], [], []>} : vector<8x64xbf16>, vector<64x64xbf16>, vector<8x64xf32> -> vector<8x64xf32>
    %169 = arith.addf %167, %168 : vector<8x64xf32>
    %c32_140 = arith.constant 32 : index
    %c0_141 = arith.constant 0 : index
    %170 = vector.load %arg9[%c32_140, %c0_141] : memref<64x64xf32, #tpu.memory_space<vmem>>, vector<8x64xf32>
    tpu.vector_store %arg9[%c32_140, %c0_141], %169 {strides = array<i32>} : memref<64x64xf32, #tpu.memory_space<vmem>>, vector<8x64xf32>,
    %c5_142 = arith.constant 5 : index
    %c1_143 = arith.constant 1 : index
    %c0_144 = arith.constant 0 : index
    %171 = vector.load %arg8[%c5_142, %c1_143, %c0_144] : memref<10x10x64xf32, #tpu.memory_space<vmem>>, vector<1x8x64xf32>
    %172 = vector.shape_cast %171 : vector<1x8x64xf32> to vector<8x64xf32>
    %173 = arith.truncf %172 : vector<8x64xf32> to vector<8x64xbf16>
    %c40_145 = arith.constant 40 : index
    %c0_146 = arith.constant 0 : index
    %174 = vector.load %arg9[%c40_145, %c0_146] : memref<64x64xf32, #tpu.memory_space<vmem>>, vector<8x64xf32>
    %cst_147 = arith.constant dense<0.000000e+00> : vector<8x64xf32>
    %175 = tpu.matmul %173, %135, %cst_147 {dimension_numbers = #tpu.dot_dimension_numbers<[1], [0], [0], [1], [0, 0, 1, 1], [], []>} : vector<8x64xbf16>, vector<64x64xbf16>, vector<8x64xf32> -> vector<8x64xf32>
    %176 = arith.addf %174, %175 : vector<8x64xf32>
    %c40_148 = arith.constant 40 : index
    %c0_149 = arith.constant 0 : index
    %177 = vector.load %arg9[%c40_148, %c0_149] : memref<64x64xf32, #tpu.memory_space<vmem>>, vector<8x64xf32>
    tpu.vector_store %arg9[%c40_148, %c0_149], %176 {strides = array<i32>} : memref<64x64xf32, #tpu.memory_space<vmem>>, vector<8x64xf32>,
    %c6_150 = arith.constant 6 : index
    %c1_151 = arith.constant 1 : index
    %c0_152 = arith.constant 0 : index
    %178 = vector.load %arg8[%c6_150, %c1_151, %c0_152] : memref<10x10x64xf32, #tpu.memory_space<vmem>>, vector<1x8x64xf32>
    %179 = vector.shape_cast %178 : vector<1x8x64xf32> to vector<8x64xf32>
    %180 = arith.truncf %179 : vector<8x64xf32> to vector<8x64xbf16>
    %c48_153 = arith.constant 48 : index
    %c0_154 = arith.constant 0 : index
    %181 = vector.load %arg9[%c48_153, %c0_154] : memref<64x64xf32, #tpu.memory_space<vmem>>, vector<8x64xf32>
    %cst_155 = arith.constant dense<0.000000e+00> : vector<8x64xf32>
    %182 = tpu.matmul %180, %135, %cst_155 {dimension_numbers = #tpu.dot_dimension_numbers<[1], [0], [0], [1], [0, 0, 1, 1], [], []>} : vector<8x64xbf16>, vector<64x64xbf16>, vector<8x64xf32> -> vector<8x64xf32>
    %183 = arith.addf %181, %182 : vector<8x64xf32>
    %c48_156 = arith.constant 48 : index
    %c0_157 = arith.constant 0 : index
    %184 = vector.load %arg9[%c48_156, %c0_157] : memref<64x64xf32, #tpu.memory_space<vmem>>, vector<8x64xf32>
    tpu.vector_store %arg9[%c48_156, %c0_157], %183 {strides = array<i32>} : memref<64x64xf32, #tpu.memory_space<vmem>>, vector<8x64xf32>,
    %c7_158 = arith.constant 7 : index
    %c1_159 = arith.constant 1 : index
    %c0_160 = arith.constant 0 : index
    %185 = vector.load %arg8[%c7_158, %c1_159, %c0_160] : memref<10x10x64xf32, #tpu.memory_space<vmem>>, vector<1x8x64xf32>
    %186 = vector.shape_cast %185 : vector<1x8x64xf32> to vector<8x64xf32>
    %187 = arith.truncf %186 : vector<8x64xf32> to vector<8x64xbf16>
    %c56_161 = arith.constant 56 : index
    %c0_162 = arith.constant 0 : index
    %188 = vector.load %arg9[%c56_161, %c0_162] : memref<64x64xf32, #tpu.memory_space<vmem>>, vector<8x64xf32>
    %cst_163 = arith.constant dense<0.000000e+00> : vector<8x64xf32>
    %189 = tpu.matmul %187, %135, %cst_163 {dimension_numbers = #tpu.dot_dimension_numbers<[1], [0], [0], [1], [0, 0, 1, 1], [], []>} : vector<8x64xbf16>, vector<64x64xbf16>, vector<8x64xf32> -> vector<8x64xf32>
    %190 = arith.addf %188, %189 : vector<8x64xf32>
    %c56_164 = arith.constant 56 : index
    %c0_165 = arith.constant 0 : index
    %191 = vector.load %arg9[%c56_164, %c0_165] : memref<64x64xf32, #tpu.memory_space<vmem>>, vector<8x64xf32>
    tpu.vector_store %arg9[%c56_164, %c0_165], %190 {strides = array<i32>} : memref<64x64xf32, #tpu.memory_space<vmem>>, vector<8x64xf32>,
    %c128 = arith.constant 128 : index
    %c0_166 = arith.constant 0 : index
    %192 = vector.load %arg4[%c128, %c0_166] : memref<576x64xbf16, #tpu.memory_space<vmem>>, vector<64x64xbf16>
    %c0_167 = arith.constant 0 : index
    %c2_168 = arith.constant 2 : index
    %c0_169 = arith.constant 0 : index
    %193 = vector.load %arg8[%c0_167, %c2_168, %c0_169] : memref<10x10x64xf32, #tpu.memory_space<vmem>>, vector<1x8x64xf32>
    %194 = vector.shape_cast %193 : vector<1x8x64xf32> to vector<8x64xf32>
    %195 = arith.truncf %194 : vector<8x64xf32> to vector<8x64xbf16>
    %c0_170 = arith.constant 0 : index
    %c0_171 = arith.constant 0 : index
    %196 = vector.load %arg9[%c0_170, %c0_171] : memref<64x64xf32, #tpu.memory_space<vmem>>, vector<8x64xf32>
    %cst_172 = arith.constant dense<0.000000e+00> : vector<8x64xf32>
    %197 = tpu.matmul %195, %192, %cst_172 {dimension_numbers = #tpu.dot_dimension_numbers<[1], [0], [0], [1], [0, 0, 1, 1], [], []>} : vector<8x64xbf16>, vector<64x64xbf16>, vector<8x64xf32> -> vector<8x64xf32>
    %198 = arith.addf %196, %197 : vector<8x64xf32>
    %c0_173 = arith.constant 0 : index
    %c0_174 = arith.constant 0 : index
    %199 = vector.load %arg9[%c0_173, %c0_174] : memref<64x64xf32, #tpu.memory_space<vmem>>, vector<8x64xf32>
    tpu.vector_store %arg9[%c0_173, %c0_174], %198 {strides = array<i32>} : memref<64x64xf32, #tpu.memory_space<vmem>>, vector<8x64xf32>,
    %c1_175 = arith.constant 1 : index
    %c2_176 = arith.constant 2 : index
    %c0_177 = arith.constant 0 : index
    %200 = vector.load %arg8[%c1_175, %c2_176, %c0_177] : memref<10x10x64xf32, #tpu.memory_space<vmem>>, vector<1x8x64xf32>
    %201 = vector.shape_cast %200 : vector<1x8x64xf32> to vector<8x64xf32>
    %202 = arith.truncf %201 : vector<8x64xf32> to vector<8x64xbf16>
    %c8_178 = arith.constant 8 : index
    %c0_179 = arith.constant 0 : index
    %203 = vector.load %arg9[%c8_178, %c0_179] : memref<64x64xf32, #tpu.memory_space<vmem>>, vector<8x64xf32>
    %cst_180 = arith.constant dense<0.000000e+00> : vector<8x64xf32>
    %204 = tpu.matmul %202, %192, %cst_180 {dimension_numbers = #tpu.dot_dimension_numbers<[1], [0], [0], [1], [0, 0, 1, 1], [], []>} : vector<8x64xbf16>, vector<64x64xbf16>, vector<8x64xf32> -> vector<8x64xf32>
    %205 = arith.addf %203, %204 : vector<8x64xf32>
    %c8_181 = arith.constant 8 : index
    %c0_182 = arith.constant 0 : index
    %206 = vector.load %arg9[%c8_181, %c0_182] : memref<64x64xf32, #tpu.memory_space<vmem>>, vector<8x64xf32>
    tpu.vector_store %arg9[%c8_181, %c0_182], %205 {strides = array<i32>} : memref<64x64xf32, #tpu.memory_space<vmem>>, vector<8x64xf32>,
    %c2_183 = arith.constant 2 : index
    %c2_184 = arith.constant 2 : index
    %c0_185 = arith.constant 0 : index
    %207 = vector.load %arg8[%c2_183, %c2_184, %c0_185] : memref<10x10x64xf32, #tpu.memory_space<vmem>>, vector<1x8x64xf32>
    %208 = vector.shape_cast %207 : vector<1x8x64xf32> to vector<8x64xf32>
    %209 = arith.truncf %208 : vector<8x64xf32> to vector<8x64xbf16>
    %c16_186 = arith.constant 16 : index
    %c0_187 = arith.constant 0 : index
    %210 = vector.load %arg9[%c16_186, %c0_187] : memref<64x64xf32, #tpu.memory_space<vmem>>, vector<8x64xf32>
    %cst_188 = arith.constant dense<0.000000e+00> : vector<8x64xf32>
    %211 = tpu.matmul %209, %192, %cst_188 {dimension_numbers = #tpu.dot_dimension_numbers<[1], [0], [0], [1], [0, 0, 1, 1], [], []>} : vector<8x64xbf16>, vector<64x64xbf16>, vector<8x64xf32> -> vector<8x64xf32>
    %212 = arith.addf %210, %211 : vector<8x64xf32>
    %c16_189 = arith.constant 16 : index
    %c0_190 = arith.constant 0 : index
    %213 = vector.load %arg9[%c16_189, %c0_190] : memref<64x64xf32, #tpu.memory_space<vmem>>, vector<8x64xf32>
    tpu.vector_store %arg9[%c16_189, %c0_190], %212 {strides = array<i32>} : memref<64x64xf32, #tpu.memory_space<vmem>>, vector<8x64xf32>,
    %c3_191 = arith.constant 3 : index
    %c2_192 = arith.constant 2 : index
    %c0_193 = arith.constant 0 : index
    %214 = vector.load %arg8[%c3_191, %c2_192, %c0_193] : memref<10x10x64xf32, #tpu.memory_space<vmem>>, vector<1x8x64xf32>
    %215 = vector.shape_cast %214 : vector<1x8x64xf32> to vector<8x64xf32>
    %216 = arith.truncf %215 : vector<8x64xf32> to vector<8x64xbf16>
    %c24_194 = arith.constant 24 : index
    %c0_195 = arith.constant 0 : index
    %217 = vector.load %arg9[%c24_194, %c0_195] : memref<64x64xf32, #tpu.memory_space<vmem>>, vector<8x64xf32>
    %cst_196 = arith.constant dense<0.000000e+00> : vector<8x64xf32>
    %218 = tpu.matmul %216, %192, %cst_196 {dimension_numbers = #tpu.dot_dimension_numbers<[1], [0], [0], [1], [0, 0, 1, 1], [], []>} : vector<8x64xbf16>, vector<64x64xbf16>, vector<8x64xf32> -> vector<8x64xf32>
    %219 = arith.addf %217, %218 : vector<8x64xf32>
    %c24_197 = arith.constant 24 : index
    %c0_198 = arith.constant 0 : index
    %220 = vector.load %arg9[%c24_197, %c0_198] : memref<64x64xf32, #tpu.memory_space<vmem>>, vector<8x64xf32>
    tpu.vector_store %arg9[%c24_197, %c0_198], %219 {strides = array<i32>} : memref<64x64xf32, #tpu.memory_space<vmem>>, vector<8x64xf32>,
    %c4_199 = arith.constant 4 : index
    %c2_200 = arith.constant 2 : index
    %c0_201 = arith.constant 0 : index
    %221 = vector.load %arg8[%c4_199, %c2_200, %c0_201] : memref<10x10x64xf32, #tpu.memory_space<vmem>>, vector<1x8x64xf32>
    %222 = vector.shape_cast %221 : vector<1x8x64xf32> to vector<8x64xf32>
    %223 = arith.truncf %222 : vector<8x64xf32> to vector<8x64xbf16>
    %c32_202 = arith.constant 32 : index
    %c0_203 = arith.constant 0 : index
    %224 = vector.load %arg9[%c32_202, %c0_203] : memref<64x64xf32, #tpu.memory_space<vmem>>, vector<8x64xf32>
    %cst_204 = arith.constant dense<0.000000e+00> : vector<8x64xf32>
    %225 = tpu.matmul %223, %192, %cst_204 {dimension_numbers = #tpu.dot_dimension_numbers<[1], [0], [0], [1], [0, 0, 1, 1], [], []>} : vector<8x64xbf16>, vector<64x64xbf16>, vector<8x64xf32> -> vector<8x64xf32>
    %226 = arith.addf %224, %225 : vector<8x64xf32>
    %c32_205 = arith.constant 32 : index
    %c0_206 = arith.constant 0 : index
    %227 = vector.load %arg9[%c32_205, %c0_206] : memref<64x64xf32, #tpu.memory_space<vmem>>, vector<8x64xf32>
    tpu.vector_store %arg9[%c32_205, %c0_206], %226 {strides = array<i32>} : memref<64x64xf32, #tpu.memory_space<vmem>>, vector<8x64xf32>,
    %c5_207 = arith.constant 5 : index
    %c2_208 = arith.constant 2 : index
    %c0_209 = arith.constant 0 : index
    %228 = vector.load %arg8[%c5_207, %c2_208, %c0_209] : memref<10x10x64xf32, #tpu.memory_space<vmem>>, vector<1x8x64xf32>
    %229 = vector.shape_cast %228 : vector<1x8x64xf32> to vector<8x64xf32>
    %230 = arith.truncf %229 : vector<8x64xf32> to vector<8x64xbf16>
    %c40_210 = arith.constant 40 : index
    %c0_211 = arith.constant 0 : index
    %231 = vector.load %arg9[%c40_210, %c0_211] : memref<64x64xf32, #tpu.memory_space<vmem>>, vector<8x64xf32>
    %cst_212 = arith.constant dense<0.000000e+00> : vector<8x64xf32>
    %232 = tpu.matmul %230, %192, %cst_212 {dimension_numbers = #tpu.dot_dimension_numbers<[1], [0], [0], [1], [0, 0, 1, 1], [], []>} : vector<8x64xbf16>, vector<64x64xbf16>, vector<8x64xf32> -> vector<8x64xf32>
    %233 = arith.addf %231, %232 : vector<8x64xf32>
    %c40_213 = arith.constant 40 : index
    %c0_214 = arith.constant 0 : index
    %234 = vector.load %arg9[%c40_213, %c0_214] : memref<64x64xf32, #tpu.memory_space<vmem>>, vector<8x64xf32>
    tpu.vector_store %arg9[%c40_213, %c0_214], %233 {strides = array<i32>} : memref<64x64xf32, #tpu.memory_space<vmem>>, vector<8x64xf32>,
    %c6_215 = arith.constant 6 : index
    %c2_216 = arith.constant 2 : index
    %c0_217 = arith.constant 0 : index
    %235 = vector.load %arg8[%c6_215, %c2_216, %c0_217] : memref<10x10x64xf32, #tpu.memory_space<vmem>>, vector<1x8x64xf32>
    %236 = vector.shape_cast %235 : vector<1x8x64xf32> to vector<8x64xf32>
    %237 = arith.truncf %236 : vector<8x64xf32> to vector<8x64xbf16>
    %c48_218 = arith.constant 48 : index
    %c0_219 = arith.constant 0 : index
    %238 = vector.load %arg9[%c48_218, %c0_219] : memref<64x64xf32, #tpu.memory_space<vmem>>, vector<8x64xf32>
    %cst_220 = arith.constant dense<0.000000e+00> : vector<8x64xf32>
    %239 = tpu.matmul %237, %192, %cst_220 {dimension_numbers = #tpu.dot_dimension_numbers<[1], [0], [0], [1], [0, 0, 1, 1], [], []>} : vector<8x64xbf16>, vector<64x64xbf16>, vector<8x64xf32> -> vector<8x64xf32>
    %240 = arith.addf %238, %239 : vector<8x64xf32>
    %c48_221 = arith.constant 48 : index
    %c0_222 = arith.constant 0 : index
    %241 = vector.load %arg9[%c48_221, %c0_222] : memref<64x64xf32, #tpu.memory_space<vmem>>, vector<8x64xf32>
    tpu.vector_store %arg9[%c48_221, %c0_222], %240 {strides = array<i32>} : memref<64x64xf32, #tpu.memory_space<vmem>>, vector<8x64xf32>,
    %c7_223 = arith.constant 7 : index
    %c2_224 = arith.constant 2 : index
    %c0_225 = arith.constant 0 : index
    %242 = vector.load %arg8[%c7_223, %c2_224, %c0_225] : memref<10x10x64xf32, #tpu.memory_space<vmem>>, vector<1x8x64xf32>
    %243 = vector.shape_cast %242 : vector<1x8x64xf32> to vector<8x64xf32>
    %244 = arith.truncf %243 : vector<8x64xf32> to vector<8x64xbf16>
    %c56_226 = arith.constant 56 : index
    %c0_227 = arith.constant 0 : index
    %245 = vector.load %arg9[%c56_226, %c0_227] : memref<64x64xf32, #tpu.memory_space<vmem>>, vector<8x64xf32>
    %cst_228 = arith.constant dense<0.000000e+00> : vector<8x64xf32>
    %246 = tpu.matmul %244, %192, %cst_228 {dimension_numbers = #tpu.dot_dimension_numbers<[1], [0], [0], [1], [0, 0, 1, 1], [], []>} : vector<8x64xbf16>, vector<64x64xbf16>, vector<8x64xf32> -> vector<8x64xf32>
    %247 = arith.addf %245, %246 : vector<8x64xf32>
    %c56_229 = arith.constant 56 : index
    %c0_230 = arith.constant 0 : index
    %248 = vector.load %arg9[%c56_229, %c0_230] : memref<64x64xf32, #tpu.memory_space<vmem>>, vector<8x64xf32>
    tpu.vector_store %arg9[%c56_229, %c0_230], %247 {strides = array<i32>} : memref<64x64xf32, #tpu.memory_space<vmem>>, vector<8x64xf32>,
    %c192 = arith.constant 192 : index
    %c0_231 = arith.constant 0 : index
    %249 = vector.load %arg4[%c192, %c0_231] : memref<576x64xbf16, #tpu.memory_space<vmem>>, vector<64x64xbf16>
    %c1_232 = arith.constant 1 : index
    %c0_233 = arith.constant 0 : index
    %c0_234 = arith.constant 0 : index
    %250 = vector.load %arg8[%c1_232, %c0_233, %c0_234] : memref<10x10x64xf32, #tpu.memory_space<vmem>>, vector<1x8x64xf32>
    %251 = vector.shape_cast %250 : vector<1x8x64xf32> to vector<8x64xf32>
    %252 = arith.truncf %251 : vector<8x64xf32> to vector<8x64xbf16>
    %c0_235 = arith.constant 0 : index
    %c0_236 = arith.constant 0 : index
    %253 = vector.load %arg9[%c0_235, %c0_236] : memref<64x64xf32, #tpu.memory_space<vmem>>, vector<8x64xf32>
    %cst_237 = arith.constant dense<0.000000e+00> : vector<8x64xf32>
    %254 = tpu.matmul %252, %249, %cst_237 {dimension_numbers = #tpu.dot_dimension_numbers<[1], [0], [0], [1], [0, 0, 1, 1], [], []>} : vector<8x64xbf16>, vector<64x64xbf16>, vector<8x64xf32> -> vector<8x64xf32>
    %255 = arith.addf %253, %254 : vector<8x64xf32>
    %c0_238 = arith.constant 0 : index
    %c0_239 = arith.constant 0 : index
    %256 = vector.load %arg9[%c0_238, %c0_239] : memref<64x64xf32, #tpu.memory_space<vmem>>, vector<8x64xf32>
    tpu.vector_store %arg9[%c0_238, %c0_239], %255 {strides = array<i32>} : memref<64x64xf32, #tpu.memory_space<vmem>>, vector<8x64xf32>,
    %c2_240 = arith.constant 2 : index
    %c0_241 = arith.constant 0 : index
    %c0_242 = arith.constant 0 : index
    %257 = vector.load %arg8[%c2_240, %c0_241, %c0_242] : memref<10x10x64xf32, #tpu.memory_space<vmem>>, vector<1x8x64xf32>
    %258 = vector.shape_cast %257 : vector<1x8x64xf32> to vector<8x64xf32>
    %259 = arith.truncf %258 : vector<8x64xf32> to vector<8x64xbf16>
    %c8_243 = arith.constant 8 : index
    %c0_244 = arith.constant 0 : index
    %260 = vector.load %arg9[%c8_243, %c0_244] : memref<64x64xf32, #tpu.memory_space<vmem>>, vector<8x64xf32>
    %cst_245 = arith.constant dense<0.000000e+00> : vector<8x64xf32>
    %261 = tpu.matmul %259, %249, %cst_245 {dimension_numbers = #tpu.dot_dimension_numbers<[1], [0], [0], [1], [0, 0, 1, 1], [], []>} : vector<8x64xbf16>, vector<64x64xbf16>, vector<8x64xf32> -> vector<8x64xf32>
    %262 = arith.addf %260, %261 : vector<8x64xf32>
    %c8_246 = arith.constant 8 : index
    %c0_247 = arith.constant 0 : index
    %263 = vector.load %arg9[%c8_246, %c0_247] : memref<64x64xf32, #tpu.memory_space<vmem>>, vector<8x64xf32>
    tpu.vector_store %arg9[%c8_246, %c0_247], %262 {strides = array<i32>} : memref<64x64xf32, #tpu.memory_space<vmem>>, vector<8x64xf32>,
    %c3_248 = arith.constant 3 : index
    %c0_249 = arith.constant 0 : index
    %c0_250 = arith.constant 0 : index
    %264 = vector.load %arg8[%c3_248, %c0_249, %c0_250] : memref<10x10x64xf32, #tpu.memory_space<vmem>>, vector<1x8x64xf32>
    %265 = vector.shape_cast %264 : vector<1x8x64xf32> to vector<8x64xf32>
    %266 = arith.truncf %265 : vector<8x64xf32> to vector<8x64xbf16>
    %c16_251 = arith.constant 16 : index
    %c0_252 = arith.constant 0 : index
    %267 = vector.load %arg9[%c16_251, %c0_252] : memref<64x64xf32, #tpu.memory_space<vmem>>, vector<8x64xf32>
    %cst_253 = arith.constant dense<0.000000e+00> : vector<8x64xf32>
    %268 = tpu.matmul %266, %249, %cst_253 {dimension_numbers = #tpu.dot_dimension_numbers<[1], [0], [0], [1], [0, 0, 1, 1], [], []>} : vector<8x64xbf16>, vector<64x64xbf16>, vector<8x64xf32> -> vector<8x64xf32>
    %269 = arith.addf %267, %268 : vector<8x64xf32>
    %c16_254 = arith.constant 16 : index
    %c0_255 = arith.constant 0 : index
    %270 = vector.load %arg9[%c16_254, %c0_255] : memref<64x64xf32, #tpu.memory_space<vmem>>, vector<8x64xf32>
    tpu.vector_store %arg9[%c16_254, %c0_255], %269 {strides = array<i32>} : memref<64x64xf32, #tpu.memory_space<vmem>>, vector<8x64xf32>,
    %c4_256 = arith.constant 4 : index
    %c0_257 = arith.constant 0 : index
    %c0_258 = arith.constant 0 : index
    %271 = vector.load %arg8[%c4_256, %c0_257, %c0_258] : memref<10x10x64xf32, #tpu.memory_space<vmem>>, vector<1x8x64xf32>
    %272 = vector.shape_cast %271 : vector<1x8x64xf32> to vector<8x64xf32>
    %273 = arith.truncf %272 : vector<8x64xf32> to vector<8x64xbf16>
    %c24_259 = arith.constant 24 : index
    %c0_260 = arith.constant 0 : index
    %274 = vector.load %arg9[%c24_259, %c0_260] : memref<64x64xf32, #tpu.memory_space<vmem>>, vector<8x64xf32>
    %cst_261 = arith.constant dense<0.000000e+00> : vector<8x64xf32>
    %275 = tpu.matmul %273, %249, %cst_261 {dimension_numbers = #tpu.dot_dimension_numbers<[1], [0], [0], [1], [0, 0, 1, 1], [], []>} : vector<8x64xbf16>, vector<64x64xbf16>, vector<8x64xf32> -> vector<8x64xf32>
    %276 = arith.addf %274, %275 : vector<8x64xf32>
    %c24_262 = arith.constant 24 : index
    %c0_263 = arith.constant 0 : index
    %277 = vector.load %arg9[%c24_262, %c0_263] : memref<64x64xf32, #tpu.memory_space<vmem>>, vector<8x64xf32>
    tpu.vector_store %arg9[%c24_262, %c0_263], %276 {strides = array<i32>} : memref<64x64xf32, #tpu.memory_space<vmem>>, vector<8x64xf32>,
    %c5_264 = arith.constant 5 : index
    %c0_265 = arith.constant 0 : index
    %c0_266 = arith.constant 0 : index
    %278 = vector.load %arg8[%c5_264, %c0_265, %c0_266] : memref<10x10x64xf32, #tpu.memory_space<vmem>>, vector<1x8x64xf32>
    %279 = vector.shape_cast %278 : vector<1x8x64xf32> to vector<8x64xf32>
    %280 = arith.truncf %279 : vector<8x64xf32> to vector<8x64xbf16>
    %c32_267 = arith.constant 32 : index
    %c0_268 = arith.constant 0 : index
    %281 = vector.load %arg9[%c32_267, %c0_268] : memref<64x64xf32, #tpu.memory_space<vmem>>, vector<8x64xf32>
    %cst_269 = arith.constant dense<0.000000e+00> : vector<8x64xf32>
    %282 = tpu.matmul %280, %249, %cst_269 {dimension_numbers = #tpu.dot_dimension_numbers<[1], [0], [0], [1], [0, 0, 1, 1], [], []>} : vector<8x64xbf16>, vector<64x64xbf16>, vector<8x64xf32> -> vector<8x64xf32>
    %283 = arith.addf %281, %282 : vector<8x64xf32>
    %c32_270 = arith.constant 32 : index
    %c0_271 = arith.constant 0 : index
    %284 = vector.load %arg9[%c32_270, %c0_271] : memref<64x64xf32, #tpu.memory_space<vmem>>, vector<8x64xf32>
    tpu.vector_store %arg9[%c32_270, %c0_271], %283 {strides = array<i32>} : memref<64x64xf32, #tpu.memory_space<vmem>>, vector<8x64xf32>,
    %c6_272 = arith.constant 6 : index
    %c0_273 = arith.constant 0 : index
    %c0_274 = arith.constant 0 : index
    %285 = vector.load %arg8[%c6_272, %c0_273, %c0_274] : memref<10x10x64xf32, #tpu.memory_space<vmem>>, vector<1x8x64xf32>
    %286 = vector.shape_cast %285 : vector<1x8x64xf32> to vector<8x64xf32>
    %287 = arith.truncf %286 : vector<8x64xf32> to vector<8x64xbf16>
    %c40_275 = arith.constant 40 : index
    %c0_276 = arith.constant 0 : index
    %288 = vector.load %arg9[%c40_275, %c0_276] : memref<64x64xf32, #tpu.memory_space<vmem>>, vector<8x64xf32>
    %cst_277 = arith.constant dense<0.000000e+00> : vector<8x64xf32>
    %289 = tpu.matmul %287, %249, %cst_277 {dimension_numbers = #tpu.dot_dimension_numbers<[1], [0], [0], [1], [0, 0, 1, 1], [], []>} : vector<8x64xbf16>, vector<64x64xbf16>, vector<8x64xf32> -> vector<8x64xf32>
    %290 = arith.addf %288, %289 : vector<8x64xf32>
    %c40_278 = arith.constant 40 : index
    %c0_279 = arith.constant 0 : index
    %291 = vector.load %arg9[%c40_278, %c0_279] : memref<64x64xf32, #tpu.memory_space<vmem>>, vector<8x64xf32>
    tpu.vector_store %arg9[%c40_278, %c0_279], %290 {strides = array<i32>} : memref<64x64xf32, #tpu.memory_space<vmem>>, vector<8x64xf32>,
    %c7_280 = arith.constant 7 : index
    %c0_281 = arith.constant 0 : index
    %c0_282 = arith.constant 0 : index
    %292 = vector.load %arg8[%c7_280, %c0_281, %c0_282] : memref<10x10x64xf32, #tpu.memory_space<vmem>>, vector<1x8x64xf32>
    %293 = vector.shape_cast %292 : vector<1x8x64xf32> to vector<8x64xf32>
    %294 = arith.truncf %293 : vector<8x64xf32> to vector<8x64xbf16>
    %c48_283 = arith.constant 48 : index
    %c0_284 = arith.constant 0 : index
    %295 = vector.load %arg9[%c48_283, %c0_284] : memref<64x64xf32, #tpu.memory_space<vmem>>, vector<8x64xf32>
    %cst_285 = arith.constant dense<0.000000e+00> : vector<8x64xf32>
    %296 = tpu.matmul %294, %249, %cst_285 {dimension_numbers = #tpu.dot_dimension_numbers<[1], [0], [0], [1], [0, 0, 1, 1], [], []>} : vector<8x64xbf16>, vector<64x64xbf16>, vector<8x64xf32> -> vector<8x64xf32>
    %297 = arith.addf %295, %296 : vector<8x64xf32>
    %c48_286 = arith.constant 48 : index
    %c0_287 = arith.constant 0 : index
    %298 = vector.load %arg9[%c48_286, %c0_287] : memref<64x64xf32, #tpu.memory_space<vmem>>, vector<8x64xf32>
    tpu.vector_store %arg9[%c48_286, %c0_287], %297 {strides = array<i32>} : memref<64x64xf32, #tpu.memory_space<vmem>>, vector<8x64xf32>,
    %c8_288 = arith.constant 8 : index
    %c0_289 = arith.constant 0 : index
    %c0_290 = arith.constant 0 : index
    %299 = vector.load %arg8[%c8_288, %c0_289, %c0_290] : memref<10x10x64xf32, #tpu.memory_space<vmem>>, vector<1x8x64xf32>
    %300 = vector.shape_cast %299 : vector<1x8x64xf32> to vector<8x64xf32>
    %301 = arith.truncf %300 : vector<8x64xf32> to vector<8x64xbf16>
    %c56_291 = arith.constant 56 : index
    %c0_292 = arith.constant 0 : index
    %302 = vector.load %arg9[%c56_291, %c0_292] : memref<64x64xf32, #tpu.memory_space<vmem>>, vector<8x64xf32>
    %cst_293 = arith.constant dense<0.000000e+00> : vector<8x64xf32>
    %303 = tpu.matmul %301, %249, %cst_293 {dimension_numbers = #tpu.dot_dimension_numbers<[1], [0], [0], [1], [0, 0, 1, 1], [], []>} : vector<8x64xbf16>, vector<64x64xbf16>, vector<8x64xf32> -> vector<8x64xf32>
    %304 = arith.addf %302, %303 : vector<8x64xf32>
    %c56_294 = arith.constant 56 : index
    %c0_295 = arith.constant 0 : index
    %305 = vector.load %arg9[%c56_294, %c0_295] : memref<64x64xf32, #tpu.memory_space<vmem>>, vector<8x64xf32>
    tpu.vector_store %arg9[%c56_294, %c0_295], %304 {strides = array<i32>} : memref<64x64xf32, #tpu.memory_space<vmem>>, vector<8x64xf32>,
    %c256 = arith.constant 256 : index
    %c0_296 = arith.constant 0 : index
    %306 = vector.load %arg4[%c256, %c0_296] : memref<576x64xbf16, #tpu.memory_space<vmem>>, vector<64x64xbf16>
    %c1_297 = arith.constant 1 : index
    %c1_298 = arith.constant 1 : index
    %c0_299 = arith.constant 0 : index
    %307 = vector.load %arg8[%c1_297, %c1_298, %c0_299] : memref<10x10x64xf32, #tpu.memory_space<vmem>>, vector<1x8x64xf32>
    %308 = vector.shape_cast %307 : vector<1x8x64xf32> to vector<8x64xf32>
    %309 = arith.truncf %308 : vector<8x64xf32> to vector<8x64xbf16>
    %c0_300 = arith.constant 0 : index
    %c0_301 = arith.constant 0 : index
    %310 = vector.load %arg9[%c0_300, %c0_301] : memref<64x64xf32, #tpu.memory_space<vmem>>, vector<8x64xf32>
    %cst_302 = arith.constant dense<0.000000e+00> : vector<8x64xf32>
    %311 = tpu.matmul %309, %306, %cst_302 {dimension_numbers = #tpu.dot_dimension_numbers<[1], [0], [0], [1], [0, 0, 1, 1], [], []>} : vector<8x64xbf16>, vector<64x64xbf16>, vector<8x64xf32> -> vector<8x64xf32>
    %312 = arith.addf %310, %311 : vector<8x64xf32>
    %c0_303 = arith.constant 0 : index
    %c0_304 = arith.constant 0 : index
    %313 = vector.load %arg9[%c0_303, %c0_304] : memref<64x64xf32, #tpu.memory_space<vmem>>, vector<8x64xf32>
    tpu.vector_store %arg9[%c0_303, %c0_304], %312 {strides = array<i32>} : memref<64x64xf32, #tpu.memory_space<vmem>>, vector<8x64xf32>,
    %c2_305 = arith.constant 2 : index
    %c1_306 = arith.constant 1 : index
    %c0_307 = arith.constant 0 : index
    %314 = vector.load %arg8[%c2_305, %c1_306, %c0_307] : memref<10x10x64xf32, #tpu.memory_space<vmem>>, vector<1x8x64xf32>
    %315 = vector.shape_cast %314 : vector<1x8x64xf32> to vector<8x64xf32>
    %316 = arith.truncf %315 : vector<8x64xf32> to vector<8x64xbf16>
    %c8_308 = arith.constant 8 : index
    %c0_309 = arith.constant 0 : index
    %317 = vector.load %arg9[%c8_308, %c0_309] : memref<64x64xf32, #tpu.memory_space<vmem>>, vector<8x64xf32>
    %cst_310 = arith.constant dense<0.000000e+00> : vector<8x64xf32>
    %318 = tpu.matmul %316, %306, %cst_310 {dimension_numbers = #tpu.dot_dimension_numbers<[1], [0], [0], [1], [0, 0, 1, 1], [], []>} : vector<8x64xbf16>, vector<64x64xbf16>, vector<8x64xf32> -> vector<8x64xf32>
    %319 = arith.addf %317, %318 : vector<8x64xf32>
    %c8_311 = arith.constant 8 : index
    %c0_312 = arith.constant 0 : index
    %320 = vector.load %arg9[%c8_311, %c0_312] : memref<64x64xf32, #tpu.memory_space<vmem>>, vector<8x64xf32>
    tpu.vector_store %arg9[%c8_311, %c0_312], %319 {strides = array<i32>} : memref<64x64xf32, #tpu.memory_space<vmem>>, vector<8x64xf32>,
    %c3_313 = arith.constant 3 : index
    %c1_314 = arith.constant 1 : index
    %c0_315 = arith.constant 0 : index
    %321 = vector.load %arg8[%c3_313, %c1_314, %c0_315] : memref<10x10x64xf32, #tpu.memory_space<vmem>>, vector<1x8x64xf32>
    %322 = vector.shape_cast %321 : vector<1x8x64xf32> to vector<8x64xf32>
    %323 = arith.truncf %322 : vector<8x64xf32> to vector<8x64xbf16>
    %c16_316 = arith.constant 16 : index
    %c0_317 = arith.constant 0 : index
    %324 = vector.load %arg9[%c16_316, %c0_317] : memref<64x64xf32, #tpu.memory_space<vmem>>, vector<8x64xf32>
    %cst_318 = arith.constant dense<0.000000e+00> : vector<8x64xf32>
    %325 = tpu.matmul %323, %306, %cst_318 {dimension_numbers = #tpu.dot_dimension_numbers<[1], [0], [0], [1], [0, 0, 1, 1], [], []>} : vector<8x64xbf16>, vector<64x64xbf16>, vector<8x64xf32> -> vector<8x64xf32>
    %326 = arith.addf %324, %325 : vector<8x64xf32>
    %c16_319 = arith.constant 16 : index
    %c0_320 = arith.constant 0 : index
    %327 = vector.load %arg9[%c16_319, %c0_320] : memref<64x64xf32, #tpu.memory_space<vmem>>, vector<8x64xf32>
    tpu.vector_store %arg9[%c16_319, %c0_320], %326 {strides = array<i32>} : memref<64x64xf32, #tpu.memory_space<vmem>>, vector<8x64xf32>,
    %c4_321 = arith.constant 4 : index
    %c1_322 = arith.constant 1 : index
    %c0_323 = arith.constant 0 : index
    %328 = vector.load %arg8[%c4_321, %c1_322, %c0_323] : memref<10x10x64xf32, #tpu.memory_space<vmem>>, vector<1x8x64xf32>
    %329 = vector.shape_cast %328 : vector<1x8x64xf32> to vector<8x64xf32>
    %330 = arith.truncf %329 : vector<8x64xf32> to vector<8x64xbf16>
    %c24_324 = arith.constant 24 : index
    %c0_325 = arith.constant 0 : index
    %331 = vector.load %arg9[%c24_324, %c0_325] : memref<64x64xf32, #tpu.memory_space<vmem>>, vector<8x64xf32>
    %cst_326 = arith.constant dense<0.000000e+00> : vector<8x64xf32>
    %332 = tpu.matmul %330, %306, %cst_326 {dimension_numbers = #tpu.dot_dimension_numbers<[1], [0], [0], [1], [0, 0, 1, 1], [], []>} : vector<8x64xbf16>, vector<64x64xbf16>, vector<8x64xf32> -> vector<8x64xf32>
    %333 = arith.addf %331, %332 : vector<8x64xf32>
    %c24_327 = arith.constant 24 : index
    %c0_328 = arith.constant 0 : index
    %334 = vector.load %arg9[%c24_327, %c0_328] : memref<64x64xf32, #tpu.memory_space<vmem>>, vector<8x64xf32>
    tpu.vector_store %arg9[%c24_327, %c0_328], %333 {strides = array<i32>} : memref<64x64xf32, #tpu.memory_space<vmem>>, vector<8x64xf32>,
    %c5_329 = arith.constant 5 : index
    %c1_330 = arith.constant 1 : index
    %c0_331 = arith.constant 0 : index
    %335 = vector.load %arg8[%c5_329, %c1_330, %c0_331] : memref<10x10x64xf32, #tpu.memory_space<vmem>>, vector<1x8x64xf32>
    %336 = vector.shape_cast %335 : vector<1x8x64xf32> to vector<8x64xf32>
    %337 = arith.truncf %336 : vector<8x64xf32> to vector<8x64xbf16>
    %c32_332 = arith.constant 32 : index
    %c0_333 = arith.constant 0 : index
    %338 = vector.load %arg9[%c32_332, %c0_333] : memref<64x64xf32, #tpu.memory_space<vmem>>, vector<8x64xf32>
    %cst_334 = arith.constant dense<0.000000e+00> : vector<8x64xf32>
    %339 = tpu.matmul %337, %306, %cst_334 {dimension_numbers = #tpu.dot_dimension_numbers<[1], [0], [0], [1], [0, 0, 1, 1], [], []>} : vector<8x64xbf16>, vector<64x64xbf16>, vector<8x64xf32> -> vector<8x64xf32>
    %340 = arith.addf %338, %339 : vector<8x64xf32>
    %c32_335 = arith.constant 32 : index
    %c0_336 = arith.constant 0 : index
    %341 = vector.load %arg9[%c32_335, %c0_336] : memref<64x64xf32, #tpu.memory_space<vmem>>, vector<8x64xf32>
    tpu.vector_store %arg9[%c32_335, %c0_336], %340 {strides = array<i32>} : memref<64x64xf32, #tpu.memory_space<vmem>>, vector<8x64xf32>,
    %c6_337 = arith.constant 6 : index
    %c1_338 = arith.constant 1 : index
    %c0_339 = arith.constant 0 : index
    %342 = vector.load %arg8[%c6_337, %c1_338, %c0_339] : memref<10x10x64xf32, #tpu.memory_space<vmem>>, vector<1x8x64xf32>
    %343 = vector.shape_cast %342 : vector<1x8x64xf32> to vector<8x64xf32>
    %344 = arith.truncf %343 : vector<8x64xf32> to vector<8x64xbf16>
    %c40_340 = arith.constant 40 : index
    %c0_341 = arith.constant 0 : index
    %345 = vector.load %arg9[%c40_340, %c0_341] : memref<64x64xf32, #tpu.memory_space<vmem>>, vector<8x64xf32>
    %cst_342 = arith.constant dense<0.000000e+00> : vector<8x64xf32>
    %346 = tpu.matmul %344, %306, %cst_342 {dimension_numbers = #tpu.dot_dimension_numbers<[1], [0], [0], [1], [0, 0, 1, 1], [], []>} : vector<8x64xbf16>, vector<64x64xbf16>, vector<8x64xf32> -> vector<8x64xf32>
    %347 = arith.addf %345, %346 : vector<8x64xf32>
    %c40_343 = arith.constant 40 : index
    %c0_344 = arith.constant 0 : index
    %348 = vector.load %arg9[%c40_343, %c0_344] : memref<64x64xf32, #tpu.memory_space<vmem>>, vector<8x64xf32>
    tpu.vector_store %arg9[%c40_343, %c0_344], %347 {strides = array<i32>} : memref<64x64xf32, #tpu.memory_space<vmem>>, vector<8x64xf32>,
    %c7_345 = arith.constant 7 : index
    %c1_346 = arith.constant 1 : index
    %c0_347 = arith.constant 0 : index
    %349 = vector.load %arg8[%c7_345, %c1_346, %c0_347] : memref<10x10x64xf32, #tpu.memory_space<vmem>>, vector<1x8x64xf32>
    %350 = vector.shape_cast %349 : vector<1x8x64xf32> to vector<8x64xf32>
    %351 = arith.truncf %350 : vector<8x64xf32> to vector<8x64xbf16>
    %c48_348 = arith.constant 48 : index
    %c0_349 = arith.constant 0 : index
    %352 = vector.load %arg9[%c48_348, %c0_349] : memref<64x64xf32, #tpu.memory_space<vmem>>, vector<8x64xf32>
    %cst_350 = arith.constant dense<0.000000e+00> : vector<8x64xf32>
    %353 = tpu.matmul %351, %306, %cst_350 {dimension_numbers = #tpu.dot_dimension_numbers<[1], [0], [0], [1], [0, 0, 1, 1], [], []>} : vector<8x64xbf16>, vector<64x64xbf16>, vector<8x64xf32> -> vector<8x64xf32>
    %354 = arith.addf %352, %353 : vector<8x64xf32>
    %c48_351 = arith.constant 48 : index
    %c0_352 = arith.constant 0 : index
    %355 = vector.load %arg9[%c48_351, %c0_352] : memref<64x64xf32, #tpu.memory_space<vmem>>, vector<8x64xf32>
    tpu.vector_store %arg9[%c48_351, %c0_352], %354 {strides = array<i32>} : memref<64x64xf32, #tpu.memory_space<vmem>>, vector<8x64xf32>,
    %c8_353 = arith.constant 8 : index
    %c1_354 = arith.constant 1 : index
    %c0_355 = arith.constant 0 : index
    %356 = vector.load %arg8[%c8_353, %c1_354, %c0_355] : memref<10x10x64xf32, #tpu.memory_space<vmem>>, vector<1x8x64xf32>
    %357 = vector.shape_cast %356 : vector<1x8x64xf32> to vector<8x64xf32>
    %358 = arith.truncf %357 : vector<8x64xf32> to vector<8x64xbf16>
    %c56_356 = arith.constant 56 : index
    %c0_357 = arith.constant 0 : index
    %359 = vector.load %arg9[%c56_356, %c0_357] : memref<64x64xf32, #tpu.memory_space<vmem>>, vector<8x64xf32>
    %cst_358 = arith.constant dense<0.000000e+00> : vector<8x64xf32>
    %360 = tpu.matmul %358, %306, %cst_358 {dimension_numbers = #tpu.dot_dimension_numbers<[1], [0], [0], [1], [0, 0, 1, 1], [], []>} : vector<8x64xbf16>, vector<64x64xbf16>, vector<8x64xf32> -> vector<8x64xf32>
    %361 = arith.addf %359, %360 : vector<8x64xf32>
    %c56_359 = arith.constant 56 : index
    %c0_360 = arith.constant 0 : index
    %362 = vector.load %arg9[%c56_359, %c0_360] : memref<64x64xf32, #tpu.memory_space<vmem>>, vector<8x64xf32>
    tpu.vector_store %arg9[%c56_359, %c0_360], %361 {strides = array<i32>} : memref<64x64xf32, #tpu.memory_space<vmem>>, vector<8x64xf32>,
    %c320 = arith.constant 320 : index
    %c0_361 = arith.constant 0 : index
    %363 = vector.load %arg4[%c320, %c0_361] : memref<576x64xbf16, #tpu.memory_space<vmem>>, vector<64x64xbf16>
    %c1_362 = arith.constant 1 : index
    %c2_363 = arith.constant 2 : index
    %c0_364 = arith.constant 0 : index
    %364 = vector.load %arg8[%c1_362, %c2_363, %c0_364] : memref<10x10x64xf32, #tpu.memory_space<vmem>>, vector<1x8x64xf32>
    %365 = vector.shape_cast %364 : vector<1x8x64xf32> to vector<8x64xf32>
    %366 = arith.truncf %365 : vector<8x64xf32> to vector<8x64xbf16>
    %c0_365 = arith.constant 0 : index
    %c0_366 = arith.constant 0 : index
    %367 = vector.load %arg9[%c0_365, %c0_366] : memref<64x64xf32, #tpu.memory_space<vmem>>, vector<8x64xf32>
    %cst_367 = arith.constant dense<0.000000e+00> : vector<8x64xf32>
    %368 = tpu.matmul %366, %363, %cst_367 {dimension_numbers = #tpu.dot_dimension_numbers<[1], [0], [0], [1], [0, 0, 1, 1], [], []>} : vector<8x64xbf16>, vector<64x64xbf16>, vector<8x64xf32> -> vector<8x64xf32>
    %369 = arith.addf %367, %368 : vector<8x64xf32>
    %c0_368 = arith.constant 0 : index
    %c0_369 = arith.constant 0 : index
    %370 = vector.load %arg9[%c0_368, %c0_369] : memref<64x64xf32, #tpu.memory_space<vmem>>, vector<8x64xf32>
    tpu.vector_store %arg9[%c0_368, %c0_369], %369 {strides = array<i32>} : memref<64x64xf32, #tpu.memory_space<vmem>>, vector<8x64xf32>,
    %c2_370 = arith.constant 2 : index
    %c2_371 = arith.constant 2 : index
    %c0_372 = arith.constant 0 : index
    %371 = vector.load %arg8[%c2_370, %c2_371, %c0_372] : memref<10x10x64xf32, #tpu.memory_space<vmem>>, vector<1x8x64xf32>
    %372 = vector.shape_cast %371 : vector<1x8x64xf32> to vector<8x64xf32>
    %373 = arith.truncf %372 : vector<8x64xf32> to vector<8x64xbf16>
    %c8_373 = arith.constant 8 : index
    %c0_374 = arith.constant 0 : index
    %374 = vector.load %arg9[%c8_373, %c0_374] : memref<64x64xf32, #tpu.memory_space<vmem>>, vector<8x64xf32>
    %cst_375 = arith.constant dense<0.000000e+00> : vector<8x64xf32>
    %375 = tpu.matmul %373, %363, %cst_375 {dimension_numbers = #tpu.dot_dimension_numbers<[1], [0], [0], [1], [0, 0, 1, 1], [], []>} : vector<8x64xbf16>, vector<64x64xbf16>, vector<8x64xf32> -> vector<8x64xf32>
    %376 = arith.addf %374, %375 : vector<8x64xf32>
    %c8_376 = arith.constant 8 : index
    %c0_377 = arith.constant 0 : index
    %377 = vector.load %arg9[%c8_376, %c0_377] : memref<64x64xf32, #tpu.memory_space<vmem>>, vector<8x64xf32>
    tpu.vector_store %arg9[%c8_376, %c0_377], %376 {strides = array<i32>} : memref<64x64xf32, #tpu.memory_space<vmem>>, vector<8x64xf32>,
    %c3_378 = arith.constant 3 : index
    %c2_379 = arith.constant 2 : index
    %c0_380 = arith.constant 0 : index
    %378 = vector.load %arg8[%c3_378, %c2_379, %c0_380] : memref<10x10x64xf32, #tpu.memory_space<vmem>>, vector<1x8x64xf32>
    %379 = vector.shape_cast %378 : vector<1x8x64xf32> to vector<8x64xf32>
    %380 = arith.truncf %379 : vector<8x64xf32> to vector<8x64xbf16>
    %c16_381 = arith.constant 16 : index
    %c0_382 = arith.constant 0 : index
    %381 = vector.load %arg9[%c16_381, %c0_382] : memref<64x64xf32, #tpu.memory_space<vmem>>, vector<8x64xf32>
    %cst_383 = arith.constant dense<0.000000e+00> : vector<8x64xf32>
    %382 = tpu.matmul %380, %363, %cst_383 {dimension_numbers = #tpu.dot_dimension_numbers<[1], [0], [0], [1], [0, 0, 1, 1], [], []>} : vector<8x64xbf16>, vector<64x64xbf16>, vector<8x64xf32> -> vector<8x64xf32>
    %383 = arith.addf %381, %382 : vector<8x64xf32>
    %c16_384 = arith.constant 16 : index
    %c0_385 = arith.constant 0 : index
    %384 = vector.load %arg9[%c16_384, %c0_385] : memref<64x64xf32, #tpu.memory_space<vmem>>, vector<8x64xf32>
    tpu.vector_store %arg9[%c16_384, %c0_385], %383 {strides = array<i32>} : memref<64x64xf32, #tpu.memory_space<vmem>>, vector<8x64xf32>,
    %c4_386 = arith.constant 4 : index
    %c2_387 = arith.constant 2 : index
    %c0_388 = arith.constant 0 : index
    %385 = vector.load %arg8[%c4_386, %c2_387, %c0_388] : memref<10x10x64xf32, #tpu.memory_space<vmem>>, vector<1x8x64xf32>
    %386 = vector.shape_cast %385 : vector<1x8x64xf32> to vector<8x64xf32>
    %387 = arith.truncf %386 : vector<8x64xf32> to vector<8x64xbf16>
    %c24_389 = arith.constant 24 : index
    %c0_390 = arith.constant 0 : index
    %388 = vector.load %arg9[%c24_389, %c0_390] : memref<64x64xf32, #tpu.memory_space<vmem>>, vector<8x64xf32>
    %cst_391 = arith.constant dense<0.000000e+00> : vector<8x64xf32>
    %389 = tpu.matmul %387, %363, %cst_391 {dimension_numbers = #tpu.dot_dimension_numbers<[1], [0], [0], [1], [0, 0, 1, 1], [], []>} : vector<8x64xbf16>, vector<64x64xbf16>, vector<8x64xf32> -> vector<8x64xf32>
    %390 = arith.addf %388, %389 : vector<8x64xf32>
    %c24_392 = arith.constant 24 : index
    %c0_393 = arith.constant 0 : index
    %391 = vector.load %arg9[%c24_392, %c0_393] : memref<64x64xf32, #tpu.memory_space<vmem>>, vector<8x64xf32>
    tpu.vector_store %arg9[%c24_392, %c0_393], %390 {strides = array<i32>} : memref<64x64xf32, #tpu.memory_space<vmem>>, vector<8x64xf32>,
    %c5_394 = arith.constant 5 : index
    %c2_395 = arith.constant 2 : index
    %c0_396 = arith.constant 0 : index
    %392 = vector.load %arg8[%c5_394, %c2_395, %c0_396] : memref<10x10x64xf32, #tpu.memory_space<vmem>>, vector<1x8x64xf32>
    %393 = vector.shape_cast %392 : vector<1x8x64xf32> to vector<8x64xf32>
    %394 = arith.truncf %393 : vector<8x64xf32> to vector<8x64xbf16>
    %c32_397 = arith.constant 32 : index
    %c0_398 = arith.constant 0 : index
    %395 = vector.load %arg9[%c32_397, %c0_398] : memref<64x64xf32, #tpu.memory_space<vmem>>, vector<8x64xf32>
    %cst_399 = arith.constant dense<0.000000e+00> : vector<8x64xf32>
    %396 = tpu.matmul %394, %363, %cst_399 {dimension_numbers = #tpu.dot_dimension_numbers<[1], [0], [0], [1], [0, 0, 1, 1], [], []>} : vector<8x64xbf16>, vector<64x64xbf16>, vector<8x64xf32> -> vector<8x64xf32>
    %397 = arith.addf %395, %396 : vector<8x64xf32>
    %c32_400 = arith.constant 32 : index
    %c0_401 = arith.constant 0 : index
    %398 = vector.load %arg9[%c32_400, %c0_401] : memref<64x64xf32, #tpu.memory_space<vmem>>, vector<8x64xf32>
    tpu.vector_store %arg9[%c32_400, %c0_401], %397 {strides = array<i32>} : memref<64x64xf32, #tpu.memory_space<vmem>>, vector<8x64xf32>,
    %c6_402 = arith.constant 6 : index
    %c2_403 = arith.constant 2 : index
    %c0_404 = arith.constant 0 : index
    %399 = vector.load %arg8[%c6_402, %c2_403, %c0_404] : memref<10x10x64xf32, #tpu.memory_space<vmem>>, vector<1x8x64xf32>
    %400 = vector.shape_cast %399 : vector<1x8x64xf32> to vector<8x64xf32>
    %401 = arith.truncf %400 : vector<8x64xf32> to vector<8x64xbf16>
    %c40_405 = arith.constant 40 : index
    %c0_406 = arith.constant 0 : index
    %402 = vector.load %arg9[%c40_405, %c0_406] : memref<64x64xf32, #tpu.memory_space<vmem>>, vector<8x64xf32>
    %cst_407 = arith.constant dense<0.000000e+00> : vector<8x64xf32>
    %403 = tpu.matmul %401, %363, %cst_407 {dimension_numbers = #tpu.dot_dimension_numbers<[1], [0], [0], [1], [0, 0, 1, 1], [], []>} : vector<8x64xbf16>, vector<64x64xbf16>, vector<8x64xf32> -> vector<8x64xf32>
    %404 = arith.addf %402, %403 : vector<8x64xf32>
    %c40_408 = arith.constant 40 : index
    %c0_409 = arith.constant 0 : index
    %405 = vector.load %arg9[%c40_408, %c0_409] : memref<64x64xf32, #tpu.memory_space<vmem>>, vector<8x64xf32>
    tpu.vector_store %arg9[%c40_408, %c0_409], %404 {strides = array<i32>} : memref<64x64xf32, #tpu.memory_space<vmem>>, vector<8x64xf32>,
    %c7_410 = arith.constant 7 : index
    %c2_411 = arith.constant 2 : index
    %c0_412 = arith.constant 0 : index
    %406 = vector.load %arg8[%c7_410, %c2_411, %c0_412] : memref<10x10x64xf32, #tpu.memory_space<vmem>>, vector<1x8x64xf32>
    %407 = vector.shape_cast %406 : vector<1x8x64xf32> to vector<8x64xf32>
    %408 = arith.truncf %407 : vector<8x64xf32> to vector<8x64xbf16>
    %c48_413 = arith.constant 48 : index
    %c0_414 = arith.constant 0 : index
    %409 = vector.load %arg9[%c48_413, %c0_414] : memref<64x64xf32, #tpu.memory_space<vmem>>, vector<8x64xf32>
    %cst_415 = arith.constant dense<0.000000e+00> : vector<8x64xf32>
    %410 = tpu.matmul %408, %363, %cst_415 {dimension_numbers = #tpu.dot_dimension_numbers<[1], [0], [0], [1], [0, 0, 1, 1], [], []>} : vector<8x64xbf16>, vector<64x64xbf16>, vector<8x64xf32> -> vector<8x64xf32>
    %411 = arith.addf %409, %410 : vector<8x64xf32>
    %c48_416 = arith.constant 48 : index
    %c0_417 = arith.constant 0 : index
    %412 = vector.load %arg9[%c48_416, %c0_417] : memref<64x64xf32, #tpu.memory_space<vmem>>, vector<8x64xf32>
    tpu.vector_store %arg9[%c48_416, %c0_417], %411 {strides = array<i32>} : memref<64x64xf32, #tpu.memory_space<vmem>>, vector<8x64xf32>,
    %c8_418 = arith.constant 8 : index
    %c2_419 = arith.constant 2 : index
    %c0_420 = arith.constant 0 : index
    %413 = vector.load %arg8[%c8_418, %c2_419, %c0_420] : memref<10x10x64xf32, #tpu.memory_space<vmem>>, vector<1x8x64xf32>
    %414 = vector.shape_cast %413 : vector<1x8x64xf32> to vector<8x64xf32>
    %415 = arith.truncf %414 : vector<8x64xf32> to vector<8x64xbf16>
    %c56_421 = arith.constant 56 : index
    %c0_422 = arith.constant 0 : index
    %416 = vector.load %arg9[%c56_421, %c0_422] : memref<64x64xf32, #tpu.memory_space<vmem>>, vector<8x64xf32>
    %cst_423 = arith.constant dense<0.000000e+00> : vector<8x64xf32>
    %417 = tpu.matmul %415, %363, %cst_423 {dimension_numbers = #tpu.dot_dimension_numbers<[1], [0], [0], [1], [0, 0, 1, 1], [], []>} : vector<8x64xbf16>, vector<64x64xbf16>, vector<8x64xf32> -> vector<8x64xf32>
    %418 = arith.addf %416, %417 : vector<8x64xf32>
    %c56_424 = arith.constant 56 : index
    %c0_425 = arith.constant 0 : index
    %419 = vector.load %arg9[%c56_424, %c0_425] : memref<64x64xf32, #tpu.memory_space<vmem>>, vector<8x64xf32>
    tpu.vector_store %arg9[%c56_424, %c0_425], %418 {strides = array<i32>} : memref<64x64xf32, #tpu.memory_space<vmem>>, vector<8x64xf32>,
    %c384 = arith.constant 384 : index
    %c0_426 = arith.constant 0 : index
    %420 = vector.load %arg4[%c384, %c0_426] : memref<576x64xbf16, #tpu.memory_space<vmem>>, vector<64x64xbf16>
    %c2_427 = arith.constant 2 : index
    %c0_428 = arith.constant 0 : index
    %c0_429 = arith.constant 0 : index
    %421 = vector.load %arg8[%c2_427, %c0_428, %c0_429] : memref<10x10x64xf32, #tpu.memory_space<vmem>>, vector<1x8x64xf32>
    %422 = vector.shape_cast %421 : vector<1x8x64xf32> to vector<8x64xf32>
    %423 = arith.truncf %422 : vector<8x64xf32> to vector<8x64xbf16>
    %c0_430 = arith.constant 0 : index
    %c0_431 = arith.constant 0 : index
    %424 = vector.load %arg9[%c0_430, %c0_431] : memref<64x64xf32, #tpu.memory_space<vmem>>, vector<8x64xf32>
    %cst_432 = arith.constant dense<0.000000e+00> : vector<8x64xf32>
    %425 = tpu.matmul %423, %420, %cst_432 {dimension_numbers = #tpu.dot_dimension_numbers<[1], [0], [0], [1], [0, 0, 1, 1], [], []>} : vector<8x64xbf16>, vector<64x64xbf16>, vector<8x64xf32> -> vector<8x64xf32>
    %426 = arith.addf %424, %425 : vector<8x64xf32>
    %c0_433 = arith.constant 0 : index
    %c0_434 = arith.constant 0 : index
    %427 = vector.load %arg9[%c0_433, %c0_434] : memref<64x64xf32, #tpu.memory_space<vmem>>, vector<8x64xf32>
    tpu.vector_store %arg9[%c0_433, %c0_434], %426 {strides = array<i32>} : memref<64x64xf32, #tpu.memory_space<vmem>>, vector<8x64xf32>,
    %c3_435 = arith.constant 3 : index
    %c0_436 = arith.constant 0 : index
    %c0_437 = arith.constant 0 : index
    %428 = vector.load %arg8[%c3_435, %c0_436, %c0_437] : memref<10x10x64xf32, #tpu.memory_space<vmem>>, vector<1x8x64xf32>
    %429 = vector.shape_cast %428 : vector<1x8x64xf32> to vector<8x64xf32>
    %430 = arith.truncf %429 : vector<8x64xf32> to vector<8x64xbf16>
    %c8_438 = arith.constant 8 : index
    %c0_439 = arith.constant 0 : index
    %431 = vector.load %arg9[%c8_438, %c0_439] : memref<64x64xf32, #tpu.memory_space<vmem>>, vector<8x64xf32>
    %cst_440 = arith.constant dense<0.000000e+00> : vector<8x64xf32>
    %432 = tpu.matmul %430, %420, %cst_440 {dimension_numbers = #tpu.dot_dimension_numbers<[1], [0], [0], [1], [0, 0, 1, 1], [], []>} : vector<8x64xbf16>, vector<64x64xbf16>, vector<8x64xf32> -> vector<8x64xf32>
    %433 = arith.addf %431, %432 : vector<8x64xf32>
    %c8_441 = arith.constant 8 : index
    %c0_442 = arith.constant 0 : index
    %434 = vector.load %arg9[%c8_441, %c0_442] : memref<64x64xf32, #tpu.memory_space<vmem>>, vector<8x64xf32>
    tpu.vector_store %arg9[%c8_441, %c0_442], %433 {strides = array<i32>} : memref<64x64xf32, #tpu.memory_space<vmem>>, vector<8x64xf32>,
    %c4_443 = arith.constant 4 : index
    %c0_444 = arith.constant 0 : index
    %c0_445 = arith.constant 0 : index
    %435 = vector.load %arg8[%c4_443, %c0_444, %c0_445] : memref<10x10x64xf32, #tpu.memory_space<vmem>>, vector<1x8x64xf32>
    %436 = vector.shape_cast %435 : vector<1x8x64xf32> to vector<8x64xf32>
    %437 = arith.truncf %436 : vector<8x64xf32> to vector<8x64xbf16>
    %c16_446 = arith.constant 16 : index
    %c0_447 = arith.constant 0 : index
    %438 = vector.load %arg9[%c16_446, %c0_447] : memref<64x64xf32, #tpu.memory_space<vmem>>, vector<8x64xf32>
    %cst_448 = arith.constant dense<0.000000e+00> : vector<8x64xf32>
    %439 = tpu.matmul %437, %420, %cst_448 {dimension_numbers = #tpu.dot_dimension_numbers<[1], [0], [0], [1], [0, 0, 1, 1], [], []>} : vector<8x64xbf16>, vector<64x64xbf16>, vector<8x64xf32> -> vector<8x64xf32>
    %440 = arith.addf %438, %439 : vector<8x64xf32>
    %c16_449 = arith.constant 16 : index
    %c0_450 = arith.constant 0 : index
    %441 = vector.load %arg9[%c16_449, %c0_450] : memref<64x64xf32, #tpu.memory_space<vmem>>, vector<8x64xf32>
    tpu.vector_store %arg9[%c16_449, %c0_450], %440 {strides = array<i32>} : memref<64x64xf32, #tpu.memory_space<vmem>>, vector<8x64xf32>,
    %c5_451 = arith.constant 5 : index
    %c0_452 = arith.constant 0 : index
    %c0_453 = arith.constant 0 : index
    %442 = vector.load %arg8[%c5_451, %c0_452, %c0_453] : memref<10x10x64xf32, #tpu.memory_space<vmem>>, vector<1x8x64xf32>
    %443 = vector.shape_cast %442 : vector<1x8x64xf32> to vector<8x64xf32>
    %444 = arith.truncf %443 : vector<8x64xf32> to vector<8x64xbf16>
    %c24_454 = arith.constant 24 : index
    %c0_455 = arith.constant 0 : index
    %445 = vector.load %arg9[%c24_454, %c0_455] : memref<64x64xf32, #tpu.memory_space<vmem>>, vector<8x64xf32>
    %cst_456 = arith.constant dense<0.000000e+00> : vector<8x64xf32>
    %446 = tpu.matmul %444, %420, %cst_456 {dimension_numbers = #tpu.dot_dimension_numbers<[1], [0], [0], [1], [0, 0, 1, 1], [], []>} : vector<8x64xbf16>, vector<64x64xbf16>, vector<8x64xf32> -> vector<8x64xf32>
    %447 = arith.addf %445, %446 : vector<8x64xf32>
    %c24_457 = arith.constant 24 : index
    %c0_458 = arith.constant 0 : index
    %448 = vector.load %arg9[%c24_457, %c0_458] : memref<64x64xf32, #tpu.memory_space<vmem>>, vector<8x64xf32>
    tpu.vector_store %arg9[%c24_457, %c0_458], %447 {strides = array<i32>} : memref<64x64xf32, #tpu.memory_space<vmem>>, vector<8x64xf32>,
    %c6_459 = arith.constant 6 : index
    %c0_460 = arith.constant 0 : index
    %c0_461 = arith.constant 0 : index
    %449 = vector.load %arg8[%c6_459, %c0_460, %c0_461] : memref<10x10x64xf32, #tpu.memory_space<vmem>>, vector<1x8x64xf32>
    %450 = vector.shape_cast %449 : vector<1x8x64xf32> to vector<8x64xf32>
    %451 = arith.truncf %450 : vector<8x64xf32> to vector<8x64xbf16>
    %c32_462 = arith.constant 32 : index
    %c0_463 = arith.constant 0 : index
    %452 = vector.load %arg9[%c32_462, %c0_463] : memref<64x64xf32, #tpu.memory_space<vmem>>, vector<8x64xf32>
    %cst_464 = arith.constant dense<0.000000e+00> : vector<8x64xf32>
    %453 = tpu.matmul %451, %420, %cst_464 {dimension_numbers = #tpu.dot_dimension_numbers<[1], [0], [0], [1], [0, 0, 1, 1], [], []>} : vector<8x64xbf16>, vector<64x64xbf16>, vector<8x64xf32> -> vector<8x64xf32>
    %454 = arith.addf %452, %453 : vector<8x64xf32>
    %c32_465 = arith.constant 32 : index
    %c0_466 = arith.constant 0 : index
    %455 = vector.load %arg9[%c32_465, %c0_466] : memref<64x64xf32, #tpu.memory_space<vmem>>, vector<8x64xf32>
    tpu.vector_store %arg9[%c32_465, %c0_466], %454 {strides = array<i32>} : memref<64x64xf32, #tpu.memory_space<vmem>>, vector<8x64xf32>,
    %c7_467 = arith.constant 7 : index
    %c0_468 = arith.constant 0 : index
    %c0_469 = arith.constant 0 : index
    %456 = vector.load %arg8[%c7_467, %c0_468, %c0_469] : memref<10x10x64xf32, #tpu.memory_space<vmem>>, vector<1x8x64xf32>
    %457 = vector.shape_cast %456 : vector<1x8x64xf32> to vector<8x64xf32>
    %458 = arith.truncf %457 : vector<8x64xf32> to vector<8x64xbf16>
    %c40_470 = arith.constant 40 : index
    %c0_471 = arith.constant 0 : index
    %459 = vector.load %arg9[%c40_470, %c0_471] : memref<64x64xf32, #tpu.memory_space<vmem>>, vector<8x64xf32>
    %cst_472 = arith.constant dense<0.000000e+00> : vector<8x64xf32>
    %460 = tpu.matmul %458, %420, %cst_472 {dimension_numbers = #tpu.dot_dimension_numbers<[1], [0], [0], [1], [0, 0, 1, 1], [], []>} : vector<8x64xbf16>, vector<64x64xbf16>, vector<8x64xf32> -> vector<8x64xf32>
    %461 = arith.addf %459, %460 : vector<8x64xf32>
    %c40_473 = arith.constant 40 : index
    %c0_474 = arith.constant 0 : index
    %462 = vector.load %arg9[%c40_473, %c0_474] : memref<64x64xf32, #tpu.memory_space<vmem>>, vector<8x64xf32>
    tpu.vector_store %arg9[%c40_473, %c0_474], %461 {strides = array<i32>} : memref<64x64xf32, #tpu.memory_space<vmem>>, vector<8x64xf32>,
    %c8_475 = arith.constant 8 : index
    %c0_476 = arith.constant 0 : index
    %c0_477 = arith.constant 0 : index
    %463 = vector.load %arg8[%c8_475, %c0_476, %c0_477] : memref<10x10x64xf32, #tpu.memory_space<vmem>>, vector<1x8x64xf32>
    %464 = vector.shape_cast %463 : vector<1x8x64xf32> to vector<8x64xf32>
    %465 = arith.truncf %464 : vector<8x64xf32> to vector<8x64xbf16>
    %c48_478 = arith.constant 48 : index
    %c0_479 = arith.constant 0 : index
    %466 = vector.load %arg9[%c48_478, %c0_479] : memref<64x64xf32, #tpu.memory_space<vmem>>, vector<8x64xf32>
    %cst_480 = arith.constant dense<0.000000e+00> : vector<8x64xf32>
    %467 = tpu.matmul %465, %420, %cst_480 {dimension_numbers = #tpu.dot_dimension_numbers<[1], [0], [0], [1], [0, 0, 1, 1], [], []>} : vector<8x64xbf16>, vector<64x64xbf16>, vector<8x64xf32> -> vector<8x64xf32>
    %468 = arith.addf %466, %467 : vector<8x64xf32>
    %c48_481 = arith.constant 48 : index
    %c0_482 = arith.constant 0 : index
    %469 = vector.load %arg9[%c48_481, %c0_482] : memref<64x64xf32, #tpu.memory_space<vmem>>, vector<8x64xf32>
    tpu.vector_store %arg9[%c48_481, %c0_482], %468 {strides = array<i32>} : memref<64x64xf32, #tpu.memory_space<vmem>>, vector<8x64xf32>,
    %c9 = arith.constant 9 : index
    %c0_483 = arith.constant 0 : index
    %c0_484 = arith.constant 0 : index
    %470 = vector.load %arg8[%c9, %c0_483, %c0_484] : memref<10x10x64xf32, #tpu.memory_space<vmem>>, vector<1x8x64xf32>
    %471 = vector.shape_cast %470 : vector<1x8x64xf32> to vector<8x64xf32>
    %472 = arith.truncf %471 : vector<8x64xf32> to vector<8x64xbf16>
    %c56_485 = arith.constant 56 : index
    %c0_486 = arith.constant 0 : index
    %473 = vector.load %arg9[%c56_485, %c0_486] : memref<64x64xf32, #tpu.memory_space<vmem>>, vector<8x64xf32>
    %cst_487 = arith.constant dense<0.000000e+00> : vector<8x64xf32>
    %474 = tpu.matmul %472, %420, %cst_487 {dimension_numbers = #tpu.dot_dimension_numbers<[1], [0], [0], [1], [0, 0, 1, 1], [], []>} : vector<8x64xbf16>, vector<64x64xbf16>, vector<8x64xf32> -> vector<8x64xf32>
    %475 = arith.addf %473, %474 : vector<8x64xf32>
    %c56_488 = arith.constant 56 : index
    %c0_489 = arith.constant 0 : index
    %476 = vector.load %arg9[%c56_488, %c0_489] : memref<64x64xf32, #tpu.memory_space<vmem>>, vector<8x64xf32>
    tpu.vector_store %arg9[%c56_488, %c0_489], %475 {strides = array<i32>} : memref<64x64xf32, #tpu.memory_space<vmem>>, vector<8x64xf32>,
    %c448 = arith.constant 448 : index
    %c0_490 = arith.constant 0 : index
    %477 = vector.load %arg4[%c448, %c0_490] : memref<576x64xbf16, #tpu.memory_space<vmem>>, vector<64x64xbf16>
    %c2_491 = arith.constant 2 : index
    %c1_492 = arith.constant 1 : index
    %c0_493 = arith.constant 0 : index
    %478 = vector.load %arg8[%c2_491, %c1_492, %c0_493] : memref<10x10x64xf32, #tpu.memory_space<vmem>>, vector<1x8x64xf32>
    %479 = vector.shape_cast %478 : vector<1x8x64xf32> to vector<8x64xf32>
    %480 = arith.truncf %479 : vector<8x64xf32> to vector<8x64xbf16>
    %c0_494 = arith.constant 0 : index
    %c0_495 = arith.constant 0 : index
    %481 = vector.load %arg9[%c0_494, %c0_495] : memref<64x64xf32, #tpu.memory_space<vmem>>, vector<8x64xf32>
    %cst_496 = arith.constant dense<0.000000e+00> : vector<8x64xf32>
    %482 = tpu.matmul %480, %477, %cst_496 {dimension_numbers = #tpu.dot_dimension_numbers<[1], [0], [0], [1], [0, 0, 1, 1], [], []>} : vector<8x64xbf16>, vector<64x64xbf16>, vector<8x64xf32> -> vector<8x64xf32>
    %483 = arith.addf %481, %482 : vector<8x64xf32>
    %c0_497 = arith.constant 0 : index
    %c0_498 = arith.constant 0 : index
    %484 = vector.load %arg9[%c0_497, %c0_498] : memref<64x64xf32, #tpu.memory_space<vmem>>, vector<8x64xf32>
    tpu.vector_store %arg9[%c0_497, %c0_498], %483 {strides = array<i32>} : memref<64x64xf32, #tpu.memory_space<vmem>>, vector<8x64xf32>,
    %c3_499 = arith.constant 3 : index
    %c1_500 = arith.constant 1 : index
    %c0_501 = arith.constant 0 : index
    %485 = vector.load %arg8[%c3_499, %c1_500, %c0_501] : memref<10x10x64xf32, #tpu.memory_space<vmem>>, vector<1x8x64xf32>
    %486 = vector.shape_cast %485 : vector<1x8x64xf32> to vector<8x64xf32>
    %487 = arith.truncf %486 : vector<8x64xf32> to vector<8x64xbf16>
    %c8_502 = arith.constant 8 : index
    %c0_503 = arith.constant 0 : index
    %488 = vector.load %arg9[%c8_502, %c0_503] : memref<64x64xf32, #tpu.memory_space<vmem>>, vector<8x64xf32>
    %cst_504 = arith.constant dense<0.000000e+00> : vector<8x64xf32>
    %489 = tpu.matmul %487, %477, %cst_504 {dimension_numbers = #tpu.dot_dimension_numbers<[1], [0], [0], [1], [0, 0, 1, 1], [], []>} : vector<8x64xbf16>, vector<64x64xbf16>, vector<8x64xf32> -> vector<8x64xf32>
    %490 = arith.addf %488, %489 : vector<8x64xf32>
    %c8_505 = arith.constant 8 : index
    %c0_506 = arith.constant 0 : index
    %491 = vector.load %arg9[%c8_505, %c0_506] : memref<64x64xf32, #tpu.memory_space<vmem>>, vector<8x64xf32>
    tpu.vector_store %arg9[%c8_505, %c0_506], %490 {strides = array<i32>} : memref<64x64xf32, #tpu.memory_space<vmem>>, vector<8x64xf32>,
    %c4_507 = arith.constant 4 : index
    %c1_508 = arith.constant 1 : index
    %c0_509 = arith.constant 0 : index
    %492 = vector.load %arg8[%c4_507, %c1_508, %c0_509] : memref<10x10x64xf32, #tpu.memory_space<vmem>>, vector<1x8x64xf32>
    %493 = vector.shape_cast %492 : vector<1x8x64xf32> to vector<8x64xf32>
    %494 = arith.truncf %493 : vector<8x64xf32> to vector<8x64xbf16>
    %c16_510 = arith.constant 16 : index
    %c0_511 = arith.constant 0 : index
    %495 = vector.load %arg9[%c16_510, %c0_511] : memref<64x64xf32, #tpu.memory_space<vmem>>, vector<8x64xf32>
    %cst_512 = arith.constant dense<0.000000e+00> : vector<8x64xf32>
    %496 = tpu.matmul %494, %477, %cst_512 {dimension_numbers = #tpu.dot_dimension_numbers<[1], [0], [0], [1], [0, 0, 1, 1], [], []>} : vector<8x64xbf16>, vector<64x64xbf16>, vector<8x64xf32> -> vector<8x64xf32>
    %497 = arith.addf %495, %496 : vector<8x64xf32>
    %c16_513 = arith.constant 16 : index
    %c0_514 = arith.constant 0 : index
    %498 = vector.load %arg9[%c16_513, %c0_514] : memref<64x64xf32, #tpu.memory_space<vmem>>, vector<8x64xf32>
    tpu.vector_store %arg9[%c16_513, %c0_514], %497 {strides = array<i32>} : memref<64x64xf32, #tpu.memory_space<vmem>>, vector<8x64xf32>,
    %c5_515 = arith.constant 5 : index
    %c1_516 = arith.constant 1 : index
    %c0_517 = arith.constant 0 : index
    %499 = vector.load %arg8[%c5_515, %c1_516, %c0_517] : memref<10x10x64xf32, #tpu.memory_space<vmem>>, vector<1x8x64xf32>
    %500 = vector.shape_cast %499 : vector<1x8x64xf32> to vector<8x64xf32>
    %501 = arith.truncf %500 : vector<8x64xf32> to vector<8x64xbf16>
    %c24_518 = arith.constant 24 : index
    %c0_519 = arith.constant 0 : index
    %502 = vector.load %arg9[%c24_518, %c0_519] : memref<64x64xf32, #tpu.memory_space<vmem>>, vector<8x64xf32>
    %cst_520 = arith.constant dense<0.000000e+00> : vector<8x64xf32>
    %503 = tpu.matmul %501, %477, %cst_520 {dimension_numbers = #tpu.dot_dimension_numbers<[1], [0], [0], [1], [0, 0, 1, 1], [], []>} : vector<8x64xbf16>, vector<64x64xbf16>, vector<8x64xf32> -> vector<8x64xf32>
    %504 = arith.addf %502, %503 : vector<8x64xf32>
    %c24_521 = arith.constant 24 : index
    %c0_522 = arith.constant 0 : index
    %505 = vector.load %arg9[%c24_521, %c0_522] : memref<64x64xf32, #tpu.memory_space<vmem>>, vector<8x64xf32>
    tpu.vector_store %arg9[%c24_521, %c0_522], %504 {strides = array<i32>} : memref<64x64xf32, #tpu.memory_space<vmem>>, vector<8x64xf32>,
    %c6_523 = arith.constant 6 : index
    %c1_524 = arith.constant 1 : index
    %c0_525 = arith.constant 0 : index
    %506 = vector.load %arg8[%c6_523, %c1_524, %c0_525] : memref<10x10x64xf32, #tpu.memory_space<vmem>>, vector<1x8x64xf32>
    %507 = vector.shape_cast %506 : vector<1x8x64xf32> to vector<8x64xf32>
    %508 = arith.truncf %507 : vector<8x64xf32> to vector<8x64xbf16>
    %c32_526 = arith.constant 32 : index
    %c0_527 = arith.constant 0 : index
    %509 = vector.load %arg9[%c32_526, %c0_527] : memref<64x64xf32, #tpu.memory_space<vmem>>, vector<8x64xf32>
    %cst_528 = arith.constant dense<0.000000e+00> : vector<8x64xf32>
    %510 = tpu.matmul %508, %477, %cst_528 {dimension_numbers = #tpu.dot_dimension_numbers<[1], [0], [0], [1], [0, 0, 1, 1], [], []>} : vector<8x64xbf16>, vector<64x64xbf16>, vector<8x64xf32> -> vector<8x64xf32>
    %511 = arith.addf %509, %510 : vector<8x64xf32>
    %c32_529 = arith.constant 32 : index
    %c0_530 = arith.constant 0 : index
    %512 = vector.load %arg9[%c32_529, %c0_530] : memref<64x64xf32, #tpu.memory_space<vmem>>, vector<8x64xf32>
    tpu.vector_store %arg9[%c32_529, %c0_530], %511 {strides = array<i32>} : memref<64x64xf32, #tpu.memory_space<vmem>>, vector<8x64xf32>,
    %c7_531 = arith.constant 7 : index
    %c1_532 = arith.constant 1 : index
    %c0_533 = arith.constant 0 : index
    %513 = vector.load %arg8[%c7_531, %c1_532, %c0_533] : memref<10x10x64xf32, #tpu.memory_space<vmem>>, vector<1x8x64xf32>
    %514 = vector.shape_cast %513 : vector<1x8x64xf32> to vector<8x64xf32>
    %515 = arith.truncf %514 : vector<8x64xf32> to vector<8x64xbf16>
    %c40_534 = arith.constant 40 : index
    %c0_535 = arith.constant 0 : index
    %516 = vector.load %arg9[%c40_534, %c0_535] : memref<64x64xf32, #tpu.memory_space<vmem>>, vector<8x64xf32>
    %cst_536 = arith.constant dense<0.000000e+00> : vector<8x64xf32>
    %517 = tpu.matmul %515, %477, %cst_536 {dimension_numbers = #tpu.dot_dimension_numbers<[1], [0], [0], [1], [0, 0, 1, 1], [], []>} : vector<8x64xbf16>, vector<64x64xbf16>, vector<8x64xf32> -> vector<8x64xf32>
    %518 = arith.addf %516, %517 : vector<8x64xf32>
    %c40_537 = arith.constant 40 : index
    %c0_538 = arith.constant 0 : index
    %519 = vector.load %arg9[%c40_537, %c0_538] : memref<64x64xf32, #tpu.memory_space<vmem>>, vector<8x64xf32>
    tpu.vector_store %arg9[%c40_537, %c0_538], %518 {strides = array<i32>} : memref<64x64xf32, #tpu.memory_space<vmem>>, vector<8x64xf32>,
    %c8_539 = arith.constant 8 : index
    %c1_540 = arith.constant 1 : index
    %c0_541 = arith.constant 0 : index
    %520 = vector.load %arg8[%c8_539, %c1_540, %c0_541] : memref<10x10x64xf32, #tpu.memory_space<vmem>>, vector<1x8x64xf32>
    %521 = vector.shape_cast %520 : vector<1x8x64xf32> to vector<8x64xf32>
    %522 = arith.truncf %521 : vector<8x64xf32> to vector<8x64xbf16>
    %c48_542 = arith.constant 48 : index
    %c0_543 = arith.constant 0 : index
    %523 = vector.load %arg9[%c48_542, %c0_543] : memref<64x64xf32, #tpu.memory_space<vmem>>, vector<8x64xf32>
    %cst_544 = arith.constant dense<0.000000e+00> : vector<8x64xf32>
    %524 = tpu.matmul %522, %477, %cst_544 {dimension_numbers = #tpu.dot_dimension_numbers<[1], [0], [0], [1], [0, 0, 1, 1], [], []>} : vector<8x64xbf16>, vector<64x64xbf16>, vector<8x64xf32> -> vector<8x64xf32>
    %525 = arith.addf %523, %524 : vector<8x64xf32>
    %c48_545 = arith.constant 48 : index
    %c0_546 = arith.constant 0 : index
    %526 = vector.load %arg9[%c48_545, %c0_546] : memref<64x64xf32, #tpu.memory_space<vmem>>, vector<8x64xf32>
    tpu.vector_store %arg9[%c48_545, %c0_546], %525 {strides = array<i32>} : memref<64x64xf32, #tpu.memory_space<vmem>>, vector<8x64xf32>,
    %c9_547 = arith.constant 9 : index
    %c1_548 = arith.constant 1 : index
    %c0_549 = arith.constant 0 : index
    %527 = vector.load %arg8[%c9_547, %c1_548, %c0_549] : memref<10x10x64xf32, #tpu.memory_space<vmem>>, vector<1x8x64xf32>
    %528 = vector.shape_cast %527 : vector<1x8x64xf32> to vector<8x64xf32>
    %529 = arith.truncf %528 : vector<8x64xf32> to vector<8x64xbf16>
    %c56_550 = arith.constant 56 : index
    %c0_551 = arith.constant 0 : index
    %530 = vector.load %arg9[%c56_550, %c0_551] : memref<64x64xf32, #tpu.memory_space<vmem>>, vector<8x64xf32>
    %cst_552 = arith.constant dense<0.000000e+00> : vector<8x64xf32>
    %531 = tpu.matmul %529, %477, %cst_552 {dimension_numbers = #tpu.dot_dimension_numbers<[1], [0], [0], [1], [0, 0, 1, 1], [], []>} : vector<8x64xbf16>, vector<64x64xbf16>, vector<8x64xf32> -> vector<8x64xf32>
    %532 = arith.addf %530, %531 : vector<8x64xf32>
    %c56_553 = arith.constant 56 : index
    %c0_554 = arith.constant 0 : index
    %533 = vector.load %arg9[%c56_553, %c0_554] : memref<64x64xf32, #tpu.memory_space<vmem>>, vector<8x64xf32>
    tpu.vector_store %arg9[%c56_553, %c0_554], %532 {strides = array<i32>} : memref<64x64xf32, #tpu.memory_space<vmem>>, vector<8x64xf32>,
    %c512 = arith.constant 512 : index
    %c0_555 = arith.constant 0 : index
    %534 = vector.load %arg4[%c512, %c0_555] : memref<576x64xbf16, #tpu.memory_space<vmem>>, vector<64x64xbf16>
    %c2_556 = arith.constant 2 : index
    %c2_557 = arith.constant 2 : index
    %c0_558 = arith.constant 0 : index
    %535 = vector.load %arg8[%c2_556, %c2_557, %c0_558] : memref<10x10x64xf32, #tpu.memory_space<vmem>>, vector<1x8x64xf32>
    %536 = vector.shape_cast %535 : vector<1x8x64xf32> to vector<8x64xf32>
    %537 = arith.truncf %536 : vector<8x64xf32> to vector<8x64xbf16>
    %c0_559 = arith.constant 0 : index
    %c0_560 = arith.constant 0 : index
    %538 = vector.load %arg9[%c0_559, %c0_560] : memref<64x64xf32, #tpu.memory_space<vmem>>, vector<8x64xf32>
    %cst_561 = arith.constant dense<0.000000e+00> : vector<8x64xf32>
    %539 = tpu.matmul %537, %534, %cst_561 {dimension_numbers = #tpu.dot_dimension_numbers<[1], [0], [0], [1], [0, 0, 1, 1], [], []>} : vector<8x64xbf16>, vector<64x64xbf16>, vector<8x64xf32> -> vector<8x64xf32>
    %540 = arith.addf %538, %539 : vector<8x64xf32>
    %c0_562 = arith.constant 0 : index
    %c0_563 = arith.constant 0 : index
    %541 = vector.load %arg9[%c0_562, %c0_563] : memref<64x64xf32, #tpu.memory_space<vmem>>, vector<8x64xf32>
    tpu.vector_store %arg9[%c0_562, %c0_563], %540 {strides = array<i32>} : memref<64x64xf32, #tpu.memory_space<vmem>>, vector<8x64xf32>,
    %c3_564 = arith.constant 3 : index
    %c2_565 = arith.constant 2 : index
    %c0_566 = arith.constant 0 : index
    %542 = vector.load %arg8[%c3_564, %c2_565, %c0_566] : memref<10x10x64xf32, #tpu.memory_space<vmem>>, vector<1x8x64xf32>
    %543 = vector.shape_cast %542 : vector<1x8x64xf32> to vector<8x64xf32>
    %544 = arith.truncf %543 : vector<8x64xf32> to vector<8x64xbf16>
    %c8_567 = arith.constant 8 : index
    %c0_568 = arith.constant 0 : index
    %545 = vector.load %arg9[%c8_567, %c0_568] : memref<64x64xf32, #tpu.memory_space<vmem>>, vector<8x64xf32>
    %cst_569 = arith.constant dense<0.000000e+00> : vector<8x64xf32>
    %546 = tpu.matmul %544, %534, %cst_569 {dimension_numbers = #tpu.dot_dimension_numbers<[1], [0], [0], [1], [0, 0, 1, 1], [], []>} : vector<8x64xbf16>, vector<64x64xbf16>, vector<8x64xf32> -> vector<8x64xf32>
    %547 = arith.addf %545, %546 : vector<8x64xf32>
    %c8_570 = arith.constant 8 : index
    %c0_571 = arith.constant 0 : index
    %548 = vector.load %arg9[%c8_570, %c0_571] : memref<64x64xf32, #tpu.memory_space<vmem>>, vector<8x64xf32>
    tpu.vector_store %arg9[%c8_570, %c0_571], %547 {strides = array<i32>} : memref<64x64xf32, #tpu.memory_space<vmem>>, vector<8x64xf32>,
    %c4_572 = arith.constant 4 : index
    %c2_573 = arith.constant 2 : index
    %c0_574 = arith.constant 0 : index
    %549 = vector.load %arg8[%c4_572, %c2_573, %c0_574] : memref<10x10x64xf32, #tpu.memory_space<vmem>>, vector<1x8x64xf32>
    %550 = vector.shape_cast %549 : vector<1x8x64xf32> to vector<8x64xf32>
    %551 = arith.truncf %550 : vector<8x64xf32> to vector<8x64xbf16>
    %c16_575 = arith.constant 16 : index
    %c0_576 = arith.constant 0 : index
    %552 = vector.load %arg9[%c16_575, %c0_576] : memref<64x64xf32, #tpu.memory_space<vmem>>, vector<8x64xf32>
    %cst_577 = arith.constant dense<0.000000e+00> : vector<8x64xf32>
    %553 = tpu.matmul %551, %534, %cst_577 {dimension_numbers = #tpu.dot_dimension_numbers<[1], [0], [0], [1], [0, 0, 1, 1], [], []>} : vector<8x64xbf16>, vector<64x64xbf16>, vector<8x64xf32> -> vector<8x64xf32>
    %554 = arith.addf %552, %553 : vector<8x64xf32>
    %c16_578 = arith.constant 16 : index
    %c0_579 = arith.constant 0 : index
    %555 = vector.load %arg9[%c16_578, %c0_579] : memref<64x64xf32, #tpu.memory_space<vmem>>, vector<8x64xf32>
    tpu.vector_store %arg9[%c16_578, %c0_579], %554 {strides = array<i32>} : memref<64x64xf32, #tpu.memory_space<vmem>>, vector<8x64xf32>,
    %c5_580 = arith.constant 5 : index
    %c2_581 = arith.constant 2 : index
    %c0_582 = arith.constant 0 : index
    %556 = vector.load %arg8[%c5_580, %c2_581, %c0_582] : memref<10x10x64xf32, #tpu.memory_space<vmem>>, vector<1x8x64xf32>
    %557 = vector.shape_cast %556 : vector<1x8x64xf32> to vector<8x64xf32>
    %558 = arith.truncf %557 : vector<8x64xf32> to vector<8x64xbf16>
    %c24_583 = arith.constant 24 : index
    %c0_584 = arith.constant 0 : index
    %559 = vector.load %arg9[%c24_583, %c0_584] : memref<64x64xf32, #tpu.memory_space<vmem>>, vector<8x64xf32>
    %cst_585 = arith.constant dense<0.000000e+00> : vector<8x64xf32>
    %560 = tpu.matmul %558, %534, %cst_585 {dimension_numbers = #tpu.dot_dimension_numbers<[1], [0], [0], [1], [0, 0, 1, 1], [], []>} : vector<8x64xbf16>, vector<64x64xbf16>, vector<8x64xf32> -> vector<8x64xf32>
    %561 = arith.addf %559, %560 : vector<8x64xf32>
    %c24_586 = arith.constant 24 : index
    %c0_587 = arith.constant 0 : index
    %562 = vector.load %arg9[%c24_586, %c0_587] : memref<64x64xf32, #tpu.memory_space<vmem>>, vector<8x64xf32>
    tpu.vector_store %arg9[%c24_586, %c0_587], %561 {strides = array<i32>} : memref<64x64xf32, #tpu.memory_space<vmem>>, vector<8x64xf32>,
    %c6_588 = arith.constant 6 : index
    %c2_589 = arith.constant 2 : index
    %c0_590 = arith.constant 0 : index
    %563 = vector.load %arg8[%c6_588, %c2_589, %c0_590] : memref<10x10x64xf32, #tpu.memory_space<vmem>>, vector<1x8x64xf32>
    %564 = vector.shape_cast %563 : vector<1x8x64xf32> to vector<8x64xf32>
    %565 = arith.truncf %564 : vector<8x64xf32> to vector<8x64xbf16>
    %c32_591 = arith.constant 32 : index
    %c0_592 = arith.constant 0 : index
    %566 = vector.load %arg9[%c32_591, %c0_592] : memref<64x64xf32, #tpu.memory_space<vmem>>, vector<8x64xf32>
    %cst_593 = arith.constant dense<0.000000e+00> : vector<8x64xf32>
    %567 = tpu.matmul %565, %534, %cst_593 {dimension_numbers = #tpu.dot_dimension_numbers<[1], [0], [0], [1], [0, 0, 1, 1], [], []>} : vector<8x64xbf16>, vector<64x64xbf16>, vector<8x64xf32> -> vector<8x64xf32>
    %568 = arith.addf %566, %567 : vector<8x64xf32>
    %c32_594 = arith.constant 32 : index
    %c0_595 = arith.constant 0 : index
    %569 = vector.load %arg9[%c32_594, %c0_595] : memref<64x64xf32, #tpu.memory_space<vmem>>, vector<8x64xf32>
    tpu.vector_store %arg9[%c32_594, %c0_595], %568 {strides = array<i32>} : memref<64x64xf32, #tpu.memory_space<vmem>>, vector<8x64xf32>,
    %c7_596 = arith.constant 7 : index
    %c2_597 = arith.constant 2 : index
    %c0_598 = arith.constant 0 : index
    %570 = vector.load %arg8[%c7_596, %c2_597, %c0_598] : memref<10x10x64xf32, #tpu.memory_space<vmem>>, vector<1x8x64xf32>
    %571 = vector.shape_cast %570 : vector<1x8x64xf32> to vector<8x64xf32>
    %572 = arith.truncf %571 : vector<8x64xf32> to vector<8x64xbf16>
    %c40_599 = arith.constant 40 : index
    %c0_600 = arith.constant 0 : index
    %573 = vector.load %arg9[%c40_599, %c0_600] : memref<64x64xf32, #tpu.memory_space<vmem>>, vector<8x64xf32>
    %cst_601 = arith.constant dense<0.000000e+00> : vector<8x64xf32>
    %574 = tpu.matmul %572, %534, %cst_601 {dimension_numbers = #tpu.dot_dimension_numbers<[1], [0], [0], [1], [0, 0, 1, 1], [], []>} : vector<8x64xbf16>, vector<64x64xbf16>, vector<8x64xf32> -> vector<8x64xf32>
    %575 = arith.addf %573, %574 : vector<8x64xf32>
    %c40_602 = arith.constant 40 : index
    %c0_603 = arith.constant 0 : index
    %576 = vector.load %arg9[%c40_602, %c0_603] : memref<64x64xf32, #tpu.memory_space<vmem>>, vector<8x64xf32>
    tpu.vector_store %arg9[%c40_602, %c0_603], %575 {strides = array<i32>} : memref<64x64xf32, #tpu.memory_space<vmem>>, vector<8x64xf32>,
    %c8_604 = arith.constant 8 : index
    %c2_605 = arith.constant 2 : index
    %c0_606 = arith.constant 0 : index
    %577 = vector.load %arg8[%c8_604, %c2_605, %c0_606] : memref<10x10x64xf32, #tpu.memory_space<vmem>>, vector<1x8x64xf32>
    %578 = vector.shape_cast %577 : vector<1x8x64xf32> to vector<8x64xf32>
    %579 = arith.truncf %578 : vector<8x64xf32> to vector<8x64xbf16>
    %c48_607 = arith.constant 48 : index
    %c0_608 = arith.constant 0 : index
    %580 = vector.load %arg9[%c48_607, %c0_608] : memref<64x64xf32, #tpu.memory_space<vmem>>, vector<8x64xf32>
    %cst_609 = arith.constant dense<0.000000e+00> : vector<8x64xf32>
    %581 = tpu.matmul %579, %534, %cst_609 {dimension_numbers = #tpu.dot_dimension_numbers<[1], [0], [0], [1], [0, 0, 1, 1], [], []>} : vector<8x64xbf16>, vector<64x64xbf16>, vector<8x64xf32> -> vector<8x64xf32>
    %582 = arith.addf %580, %581 : vector<8x64xf32>
    %c48_610 = arith.constant 48 : index
    %c0_611 = arith.constant 0 : index
    %583 = vector.load %arg9[%c48_610, %c0_611] : memref<64x64xf32, #tpu.memory_space<vmem>>, vector<8x64xf32>
    tpu.vector_store %arg9[%c48_610, %c0_611], %582 {strides = array<i32>} : memref<64x64xf32, #tpu.memory_space<vmem>>, vector<8x64xf32>,
    %c9_612 = arith.constant 9 : index
    %c2_613 = arith.constant 2 : index
    %c0_614 = arith.constant 0 : index
    %584 = vector.load %arg8[%c9_612, %c2_613, %c0_614] : memref<10x10x64xf32, #tpu.memory_space<vmem>>, vector<1x8x64xf32>
    %585 = vector.shape_cast %584 : vector<1x8x64xf32> to vector<8x64xf32>
    %586 = arith.truncf %585 : vector<8x64xf32> to vector<8x64xbf16>
    %c56_615 = arith.constant 56 : index
    %c0_616 = arith.constant 0 : index
    %587 = vector.load %arg9[%c56_615, %c0_616] : memref<64x64xf32, #tpu.memory_space<vmem>>, vector<8x64xf32>
    %cst_617 = arith.constant dense<0.000000e+00> : vector<8x64xf32>
    %588 = tpu.matmul %586, %534, %cst_617 {dimension_numbers = #tpu.dot_dimension_numbers<[1], [0], [0], [1], [0, 0, 1, 1], [], []>} : vector<8x64xbf16>, vector<64x64xbf16>, vector<8x64xf32> -> vector<8x64xf32>
    %589 = arith.addf %587, %588 : vector<8x64xf32>
    %c56_618 = arith.constant 56 : index
    %c0_619 = arith.constant 0 : index
    %590 = vector.load %arg9[%c56_618, %c0_619] : memref<64x64xf32, #tpu.memory_space<vmem>>, vector<8x64xf32>
    tpu.vector_store %arg9[%c56_618, %c0_619], %589 {strides = array<i32>} : memref<64x64xf32, #tpu.memory_space<vmem>>, vector<8x64xf32>,
    %c0_620 = arith.constant 0 : index
    %c0_621 = arith.constant 0 : index
    %591 = vector.load %arg9[%c0_620, %c0_621] : memref<64x64xf32, #tpu.memory_space<vmem>>, vector<64x64xf32>
    %cst_622 = arith.constant 0.000000e+00 : f32
    %592 = vector.broadcast %cst_622 : f32 to vector<64x64xf32>
    %593 = arith.maximumf %591, %592 : vector<64x64xf32>
    %594 = arith.truncf %593 : vector<64x64xf32> to vector<64x64xbf16>
    %c0_623 = arith.constant 0 : index
    %c0_624 = arith.constant 0 : index
    %595 = vector.load %arg5[%c0_623, %c0_624] : memref<64x64xbf16, #tpu.memory_space<vmem>>, vector<64x64xbf16>
    tpu.vector_store %arg5[%c0_623, %c0_624], %594 {strides = array<i32>} : memref<64x64xbf16, #tpu.memory_space<vmem>>, vector<64x64xbf16>,
    %596 = vector.extract_strided_slice %593 {offsets = [0, 0], sizes = [8, 64], strides = [1, 1]} : vector<64x64xf32> to vector<8x64xf32>
    %597 = vector.extract_strided_slice %593 {offsets = [8, 0], sizes = [8, 64], strides = [1, 1]} : vector<64x64xf32> to vector<8x64xf32>
    %598 = arith.addf %596, %597 : vector<8x64xf32>
    %599 = vector.extract_strided_slice %593 {offsets = [16, 0], sizes = [8, 64], strides = [1, 1]} : vector<64x64xf32> to vector<8x64xf32>
    %600 = arith.addf %598, %599 : vector<8x64xf32>
    %601 = vector.extract_strided_slice %593 {offsets = [24, 0], sizes = [8, 64], strides = [1, 1]} : vector<64x64xf32> to vector<8x64xf32>
    %602 = arith.addf %600, %601 : vector<8x64xf32>
    %603 = vector.extract_strided_slice %593 {offsets = [32, 0], sizes = [8, 64], strides = [1, 1]} : vector<64x64xf32> to vector<8x64xf32>
    %604 = arith.addf %602, %603 : vector<8x64xf32>
    %605 = vector.extract_strided_slice %593 {offsets = [40, 0], sizes = [8, 64], strides = [1, 1]} : vector<64x64xf32> to vector<8x64xf32>
    %606 = arith.addf %604, %605 : vector<8x64xf32>
    %607 = vector.extract_strided_slice %593 {offsets = [48, 0], sizes = [8, 64], strides = [1, 1]} : vector<64x64xf32> to vector<8x64xf32>
    %608 = arith.addf %606, %607 : vector<8x64xf32>
    %609 = vector.extract_strided_slice %593 {offsets = [56, 0], sizes = [8, 64], strides = [1, 1]} : vector<64x64xf32> to vector<8x64xf32>
    %610 = arith.addf %608, %609 : vector<8x64xf32>
    %c0_625 = arith.constant 0 : index
    %c0_626 = arith.constant 0 : index
    %c0_627 = arith.constant 0 : index
    %611 = vector.load %arg6[%c0_625, %c0_626, %c0_627] : memref<1x8x64xf32, #tpu.memory_space<vmem>>, vector<1x8x64xf32>
    %612 = vector.shape_cast %611 : vector<1x8x64xf32> to vector<8x64xf32>
    %613 = vector.shape_cast %610 : vector<8x64xf32> to vector<1x8x64xf32>
    tpu.vector_store %arg6[%c0_625, %c0_626, %c0_627], %613 {strides = array<i32>} : memref<1x8x64xf32, #tpu.memory_space<vmem>>, vector<1x8x64xf32>,
    %614 = arith.mulf %593, %593 : vector<64x64xf32>
    %615 = vector.extract_strided_slice %614 {offsets = [0, 0], sizes = [8, 64], strides = [1, 1]} : vector<64x64xf32> to vector<8x64xf32>
    %616 = vector.extract_strided_slice %614 {offsets = [8, 0], sizes = [8, 64], strides = [1, 1]} : vector<64x64xf32> to vector<8x64xf32>
    %617 = arith.addf %615, %616 : vector<8x64xf32>
    %618 = vector.extract_strided_slice %614 {offsets = [16, 0], sizes = [8, 64], strides = [1, 1]} : vector<64x64xf32> to vector<8x64xf32>
    %619 = arith.addf %617, %618 : vector<8x64xf32>
    %620 = vector.extract_strided_slice %614 {offsets = [24, 0], sizes = [8, 64], strides = [1, 1]} : vector<64x64xf32> to vector<8x64xf32>
    %621 = arith.addf %619, %620 : vector<8x64xf32>
    %622 = vector.extract_strided_slice %614 {offsets = [32, 0], sizes = [8, 64], strides = [1, 1]} : vector<64x64xf32> to vector<8x64xf32>
    %623 = arith.addf %621, %622 : vector<8x64xf32>
    %624 = vector.extract_strided_slice %614 {offsets = [40, 0], sizes = [8, 64], strides = [1, 1]} : vector<64x64xf32> to vector<8x64xf32>
    %625 = arith.addf %623, %624 : vector<8x64xf32>
    %626 = vector.extract_strided_slice %614 {offsets = [48, 0], sizes = [8, 64], strides = [1, 1]} : vector<64x64xf32> to vector<8x64xf32>
    %627 = arith.addf %625, %626 : vector<8x64xf32>
    %628 = vector.extract_strided_slice %614 {offsets = [56, 0], sizes = [8, 64], strides = [1, 1]} : vector<64x64xf32> to vector<8x64xf32>
    %629 = arith.addf %627, %628 : vector<8x64xf32>
    %c0_628 = arith.constant 0 : index
    %c0_629 = arith.constant 0 : index
    %c0_630 = arith.constant 0 : index
    %630 = vector.load %arg7[%c0_628, %c0_629, %c0_630] : memref<1x8x64xf32, #tpu.memory_space<vmem>>, vector<1x8x64xf32>
    %631 = vector.shape_cast %630 : vector<1x8x64xf32> to vector<8x64xf32>
    %632 = vector.shape_cast %629 : vector<8x64xf32> to vector<1x8x64xf32>
    tpu.vector_store %arg7[%c0_628, %c0_629, %c0_630], %632 {strides = array<i32>} : memref<1x8x64xf32, #tpu.memory_space<vmem>>, vector<1x8x64xf32>,
    return
  }
  func.func @transform_0(%arg0: i32) -> (i32, i32) {
    %c0_i32 = arith.constant 0 : i32
    %c0_i32_0 = arith.constant 0 : i32
    return %arg0, %c0_i32 : i32, i32
  }
  func.func @transform_1(%arg0: i32) -> (i32, i32) {
    %c0_i32 = arith.constant 0 : i32
    %c0_i32_0 = arith.constant 0 : i32
    %c0_i32_1 = arith.constant 0 : i32
    return %c0_i32, %c0_i32_0 : i32, i32
  }
  func.func @transform_2(%arg0: i32) -> (i32, i32) {
    %c0_i32 = arith.constant 0 : i32
    %c0_i32_0 = arith.constant 0 : i32
    %c0_i32_1 = arith.constant 0 : i32
    return %c0_i32, %c0_i32_0 : i32, i32
  }
  func.func @transform_3(%arg0: i32) -> (i32, i32) {
    %c0_i32 = arith.constant 0 : i32
    %c0_i32_0 = arith.constant 0 : i32
    %c0_i32_1 = arith.constant 0 : i32
    return %c0_i32, %c0_i32_0 : i32, i32
  }
  func.func @transform_4(%arg0: i32) -> (i32, i32) {
    %c0_i32 = arith.constant 0 : i32
    %c0_i32_0 = arith.constant 0 : i32
    return %arg0, %c0_i32 : i32, i32
  }
  func.func @transform_5(%arg0: i32) -> (i32, i32, i32) {
    %c0_i32 = arith.constant 0 : i32
    %c0_i32_0 = arith.constant 0 : i32
    %c0_i32_1 = arith.constant 0 : i32
    return %arg0, %c0_i32, %c0_i32_0 : i32, i32, i32
  }
  func.func @transform_6(%arg0: i32) -> (i32, i32, i32) {
    %c0_i32 = arith.constant 0 : i32
    %c0_i32_0 = arith.constant 0 : i32
    %c0_i32_1 = arith.constant 0 : i32
    return %arg0, %c0_i32, %c0_i32_0 : i32, i32, i32
  }
}

</mosaic_0001>

<llo_original>
// kernel: bottleneck_t_forward.4
$region0: #{bottleneck_t_forward.4}
  #allocation0 [shape = 'u32[]', space=smem, size = 0x4, offset = 0x4, fixed_abs, tag = 'smem constant byte address 0x4 - core index']
  #allocation1 [shape = 'u32[144,128]{1,0:T(1,128)}', space=vmem, size = 0x12000, scoped, tag = 'internal scratch']
  %s0 = inlined_call_operand.hbm [shape: f32[128,64], index: 0, kind: input, shape index: {}]
  %s1 = inlined_call_operand.vmem [shape: f32[8,64], index: 1, kind: output, shape index: {0}]
  %s2 = inlined_call_operand.vmem [shape: f32[8,64], index: 2, kind: output, shape index: {1}]
  %3 = xla_tuple %s1, %s2
  %s4 = sld [smem:[#allocation0]]
  $region53: #{bottleneck_t_forward.4} parent=0
    _
  %s6 = ssub.s32 1, %s4
  %s7 = scalar_select 0, %s6, %s4
  $region1: #{bottleneck_t_forward.4} parent=0
    #allocation2 [shape = 'u8[65536]{0}', space=vmem, size = 0x10000, scoped, tag = 'input window, operand 0']
    #allocation3 [shape = 's32[2]{0}', space=sflag, size = 0x8, scoped, tag = 'scoped memory for bottleneck_t_forward.4']
    %8 = vsyncpa [#allocation3], 0
    %s9 = scalar_lea.sflag [#allocation3], 1
    %10 = vsyncpa %s9, 0
    loop: start=0, step=1, limit=4
    $region2: #{bottleneck_t_forward.4} parent=1 // loop_pre_header
      _
    $region3: #{bottleneck_t_forward.4} parent=1 // loop_header
      %s12 = sphi 0, %s16
      %p13 = scmp.ge.s32.totalorder %s12, 4
      %s22 = sphi 0, %s24
      %s25 = sphi 0, %s22
      %s26 = sphi 0, %s25
      %s42 = sphi 0, %s26
      %s46 = sphi 0, %s46
      %s48 = sphi 0, %s46
      %s49 = sphi 0, %s48
      %s63 = sphi 0, %s49
      %s67 = sphi 0, %s67
      %s69 = sphi 0, %s67
      %s70 = sphi 0, %s69
      %s84 = sphi 0, %s70
    $region4: #{bottleneck_t_forward.4} parent=1 // loop_header_branch
      %15 = sbr.rel (%p13) target = $region8
    $region5: #{bottleneck_t_forward.4} parent=1 // loop_body
      %s17 = ssub.s32 %s12, 1
      %s18 = ssub.s32 %s12, 2
      %s19 = sadd.s32 %s12, 1
      %s20 = ssub.s32 %s12, %s19
      %p21 = scmp.eq.s32.totalorder %s20, 0
      %s23 = sadd.s32 %s22, 1
      %s24 = scalar_select %p21, %s22, %s23
      %p27 = pneg %p21
      %p28 = scmp.eq.s32.totalorder %s12, 1
      %p29 = por %p27, %p28
      %p30 = scmp.ne.s32.totalorder %s22, %s25
      %p31 = scmp.eq.s32.totalorder %s12, 0
      %p32 = por %p30, %p31
      %p33 = scmp.ne.s32.totalorder %s22, %s25
      %p34 = scmp.eq.s32.totalorder %s17, 1
      %p35 = por %p33, %p34
      %p36 = scmp.ne.s32.totalorder %s25, %s26
      %p37 = scmp.eq.s32.totalorder %s17, 0
      %p38 = por %p36, %p37
      %p39 = scmp.ne.s32.totalorder %s25, %s26
      %p40 = scmp.eq.s32.totalorder %s18, 1
      %p41 = por %p39, %p40
      %p43 = scmp.ne.s32.totalorder %s26, %s42
      %p44 = scmp.eq.s32.totalorder %s18, 0
      %p45 = por %p43, %p44
      %s47 = sadd.s32 %s46, 1
      %p50 = scmp.eq.s32.totalorder %s12, 1
      %p51 = scmp.ne.s32.totalorder %s46, %s48
      %p52 = scmp.eq.s32.totalorder %s12, 0
      %p53 = por %p51, %p52
      %p54 = scmp.ne.s32.totalorder %s46, %s48
      %p55 = scmp.eq.s32.totalorder %s17, 1
      %p56 = por %p54, %p55
      %p57 = scmp.ne.s32.totalorder %s48, %s49
      %p58 = scmp.eq.s32.totalorder %s17, 0
      %p59 = por %p57, %p58
      %p60 = scmp.ne.s32.totalorder %s48, %s49
      %p61 = scmp.eq.s32.totalorder %s18, 1
      %p62 = por %p60, %p61
      %p64 = scmp.ne.s32.totalorder %s49, %s63
      %p65 = scmp.eq.s32.totalorder %s18, 0
      %p66 = por %p64, %p65
      %s68 = sadd.s32 %s67, 1
      %p71 = scmp.eq.s32.totalorder %s12, 1
      %p72 = scmp.ne.s32.totalorder %s67, %s69
      %p73 = scmp.eq.s32.totalorder %s12, 0
      %p74 = por %p72, %p73
      %p75 = scmp.ne.s32.totalorder %s67, %s69
      %p76 = scmp.eq.s32.totalorder %s17, 1
      %p77 = por %p75, %p76
      %p78 = scmp.ne.s32.totalorder %s69, %s70
      %p79 = scmp.eq.s32.totalorder %s17, 0
      %p80 = por %p78, %p79
      %p81 = scmp.ne.s32.totalorder %s69, %s70
      %p82 = scmp.eq.s32.totalorder %s18, 1
      %p83 = por %p81, %p82
      %p85 = scmp.ne.s32.totalorder %s70, %s84
      %p86 = scmp.eq.s32.totalorder %s18, 0
      %p87 = por %p85, %p86
      %p88 = scmp.le.s32.totalorder 1, %s12
      %p89 = scmp.lt.s32.totalorder %s12, 3
      %p90 = pnand %p88, %p89
      %p91 = pneg %p90
      // Predicated region
      $region9: #{bottleneck_t_forward.4} parent=5 // pred_check
        _
      $region10: #{bottleneck_t_forward.4} parent=5 // pred_check_branch
        %93 = sbr.rel (%p90) target = $region12
      $region11: #{bottleneck_t_forward.4} parent=5 // pred_region
        %s94 = ssub.s32 %s12, 1
      $region12: #{bottleneck_t_forward.4} parent=5 // pred_fallthru
        _
      %p95 = scmp.lt.s32.totalorder %s12, 2
      // Predicated region
      $region13: #{bottleneck_t_forward.4} parent=5 // pred_check
        %p96 = pneg %p95
      $region14: #{bottleneck_t_forward.4} parent=5 // pred_check_branch
        %98 = sbr.rel (%p96) target = $region16
      $region15: #{bottleneck_t_forward.4} parent=5 // pred_region
        // Predicated region
        $region17: #{bottleneck_t_forward.4} parent=15 // pred_check
          %p99 = pneg %p32
        $region18: #{bottleneck_t_forward.4} parent=15 // pred_check_branch
          %101 = sbr.rel (%p99) target = $region20
        $region19: #{bottleneck_t_forward.4} parent=15 // pred_region
          %s102 = sand.u32 %s22, 1
          %s103 = scalar_lea.sflag [#allocation3], %s102
          %s104 = sand.u32 %s22, 1
          %s105 = smul.addr %s104, 64
          %s106 = scalar_lea.vmem [#allocation2], %s105
          %s107 = smul.u32 8, %s12
          %s109 = ssub.s32 1024, 1024
          %110 = vsyncadd %s103, %s109
          %s111 = smul.addr %s107, 128
          %s112 = scalar_lea.hbm %s0, %s111
          %s113 = sshll.u32 %s106, 4
          %s114 = int_to_ptr.vmem [resolvable:$true] %s113
          %119 = dma.hbm_to_vmem [thread:$0]  %s112, 1024, %s114, %s103, 128, 128, 8
        $region20: #{bottleneck_t_forward.4} parent=15 // pred_fallthru
          _
      $region16: #{bottleneck_t_forward.4} parent=5 // pred_fallthru
        _
      %p120 = scmp.le.s32.totalorder 1, %s12
      %p121 = scmp.lt.s32.totalorder %s12, 3
      %p122 = pnand %p120, %p121
      %p123 = pneg %p122
      // Predicated region
      $region21: #{bottleneck_t_forward.4} parent=5 // pred_check
        _
      $region22: #{bottleneck_t_forward.4} parent=5 // pred_check_branch
        %125 = sbr.rel (%p122) target = $region24
      $region23: #{bottleneck_t_forward.4} parent=5 // pred_region
        %s126 = ssub.s32 %s12, 1
        %s127 = sand.u32 %s25, 1
        %s128 = scalar_lea.sflag [#allocation3], %s127
        %s129 = sand.u32 %s25, 1
        %s130 = smul.addr %s129, 64
        %s131 = scalar_lea.vmem [#allocation2], %s130
        // Predicated region
        $region25: #{bottleneck_t_forward.4} parent=23 // pred_check
          %p132 = pneg %p38
        $region26: #{bottleneck_t_forward.4} parent=23 // pred_check_branch
          %134 = sbr.rel (%p132) target = $region28
        $region27: #{bottleneck_t_forward.4} parent=23 // pred_region
          %135 = dma.done %s128, 1024
        $region28: #{bottleneck_t_forward.4} parent=23 // pred_fallthru
          _
        %s136 = sand.u32 %s25, 1
        %s137 = scalar_lea.sflag [#allocation3], %s136
        %s138 = sand.u32 %s25, 1
        %s139 = smul.addr %s138, 64
        %s140 = scalar_lea.vmem [#allocation2], %s139
        %p141 = pneg %p38
        %p142 = pneg %p35
        %p143 = pneg %p59
        %p144 = pneg %p56
        %p145 = pneg %p80
        %p146 = pneg %p77
        %s147 = smul.u32 8, %s17
        %p148 = scmp.eq.s32.totalorder %s17, 0
        // Predicated region
        $region29: #{bottleneck_t_forward.4} parent=23 // pred_check
          %p149 = pneg %p148
        $region30: #{bottleneck_t_forward.4} parent=23 // pred_check_branch
          %151 = sbr.rel (%p149) target = $region32
        $region31: #{bottleneck_t_forward.4} parent=23 // pred_region
          %vm152 = vcmask 523264
          %153 = vst.msk [vmem:[%s1] sm:$0xff] %vm152, 0.0
          %154 = vst.msk [vmem:[%s2] sm:$0xff] %vm152, 0.0
        $region32: #{bottleneck_t_forward.4} parent=23 // pred_fallthru
          _
        %v155 = vld [vmem:[%s131] sm:$0xff]
        %v156 = vld [vmem:[%s131 + $0x8] sm:$0xff]
        %v157 = vld [vmem:[%s131 + $0x10] sm:$0xff]
        %v158 = vld [vmem:[%s131 + $0x18] sm:$0xff]
        %v159 = vld [vmem:[%s131 + $0x20] sm:$0xff]
        %v160 = vld [vmem:[%s131 + $0x28] sm:$0xff]
        %v161 = vld [vmem:[%s131 + $0x30] sm:$0xff]
        %v162 = vld [vmem:[%s131 + $0x38] sm:$0xff]
        %v163 = vld [vmem:[%s1] sm:$0xff]
        %v164 = vadd.f32 %v155, %v156
        %v165 = vadd.f32 %v164, %v157
        %v166 = vadd.f32 %v165, %v158
        %v167 = vadd.f32 %v166, %v159
        %v168 = vadd.f32 %v167, %v160
        %v169 = vadd.f32 %v168, %v161
        %v170 = vadd.f32 %v169, %v162
        %v171 = vadd.f32 %v163, %v170
        %vm172 = vcmask 523264
        %173 = vst.msk [vmem:[%s1] sm:$0xff] %vm172, %v171
        %v174 = vld [vmem:[%s2] sm:$0xff]
        %v175 = vmul.f32 %v155, %v155
        %v176 = vmul.f32 %v156, %v156
        %v177 = vmul.f32 %v157, %v157
        %v178 = vmul.f32 %v158, %v158
        %v179 = vmul.f32 %v159, %v159
        %v180 = vmul.f32 %v160, %v160
        %v181 = vmul.f32 %v161, %v161
        %v182 = vmul.f32 %v162, %v162
        %v183 = vadd.f32 %v175, %v176
        %v184 = vadd.f32 %v183, %v177
        %v185 = vadd.f32 %v184, %v178
        %v186 = vadd.f32 %v185, %v179
        %v187 = vadd.f32 %v186, %v180
        %v188 = vadd.f32 %v187, %v181
        %v189 = vadd.f32 %v188, %v182
        %v190 = vadd.f32 %v174, %v189
        %191 = vst.msk [vmem:[%s2] sm:$0xff] %vm172, %v190
        // Predicated region
        $region33: #{bottleneck_t_forward.4} parent=23 // pred_check
          %p192 = pneg %p56
        $region34: #{bottleneck_t_forward.4} parent=23 // pred_check_branch
          %194 = sbr.rel (%p192) target = $region36
        $region35: #{bottleneck_t_forward.4} parent=23 // pred_region
          _
        $region36: #{bottleneck_t_forward.4} parent=23 // pred_fallthru
          _
        // Predicated region
        $region37: #{bottleneck_t_forward.4} parent=23 // pred_check
          %p195 = pneg %p77
        $region38: #{bottleneck_t_forward.4} parent=23 // pred_check_branch
          %197 = sbr.rel (%p195) target = $region40
        $region39: #{bottleneck_t_forward.4} parent=23 // pred_region
          _
        $region40: #{bottleneck_t_forward.4} parent=23 // pred_fallthru
          _
        // Predicated region
        $region41: #{bottleneck_t_forward.4} parent=23 // pred_check
          %p198 = pneg %p56
        $region42: #{bottleneck_t_forward.4} parent=23 // pred_check_branch
          %200 = sbr.rel (%p198) target = $region44
        $region43: #{bottleneck_t_forward.4} parent=23 // pred_region
          _
        $region44: #{bottleneck_t_forward.4} parent=23 // pred_fallthru
          _
        // Predicated region
        $region45: #{bottleneck_t_forward.4} parent=23 // pred_check
          %p201 = pneg %p77
        $region46: #{bottleneck_t_forward.4} parent=23 // pred_check_branch
          %203 = sbr.rel (%p201) target = $region48
        $region47: #{bottleneck_t_forward.4} parent=23 // pred_region
          _
        $region48: #{bottleneck_t_forward.4} parent=23 // pred_fallthru
          _
      $region24: #{bottleneck_t_forward.4} parent=5 // pred_fallthru
        _
      %p204 = scmp.le.s32.totalorder 2, %s12
      // Predicated region
      $region49: #{bottleneck_t_forward.4} parent=5 // pred_check
        %p205 = pneg %p204
      $region50: #{bottleneck_t_forward.4} parent=5 // pred_check_branch
        %207 = sbr.rel (%p205) target = $region52
      $region51: #{bottleneck_t_forward.4} parent=5 // pred_region
        %s208 = ssub.s32 %s12, 2
      $region52: #{bottleneck_t_forward.4} parent=5 // pred_fallthru
        _
    $region6: #{bottleneck_t_forward.4} parent=1 // loop_footer
      %s16 = sadd.s32 1, %s12
    $region7: #{bottleneck_t_forward.4} parent=1 // loop_footer_branch
      %11 = sbr.rel target = $region3
    $region8: #{bottleneck_t_forward.4} parent=1 // loop_exit
      _
    %209 = vsyncpa [#allocation3], 1
    %s210 = scalar_lea.sflag [#allocation3], 1
    %211 = vsyncpa %s210, 1

// kernel: bottleneck_t_forward.7
$region0: #{bottleneck_t_forward.7}
  #allocation0 [shape = 'u32[]', space=smem, size = 0x4, offset = 0x4, fixed_abs, tag = 'smem constant byte address 0x4 - core index']
  #allocation1 [shape = 'u32[144,128]{1,0:T(1,128)}', space=vmem, size = 0x12000, scoped, tag = 'internal scratch']
  #allocation2 [shape = 'f32[64,64]{1,0:T(8,128)}', space=vmem, size = 0x8000, scoped, tag = 'scratch operand']
  %s0 = inlined_call_operand.vmem [shape: bf16[128,64], index: 0, kind: input, shape index: {}]
  %s1 = inlined_call_operand.vmem [shape: f32[1,64], index: 1, kind: input, shape index: {}]
  %s2 = inlined_call_operand.vmem [shape: f32[1,64], index: 2, kind: input, shape index: {}]
  %s3 = inlined_call_operand.vmem [shape: bf16[64,64], index: 3, kind: input, shape index: {}]
  %s4 = inlined_call_operand.vmem [shape: f32[128,64], index: 4, kind: input, shape index: {}]
  %s5 = inlined_call_operand.hbm [shape: f32[128,64], index: 5, kind: output, shape index: {}]
  %s6 = sld [smem:[#allocation0]]
  $region61: #{bottleneck_t_forward.7} parent=0
    _
  %s8 = ssub.s32 1, %s6
  %s9 = scalar_select 0, %s8, %s6
  $region1: #{bottleneck_t_forward.7} parent=0
    #allocation3 [shape = 'u8[65536]{0}', space=vmem, size = 0x10000, scoped, tag = 'output window, operand 0']
    #allocation4 [shape = 's32[2]{0}', space=sflag, size = 0x8, scoped, tag = 'scoped memory for bottleneck_t_forward.7']
    %10 = vsyncpa [#allocation4], 0
    %s11 = scalar_lea.sflag [#allocation4], 1
    %12 = vsyncpa %s11, 0
    loop: start=0, step=1, limit=4
    $region2: #{bottleneck_t_forward.7} parent=1 // loop_pre_header
      _
    $region3: #{bottleneck_t_forward.7} parent=1 // loop_header
      %s14 = sphi 0, %s18
      %p15 = scmp.ge.s32.totalorder %s14, 4
      %s21 = sphi 0, %s33
      %s22 = sphi 0, %s29
      %s23 = sphi 0, %s21
      %s24 = sphi 0, %s22
      %s25 = sphi 0, %s23
      %s26 = sphi 0, %s24
      %s38 = sphi 0, %s40
      %s41 = sphi 0, %s38
      %s42 = sphi 0, %s41
      %s58 = sphi 0, %s42
      %s64 = sphi 0, %s66
      %s67 = sphi 0, %s64
      %s68 = sphi 0, %s67
      %s84 = sphi 0, %s68
      %s90 = sphi 0, %s92
      %s93 = sphi 0, %s90
      %s94 = sphi 0, %s93
      %s110 = sphi 0, %s94
      %s116 = sphi 0, %s118
      %s119 = sphi 0, %s116
      %s120 = sphi 0, %s119
      %s136 = sphi 0, %s120
      %s142 = sphi 0, %s144
      %s145 = sphi 0, %s142
      %s146 = sphi 0, %s145
      %s162 = sphi 0, %s146
      %s168 = sphi 0, %s170
      %s171 = sphi 0, %s168
      %s172 = sphi 0, %s171
      %s188 = sphi 0, %s172
    $region4: #{bottleneck_t_forward.7} parent=1 // loop_header_branch
      %17 = sbr.rel (%p15) target = $region8
    $region5: #{bottleneck_t_forward.7} parent=1 // loop_body
      %s19 = ssub.s32 %s14, 1
      %s20 = ssub.s32 %s14, 2
      %s27 = sadd.s32 1, %s22
      %p28 = scmp.ge.s32.totalorder %s27, 1
      %s29 = scalar_select %p28, 0, %s27
      %s30 = sadd.s32 1, %s21
      %s31 = scalar_select %p28, %s30, %s21
      %p32 = scmp.ge.s32.totalorder %s31, 2
      %s33 = scalar_select %p32, 0, %s31
      %s34 = ssub.s32 %s21, %s33
      %s35 = ssub.s32 %s22, %s29
      %s36 = sor.u32 %s34, %s35
      %p37 = scmp.eq.s32.totalorder %s36, 0
      %s39 = sadd.s32 %s38, 1
      %s40 = scalar_select %p37, %s38, %s39
      %p43 = pneg %p37
      %p44 = scmp.eq.s32.totalorder %s14, 1
      %p45 = por %p43, %p44
      %p46 = scmp.ne.s32.totalorder %s38, %s41
      %p47 = scmp.eq.s32.totalorder %s14, 0
      %p48 = por %p46, %p47
      %p49 = scmp.ne.s32.totalorder %s38, %s41
      %p50 = scmp.eq.s32.totalorder %s19, 1
      %p51 = por %p49, %p50
      %p52 = scmp.ne.s32.totalorder %s41, %s42
      %p53 = scmp.eq.s32.totalorder %s19, 0
      %p54 = por %p52, %p53
      %p55 = scmp.ne.s32.totalorder %s41, %s42
      %p56 = scmp.eq.s32.totalorder %s20, 1
      %p57 = por %p55, %p56
      %p59 = scmp.ne.s32.totalorder %s42, %s58
      %p60 = scmp.eq.s32.totalorder %s20, 0
      %p61 = por %p59, %p60
      %s62 = ssub.s32 %s22, %s29
      %p63 = scmp.eq.s32.totalorder %s62, 0
      %s65 = sadd.s32 %s64, 1
      %s66 = scalar_select %p63, %s64, %s65
      %p69 = pneg %p63
      %p70 = scmp.eq.s32.totalorder %s14, 1
      %p71 = por %p69, %p70
      %p72 = scmp.ne.s32.totalorder %s64, %s67
      %p73 = scmp.eq.s32.totalorder %s14, 0
      %p74 = por %p72, %p73
      %p75 = scmp.ne.s32.totalorder %s64, %s67
      %p76 = scmp.eq.s32.totalorder %s19, 1
      %p77 = por %p75, %p76
      %p78 = scmp.ne.s32.totalorder %s67, %s68
      %p79 = scmp.eq.s32.totalorder %s19, 0
      %p80 = por %p78, %p79
      %p81 = scmp.ne.s32.totalorder %s67, %s68
      %p82 = scmp.eq.s32.totalorder %s20, 1
      %p83 = por %p81, %p82
      %p85 = scmp.ne.s32.totalorder %s68, %s84
      %p86 = scmp.eq.s32.totalorder %s20, 0
      %p87 = por %p85, %p86
      %s88 = ssub.s32 %s22, %s29
      %p89 = scmp.eq.s32.totalorder %s88, 0
      %s91 = sadd.s32 %s90, 1
      %s92 = scalar_select %p89, %s90, %s91
      %p95 = pneg %p89
      %p96 = scmp.eq.s32.totalorder %s14, 1
      %p97 = por %p95, %p96
      %p98 = scmp.ne.s32.totalorder %s90, %s93
      %p99 = scmp.eq.s32.totalorder %s14, 0
      %p100 = por %p98, %p99
      %p101 = scmp.ne.s32.totalorder %s90, %s93
      %p102 = scmp.eq.s32.totalorder %s19, 1
      %p103 = por %p101, %p102
      %p104 = scmp.ne.s32.totalorder %s93, %s94
      %p105 = scmp.eq.s32.totalorder %s19, 0
      %p106 = por %p104, %p105
      %p107 = scmp.ne.s32.totalorder %s93, %s94
      %p108 = scmp.eq.s32.totalorder %s20, 1
      %p109 = por %p107, %p108
      %p111 = scmp.ne.s32.totalorder %s94, %s110
      %p112 = scmp.eq.s32.totalorder %s20, 0
      %p113 = por %p111, %p112
      %s114 = ssub.s32 %s22, %s29
      %p115 = scmp.eq.s32.totalorder %s114, 0
      %s117 = sadd.s32 %s116, 1
      %s118 = scalar_select %p115, %s116, %s117
      %p121 = pneg %p115
      %p122 = scmp.eq.s32.totalorder %s14, 1
      %p123 = por %p121, %p122
      %p124 = scmp.ne.s32.totalorder %s116, %s119
      %p125 = scmp.eq.s32.totalorder %s14, 0
      %p126 = por %p124, %p125
      %p127 = scmp.ne.s32.totalorder %s116, %s119
      %p128 = scmp.eq.s32.totalorder %s19, 1
      %p129 = por %p127, %p128
      %p130 = scmp.ne.s32.totalorder %s119, %s120
      %p131 = scmp.eq.s32.totalorder %s19, 0
      %p132 = por %p130, %p131
      %p133 = scmp.ne.s32.totalorder %s119, %s120
      %p134 = scmp.eq.s32.totalorder %s20, 1
      %p135 = por %p133, %p134
      %p137 = scmp.ne.s32.totalorder %s120, %s136
      %p138 = scmp.eq.s32.totalorder %s20, 0
      %p139 = por %p137, %p138
      %s140 = ssub.s32 %s21, %s33
      %p141 = scmp.eq.s32.totalorder %s140, 0
      %s143 = sadd.s32 %s142, 1
      %s144 = scalar_select %p141, %s142, %s143
      %p147 = pneg %p141
      %p148 = scmp.eq.s32.totalorder %s14, 1
      %p149 = por %p147, %p148
      %p150 = scmp.ne.s32.totalorder %s142, %s145
      %p151 = scmp.eq.s32.totalorder %s14, 0
      %p152 = por %p150, %p151
      %p153 = scmp.ne.s32.totalorder %s142, %s145
      %p154 = scmp.eq.s32.totalorder %s19, 1
      %p155 = por %p153, %p154
      %p156 = scmp.ne.s32.totalorder %s145, %s146
      %p157 = scmp.eq.s32.totalorder %s19, 0
      %p158 = por %p156, %p157
      %p159 = scmp.ne.s32.totalorder %s145, %s146
      %p160 = scmp.eq.s32.totalorder %s20, 1
      %p161 = por %p159, %p160
      %p163 = scmp.ne.s32.totalorder %s146, %s162
      %p164 = scmp.eq.s32.totalorder %s20, 0
      %p165 = por %p163, %p164
      %s166 = ssub.s32 %s21, %s33
      %p167 = scmp.eq.s32.totalorder %s166, 0
      %s169 = sadd.s32 %s168, 1
      %s170 = scalar_select %p167, %s168, %s169
      %p173 = pneg %p167
      %p174 = scmp.eq.s32.totalorder %s14, 1
      %p175 = por %p173, %p174
      %p176 = scmp.ne.s32.totalorder %s168, %s171
      %p177 = scmp.eq.s32.totalorder %s14, 0
      %p178 = por %p176, %p177
      %p179 = scmp.ne.s32.totalorder %s168, %s171
      %p180 = scmp.eq.s32.totalorder %s19, 1
      %p181 = por %p179, %p180
      %p182 = scmp.ne.s32.totalorder %s171, %s172
      %p183 = scmp.eq.s32.totalorder %s19, 0
      %p184 = por %p182, %p183
      %p185 = scmp.ne.s32.totalorder %s171, %s172
      %p186 = scmp.eq.s32.totalorder %s20, 1
      %p187 = por %p185, %p186
      %p189 = scmp.ne.s32.totalorder %s172, %s188
      %p190 = scmp.eq.s32.totalorder %s20, 0
      %p191 = por %p189, %p190
      %p192 = scmp.le.s32.totalorder 1, %s14
      %p193 = scmp.lt.s32.totalorder %s14, 3
      %p194 = pnand %p192, %p193
      %p195 = pneg %p194
      // Predicated region
      $region9: #{bottleneck_t_forward.7} parent=5 // pred_check
        _
      $region10: #{bottleneck_t_forward.7} parent=5 // pred_check_branch
        %197 = sbr.rel (%p194) target = $region12
      $region11: #{bottleneck_t_forward.7} parent=5 // pred_region
        %s198 = ssub.s32 %s14, 1
        // Predicated region
        $region13: #{bottleneck_t_forward.7} parent=11 // pred_check
          %p199 = pneg %p80
        $region14: #{bottleneck_t_forward.7} parent=11 // pred_check_branch
          %201 = sbr.rel (%p199) target = $region16
        $region15: #{bottleneck_t_forward.7} parent=11 // pred_region
          %p202 = scmp.lt.s32.totalorder %s24, 0
          %s203 = scalar_select %p202, %s24, 0
          %s204 = scalar_lea.vmem %s1, %s203
        $region16: #{bottleneck_t_forward.7} parent=11 // pred_fallthru
          _
        // Predicated region
        $region17: #{bottleneck_t_forward.7} parent=11 // pred_check
          %p205 = pneg %p106
        $region18: #{bottleneck_t_forward.7} parent=11 // pred_check_branch
          %207 = sbr.rel (%p205) target = $region20
        $region19: #{bottleneck_t_forward.7} parent=11 // pred_region
          %p208 = scmp.lt.s32.totalorder %s24, 0
          %s209 = scalar_select %p208, %s24, 0
          %s210 = scalar_lea.vmem %s2, %s209
        $region20: #{bottleneck_t_forward.7} parent=11 // pred_fallthru
          _
        // Predicated region
        $region21: #{bottleneck_t_forward.7} parent=11 // pred_check
          %p211 = pneg %p132
        $region22: #{bottleneck_t_forward.7} parent=11 // pred_check_branch
          %213 = sbr.rel (%p211) target = $region24
        $region23: #{bottleneck_t_forward.7} parent=11 // pred_region
          %s214 = smul.u32 8, %s24
          %p215 = scmp.lt.s32.totalorder %s214, 7
          %s216 = scalar_select %p215, %s214, 7
          %s217 = smul.addr %s216, 4
          %s218 = scalar_lea.vmem %s3, %s217
          %s219 = smul.u32 8, %s24
        $region24: #{bottleneck_t_forward.7} parent=11 // pred_fallthru
          _
      $region12: #{bottleneck_t_forward.7} parent=5 // pred_fallthru
        _
      %p220 = scmp.lt.s32.totalorder %s14, 2
      // Predicated region
      $region25: #{bottleneck_t_forward.7} parent=5 // pred_check
        %p221 = pneg %p220
      $region26: #{bottleneck_t_forward.7} parent=5 // pred_check_branch
        %223 = sbr.rel (%p221) target = $region28
      $region27: #{bottleneck_t_forward.7} parent=5 // pred_region
        // Predicated region
        $region29: #{bottleneck_t_forward.7} parent=27 // pred_check
          %p224 = pneg %p48
        $region30: #{bottleneck_t_forward.7} parent=27 // pred_check_branch
          %226 = sbr.rel (%p224) target = $region32
        $region31: #{bottleneck_t_forward.7} parent=27 // pred_region
          %s227 = smul.u32 8, %s21
          %p228 = scmp.lt.s32.totalorder %s227, 15
          %s229 = scalar_select %p228, %s227, 15
          %p230 = scmp.lt.s32.totalorder %s22, 0
          %s231 = scalar_select %p230, %s22, 0
          %s232 = sadd.s32 %s231, %s229
          %s233 = smul.addr %s232, 4
          %s234 = scalar_lea.vmem %s0, %s233
          %s235 = smul.u32 8, %s21
        $region32: #{bottleneck_t_forward.7} parent=27 // pred_fallthru
          _
        // Predicated region
        $region33: #{bottleneck_t_forward.7} parent=27 // pred_check
          %p236 = pneg %p152
        $region34: #{bottleneck_t_forward.7} parent=27 // pred_check_branch
          %238 = sbr.rel (%p236) target = $region36
        $region35: #{bottleneck_t_forward.7} parent=27 // pred_region
          %s239 = smul.u32 8, %s21
          %p240 = scmp.lt.s32.totalorder %s239, 15
          %s241 = scalar_select %p240, %s239, 15
          %s242 = smul.addr %s241, 8
          %s243 = scalar_lea.vmem %s4, %s242
          %s244 = smul.u32 8, %s21
        $region36: #{bottleneck_t_forward.7} parent=27 // pred_fallthru
          _
      $region28: #{bottleneck_t_forward.7} parent=5 // pred_fallthru
        _
      %p245 = scmp.le.s32.totalorder 1, %s14
      %p246 = scmp.lt.s32.totalorder %s14, 3
      %p247 = pnand %p245, %p246
      %p248 = pneg %p247
      // Predicated region
      $region37: #{bottleneck_t_forward.7} parent=5 // pred_check
        _
      $region38: #{bottleneck_t_forward.7} parent=5 // pred_check_branch
        %250 = sbr.rel (%p247) target = $region40
      $region39: #{bottleneck_t_forward.7} parent=5 // pred_region
        %s251 = ssub.s32 %s14, 1
        %s252 = smul.u32 8, %s23
        %p253 = scmp.lt.s32.totalorder %s252, 15
        %s254 = scalar_select %p253, %s252, 15
        %p255 = scmp.lt.s32.totalorder %s24, 0
        %s256 = scalar_select %p255, %s24, 0
        %s257 = sadd.s32 %s256, %s254
        %s258 = smul.addr %s257, 4
        %s259 = scalar_lea.vmem %s0, %s258
        %p260 = pneg %p54
        %p261 = pneg %p51
        %p262 = scmp.lt.s32.totalorder %s24, 0
        %s263 = scalar_select %p262, %s24, 0
        %s264 = scalar_lea.vmem %s1, %s263
        %p265 = pneg %p80
        %p266 = pneg %p77
        %p267 = scmp.lt.s32.totalorder %s24, 0
        %s268 = scalar_select %p267, %s24, 0
        %s269 = scalar_lea.vmem %s2, %s268
        %p270 = pneg %p106
        %p271 = pneg %p103
        %s272 = smul.u32 8, %s24
        %p273 = scmp.lt.s32.totalorder %s272, 7
        %s274 = scalar_select %p273, %s272, 7
        %s275 = smul.addr %s274, 4
        %s276 = scalar_lea.vmem %s3, %s275
        %p277 = pneg %p132
        %p278 = pneg %p129
        %s279 = smul.u32 8, %s23
        %p280 = scmp.lt.s32.totalorder %s279, 15
        %s281 = scalar_select %p280, %s279, 15
        %s282 = smul.addr %s281, 8
        %s283 = scalar_lea.vmem %s4, %s282
        %p284 = pneg %p158
        %p285 = pneg %p155
        %p286 = pneg %p184
        %p287 = pneg %p181
        %s288 = sand.u32 %s171, 1
        %s289 = scalar_lea.sflag [#allocation4], %s288
        %s290 = sand.u32 %s171, 1
        %s291 = smul.addr %s290, 64
        %s292 = scalar_lea.vmem [#allocation3], %s291
        %s293 = smul.u32 8, %s23
        %p294 = scmp.lt.s32.totalorder %s293, 15
        %s295 = scalar_select %p294, %s293, 15
        %p296 = scmp.lt.s32.totalorder %s24, 0
        %s297 = scalar_select %p296, %s24, 0
        %s298 = sadd.s32 %s297, %s295
        %s299 = smul.addr %s298, 4
        %s300 = scalar_lea.vmem %s0, %s299
        %s301 = smul.u32 8, %s23
        %p302 = scmp.lt.s32.totalorder %s24, 0
        %s303 = scalar_select %p302, %s24, 0
        %s304 = scalar_lea.vmem %s1, %s303
        %p305 = scmp.lt.s32.totalorder %s24, 0
        %s306 = scalar_select %p305, %s24, 0
        %s307 = scalar_lea.vmem %s2, %s306
        %s308 = smul.u32 8, %s24
        %p309 = scmp.lt.s32.totalorder %s308, 7
        %s310 = scalar_select %p309, %s308, 7
        %s311 = smul.addr %s310, 4
        %s312 = scalar_lea.vmem %s3, %s311
        %s313 = smul.u32 8, %s24
        %s314 = smul.u32 8, %s23
        %p315 = scmp.lt.s32.totalorder %s314, 15
        %s316 = scalar_select %p315, %s314, 15
        %s317 = smul.addr %s316, 8
        %s318 = scalar_lea.vmem %s4, %s317
        %s319 = smul.u32 8, %s23
        %s320 = smul.u32 8, %s23
        %p322 = scmp.eq.s32.totalorder %s24, 0
        // Predicated region
        $region41: #{bottleneck_t_forward.7} parent=39 // pred_check
          %p323 = pneg %p322
        $region42: #{bottleneck_t_forward.7} parent=39 // pred_check_branch
          %325 = sbr.rel (%p323) target = $region44
        $region43: #{bottleneck_t_forward.7} parent=39 // pred_region
          %vm326 = vcmask 523264
          %327 = vst.msk [vmem:[#allocation2] sm:$0xff] %vm326, 0.0
          %328 = vst.msk [vmem:[#allocation2 + $0x8] sm:$0xff] %vm326, 0.0
          %329 = vst.msk [vmem:[#allocation2 + $0x10] sm:$0xff] %vm326, 0.0
          %330 = vst.msk [vmem:[#allocation2 + $0x18] sm:$0xff] %vm326, 0.0
          %331 = vst.msk [vmem:[#allocation2 + $0x20] sm:$0xff] %vm326, 0.0
          %332 = vst.msk [vmem:[#allocation2 + $0x28] sm:$0xff] %vm326, 0.0
          %333 = vst.msk [vmem:[#allocation2 + $0x30] sm:$0xff] %vm326, 0.0
          %334 = vst.msk [vmem:[#allocation2 + $0x38] sm:$0xff] %vm326, 0.0
        $region44: #{bottleneck_t_forward.7} parent=39 // pred_fallthru
          _
        %v335 = vld [vmem:[%s300] sm:$0xf]
        %v336 = vld [vmem:[%s300 + $0x4] sm:$0xf]
        %v337 = vld [vmem:[%s300 + $0x8] sm:$0xf]
        %v338 = vld [vmem:[%s300 + $0xc] sm:$0xf]
        %v339 = vld [vmem:[%s300 + $0x10] sm:$0xf]
        %v340 = vld [vmem:[%s300 + $0x14] sm:$0xf]
        %v341 = vld [vmem:[%s300 + $0x18] sm:$0xf]
        %v342 = vld [vmem:[%s300 + $0x1c] sm:$0xf]
        %v343 = vunpack.c.l.bf16 %v335
        %v344 = vunpack.c.l.bf16 %v336
        %v345 = vunpack.c.l.bf16 %v337
        %v346 = vunpack.c.l.bf16 %v338
        %v347 = vunpack.c.l.bf16 %v339
        %v348 = vunpack.c.l.bf16 %v340
        %v349 = vunpack.c.l.bf16 %v341
        %v350 = vunpack.c.l.bf16 %v342
        %v351 = vld [vmem:[%s304] sm:$0x1]
        %v353 = vlaneseq
        %v354 = vshrl.u32 %v353, 7
        %v355 = vsub.s32 0, %v354
        %v356 = vrot.slane %v351, %v355
        %v358 = vmul.f32 %v343, %v356
        %v359 = vmul.f32 %v344, %v356
        %v360 = vmul.f32 %v345, %v356
        %v361 = vmul.f32 %v346, %v356
        %v362 = vmul.f32 %v347, %v356
        %v363 = vmul.f32 %v348, %v356
        %v364 = vmul.f32 %v349, %v356
        %v365 = vmul.f32 %v350, %v356
        %v366 = vld [vmem:[%s307] sm:$0x1]
        %v368 = vlaneseq
        %v369 = vshrl.u32 %v368, 7
        %v370 = vsub.s32 0, %v369
        %v371 = vrot.slane %v366, %v370
        %v373 = vadd.f32 %v358, %v371
        %v374 = vadd.f32 %v359, %v371
        %v375 = vadd.f32 %v360, %v371
        %v376 = vadd.f32 %v361, %v371
        %v377 = vadd.f32 %v362, %v371
        %v378 = vadd.f32 %v363, %v371
        %v379 = vadd.f32 %v364, %v371
        %v380 = vadd.f32 %v365, %v371
        %v381 = vld [vmem:[#allocation2] sm:$0xff]
        %v382 = vld [vmem:[#allocation2 + $0x8] sm:$0xff]
        %v383 = vld [vmem:[#allocation2 + $0x10] sm:$0xff]
        %v384 = vld [vmem:[#allocation2 + $0x18] sm:$0xff]
        %v385 = vld [vmem:[#allocation2 + $0x20] sm:$0xff]
        %v386 = vld [vmem:[#allocation2 + $0x28] sm:$0xff]
        %v387 = vld [vmem:[#allocation2 + $0x30] sm:$0xff]
        %v388 = vld [vmem:[#allocation2 + $0x38] sm:$0xff]
        %v389 = vpack.c.bf16 %v374, %v373
        %v390 = vpack.c.bf16 %v376, %v375
        %v391 = vpack.c.bf16 %v378, %v377
        %v392 = vpack.c.bf16 %v380, %v379
        %v393 = vld [vmem:[%s312] sm:$0xf]
        %v394 = vld [vmem:[%s312 + $0x4] sm:$0xf]
        %v395 = vld [vmem:[%s312 + $0x8] sm:$0xf]
        %v396 = vld [vmem:[%s312 + $0xc] sm:$0xf]
        %v397 = vld [vmem:[%s312 + $0x10] sm:$0xf]
        %v398 = vld [vmem:[%s312 + $0x14] sm:$0xf]
        %v399 = vld [vmem:[%s312 + $0x18] sm:$0xf]
        %v400 = vld [vmem:[%s312 + $0x1c] sm:$0xf]
        %v409 = vunpack.c.l.b16 %v393
        %v410 = vunpack.c.l.b16 %v394
        %v411 = vunpack.c.l.b16 %v395
        %v412 = vunpack.c.l.b16 %v396
        %v413 = vunpack.c.l.b16 %v397
        %v414 = vunpack.c.l.b16 %v398
        %v415 = vunpack.c.l.b16 %v399
        %v416 = vunpack.c.l.b16 %v400
        %v417 = vpack.c.b16 %v410, %v409
        %v418 = vpack.c.b16 %v412, %v411
        %v419 = vpack.c.b16 %v414, %v413
        %v420 = vpack.c.b16 %v416, %v415
        %vm425 = vcmask 523264
        %v427 = vsel %vm425, %v389, 0
        %v430 = vsel %vm425, %v390, 0
        %v433 = vsel %vm425, %v391, 0
        %v436 = vsel %vm425, %v392, 0
        %438 = vmatprep.subr.bf16.mxu0 0
        %439 = vmatpush1.bf16.msra.mxu0 %v417
        %440 = vmatprep.subr.bf16.mxu0 0
        %441 = vmatpush1.bf16.msra.mxu0 %v418
        %442 = vmatprep.subr.bf16.mxu0 0
        %443 = vmatpush1.bf16.msra.mxu0 %v419
        %444 = vmatprep.subr.bf16.mxu0 0
        %445 = vmatpush1.bf16.msra.mxu0 %v420
        %446 = vmatprep.subr.bf16.mxu0 0
        %447 = vmatpush1.bf16.msra.mxu0 0
        %448 = vmatprep.subr.bf16.mxu0 0
        %449 = vmatpush1.bf16.msra.mxu0 0
        %450 = vmatprep.subr.bf16.mxu0 0
        %451 = vmatpush1.bf16.msra.mxu0 0
        %452 = vmatprep.subr.bf16.mxu0 0
        %453 = vmatpush1.bf16.msra.mxu0 0
        %454 = vmatprep.subr.bf16.mxu0 0
        %455 = vmatpush1.bf16.msra.mxu0 0
        %456 = vmatprep.subr.bf16.mxu0 0
        %457 = vmatpush1.bf16.msra.mxu0 0
        %458 = vmatprep.subr.bf16.mxu0 0
        %459 = vmatpush1.bf16.msra.mxu0 0
        %460 = vmatprep.subr.bf16.mxu0 0
        %461 = vmatpush1.bf16.msra.mxu0 0
        %462 = vmatprep.subr.bf16.mxu0 0
        %463 = vmatpush1.bf16.msra.mxu0 0
        %464 = vmatprep.subr.bf16.mxu0 0
        %465 = vmatpush1.bf16.msra.mxu0 0
        %466 = vmatprep.subr.bf16.mxu0 0
        %467 = vmatpush1.bf16.msra.mxu0 0
        %468 = vmatprep.subr.bf16.mxu0 0
        %469 = vmatpush1.bf16.msra.mxu0 0
        %470 = vmatprep.mubr.bf16.mxu0 0
        %471 = vmatmul.mubr.bf16.gmra.mrb[0].mxu0 %v427
        %v472 = vpop.f32.mrb[0].mxu0
        %v473 = vadd.f32 0.0, %v472
        %v474 = vpop.f32.mrb[0].mxu0
        %v475 = vpop.f32.mrb[0].mxu0
        %v476 = vadd.f32 0.0, %v475
        %v477 = vpop.f32.mrb[0].mxu0
        %478 = vmatprep.mubr.bf16.mxu0 0
        %479 = vmatmul.mubr.bf16.gmra.mrb[0].mxu0 %v430
        %v480 = vpop.f32.mrb[0].mxu0
        %v481 = vadd.f32 0.0, %v480
        %v482 = vpop.f32.mrb[0].mxu0
        %v483 = vpop.f32.mrb[0].mxu0
        %v484 = vadd.f32 0.0, %v483
        %v485 = vpop.f32.mrb[0].mxu0
        %486 = vmatprep.mubr.bf16.mxu0 0
        %487 = vmatmul.mubr.bf16.gmra.mrb[0].mxu0 %v433
        %v488 = vpop.f32.mrb[0].mxu0
        %v489 = vadd.f32 0.0, %v488
        %v490 = vpop.f32.mrb[0].mxu0
        %v491 = vpop.f32.mrb[0].mxu0
        %v492 = vadd.f32 0.0, %v491
        %v493 = vpop.f32.mrb[0].mxu0
        %494 = vmatprep.mubr.bf16.mxu0 0
        %495 = vmatmul.mubr.bf16.gmra.mrb[0].mxu0 %v436
        %v496 = vpop.f32.mrb[0].mxu0
        %v497 = vadd.f32 0.0, %v496
        %v498 = vpop.f32.mrb[0].mxu0
        %v499 = vpop.f32.mrb[0].mxu0
        %v500 = vadd.f32 0.0, %v499
        %v501 = vpop.f32.mrb[0].mxu0
        %502 = vdwg.mxu0
        %v503 = vadd.f32 %v381, %v473
        %v504 = vadd.f32 %v382, %v476
        %v505 = vadd.f32 %v383, %v481
        %v506 = vadd.f32 %v384, %v484
        %v507 = vadd.f32 %v385, %v489
        %v508 = vadd.f32 %v386, %v492
        %v509 = vadd.f32 %v387, %v497
        %v510 = vadd.f32 %v388, %v500
        %511 = vst.msk [vmem:[#allocation2] sm:$0xff] %vm425, %v503
        %512 = vst.msk [vmem:[#allocation2 + $0x8] sm:$0xff] %vm425, %v504
        %513 = vst.msk [vmem:[#allocation2 + $0x10] sm:$0xff] %vm425, %v505
        %514 = vst.msk [vmem:[#allocation2 + $0x18] sm:$0xff] %vm425, %v506
        %515 = vst.msk [vmem:[#allocation2 + $0x20] sm:$0xff] %vm425, %v507
        %516 = vst.msk [vmem:[#allocation2 + $0x28] sm:$0xff] %vm425, %v508
        %517 = vst.msk [vmem:[#allocation2 + $0x30] sm:$0xff] %vm425, %v509
        %518 = vst.msk [vmem:[#allocation2 + $0x38] sm:$0xff] %vm425, %v510
        // Predicated region
        $region45: #{bottleneck_t_forward.7} parent=39 // pred_check
          %p519 = pneg %p322
        $region46: #{bottleneck_t_forward.7} parent=39 // pred_check_branch
          %521 = sbr.rel (%p519) target = $region48
        $region47: #{bottleneck_t_forward.7} parent=39 // pred_region
          %v522 = vld [vmem:[#allocation2] sm:$0xff]
          %v523 = vld [vmem:[#allocation2 + $0x8] sm:$0xff]
          %v524 = vld [vmem:[#allocation2 + $0x10] sm:$0xff]
          %v525 = vld [vmem:[#allocation2 + $0x18] sm:$0xff]
          %v526 = vld [vmem:[#allocation2 + $0x20] sm:$0xff]
          %v527 = vld [vmem:[#allocation2 + $0x28] sm:$0xff]
          %v528 = vld [vmem:[#allocation2 + $0x30] sm:$0xff]
          %v529 = vld [vmem:[#allocation2 + $0x38] sm:$0xff]
          %v530 = vld [vmem:[%s318] sm:$0xff]
          %v531 = vld [vmem:[%s318 + $0x8] sm:$0xff]
          %v532 = vld [vmem:[%s318 + $0x10] sm:$0xff]
          %v533 = vld [vmem:[%s318 + $0x18] sm:$0xff]
          %v534 = vld [vmem:[%s318 + $0x20] sm:$0xff]
          %v535 = vld [vmem:[%s318 + $0x28] sm:$0xff]
          %v536 = vld [vmem:[%s318 + $0x30] sm:$0xff]
          %v537 = vld [vmem:[%s318 + $0x38] sm:$0xff]
          %v538 = vadd.f32 %v522, %v530
          %v539 = vadd.f32 %v523, %v531
          %v540 = vadd.f32 %v524, %v532
          %v541 = vadd.f32 %v525, %v533
          %v542 = vadd.f32 %v526, %v534
          %v543 = vadd.f32 %v527, %v535
          %v544 = vadd.f32 %v528, %v536
          %v545 = vadd.f32 %v529, %v537
          %v546 = vmax.f32 %v538, 0.0
          %v547 = vmax.f32 %v539, 0.0
          %v548 = vmax.f32 %v540, 0.0
          %v549 = vmax.f32 %v541, 0.0
          %v550 = vmax.f32 %v542, 0.0
          %v551 = vmax.f32 %v543, 0.0
          %v552 = vmax.f32 %v544, 0.0
          %v553 = vmax.f32 %v545, 0.0
          %554 = vst.msk [vmem:[%s292] sm:$0xff] %vm425, %v546
          %555 = vst.msk [vmem:[%s292 + $0x8] sm:$0xff] %vm425, %v547
          %556 = vst.msk [vmem:[%s292 + $0x10] sm:$0xff] %vm425, %v548
          %557 = vst.msk [vmem:[%s292 + $0x18] sm:$0xff] %vm425, %v549
          %558 = vst.msk [vmem:[%s292 + $0x20] sm:$0xff] %vm425, %v550
          %559 = vst.msk [vmem:[%s292 + $0x28] sm:$0xff] %vm425, %v551
          %560 = vst.msk [vmem:[%s292 + $0x30] sm:$0xff] %vm425, %v552
          %561 = vst.msk [vmem:[%s292 + $0x38] sm:$0xff] %vm425, %v553
        $region48: #{bottleneck_t_forward.7} parent=39 // pred_fallthru
          _
        %s562 = sand.u32 %s171, 1
        %s563 = scalar_lea.sflag [#allocation4], %s562
        %s564 = sand.u32 %s171, 1
        %s565 = smul.addr %s564, 64
        %s566 = scalar_lea.vmem [#allocation3], %s565
        // Predicated region
        $region49: #{bottleneck_t_forward.7} parent=39 // pred_check
          %p567 = pneg %p181
        $region50: #{bottleneck_t_forward.7} parent=39 // pred_check_branch
          %569 = sbr.rel (%p567) target = $region52
        $region51: #{bottleneck_t_forward.7} parent=39 // pred_region
          %s570 = smul.u32 8, %s23
          %s572 = ssub.s32 1024, 1024
          %573 = vsyncadd %s563, %s572
          %s574 = smul.addr %s570, 128
          %s575 = scalar_lea.hbm %s5, %s574
          %s576 = sshll.u32 %s566, 4
          %s577 = int_to_ptr.vmem [resolvable:$true] %s576
          %582 = dma.vmem_to_hbm [thread:$0]  %s577, 1024, %s575, %s563, 128, 128, 8
        $region52: #{bottleneck_t_forward.7} parent=39 // pred_fallthru
          _
      $region40: #{bottleneck_t_forward.7} parent=5 // pred_fallthru
        _
      %p583 = scmp.le.s32.totalorder 2, %s14
      // Predicated region
      $region53: #{bottleneck_t_forward.7} parent=5 // pred_check
        %p584 = pneg %p583
      $region54: #{bottleneck_t_forward.7} parent=5 // pred_check_branch
        %586 = sbr.rel (%p584) target = $region56
      $region55: #{bottleneck_t_forward.7} parent=5 // pred_region
        %s587 = ssub.s32 %s14, 2
        // Predicated region
        $region57: #{bottleneck_t_forward.7} parent=55 // pred_check
          %p588 = pneg %p187
        $region58: #{bottleneck_t_forward.7} parent=55 // pred_check_branch
          %590 = sbr.rel (%p588) target = $region60
        $region59: #{bottleneck_t_forward.7} parent=55 // pred_region
          %s591 = sand.u32 %s172, 1
          %s592 = scalar_lea.sflag [#allocation4], %s591
          %s593 = sand.u32 %s172, 1
          %s594 = smul.addr %s593, 64
          %s595 = scalar_lea.vmem [#allocation3], %s594
          %596 = dma.done %s592, 1024
        $region60: #{bottleneck_t_forward.7} parent=55 // pred_fallthru
          _
      $region56: #{bottleneck_t_forward.7} parent=5 // pred_fallthru
        _
    $region6: #{bottleneck_t_forward.7} parent=1 // loop_footer
      %s18 = sadd.s32 1, %s14
    $region7: #{bottleneck_t_forward.7} parent=1 // loop_footer_branch
      %13 = sbr.rel target = $region3
    $region8: #{bottleneck_t_forward.7} parent=1 // loop_exit
      _
    %597 = vsyncpa [#allocation4], 1
    %s598 = scalar_lea.sflag [#allocation4], 1
    %599 = vsyncpa %s598, 1

// kernel: bottleneck_t_forward.5
$region0: #{bottleneck_t_forward.5}
  #allocation0 [shape = 'u32[]', space=smem, size = 0x4, offset = 0x4, fixed_abs, tag = 'smem constant byte address 0x4 - core index']
  #allocation1 [shape = 'u32[144,128]{1,0:T(1,128)}', space=vmem, size = 0x12000, scoped, tag = 'internal scratch']
  #allocation2 [shape = 'f32[64,64]{1,0:T(8,128)}', space=vmem, size = 0x8000, scoped, tag = 'scratch operand']
  %s0 = inlined_call_operand.vmem [shape: f32[128,64], index: 0, kind: input, shape index: {}]
  %s1 = inlined_call_operand.vmem [shape: f32[1,64], index: 1, kind: input, shape index: {}]
  %s2 = inlined_call_operand.vmem [shape: f32[1,64], index: 2, kind: input, shape index: {}]
  %s3 = inlined_call_operand.vmem [shape: bf16[64,64], index: 3, kind: input, shape index: {}]
  %s4 = inlined_call_operand.vmem [shape: bf16[128,64], index: 4, kind: output, shape index: {0}]
  %s5 = inlined_call_operand.vmem [shape: f32[2,8,64], index: 5, kind: output, shape index: {1}]
  %s6 = inlined_call_operand.vmem [shape: f32[2,8,64], index: 6, kind: output, shape index: {2}]
  %7 = xla_tuple %s4, %s5, %s6
  %s8 = sld [smem:[#allocation0]]
  $region73: #{bottleneck_t_forward.5} parent=0
    _
  %s10 = ssub.s32 1, %s8
  %s11 = scalar_select 0, %s10, %s8
  loop: start=0, step=1, limit=4
  $region2: #{bottleneck_t_forward.5} parent=0 // loop_pre_header
    _
  $region3: #{bottleneck_t_forward.5} parent=0 // loop_header
    %s13 = sphi 0, %s17
    %p14 = scmp.ge.s32.totalorder %s13, 4
    %s20 = sphi 0, %s32
    %s21 = sphi 0, %s28
    %s22 = sphi 0, %s20
    %s23 = sphi 0, %s21
    %s24 = sphi 0, %s22
    %s25 = sphi 0, %s23
    %s37 = sphi 0, %s39
    %s40 = sphi 0, %s37
    %s41 = sphi 0, %s40
    %s57 = sphi 0, %s41
    %s63 = sphi 0, %s65
    %s66 = sphi 0, %s63
    %s67 = sphi 0, %s66
    %s83 = sphi 0, %s67
    %s89 = sphi 0, %s91
    %s92 = sphi 0, %s89
    %s93 = sphi 0, %s92
    %s109 = sphi 0, %s93
    %s115 = sphi 0, %s117
    %s118 = sphi 0, %s115
    %s119 = sphi 0, %s118
    %s135 = sphi 0, %s119
    %s141 = sphi 0, %s143
    %s144 = sphi 0, %s141
    %s145 = sphi 0, %s144
    %s161 = sphi 0, %s145
    %s167 = sphi 0, %s169
    %s170 = sphi 0, %s167
    %s171 = sphi 0, %s170
    %s187 = sphi 0, %s171
    %s193 = sphi 0, %s195
    %s196 = sphi 0, %s193
    %s197 = sphi 0, %s196
    %s213 = sphi 0, %s197
  $region4: #{bottleneck_t_forward.5} parent=0 // loop_header_branch
    %16 = sbr.rel (%p14) target = $region8
  $region5: #{bottleneck_t_forward.5} parent=0 // loop_body
    %s18 = ssub.s32 %s13, 1
    %s19 = ssub.s32 %s13, 2
    %s26 = sadd.s32 1, %s21
    %p27 = scmp.ge.s32.totalorder %s26, 1
    %s28 = scalar_select %p27, 0, %s26
    %s29 = sadd.s32 1, %s20
    %s30 = scalar_select %p27, %s29, %s20
    %p31 = scmp.ge.s32.totalorder %s30, 2
    %s32 = scalar_select %p31, 0, %s30
    %s33 = ssub.s32 %s20, %s32
    %s34 = ssub.s32 %s21, %s28
    %s35 = sor.u32 %s33, %s34
    %p36 = scmp.eq.s32.totalorder %s35, 0
    %s38 = sadd.s32 %s37, 1
    %s39 = scalar_select %p36, %s37, %s38
    %p42 = pneg %p36
    %p43 = scmp.eq.s32.totalorder %s13, 1
    %p44 = por %p42, %p43
    %p45 = scmp.ne.s32.totalorder %s37, %s40
    %p46 = scmp.eq.s32.totalorder %s13, 0
    %p47 = por %p45, %p46
    %p48 = scmp.ne.s32.totalorder %s37, %s40
    %p49 = scmp.eq.s32.totalorder %s18, 1
    %p50 = por %p48, %p49
    %p51 = scmp.ne.s32.totalorder %s40, %s41
    %p52 = scmp.eq.s32.totalorder %s18, 0
    %p53 = por %p51, %p52
    %p54 = scmp.ne.s32.totalorder %s40, %s41
    %p55 = scmp.eq.s32.totalorder %s19, 1
    %p56 = por %p54, %p55
    %p58 = scmp.ne.s32.totalorder %s41, %s57
    %p59 = scmp.eq.s32.totalorder %s19, 0
    %p60 = por %p58, %p59
    %s61 = ssub.s32 %s21, %s28
    %p62 = scmp.eq.s32.totalorder %s61, 0
    %s64 = sadd.s32 %s63, 1
    %s65 = scalar_select %p62, %s63, %s64
    %p68 = pneg %p62
    %p69 = scmp.eq.s32.totalorder %s13, 1
    %p70 = por %p68, %p69
    %p71 = scmp.ne.s32.totalorder %s63, %s66
    %p72 = scmp.eq.s32.totalorder %s13, 0
    %p73 = por %p71, %p72
    %p74 = scmp.ne.s32.totalorder %s63, %s66
    %p75 = scmp.eq.s32.totalorder %s18, 1
    %p76 = por %p74, %p75
    %p77 = scmp.ne.s32.totalorder %s66, %s67
    %p78 = scmp.eq.s32.totalorder %s18, 0
    %p79 = por %p77, %p78
    %p80 = scmp.ne.s32.totalorder %s66, %s67
    %p81 = scmp.eq.s32.totalorder %s19, 1
    %p82 = por %p80, %p81
    %p84 = scmp.ne.s32.totalorder %s67, %s83
    %p85 = scmp.eq.s32.totalorder %s19, 0
    %p86 = por %p84, %p85
    %s87 = ssub.s32 %s21, %s28
    %p88 = scmp.eq.s32.totalorder %s87, 0
    %s90 = sadd.s32 %s89, 1
    %s91 = scalar_select %p88, %s89, %s90
    %p94 = pneg %p88
    %p95 = scmp.eq.s32.totalorder %s13, 1
    %p96 = por %p94, %p95
    %p97 = scmp.ne.s32.totalorder %s89, %s92
    %p98 = scmp.eq.s32.totalorder %s13, 0
    %p99 = por %p97, %p98
    %p100 = scmp.ne.s32.totalorder %s89, %s92
    %p101 = scmp.eq.s32.totalorder %s18, 1
    %p102 = por %p100, %p101
    %p103 = scmp.ne.s32.totalorder %s92, %s93
    %p104 = scmp.eq.s32.totalorder %s18, 0
    %p105 = por %p103, %p104
    %p106 = scmp.ne.s32.totalorder %s92, %s93
    %p107 = scmp.eq.s32.totalorder %s19, 1
    %p108 = por %p106, %p107
    %p110 = scmp.ne.s32.totalorder %s93, %s109
    %p111 = scmp.eq.s32.totalorder %s19, 0
    %p112 = por %p110, %p111
    %s113 = ssub.s32 %s21, %s28
    %p114 = scmp.eq.s32.totalorder %s113, 0
    %s116 = sadd.s32 %s115, 1
    %s117 = scalar_select %p114, %s115, %s116
    %p120 = pneg %p114
    %p121 = scmp.eq.s32.totalorder %s13, 1
    %p122 = por %p120, %p121
    %p123 = scmp.ne.s32.totalorder %s115, %s118
    %p124 = scmp.eq.s32.totalorder %s13, 0
    %p125 = por %p123, %p124
    %p126 = scmp.ne.s32.totalorder %s115, %s118
    %p127 = scmp.eq.s32.totalorder %s18, 1
    %p128 = por %p126, %p127
    %p129 = scmp.ne.s32.totalorder %s118, %s119
    %p130 = scmp.eq.s32.totalorder %s18, 0
    %p131 = por %p129, %p130
    %p132 = scmp.ne.s32.totalorder %s118, %s119
    %p133 = scmp.eq.s32.totalorder %s19, 1
    %p134 = por %p132, %p133
    %p136 = scmp.ne.s32.totalorder %s119, %s135
    %p137 = scmp.eq.s32.totalorder %s19, 0
    %p138 = por %p136, %p137
    %s139 = ssub.s32 %s20, %s32
    %p140 = scmp.eq.s32.totalorder %s139, 0
    %s142 = sadd.s32 %s141, 1
    %s143 = scalar_select %p140, %s141, %s142
    %p146 = pneg %p140
    %p147 = scmp.eq.s32.totalorder %s13, 1
    %p148 = por %p146, %p147
    %p149 = scmp.ne.s32.totalorder %s141, %s144
    %p150 = scmp.eq.s32.totalorder %s13, 0
    %p151 = por %p149, %p150
    %p152 = scmp.ne.s32.totalorder %s141, %s144
    %p153 = scmp.eq.s32.totalorder %s18, 1
    %p154 = por %p152, %p153
    %p155 = scmp.ne.s32.totalorder %s144, %s145
    %p156 = scmp.eq.s32.totalorder %s18, 0
    %p157 = por %p155, %p156
    %p158 = scmp.ne.s32.totalorder %s144, %s145
    %p159 = scmp.eq.s32.totalorder %s19, 1
    %p160 = por %p158, %p159
    %p162 = scmp.ne.s32.totalorder %s145, %s161
    %p163 = scmp.eq.s32.totalorder %s19, 0
    %p164 = por %p162, %p163
    %s165 = ssub.s32 %s20, %s32
    %p166 = scmp.eq.s32.totalorder %s165, 0
    %s168 = sadd.s32 %s167, 1
    %s169 = scalar_select %p166, %s167, %s168
    %p172 = pneg %p166
    %p173 = scmp.eq.s32.totalorder %s13, 1
    %p174 = por %p172, %p173
    %p175 = scmp.ne.s32.totalorder %s167, %s170
    %p176 = scmp.eq.s32.totalorder %s13, 0
    %p177 = por %p175, %p176
    %p178 = scmp.ne.s32.totalorder %s167, %s170
    %p179 = scmp.eq.s32.totalorder %s18, 1
    %p180 = por %p178, %p179
    %p181 = scmp.ne.s32.totalorder %s170, %s171
    %p182 = scmp.eq.s32.totalorder %s18, 0
    %p183 = por %p181, %p182
    %p184 = scmp.ne.s32.totalorder %s170, %s171
    %p185 = scmp.eq.s32.totalorder %s19, 1
    %p186 = por %p184, %p185
    %p188 = scmp.ne.s32.totalorder %s171, %s187
    %p189 = scmp.eq.s32.totalorder %s19, 0
    %p190 = por %p188, %p189
    %s191 = ssub.s32 %s20, %s32
    %p192 = scmp.eq.s32.totalorder %s191, 0
    %s194 = sadd.s32 %s193, 1
    %s195 = scalar_select %p192, %s193, %s194
    %p198 = pneg %p192
    %p199 = scmp.eq.s32.totalorder %s13, 1
    %p200 = por %p198, %p199
    %p201 = scmp.ne.s32.totalorder %s193, %s196
    %p202 = scmp.eq.s32.totalorder %s13, 0
    %p203 = por %p201, %p202
    %p204 = scmp.ne.s32.totalorder %s193, %s196
    %p205 = scmp.eq.s32.totalorder %s18, 1
    %p206 = por %p204, %p205
    %p207 = scmp.ne.s32.totalorder %s196, %s197
    %p208 = scmp.eq.s32.totalorder %s18, 0
    %p209 = por %p207, %p208
    %p210 = scmp.ne.s32.totalorder %s196, %s197
    %p211 = scmp.eq.s32.totalorder %s19, 1
    %p212 = por %p210, %p211
    %p214 = scmp.ne.s32.totalorder %s197, %s213
    %p215 = scmp.eq.s32.totalorder %s19, 0
    %p216 = por %p214, %p215
    %p217 = scmp.le.s32.totalorder 1, %s13
    %p218 = scmp.lt.s32.totalorder %s13, 3
    %p219 = pnand %p217, %p218
    %p220 = pneg %p219
    // Predicated region
    $region9: #{bottleneck_t_forward.5} parent=5 // pred_check
      _
    $region10: #{bottleneck_t_forward.5} parent=5 // pred_check_branch
      %222 = sbr.rel (%p219) target = $region12
    $region11: #{bottleneck_t_forward.5} parent=5 // pred_region
      %s223 = ssub.s32 %s13, 1
      // Predicated region
      $region13: #{bottleneck_t_forward.5} parent=11 // pred_check
        %p224 = pneg %p79
      $region14: #{bottleneck_t_forward.5} parent=11 // pred_check_branch
        %226 = sbr.rel (%p224) target = $region16
      $region15: #{bottleneck_t_forward.5} parent=11 // pred_region
        %p227 = scmp.lt.s32.totalorder %s23, 0
        %s228 = scalar_select %p227, %s23, 0
        %s229 = scalar_lea.vmem %s1, %s228
      $region16: #{bottleneck_t_forward.5} parent=11 // pred_fallthru
        _
      // Predicated region
      $region17: #{bottleneck_t_forward.5} parent=11 // pred_check
        %p230 = pneg %p105
      $region18: #{bottleneck_t_forward.5} parent=11 // pred_check_branch
        %232 = sbr.rel (%p230) target = $region20
      $region19: #{bottleneck_t_forward.5} parent=11 // pred_region
        %p233 = scmp.lt.s32.totalorder %s23, 0
        %s234 = scalar_select %p233, %s23, 0
        %s235 = scalar_lea.vmem %s2, %s234
      $region20: #{bottleneck_t_forward.5} parent=11 // pred_fallthru
        _
      // Predicated region
      $region21: #{bottleneck_t_forward.5} parent=11 // pred_check
        %p236 = pneg %p131
      $region22: #{bottleneck_t_forward.5} parent=11 // pred_check_branch
        %238 = sbr.rel (%p236) target = $region24
      $region23: #{bottleneck_t_forward.5} parent=11 // pred_region
        %s239 = smul.u32 8, %s23
        %p240 = scmp.lt.s32.totalorder %s239, 7
        %s241 = scalar_select %p240, %s239, 7
        %s242 = smul.addr %s241, 4
        %s243 = scalar_lea.vmem %s3, %s242
        %s244 = smul.u32 8, %s23
      $region24: #{bottleneck_t_forward.5} parent=11 // pred_fallthru
        _
    $region12: #{bottleneck_t_forward.5} parent=5 // pred_fallthru
      _
    %p245 = scmp.lt.s32.totalorder %s13, 2
    // Predicated region
    $region25: #{bottleneck_t_forward.5} parent=5 // pred_check
      %p246 = pneg %p245
    $region26: #{bottleneck_t_forward.5} parent=5 // pred_check_branch
      %248 = sbr.rel (%p246) target = $region28
    $region27: #{bottleneck_t_forward.5} parent=5 // pred_region
      // Predicated region
      $region29: #{bottleneck_t_forward.5} parent=27 // pred_check
        %p249 = pneg %p47
      $region30: #{bottleneck_t_forward.5} parent=27 // pred_check_branch
        %251 = sbr.rel (%p249) target = $region32
      $region31: #{bottleneck_t_forward.5} parent=27 // pred_region
        %s252 = smul.u32 8, %s20
        %p253 = scmp.lt.s32.totalorder %s252, 15
        %s254 = scalar_select %p253, %s252, 15
        %p255 = scmp.lt.s32.totalorder %s21, 0
        %s256 = scalar_select %p255, %s21, 0
        %s257 = sadd.s32 %s256, %s254
        %s258 = smul.addr %s257, 8
        %s259 = scalar_lea.vmem %s0, %s258
        %s260 = smul.u32 8, %s20
      $region32: #{bottleneck_t_forward.5} parent=27 // pred_fallthru
        _
    $region28: #{bottleneck_t_forward.5} parent=5 // pred_fallthru
      _
    %p261 = scmp.le.s32.totalorder 1, %s13
    %p262 = scmp.lt.s32.totalorder %s13, 3
    %p263 = pnand %p261, %p262
    %p264 = pneg %p263
    // Predicated region
    $region33: #{bottleneck_t_forward.5} parent=5 // pred_check
      _
    $region34: #{bottleneck_t_forward.5} parent=5 // pred_check_branch
      %266 = sbr.rel (%p263) target = $region36
    $region35: #{bottleneck_t_forward.5} parent=5 // pred_region
      %s267 = ssub.s32 %s13, 1
      %s268 = smul.u32 8, %s22
      %p269 = scmp.lt.s32.totalorder %s268, 15
      %s270 = scalar_select %p269, %s268, 15
      %p271 = scmp.lt.s32.totalorder %s23, 0
      %s272 = scalar_select %p271, %s23, 0
      %s273 = sadd.s32 %s272, %s270
      %s274 = smul.addr %s273, 8
      %s275 = scalar_lea.vmem %s0, %s274
      %p276 = pneg %p53
      %p277 = pneg %p50
      %p278 = scmp.lt.s32.totalorder %s23, 0
      %s279 = scalar_select %p278, %s23, 0
      %s280 = scalar_lea.vmem %s1, %s279
      %p281 = pneg %p79
      %p282 = pneg %p76
      %p283 = scmp.lt.s32.totalorder %s23, 0
      %s284 = scalar_select %p283, %s23, 0
      %s285 = scalar_lea.vmem %s2, %s284
      %p286 = pneg %p105
      %p287 = pneg %p102
      %s288 = smul.u32 8, %s23
      %p289 = scmp.lt.s32.totalorder %s288, 7
      %s290 = scalar_select %p289, %s288, 7
      %s291 = smul.addr %s290, 4
      %s292 = scalar_lea.vmem %s3, %s291
      %p293 = pneg %p131
      %p294 = pneg %p128
      %p295 = pneg %p157
      %p296 = pneg %p154
      %s297 = smul.u32 8, %s22
      %p298 = scmp.lt.s32.totalorder %s297, 15
      %s299 = scalar_select %p298, %s297, 15
      %s300 = smul.addr %s299, 4
      %s301 = scalar_lea.vmem %s4, %s300
      %p302 = pneg %p183
      %p303 = pneg %p180
      %p304 = scmp.lt.s32.totalorder %s22, 1
      %s305 = scalar_select %p304, %s22, 1
      %s306 = smul.addr %s305, 8
      %s307 = scalar_lea.vmem %s5, %s306
      %p308 = pneg %p209
      %p309 = pneg %p206
      %p310 = scmp.lt.s32.totalorder %s22, 1
      %s311 = scalar_select %p310, %s22, 1
      %s312 = smul.addr %s311, 8
      %s313 = scalar_lea.vmem %s6, %s312
      %s314 = smul.u32 8, %s22
      %p315 = scmp.lt.s32.totalorder %s314, 15
      %s316 = scalar_select %p315, %s314, 15
      %p317 = scmp.lt.s32.totalorder %s23, 0
      %s318 = scalar_select %p317, %s23, 0
      %s319 = sadd.s32 %s318, %s316
      %s320 = smul.addr %s319, 8
      %s321 = scalar_lea.vmem %s0, %s320
      %s322 = smul.u32 8, %s22
      %p323 = scmp.lt.s32.totalorder %s23, 0
      %s324 = scalar_select %p323, %s23, 0
      %s325 = scalar_lea.vmem %s1, %s324
      %p326 = scmp.lt.s32.totalorder %s23, 0
      %s327 = scalar_select %p326, %s23, 0
      %s328 = scalar_lea.vmem %s2, %s327
      %s329 = smul.u32 8, %s23
      %p330 = scmp.lt.s32.totalorder %s329, 7
      %s331 = scalar_select %p330, %s329, 7
      %s332 = smul.addr %s331, 4
      %s333 = scalar_lea.vmem %s3, %s332
      %s334 = smul.u32 8, %s23
      %s335 = smul.u32 8, %s22
      %p336 = scmp.lt.s32.totalorder %s335, 15
      %s337 = scalar_select %p336, %s335, 15
      %s338 = smul.addr %s337, 4
      %s339 = scalar_lea.vmem %s4, %s338
      %s340 = smul.u32 8, %s22
      %p341 = scmp.lt.s32.totalorder %s22, 1
      %s342 = scalar_select %p341, %s22, 1
      %s343 = smul.addr %s342, 8
      %s344 = scalar_lea.vmem %s5, %s343
      %p345 = scmp.lt.s32.totalorder %s22, 1
      %s346 = scalar_select %p345, %s22, 1
      %s347 = smul.addr %s346, 8
      %s348 = scalar_lea.vmem %s6, %s347
      %p350 = scmp.eq.s32.totalorder %s23, 0
      // Predicated region
      $region37: #{bottleneck_t_forward.5} parent=35 // pred_check
        %p351 = pneg %p350
      $region38: #{bottleneck_t_forward.5} parent=35 // pred_check_branch
        %353 = sbr.rel (%p351) target = $region40
      $region39: #{bottleneck_t_forward.5} parent=35 // pred_region
        %vm354 = vcmask 523264
        %355 = vst.msk [vmem:[#allocation2] sm:$0xff] %vm354, 0.0
        %356 = vst.msk [vmem:[#allocation2 + $0x8] sm:$0xff] %vm354, 0.0
        %357 = vst.msk [vmem:[#allocation2 + $0x10] sm:$0xff] %vm354, 0.0
        %358 = vst.msk [vmem:[#allocation2 + $0x18] sm:$0xff] %vm354, 0.0
        %359 = vst.msk [vmem:[#allocation2 + $0x20] sm:$0xff] %vm354, 0.0
        %360 = vst.msk [vmem:[#allocation2 + $0x28] sm:$0xff] %vm354, 0.0
        %361 = vst.msk [vmem:[#allocation2 + $0x30] sm:$0xff] %vm354, 0.0
        %362 = vst.msk [vmem:[#allocation2 + $0x38] sm:$0xff] %vm354, 0.0
      $region40: #{bottleneck_t_forward.5} parent=35 // pred_fallthru
        _
      %v363 = vld [vmem:[%s321] sm:$0xff]
      %v364 = vld [vmem:[%s321 + $0x8] sm:$0xff]
      %v365 = vld [vmem:[%s321 + $0x10] sm:$0xff]
      %v366 = vld [vmem:[%s321 + $0x18] sm:$0xff]
      %v367 = vld [vmem:[%s321 + $0x20] sm:$0xff]
      %v368 = vld [vmem:[%s321 + $0x28] sm:$0xff]
      %v369 = vld [vmem:[%s321 + $0x30] sm:$0xff]
      %v370 = vld [vmem:[%s321 + $0x38] sm:$0xff]
      %v371 = vld [vmem:[%s325] sm:$0x1]
      %v373 = vlaneseq
      %v374 = vshrl.u32 %v373, 7
      %v375 = vsub.s32 0, %v374
      %v376 = vrot.slane %v371, %v375
      %v378 = vmul.f32 %v363, %v376
      %v379 = vmul.f32 %v364, %v376
      %v380 = vmul.f32 %v365, %v376
      %v381 = vmul.f32 %v366, %v376
      %v382 = vmul.f32 %v367, %v376
      %v383 = vmul.f32 %v368, %v376
      %v384 = vmul.f32 %v369, %v376
      %v385 = vmul.f32 %v370, %v376
      %v386 = vld [vmem:[%s328] sm:$0x1]
      %v388 = vlaneseq
      %v389 = vshrl.u32 %v388, 7
      %v390 = vsub.s32 0, %v389
      %v391 = vrot.slane %v386, %v390
      %v393 = vadd.f32 %v378, %v391
      %v394 = vadd.f32 %v379, %v391
      %v395 = vadd.f32 %v380, %v391
      %v396 = vadd.f32 %v381, %v391
      %v397 = vadd.f32 %v382, %v391
      %v398 = vadd.f32 %v383, %v391
      %v399 = vadd.f32 %v384, %v391
      %v400 = vadd.f32 %v385, %v391
      %v401 = vld [vmem:[#allocation2] sm:$0xff]
      %v402 = vld [vmem:[#allocation2 + $0x8] sm:$0xff]
      %v403 = vld [vmem:[#allocation2 + $0x10] sm:$0xff]
      %v404 = vld [vmem:[#allocation2 + $0x18] sm:$0xff]
      %v405 = vld [vmem:[#allocation2 + $0x20] sm:$0xff]
      %v406 = vld [vmem:[#allocation2 + $0x28] sm:$0xff]
      %v407 = vld [vmem:[#allocation2 + $0x30] sm:$0xff]
      %v408 = vld [vmem:[#allocation2 + $0x38] sm:$0xff]
      %v409 = vpack.c.bf16 %v394, %v393
      %v410 = vpack.c.bf16 %v396, %v395
      %v411 = vpack.c.bf16 %v398, %v397
      %v412 = vpack.c.bf16 %v400, %v399
      %v413 = vld [vmem:[%s333] sm:$0xf]
      %v414 = vld [vmem:[%s333 + $0x4] sm:$0xf]
      %v415 = vld [vmem:[%s333 + $0x8] sm:$0xf]
      %v416 = vld [vmem:[%s333 + $0xc] sm:$0xf]
      %v417 = vld [vmem:[%s333 + $0x10] sm:$0xf]
      %v418 = vld [vmem:[%s333 + $0x14] sm:$0xf]
      %v419 = vld [vmem:[%s333 + $0x18] sm:$0xf]
      %v420 = vld [vmem:[%s333 + $0x1c] sm:$0xf]
      %v429 = vunpack.c.l.b16 %v413
      %v430 = vunpack.c.l.b16 %v414
      %v431 = vunpack.c.l.b16 %v415
      %v432 = vunpack.c.l.b16 %v416
      %v433 = vunpack.c.l.b16 %v417
      %v434 = vunpack.c.l.b16 %v418
      %v435 = vunpack.c.l.b16 %v419
      %v436 = vunpack.c.l.b16 %v420
      %v437 = vpack.c.b16 %v430, %v429
      %v438 = vpack.c.b16 %v432, %v431
      %v439 = vpack.c.b16 %v434, %v433
      %v440 = vpack.c.b16 %v436, %v435
      %vm445 = vcmask 523264
      %v447 = vsel %vm445, %v409, 0
      %v450 = vsel %vm445, %v410, 0
      %v453 = vsel %vm445, %v411, 0
      %v456 = vsel %vm445, %v412, 0
      %458 = vmatprep.subr.bf16.mxu0 0
      %459 = vmatpush1.bf16.msra.mxu0 %v437
      %460 = vmatprep.subr.bf16.mxu0 0
      %461 = vmatpush1.bf16.msra.mxu0 %v438
      %462 = vmatprep.subr.bf16.mxu0 0
      %463 = vmatpush1.bf16.msra.mxu0 %v439
      %464 = vmatprep.subr.bf16.mxu0 0
      %465 = vmatpush1.bf16.msra.mxu0 %v440
      %466 = vmatprep.subr.bf16.mxu0 0
      %467 = vmatpush1.bf16.msra.mxu0 0
      %468 = vmatprep.subr.bf16.mxu0 0
      %469 = vmatpush1.bf16.msra.mxu0 0
      %470 = vmatprep.subr.bf16.mxu0 0
      %471 = vmatpush1.bf16.msra.mxu0 0
      %472 = vmatprep.subr.bf16.mxu0 0
      %473 = vmatpush1.bf16.msra.mxu0 0
      %474 = vmatprep.subr.bf16.mxu0 0
      %475 = vmatpush1.bf16.msra.mxu0 0
      %476 = vmatprep.subr.bf16.mxu0 0
      %477 = vmatpush1.bf16.msra.mxu0 0
      %478 = vmatprep.subr.bf16.mxu0 0
      %479 = vmatpush1.bf16.msra.mxu0 0
      %480 = vmatprep.subr.bf16.mxu0 0
      %481 = vmatpush1.bf16.msra.mxu0 0
      %482 = vmatprep.subr.bf16.mxu0 0
      %483 = vmatpush1.bf16.msra.mxu0 0
      %484 = vmatprep.subr.bf16.mxu0 0
      %485 = vmatpush1.bf16.msra.mxu0 0
      %486 = vmatprep.subr.bf16.mxu0 0
      %487 = vmatpush1.bf16.msra.mxu0 0
      %488 = vmatprep.subr.bf16.mxu0 0
      %489 = vmatpush1.bf16.msra.mxu0 0
      %490 = vmatprep.mubr.bf16.mxu0 0
      %491 = vmatmul.mubr.bf16.gmra.mrb[0].mxu0 %v447
      %v492 = vpop.f32.mrb[0].mxu0
      %v493 = vadd.f32 0.0, %v492
      %v494 = vpop.f32.mrb[0].mxu0
      %v495 = vpop.f32.mrb[0].mxu0
      %v496 = vadd.f32 0.0, %v495
      %v497 = vpop.f32.mrb[0].mxu0
      %498 = vmatprep.mubr.bf16.mxu0 0
      %499 = vmatmul.mubr.bf16.gmra.mrb[0].mxu0 %v450
      %v500 = vpop.f32.mrb[0].mxu0
      %v501 = vadd.f32 0.0, %v500
      %v502 = vpop.f32.mrb[0].mxu0
      %v503 = vpop.f32.mrb[0].mxu0
      %v504 = vadd.f32 0.0, %v503
      %v505 = vpop.f32.mrb[0].mxu0
      %506 = vmatprep.mubr.bf16.mxu0 0
      %507 = vmatmul.mubr.bf16.gmra.mrb[0].mxu0 %v453
      %v508 = vpop.f32.mrb[0].mxu0
      %v509 = vadd.f32 0.0, %v508
      %v510 = vpop.f32.mrb[0].mxu0
      %v511 = vpop.f32.mrb[0].mxu0
      %v512 = vadd.f32 0.0, %v511
      %v513 = vpop.f32.mrb[0].mxu0
      %514 = vmatprep.mubr.bf16.mxu0 0
      %515 = vmatmul.mubr.bf16.gmra.mrb[0].mxu0 %v456
      %v516 = vpop.f32.mrb[0].mxu0
      %v517 = vadd.f32 0.0, %v516
      %v518 = vpop.f32.mrb[0].mxu0
      %v519 = vpop.f32.mrb[0].mxu0
      %v520 = vadd.f32 0.0, %v519
      %v521 = vpop.f32.mrb[0].mxu0
      %522 = vdwg.mxu0
      %v523 = vadd.f32 %v401, %v493
      %v524 = vadd.f32 %v402, %v496
      %v525 = vadd.f32 %v403, %v501
      %v526 = vadd.f32 %v404, %v504
      %v527 = vadd.f32 %v405, %v509
      %v528 = vadd.f32 %v406, %v512
      %v529 = vadd.f32 %v407, %v517
      %v530 = vadd.f32 %v408, %v520
      %531 = vst.msk [vmem:[#allocation2] sm:$0xff] %vm445, %v523
      %532 = vst.msk [vmem:[#allocation2 + $0x8] sm:$0xff] %vm445, %v524
      %533 = vst.msk [vmem:[#allocation2 + $0x10] sm:$0xff] %vm445, %v525
      %534 = vst.msk [vmem:[#allocation2 + $0x18] sm:$0xff] %vm445, %v526
      %535 = vst.msk [vmem:[#allocation2 + $0x20] sm:$0xff] %vm445, %v527
      %536 = vst.msk [vmem:[#allocation2 + $0x28] sm:$0xff] %vm445, %v528
      %537 = vst.msk [vmem:[#allocation2 + $0x30] sm:$0xff] %vm445, %v529
      %538 = vst.msk [vmem:[#allocation2 + $0x38] sm:$0xff] %vm445, %v530
      // Predicated region
      $region41: #{bottleneck_t_forward.5} parent=35 // pred_check
        %p539 = pneg %p350
      $region42: #{bottleneck_t_forward.5} parent=35 // pred_check_branch
        %541 = sbr.rel (%p539) target = $region44
      $region43: #{bottleneck_t_forward.5} parent=35 // pred_region
        %v542 = vld [vmem:[#allocation2] sm:$0xff]
        %v543 = vld [vmem:[#allocation2 + $0x8] sm:$0xff]
        %v544 = vld [vmem:[#allocation2 + $0x10] sm:$0xff]
        %v545 = vld [vmem:[#allocation2 + $0x18] sm:$0xff]
        %v546 = vld [vmem:[#allocation2 + $0x20] sm:$0xff]
        %v547 = vld [vmem:[#allocation2 + $0x28] sm:$0xff]
        %v548 = vld [vmem:[#allocation2 + $0x30] sm:$0xff]
        %v549 = vld [vmem:[#allocation2 + $0x38] sm:$0xff]
        %v550 = vmax.f32 %v542, 0.0
        %v551 = vmax.f32 %v543, 0.0
        %v552 = vmax.f32 %v544, 0.0
        %v553 = vmax.f32 %v545, 0.0
        %v554 = vmax.f32 %v546, 0.0
        %v555 = vmax.f32 %v547, 0.0
        %v556 = vmax.f32 %v548, 0.0
        %v557 = vmax.f32 %v549, 0.0
        %v558 = vpack.c.bf16 %v551, %v550
        %v559 = vpack.c.bf16 %v553, %v552
        %v560 = vpack.c.bf16 %v555, %v554
        %v561 = vpack.c.bf16 %v557, %v556
        %v566 = vunpack.c.l.b16 %v558
        %v567 = vunpack.c.h.b16 %v558
        %v568 = vunpack.c.l.b16 %v559
        %v569 = vunpack.c.h.b16 %v559
        %v570 = vunpack.c.l.b16 %v560
        %v571 = vunpack.c.h.b16 %v560
        %v572 = vunpack.c.l.b16 %v561
        %v573 = vunpack.c.h.b16 %v561
        %v574 = vpack.c.b16 %v566, %v566
        %v575 = vpack.c.b16 %v567, %v567
        %v576 = vpack.c.b16 %v568, %v568
        %v577 = vpack.c.b16 %v569, %v569
        %v578 = vpack.c.b16 %v570, %v570
        %v579 = vpack.c.b16 %v571, %v571
        %v580 = vpack.c.b16 %v572, %v572
        %v581 = vpack.c.b16 %v573, %v573
        %vm590 = vcmask 519168
        %591 = vst.msk [vmem:[%s339] sm:$0xf] %vm590, %v574
        %592 = vst.msk [vmem:[%s339 + $0x4] sm:$0xf] %vm590, %v575
        %593 = vst.msk [vmem:[%s339 + $0x8] sm:$0xf] %vm590, %v576
        %594 = vst.msk [vmem:[%s339 + $0xc] sm:$0xf] %vm590, %v577
        %595 = vst.msk [vmem:[%s339 + $0x10] sm:$0xf] %vm590, %v578
        %596 = vst.msk [vmem:[%s339 + $0x14] sm:$0xf] %vm590, %v579
        %597 = vst.msk [vmem:[%s339 + $0x18] sm:$0xf] %vm590, %v580
        %598 = vst.msk [vmem:[%s339 + $0x1c] sm:$0xf] %vm590, %v581
        %v599 = vadd.f32 %v550, %v551
        %v600 = vadd.f32 %v599, %v552
        %v601 = vadd.f32 %v600, %v553
        %v602 = vadd.f32 %v601, %v554
        %v603 = vadd.f32 %v602, %v555
        %v604 = vadd.f32 %v603, %v556
        %v605 = vadd.f32 %v604, %v557
        %606 = vst.msk [vmem:[%s344] sm:$0xff] %vm445, %v605
        %v607 = vmul.f32 %v550, %v550
        %v608 = vmul.f32 %v551, %v551
        %v609 = vmul.f32 %v552, %v552
        %v610 = vmul.f32 %v553, %v553
        %v611 = vmul.f32 %v554, %v554
        %v612 = vmul.f32 %v555, %v555
        %v613 = vmul.f32 %v556, %v556
        %v614 = vmul.f32 %v557, %v557
        %v615 = vadd.f32 %v607, %v608
        %v616 = vadd.f32 %v615, %v609
        %v617 = vadd.f32 %v616, %v610
        %v618 = vadd.f32 %v617, %v611
        %v619 = vadd.f32 %v618, %v612
        %v620 = vadd.f32 %v619, %v613
        %v621 = vadd.f32 %v620, %v614
        %622 = vst.msk [vmem:[%s348] sm:$0xff] %vm445, %v621
      $region44: #{bottleneck_t_forward.5} parent=35 // pred_fallthru
        _
      %s623 = smul.u32 8, %s22
      %p624 = scmp.lt.s32.totalorder %s623, 15
      %s625 = scalar_select %p624, %s623, 15
      %s626 = smul.addr %s625, 4
      %s627 = scalar_lea.vmem %s4, %s626
      %p628 = scmp.lt.s32.totalorder %s22, 1
      %s629 = scalar_select %p628, %s22, 1
      %s630 = smul.addr %s629, 8
      %s631 = scalar_lea.vmem %s5, %s630
      %p632 = scmp.lt.s32.totalorder %s22, 1
      %s633 = scalar_select %p632, %s22, 1
      %s634 = smul.addr %s633, 8
      %s635 = scalar_lea.vmem %s6, %s634
      // Predicated region
      $region45: #{bottleneck_t_forward.5} parent=35 // pred_check
        %p636 = pneg %p154
      $region46: #{bottleneck_t_forward.5} parent=35 // pred_check_branch
        %638 = sbr.rel (%p636) target = $region48
      $region47: #{bottleneck_t_forward.5} parent=35 // pred_region
        %s639 = smul.u32 8, %s22
      $region48: #{bottleneck_t_forward.5} parent=35 // pred_fallthru
        _
      // Predicated region
      $region49: #{bottleneck_t_forward.5} parent=35 // pred_check
        %p640 = pneg %p180
      $region50: #{bottleneck_t_forward.5} parent=35 // pred_check_branch
        %642 = sbr.rel (%p640) target = $region52
      $region51: #{bottleneck_t_forward.5} parent=35 // pred_region
        _
      $region52: #{bottleneck_t_forward.5} parent=35 // pred_fallthru
        _
      // Predicated region
      $region53: #{bottleneck_t_forward.5} parent=35 // pred_check
        %p643 = pneg %p206
      $region54: #{bottleneck_t_forward.5} parent=35 // pred_check_branch
        %645 = sbr.rel (%p643) target = $region56
      $region55: #{bottleneck_t_forward.5} parent=35 // pred_region
        _
      $region56: #{bottleneck_t_forward.5} parent=35 // pred_fallthru
        _
    $region36: #{bottleneck_t_forward.5} parent=5 // pred_fallthru
      _
    %p646 = scmp.le.s32.totalorder 2, %s13
    // Predicated region
    $region57: #{bottleneck_t_forward.5} parent=5 // pred_check
      %p647 = pneg %p646
    $region58: #{bottleneck_t_forward.5} parent=5 // pred_check_branch
      %649 = sbr.rel (%p647) target = $region60
    $region59: #{bottleneck_t_forward.5} parent=5 // pred_region
      %s650 = ssub.s32 %s13, 2
      // Predicated region
      $region61: #{bottleneck_t_forward.5} parent=59 // pred_check
        %p651 = pneg %p160
      $region62: #{bottleneck_t_forward.5} parent=59 // pred_check_branch
        %653 = sbr.rel (%p651) target = $region64
      $region63: #{bottleneck_t_forward.5} parent=59 // pred_region
        %s654 = smul.u32 8, %s24
        %p655 = scmp.lt.s32.totalorder %s654, 15
        %s656 = scalar_select %p655, %s654, 15
        %s657 = smul.addr %s656, 4
        %s658 = scalar_lea.vmem %s4, %s657
      $region64: #{bottleneck_t_forward.5} parent=59 // pred_fallthru
        _
      // Predicated region
      $region65: #{bottleneck_t_forward.5} parent=59 // pred_check
        %p659 = pneg %p186
      $region66: #{bottleneck_t_forward.5} parent=59 // pred_check_branch
        %661 = sbr.rel (%p659) target = $region68
      $region67: #{bottleneck_t_forward.5} parent=59 // pred_region
        %p662 = scmp.lt.s32.totalorder %s24, 1
        %s663 = scalar_select %p662, %s24, 1
        %s664 = smul.addr %s663, 8
        %s665 = scalar_lea.vmem %s5, %s664
      $region68: #{bottleneck_t_forward.5} parent=59 // pred_fallthru
        _
      // Predicated region
      $region69: #{bottleneck_t_forward.5} parent=59 // pred_check
        %p666 = pneg %p212
      $region70: #{bottleneck_t_forward.5} parent=59 // pred_check_branch
        %668 = sbr.rel (%p666) target = $region72
      $region71: #{bottleneck_t_forward.5} parent=59 // pred_region
        %p669 = scmp.lt.s32.totalorder %s24, 1
        %s670 = scalar_select %p669, %s24, 1
        %s671 = smul.addr %s670, 8
        %s672 = scalar_lea.vmem %s6, %s671
      $region72: #{bottleneck_t_forward.5} parent=59 // pred_fallthru
        _
    $region60: #{bottleneck_t_forward.5} parent=5 // pred_fallthru
      _
  $region6: #{bottleneck_t_forward.5} parent=0 // loop_footer
    %s17 = sadd.s32 1, %s13
  $region7: #{bottleneck_t_forward.5} parent=0 // loop_footer_branch
    %12 = sbr.rel target = $region3
  $region8: #{bottleneck_t_forward.5} parent=0 // loop_exit
    _

// kernel: bottleneck_t_forward.6
$region0: #{bottleneck_t_forward.6}
  #allocation0 [shape = 'u32[]', space=smem, size = 0x4, offset = 0x4, fixed_abs, tag = 'smem constant byte address 0x4 - core index']
  #allocation1 [shape = 'u32[144,128]{1,0:T(1,128)}', space=vmem, size = 0x12000, scoped, tag = 'internal scratch']
  #allocation2 [shape = 'f32[10,10,64]{2,1,0:T(8,128)}', space=vmem, size = 0x14000, scoped, tag = 'scratch operand']
  #allocation3 [shape = 'f32[64,64]{1,0:T(8,128)}', space=vmem, size = 0x8000, scoped, tag = 'scratch operand']
  %s0 = inlined_call_operand.vmem [shape: bf16[128,64], index: 0, kind: input, shape index: {}]
  %s1 = inlined_call_operand.vmem [shape: f32[1,64], index: 1, kind: input, shape index: {}]
  %s2 = inlined_call_operand.vmem [shape: f32[1,64], index: 2, kind: input, shape index: {}]
  %s3 = inlined_call_operand.vmem [shape: bf16[576,64], index: 3, kind: input, shape index: {}]
  %s4 = inlined_call_operand.vmem [shape: bf16[128,64], index: 4, kind: output, shape index: {0}]
  %s5 = inlined_call_operand.vmem [shape: f32[2,8,64], index: 5, kind: output, shape index: {1}]
  %s6 = inlined_call_operand.vmem [shape: f32[2,8,64], index: 6, kind: output, shape index: {2}]
  %7 = xla_tuple %s4, %s5, %s6
  %s8 = sld [smem:[#allocation0]]
  $region65: #{bottleneck_t_forward.6} parent=0
    _
  %s10 = ssub.s32 1, %s8
  %s11 = scalar_select 0, %s10, %s8
  loop: start=0, step=1, limit=4
  $region2: #{bottleneck_t_forward.6} parent=0 // loop_pre_header
    _
  $region3: #{bottleneck_t_forward.6} parent=0 // loop_header
    %s13 = sphi 0, %s17
    %p14 = scmp.ge.s32.totalorder %s13, 4
    %s23 = sphi 0, %s25
    %s26 = sphi 0, %s23
    %s27 = sphi 0, %s26
    %s43 = sphi 0, %s27
    %s47 = sphi 0, %s47
    %s49 = sphi 0, %s47
    %s50 = sphi 0, %s49
    %s64 = sphi 0, %s50
    %s68 = sphi 0, %s68
    %s70 = sphi 0, %s68
    %s71 = sphi 0, %s70
    %s85 = sphi 0, %s71
    %s89 = sphi 0, %s89
    %s91 = sphi 0, %s89
    %s92 = sphi 0, %s91
    %s106 = sphi 0, %s92
    %s112 = sphi 0, %s114
    %s115 = sphi 0, %s112
    %s116 = sphi 0, %s115
    %s132 = sphi 0, %s116
    %s138 = sphi 0, %s140
    %s141 = sphi 0, %s138
    %s142 = sphi 0, %s141
    %s158 = sphi 0, %s142
    %s164 = sphi 0, %s166
    %s167 = sphi 0, %s164
    %s168 = sphi 0, %s167
    %s184 = sphi 0, %s168
  $region4: #{bottleneck_t_forward.6} parent=0 // loop_header_branch
    %16 = sbr.rel (%p14) target = $region8
  $region5: #{bottleneck_t_forward.6} parent=0 // loop_body
    %s18 = ssub.s32 %s13, 1
    %s19 = ssub.s32 %s13, 2
    %s20 = sadd.s32 %s13, 1
    %s21 = ssub.s32 %s13, %s20
    %p22 = scmp.eq.s32.totalorder %s21, 0
    %s24 = sadd.s32 %s23, 1
    %s25 = scalar_select %p22, %s23, %s24
    %p28 = pneg %p22
    %p29 = scmp.eq.s32.totalorder %s13, 1
    %p30 = por %p28, %p29
    %p31 = scmp.ne.s32.totalorder %s23, %s26
    %p32 = scmp.eq.s32.totalorder %s13, 0
    %p33 = por %p31, %p32
    %p34 = scmp.ne.s32.totalorder %s23, %s26
    %p35 = scmp.eq.s32.totalorder %s18, 1
    %p36 = por %p34, %p35
    %p37 = scmp.ne.s32.totalorder %s26, %s27
    %p38 = scmp.eq.s32.totalorder %s18, 0
    %p39 = por %p37, %p38
    %p40 = scmp.ne.s32.totalorder %s26, %s27
    %p41 = scmp.eq.s32.totalorder %s19, 1
    %p42 = por %p40, %p41
    %p44 = scmp.ne.s32.totalorder %s27, %s43
    %p45 = scmp.eq.s32.totalorder %s19, 0
    %p46 = por %p44, %p45
    %s48 = sadd.s32 %s47, 1
    %p51 = scmp.eq.s32.totalorder %s13, 1
    %p52 = scmp.ne.s32.totalorder %s47, %s49
    %p53 = scmp.eq.s32.totalorder %s13, 0
    %p54 = por %p52, %p53
    %p55 = scmp.ne.s32.totalorder %s47, %s49
    %p56 = scmp.eq.s32.totalorder %s18, 1
    %p57 = por %p55, %p56
    %p58 = scmp.ne.s32.totalorder %s49, %s50
    %p59 = scmp.eq.s32.totalorder %s18, 0
    %p60 = por %p58, %p59
    %p61 = scmp.ne.s32.totalorder %s49, %s50
    %p62 = scmp.eq.s32.totalorder %s19, 1
    %p63 = por %p61, %p62
    %p65 = scmp.ne.s32.totalorder %s50, %s64
    %p66 = scmp.eq.s32.totalorder %s19, 0
    %p67 = por %p65, %p66
    %s69 = sadd.s32 %s68, 1
    %p72 = scmp.eq.s32.totalorder %s13, 1
    %p73 = scmp.ne.s32.totalorder %s68, %s70
    %p74 = scmp.eq.s32.totalorder %s13, 0
    %p75 = por %p73, %p74
    %p76 = scmp.ne.s32.totalorder %s68, %s70
    %p77 = scmp.eq.s32.totalorder %s18, 1
    %p78 = por %p76, %p77
    %p79 = scmp.ne.s32.totalorder %s70, %s71
    %p80 = scmp.eq.s32.totalorder %s18, 0
    %p81 = por %p79, %p80
    %p82 = scmp.ne.s32.totalorder %s70, %s71
    %p83 = scmp.eq.s32.totalorder %s19, 1
    %p84 = por %p82, %p83
    %p86 = scmp.ne.s32.totalorder %s71, %s85
    %p87 = scmp.eq.s32.totalorder %s19, 0
    %p88 = por %p86, %p87
    %s90 = sadd.s32 %s89, 1
    %p93 = scmp.eq.s32.totalorder %s13, 1
    %p94 = scmp.ne.s32.totalorder %s89, %s91
    %p95 = scmp.eq.s32.totalorder %s13, 0
    %p96 = por %p94, %p95
    %p97 = scmp.ne.s32.totalorder %s89, %s91
    %p98 = scmp.eq.s32.totalorder %s18, 1
    %p99 = por %p97, %p98
    %p100 = scmp.ne.s32.totalorder %s91, %s92
    %p101 = scmp.eq.s32.totalorder %s18, 0
    %p102 = por %p100, %p101
    %p103 = scmp.ne.s32.totalorder %s91, %s92
    %p104 = scmp.eq.s32.totalorder %s19, 1
    %p105 = por %p103, %p104
    %p107 = scmp.ne.s32.totalorder %s92, %s106
    %p108 = scmp.eq.s32.totalorder %s19, 0
    %p109 = por %p107, %p108
    %s110 = ssub.s32 %s13, %s20
    %p111 = scmp.eq.s32.totalorder %s110, 0
    %s113 = sadd.s32 %s112, 1
    %s114 = scalar_select %p111, %s112, %s113
    %p117 = pneg %p111
    %p118 = scmp.eq.s32.totalorder %s13, 1
    %p119 = por %p117, %p118
    %p120 = scmp.ne.s32.totalorder %s112, %s115
    %p121 = scmp.eq.s32.totalorder %s13, 0
    %p122 = por %p120, %p121
    %p123 = scmp.ne.s32.totalorder %s112, %s115
    %p124 = scmp.eq.s32.totalorder %s18, 1
    %p125 = por %p123, %p124
    %p126 = scmp.ne.s32.totalorder %s115, %s116
    %p127 = scmp.eq.s32.totalorder %s18, 0
    %p128 = por %p126, %p127
    %p129 = scmp.ne.s32.totalorder %s115, %s116
    %p130 = scmp.eq.s32.totalorder %s19, 1
    %p131 = por %p129, %p130
    %p133 = scmp.ne.s32.totalorder %s116, %s132
    %p134 = scmp.eq.s32.totalorder %s19, 0
    %p135 = por %p133, %p134
    %s136 = ssub.s32 %s13, %s20
    %p137 = scmp.eq.s32.totalorder %s136, 0
    %s139 = sadd.s32 %s138, 1
    %s140 = scalar_select %p137, %s138, %s139
    %p143 = pneg %p137
    %p144 = scmp.eq.s32.totalorder %s13, 1
    %p145 = por %p143, %p144
    %p146 = scmp.ne.s32.totalorder %s138, %s141
    %p147 = scmp.eq.s32.totalorder %s13, 0
    %p148 = por %p146, %p147
    %p149 = scmp.ne.s32.totalorder %s138, %s141
    %p150 = scmp.eq.s32.totalorder %s18, 1
    %p151 = por %p149, %p150
    %p152 = scmp.ne.s32.totalorder %s141, %s142
    %p153 = scmp.eq.s32.totalorder %s18, 0
    %p154 = por %p152, %p153
    %p155 = scmp.ne.s32.totalorder %s141, %s142
    %p156 = scmp.eq.s32.totalorder %s19, 1
    %p157 = por %p155, %p156
    %p159 = scmp.ne.s32.totalorder %s142, %s158
    %p160 = scmp.eq.s32.totalorder %s19, 0
    %p161 = por %p159, %p160
    %s162 = ssub.s32 %s13, %s20
    %p163 = scmp.eq.s32.totalorder %s162, 0
    %s165 = sadd.s32 %s164, 1
    %s166 = scalar_select %p163, %s164, %s165
    %p169 = pneg %p163
    %p170 = scmp.eq.s32.totalorder %s13, 1
    %p171 = por %p169, %p170
    %p172 = scmp.ne.s32.totalorder %s164, %s167
    %p173 = scmp.eq.s32.totalorder %s13, 0
    %p174 = por %p172, %p173
    %p175 = scmp.ne.s32.totalorder %s164, %s167
    %p176 = scmp.eq.s32.totalorder %s18, 1
    %p177 = por %p175, %p176
    %p178 = scmp.ne.s32.totalorder %s167, %s168
    %p179 = scmp.eq.s32.totalorder %s18, 0
    %p180 = por %p178, %p179
    %p181 = scmp.ne.s32.totalorder %s167, %s168
    %p182 = scmp.eq.s32.totalorder %s19, 1
    %p183 = por %p181, %p182
    %p185 = scmp.ne.s32.totalorder %s168, %s184
    %p186 = scmp.eq.s32.totalorder %s19, 0
    %p187 = por %p185, %p186
    %p188 = scmp.le.s32.totalorder 1, %s13
    %p189 = scmp.lt.s32.totalorder %s13, 3
    %p190 = pnand %p188, %p189
    %p191 = pneg %p190
    // Predicated region
    $region9: #{bottleneck_t_forward.6} parent=5 // pred_check
      _
    $region10: #{bottleneck_t_forward.6} parent=5 // pred_check_branch
      %193 = sbr.rel (%p190) target = $region12
    $region11: #{bottleneck_t_forward.6} parent=5 // pred_region
      %s194 = ssub.s32 %s13, 1
      // Predicated region
      $region13: #{bottleneck_t_forward.6} parent=11 // pred_check
        %p195 = pneg %p60
      $region14: #{bottleneck_t_forward.6} parent=11 // pred_check_branch
        %197 = sbr.rel (%p195) target = $region16
      $region15: #{bottleneck_t_forward.6} parent=11 // pred_region
        _
      $region16: #{bottleneck_t_forward.6} parent=11 // pred_fallthru
        _
      // Predicated region
      $region17: #{bottleneck_t_forward.6} parent=11 // pred_check
        %p198 = pneg %p81
      $region18: #{bottleneck_t_forward.6} parent=11 // pred_check_branch
        %200 = sbr.rel (%p198) target = $region20
      $region19: #{bottleneck_t_forward.6} parent=11 // pred_region
        _
      $region20: #{bottleneck_t_forward.6} parent=11 // pred_fallthru
        _
      // Predicated region
      $region21: #{bottleneck_t_forward.6} parent=11 // pred_check
        %p201 = pneg %p102
      $region22: #{bottleneck_t_forward.6} parent=11 // pred_check_branch
        %203 = sbr.rel (%p201) target = $region24
      $region23: #{bottleneck_t_forward.6} parent=11 // pred_region
        _
      $region24: #{bottleneck_t_forward.6} parent=11 // pred_fallthru
        _
    $region12: #{bottleneck_t_forward.6} parent=5 // pred_fallthru
      _
    %p204 = scmp.lt.s32.totalorder %s13, 2
    // Predicated region
    $region25: #{bottleneck_t_forward.6} parent=5 // pred_check
      %p205 = pneg %p204
    $region26: #{bottleneck_t_forward.6} parent=5 // pred_check_branch
      %207 = sbr.rel (%p205) target = $region28
    $region27: #{bottleneck_t_forward.6} parent=5 // pred_region
      // Predicated region
      $region29: #{bottleneck_t_forward.6} parent=27 // pred_check
        %p208 = pneg %p33
      $region30: #{bottleneck_t_forward.6} parent=27 // pred_check_branch
        %210 = sbr.rel (%p208) target = $region32
      $region31: #{bottleneck_t_forward.6} parent=27 // pred_region
        %s211 = smul.u32 8, %s13
        %p212 = scmp.lt.s32.totalorder %s211, 15
        %s213 = scalar_select %p212, %s211, 15
        %s214 = smul.addr %s213, 4
        %s215 = scalar_lea.vmem %s0, %s214
        %s216 = smul.u32 8, %s13
      $region32: #{bottleneck_t_forward.6} parent=27 // pred_fallthru
        _
    $region28: #{bottleneck_t_forward.6} parent=5 // pred_fallthru
      _
    %p217 = scmp.le.s32.totalorder 1, %s13
    %p218 = scmp.lt.s32.totalorder %s13, 3
    %p219 = pnand %p217, %p218
    %p220 = pneg %p219
    // Predicated region
    $region33: #{bottleneck_t_forward.6} parent=5 // pred_check
      _
    $region34: #{bottleneck_t_forward.6} parent=5 // pred_check_branch
      %222 = sbr.rel (%p219) target = $region36
    $region35: #{bottleneck_t_forward.6} parent=5 // pred_region
      %s223 = ssub.s32 %s13, 1
      %s224 = smul.u32 8, %s18
      %p225 = scmp.lt.s32.totalorder %s224, 15
      %s226 = scalar_select %p225, %s224, 15
      %s227 = smul.addr %s226, 4
      %s228 = scalar_lea.vmem %s0, %s227
      %p229 = pneg %p39
      %p230 = pneg %p36
      %p231 = pneg %p60
      %p232 = pneg %p57
      %p233 = pneg %p81
      %p234 = pneg %p78
      %p235 = pneg %p102
      %p236 = pneg %p99
      %p237 = pneg %p128
      %p238 = pneg %p125
      %s239 = smul.u32 8, %s18
      %p240 = scmp.lt.s32.totalorder %s239, 15
      %s241 = scalar_select %p240, %s239, 15
      %s242 = smul.addr %s241, 4
      %s243 = scalar_lea.vmem %s4, %s242
      %p244 = pneg %p154
      %p245 = pneg %p151
      %p246 = scmp.lt.s32.totalorder %s18, 1
      %s247 = scalar_select %p246, %s18, 1
      %s248 = smul.addr %s247, 8
      %s249 = scalar_lea.vmem %s5, %s248
      %p250 = pneg %p180
      %p251 = pneg %p177
      %p252 = scmp.lt.s32.totalorder %s18, 1
      %s253 = scalar_select %p252, %s18, 1
      %s254 = smul.addr %s253, 8
      %s255 = scalar_lea.vmem %s6, %s254
      %s256 = smul.u32 8, %s18
      %p257 = scmp.lt.s32.totalorder %s256, 15
      %s258 = scalar_select %p257, %s256, 15
      %s259 = smul.addr %s258, 4
      %s260 = scalar_lea.vmem %s0, %s259
      %s261 = smul.u32 8, %s18
      %s262 = smul.u32 8, %s18
      %p263 = scmp.lt.s32.totalorder %s262, 15
      %s264 = scalar_select %p263, %s262, 15
      %s265 = smul.addr %s264, 4
      %s266 = scalar_lea.vmem %s4, %s265
      %s267 = smul.u32 8, %s18
      %p268 = scmp.lt.s32.totalorder %s18, 1
      %s269 = scalar_select %p268, %s18, 1
      %s270 = smul.addr %s269, 8
      %s271 = scalar_lea.vmem %s5, %s270
      %p272 = scmp.lt.s32.totalorder %s18, 1
      %s273 = scalar_select %p272, %s18, 1
      %s274 = smul.addr %s273, 8
      %s275 = scalar_lea.vmem %s6, %s274
      %vm277 = vcmask 523264
      %278 = vst.msk [vmem:[#allocation2] sm:$0xff] %vm277, 0.0
      %vm279 = vcmask 517120
      %280 = vst.msk [vmem:[#allocation2 + $0x8] sm:$0x3] %vm279, 0.0
      %281 = vst.msk [vmem:[#allocation2 + $0x10] sm:$0xff] %vm277, 0.0
      %282 = vst.msk [vmem:[#allocation2 + $0x18] sm:$0x3] %vm279, 0.0
      %283 = vst.msk [vmem:[#allocation2 + $0x20] sm:$0xff] %vm277, 0.0
      %284 = vst.msk [vmem:[#allocation2 + $0x28] sm:$0x3] %vm279, 0.0
      %285 = vst.msk [vmem:[#allocation2 + $0x30] sm:$0xff] %vm277, 0.0
      %286 = vst.msk [vmem:[#allocation2 + $0x38] sm:$0x3] %vm279, 0.0
      %287 = vst.msk [vmem:[#allocation2 + $0x40] sm:$0xff] %vm277, 0.0
      %288 = vst.msk [vmem:[#allocation2 + $0x48] sm:$0x3] %vm279, 0.0
      %289 = vst.msk [vmem:[#allocation2 + $0x50] sm:$0xff] %vm277, 0.0
      %290 = vst.msk [vmem:[#allocation2 + $0x58] sm:$0x3] %vm279, 0.0
      %291 = vst.msk [vmem:[#allocation2 + $0x60] sm:$0xff] %vm277, 0.0
      %292 = vst.msk [vmem:[#allocation2 + $0x68] sm:$0x3] %vm279, 0.0
      %293 = vst.msk [vmem:[#allocation2 + $0x70] sm:$0xff] %vm277, 0.0
      %294 = vst.msk [vmem:[#allocation2 + $0x78] sm:$0x3] %vm279, 0.0
      %295 = vst.msk [vmem:[#allocation2 + $0x80] sm:$0xff] %vm277, 0.0
      %296 = vst.msk [vmem:[#allocation2 + $0x88] sm:$0x3] %vm279, 0.0
      %297 = vst.msk [vmem:[#allocation2 + $0x90] sm:$0xff] %vm277, 0.0
      %298 = vst.msk [vmem:[#allocation2 + $0x98] sm:$0x3] %vm279, 0.0
      %v299 = vld [vmem:[%s1] sm:$0x1]
      %v300 = vld [vmem:[%s2] sm:$0x1]
      %v301 = vld [vmem:[%s260] sm:$0xf]
      %v302 = vunpack.c.l.bf16 %v301
      %v304 = vlaneseq
      %v305 = vshrl.u32 %v304, 7
      %v306 = vsub.s32 0, %v305
      %v307 = vrot.slane %v299, %v306
      %v309 = vmul.f32 %v302, %v307
      %v311 = vlaneseq
      %v312 = vshrl.u32 %v311, 7
      %v313 = vsub.s32 0, %v312
      %v314 = vrot.slane %v300, %v313
      %v316 = vadd.f32 %v309, %v314
      %s317 = scalar_lea.vmem [#allocation2], 16
      %318 = vst.msk [vmem:[%s317 + $0x1] sm:$0xff] %vm277, %v316
      %v319 = vld [vmem:[%s260 + $0x4] sm:$0xf]
      %v320 = vunpack.c.l.bf16 %v319
      %v321 = vmul.f32 %v320, %v307
      %v322 = vadd.f32 %v321, %v314
      %s323 = scalar_lea.vmem [#allocation2], 32
      %324 = vst.msk [vmem:[%s323 + $0x1] sm:$0xff] %vm277, %v322
      %v325 = vld [vmem:[%s260 + $0x8] sm:$0xf]
      %v326 = vunpack.c.l.bf16 %v325
      %v327 = vmul.f32 %v326, %v307
      %v328 = vadd.f32 %v327, %v314
      %s329 = scalar_lea.vmem [#allocation2], 48
      %330 = vst.msk [vmem:[%s329 + $0x1] sm:$0xff] %vm277, %v328
      %v331 = vld [vmem:[%s260 + $0xc] sm:$0xf]
      %v332 = vunpack.c.l.bf16 %v331
      %v333 = vmul.f32 %v332, %v307
      %v334 = vadd.f32 %v333, %v314
      %s335 = scalar_lea.vmem [#allocation2], 64
      %336 = vst.msk [vmem:[%s335 + $0x1] sm:$0xff] %vm277, %v334
      %v337 = vld [vmem:[%s260 + $0x10] sm:$0xf]
      %v338 = vunpack.c.l.bf16 %v337
      %v339 = vmul.f32 %v338, %v307
      %v340 = vadd.f32 %v339, %v314
      %s341 = scalar_lea.vmem [#allocation2], 80
      %342 = vst.msk [vmem:[%s341 + $0x1] sm:$0xff] %vm277, %v340
      %v343 = vld [vmem:[%s260 + $0x14] sm:$0xf]
      %v344 = vunpack.c.l.bf16 %v343
      %v345 = vmul.f32 %v344, %v307
      %v346 = vadd.f32 %v345, %v314
      %s347 = scalar_lea.vmem [#allocation2], 96
      %348 = vst.msk [vmem:[%s347 + $0x1] sm:$0xff] %vm277, %v346
      %v349 = vld [vmem:[%s260 + $0x18] sm:$0xf]
      %v350 = vunpack.c.l.bf16 %v349
      %v351 = vmul.f32 %v350, %v307
      %v352 = vadd.f32 %v351, %v314
      %s353 = scalar_lea.vmem [#allocation2], 112
      %354 = vst.msk [vmem:[%s353 + $0x1] sm:$0xff] %vm277, %v352
      %v355 = vld [vmem:[%s260 + $0x1c] sm:$0xf]
      %v356 = vunpack.c.l.bf16 %v355
      %v357 = vmul.f32 %v356, %v307
      %v358 = vadd.f32 %v357, %v314
      %s359 = scalar_lea.vmem [#allocation2], 128
      %360 = vst.msk [vmem:[%s359 + $0x1] sm:$0xff] %vm277, %v358
      %361 = vst.msk [vmem:[#allocation3] sm:$0xff] %vm277, 0.0
      %362 = vst.msk [vmem:[#allocation3 + $0x8] sm:$0xff] %vm277, 0.0
      %363 = vst.msk [vmem:[#allocation3 + $0x10] sm:$0xff] %vm277, 0.0
      %364 = vst.msk [vmem:[#allocation3 + $0x18] sm:$0xff] %vm277, 0.0
      %365 = vst.msk [vmem:[#allocation3 + $0x20] sm:$0xff] %vm277, 0.0
      %366 = vst.msk [vmem:[#allocation3 + $0x28] sm:$0xff] %vm277, 0.0
      %367 = vst.msk [vmem:[#allocation3 + $0x30] sm:$0xff] %vm277, 0.0
      %368 = vst.msk [vmem:[#allocation3 + $0x38] sm:$0xff] %vm277, 0.0
      %v369 = vld [vmem:[%s3] sm:$0xf]
      %v370 = vld [vmem:[%s3 + $0x4] sm:$0xf]
      %v371 = vld [vmem:[%s3 + $0x8] sm:$0xf]
      %v372 = vld [vmem:[%s3 + $0xc] sm:$0xf]
      %v373 = vld [vmem:[%s3 + $0x10] sm:$0xf]
      %v374 = vld [vmem:[%s3 + $0x14] sm:$0xf]
      %v375 = vld [vmem:[%s3 + $0x18] sm:$0xf]
      %v376 = vld [vmem:[%s3 + $0x1c] sm:$0xf]
      %v377 = vld [vmem:[#allocation2] sm:$0xff]
      %v378 = vpack.c.bf16 %v377, %v377
      %v379 = vld [vmem:[#allocation3] sm:$0xff]
      %v388 = vunpack.c.l.b16 %v369
      %v389 = vunpack.c.l.b16 %v370
      %v390 = vunpack.c.l.b16 %v371
      %v391 = vunpack.c.l.b16 %v372
      %v392 = vunpack.c.l.b16 %v373
      %v393 = vunpack.c.l.b16 %v374
      %v394 = vunpack.c.l.b16 %v375
      %v395 = vunpack.c.l.b16 %v376
      %v396 = vpack.c.b16 %v389, %v388
      %v397 = vpack.c.b16 %v391, %v390
      %v398 = vpack.c.b16 %v393, %v392
      %v399 = vpack.c.b16 %v395, %v394
      %v405 = vsel %vm277, %v378, 0
      %407 = vmatprep.subr.bf16.mxu0 0
      %408 = vmatpush1.bf16.msra.mxu0 %v396
      %409 = vmatprep.subr.bf16.mxu0 0
      %410 = vmatpush1.bf16.msra.mxu0 %v397
      %411 = vmatprep.subr.bf16.mxu0 0
      %412 = vmatpush1.bf16.msra.mxu0 %v398
      %413 = vmatprep.subr.bf16.mxu0 0
      %414 = vmatpush1.bf16.msra.mxu0 %v399
      %415 = vmatprep.subr.bf16.mxu0 0
      %416 = vmatpush1.bf16.msra.mxu0 0
      %417 = vmatprep.subr.bf16.mxu0 0
      %418 = vmatpush1.bf16.msra.mxu0 0
      %419 = vmatprep.subr.bf16.mxu0 0
      %420 = vmatpush1.bf16.msra.mxu0 0
      %421 = vmatprep.subr.bf16.mxu0 0
      %422 = vmatpush1.bf16.msra.mxu0 0
      %423 = vmatprep.subr.bf16.mxu0 0
      %424 = vmatpush1.bf16.msra.mxu0 0
      %425 = vmatprep.subr.bf16.mxu0 0
      %426 = vmatpush1.bf16.msra.mxu0 0
      %427 = vmatprep.subr.bf16.mxu0 0
      %428 = vmatpush1.bf16.msra.mxu0 0
      %429 = vmatprep.subr.bf16.mxu0 0
      %430 = vmatpush1.bf16.msra.mxu0 0
      %431 = vmatprep.subr.bf16.mxu0 0
      %432 = vmatpush1.bf16.msra.mxu0 0
      %433 = vmatprep.subr.bf16.mxu0 0
      %434 = vmatpush1.bf16.msra.mxu0 0
      %435 = vmatprep.subr.bf16.mxu0 0
      %436 = vmatpush1.bf16.msra.mxu0 0
      %437 = vmatprep.subr.bf16.mxu0 0
      %438 = vmatpush1.bf16.msra.mxu0 0
      %439 = vmatprep.mubr.bf16.mxu0 0
      %440 = vmatmul.mubr.bf16.gmra.mrb[0].mxu0 %v405
      %v441 = vpop.f32.mrb[0].mxu0
      %v442 = vadd.f32 0.0, %v441
      %v443 = vpop.f32.mrb[0].mxu0
      %v444 = vpop.f32.mrb[0].mxu0
      %v445 = vpop.f32.mrb[0].mxu0
      %446 = vdwg.mxu0
      %v447 = vadd.f32 %v379, %v442
      %448 = vst.msk [vmem:[#allocation3] sm:$0xff] %vm277, %v447
      %v449 = vld [vmem:[%s317] sm:$0xff]
      %v450 = vpack.c.bf16 %v449, %v449
      %v451 = vld [vmem:[#allocation3 + $0x8] sm:$0xff]
      %v453 = vsel %vm277, %v450, 0
      %455 = vmatprep.subr.bf16.mxu0 0
      %456 = vmatpush1.bf16.msra.mxu0 %v396
      %457 = vmatprep.subr.bf16.mxu0 0
      %458 = vmatpush1.bf16.msra.mxu0 %v397
      %459 = vmatprep.subr.bf16.mxu0 0
      %460 = vmatpush1.bf16.msra.mxu0 %v398
      %461 = vmatprep.subr.bf16.mxu0 0
      %462 = vmatpush1.bf16.msra.mxu0 %v399
      %463 = vmatprep.subr.bf16.mxu0 0
      %464 = vmatpush1.bf16.msra.mxu0 0
      %465 = vmatprep.subr.bf16.mxu0 0
      %466 = vmatpush1.bf16.msra.mxu0 0
      %467 = vmatprep.subr.bf16.mxu0 0
      %468 = vmatpush1.bf16.msra.mxu0 0
      %469 = vmatprep.subr.bf16.mxu0 0
      %470 = vmatpush1.bf16.msra.mxu0 0
      %471 = vmatprep.subr.bf16.mxu0 0
      %472 = vmatpush1.bf16.msra.mxu0 0
      %473 = vmatprep.subr.bf16.mxu0 0
      %474 = vmatpush1.bf16.msra.mxu0 0
      %475 = vmatprep.subr.bf16.mxu0 0
      %476 = vmatpush1.bf16.msra.mxu0 0
      %477 = vmatprep.subr.bf16.mxu0 0
      %478 = vmatpush1.bf16.msra.mxu0 0
      %479 = vmatprep.subr.bf16.mxu0 0
      %480 = vmatpush1.bf16.msra.mxu0 0
      %481 = vmatprep.subr.bf16.mxu0 0
      %482 = vmatpush1.bf16.msra.mxu0 0
      %483 = vmatprep.subr.bf16.mxu0 0
      %484 = vmatpush1.bf16.msra.mxu0 0
      %485 = vmatprep.subr.bf16.mxu0 0
      %486 = vmatpush1.bf16.msra.mxu0 0
      %487 = vmatprep.mubr.bf16.mxu0 0
      %488 = vmatmul.mubr.bf16.gmra.mrb[0].mxu0 %v453
      %v489 = vpop.f32.mrb[0].mxu0
      %v490 = vadd.f32 0.0, %v489
      %v491 = vpop.f32.mrb[0].mxu0
      %v492 = vpop.f32.mrb[0].mxu0
      %v493 = vpop.f32.mrb[0].mxu0
      %494 = vdwg.mxu0
      %v495 = vadd.f32 %v451, %v490
      %496 = vst.msk [vmem:[#allocation3 + $0x8] sm:$0xff] %vm277, %v495
      %v497 = vld [vmem:[%s323] sm:$0xff]
      %v498 = vpack.c.bf16 %v497, %v497
      %v499 = vld [vmem:[#allocation3 + $0x10] sm:$0xff]
      %v501 = vsel %vm277, %v498, 0
      %503 = vmatprep.subr.bf16.mxu0 0
      %504 = vmatpush1.bf16.msra.mxu0 %v396
      %505 = vmatprep.subr.bf16.mxu0 0
      %506 = vmatpush1.bf16.msra.mxu0 %v397
      %507 = vmatprep.subr.bf16.mxu0 0
      %508 = vmatpush1.bf16.msra.mxu0 %v398
      %509 = vmatprep.subr.bf16.mxu0 0
      %510 = vmatpush1.bf16.msra.mxu0 %v399
      %511 = vmatprep.subr.bf16.mxu0 0
      %512 = vmatpush1.bf16.msra.mxu0 0
      %513 = vmatprep.subr.bf16.mxu0 0
      %514 = vmatpush1.bf16.msra.mxu0 0
      %515 = vmatprep.subr.bf16.mxu0 0
      %516 = vmatpush1.bf16.msra.mxu0 0
      %517 = vmatprep.subr.bf16.mxu0 0
      %518 = vmatpush1.bf16.msra.mxu0 0
      %519 = vmatprep.subr.bf16.mxu0 0
      %520 = vmatpush1.bf16.msra.mxu0 0
      %521 = vmatprep.subr.bf16.mxu0 0
      %522 = vmatpush1.bf16.msra.mxu0 0
      %523 = vmatprep.subr.bf16.mxu0 0
      %524 = vmatpush1.bf16.msra.mxu0 0
      %525 = vmatprep.subr.bf16.mxu0 0
      %526 = vmatpush1.bf16.msra.mxu0 0
      %527 = vmatprep.subr.bf16.mxu0 0
      %528 = vmatpush1.bf16.msra.mxu0 0
      %529 = vmatprep.subr.bf16.mxu0 0
      %530 = vmatpush1.bf16.msra.mxu0 0
      %531 = vmatprep.subr.bf16.mxu0 0
      %532 = vmatpush1.bf16.msra.mxu0 0
      %533 = vmatprep.subr.bf16.mxu0 0
      %534 = vmatpush1.bf16.msra.mxu0 0
      %535 = vmatprep.mubr.bf16.mxu0 0
      %536 = vmatmul.mubr.bf16.gmra.mrb[0].mxu0 %v501
      %v537 = vpop.f32.mrb[0].mxu0
      %v538 = vadd.f32 0.0, %v537
      %v539 = vpop.f32.mrb[0].mxu0
      %v540 = vpop.f32.mrb[0].mxu0
      %v541 = vpop.f32.mrb[0].mxu0
      %542 = vdwg.mxu0
      %v543 = vadd.f32 %v499, %v538
      %544 = vst.msk [vmem:[#allocation3 + $0x10] sm:$0xff] %vm277, %v543
      %v545 = vld [vmem:[%s329] sm:$0xff]
      %v546 = vpack.c.bf16 %v545, %v545
      %v547 = vld [vmem:[#allocation3 + $0x18] sm:$0xff]
      %v549 = vsel %vm277, %v546, 0
      %551 = vmatprep.subr.bf16.mxu0 0
      %552 = vmatpush1.bf16.msra.mxu0 %v396
      %553 = vmatprep.subr.bf16.mxu0 0
      %554 = vmatpush1.bf16.msra.mxu0 %v397
      %555 = vmatprep.subr.bf16.mxu0 0
      %556 = vmatpush1.bf16.msra.mxu0 %v398
      %557 = vmatprep.subr.bf16.mxu0 0
      %558 = vmatpush1.bf16.msra.mxu0 %v399
      %559 = vmatprep.subr.bf16.mxu0 0
      %560 = vmatpush1.bf16.msra.mxu0 0
      %561 = vmatprep.subr.bf16.mxu0 0
      %562 = vmatpush1.bf16.msra.mxu0 0
      %563 = vmatprep.subr.bf16.mxu0 0
      %564 = vmatpush1.bf16.msra.mxu0 0
      %565 = vmatprep.subr.bf16.mxu0 0
      %566 = vmatpush1.bf16.msra.mxu0 0
      %567 = vmatprep.subr.bf16.mxu0 0
      %568 = vmatpush1.bf16.msra.mxu0 0
      %569 = vmatprep.subr.bf16.mxu0 0
      %570 = vmatpush1.bf16.msra.mxu0 0
      %571 = vmatprep.subr.bf16.mxu0 0
      %572 = vmatpush1.bf16.msra.mxu0 0
      %573 = vmatprep.subr.bf16.mxu0 0
      %574 = vmatpush1.bf16.msra.mxu0 0
      %575 = vmatprep.subr.bf16.mxu0 0
      %576 = vmatpush1.bf16.msra.mxu0 0
      %577 = vmatprep.subr.bf16.mxu0 0
      %578 = vmatpush1.bf16.msra.mxu0 0
      %579 = vmatprep.subr.bf16.mxu0 0
      %580 = vmatpush1.bf16.msra.mxu0 0
      %581 = vmatprep.subr.bf16.mxu0 0
      %582 = vmatpush1.bf16.msra.mxu0 0
      %583 = vmatprep.mubr.bf16.mxu0 0
      %584 = vmatmul.mubr.bf16.gmra.mrb[0].mxu0 %v549
      %v585 = vpop.f32.mrb[0].mxu0
      %v586 = vadd.f32 0.0, %v585
      %v587 = vpop.f32.mrb[0].mxu0
      %v588 = vpop.f32.mrb[0].mxu0
      %v589 = vpop.f32.mrb[0].mxu0
      %590 = vdwg.mxu0
      %v591 = vadd.f32 %v547, %v586
      %592 = vst.msk [vmem:[#allocation3 + $0x18] sm:$0xff] %vm277, %v591
      %v593 = vld [vmem:[%s335] sm:$0xff]
      %v594 = vpack.c.bf16 %v593, %v593
      %v595 = vld [vmem:[#allocation3 + $0x20] sm:$0xff]
      %v597 = vsel %vm277, %v594, 0
      %599 = vmatprep.subr.bf16.mxu0 0
      %600 = vmatpush1.bf16.msra.mxu0 %v396
      %601 = vmatprep.subr.bf16.mxu0 0
      %602 = vmatpush1.bf16.msra.mxu0 %v397
      %603 = vmatprep.subr.bf16.mxu0 0
      %604 = vmatpush1.bf16.msra.mxu0 %v398
      %605 = vmatprep.subr.bf16.mxu0 0
      %606 = vmatpush1.bf16.msra.mxu0 %v399
      %607 = vmatprep.subr.bf16.mxu0 0
      %608 = vmatpush1.bf16.msra.mxu0 0
      %609 = vmatprep.subr.bf16.mxu0 0
      %610 = vmatpush1.bf16.msra.mxu0 0
      %611 = vmatprep.subr.bf16.mxu0 0
      %612 = vmatpush1.bf16.msra.mxu0 0
      %613 = vmatprep.subr.bf16.mxu0 0
      %614 = vmatpush1.bf16.msra.mxu0 0
      %615 = vmatprep.subr.bf16.mxu0 0
      %616 = vmatpush1.bf16.msra.mxu0 0
      %617 = vmatprep.subr.bf16.mxu0 0
      %618 = vmatpush1.bf16.msra.mxu0 0
      %619 = vmatprep.subr.bf16.mxu0 0
      %620 = vmatpush1.bf16.msra.mxu0 0
      %621 = vmatprep.subr.bf16.mxu0 0
      %622 = vmatpush1.bf16.msra.mxu0 0
      %623 = vmatprep.subr.bf16.mxu0 0
      %624 = vmatpush1.bf16.msra.mxu0 0
      %625 = vmatprep.subr.bf16.mxu0 0
      %626 = vmatpush1.bf16.msra.mxu0 0
      %627 = vmatprep.subr.bf16.mxu0 0
      %628 = vmatpush1.bf16.msra.mxu0 0
      %629 = vmatprep.subr.bf16.mxu0 0
      %630 = vmatpush1.bf16.msra.mxu0 0
      %631 = vmatprep.mubr.bf16.mxu0 0
      %632 = vmatmul.mubr.bf16.gmra.mrb[0].mxu0 %v597
      %v633 = vpop.f32.mrb[0].mxu0
      %v634 = vadd.f32 0.0, %v633
      %v635 = vpop.f32.mrb[0].mxu0
      %v636 = vpop.f32.mrb[0].mxu0
      %v637 = vpop.f32.mrb[0].mxu0
      %638 = vdwg.mxu0
      %v639 = vadd.f32 %v595, %v634
      %640 = vst.msk [vmem:[#allocation3 + $0x20] sm:$0xff] %vm277, %v639
      %v641 = vld [vmem:[%s341] sm:$0xff]
      %v642 = vpack.c.bf16 %v641, %v641
      %v643 = vld [vmem:[#allocation3 + $0x28] sm:$0xff]
      %v645 = vsel %vm277, %v642, 0
      %647 = vmatprep.subr.bf16.mxu0 0
      %648 = vmatpush1.bf16.msra.mxu0 %v396
      %649 = vmatprep.subr.bf16.mxu0 0
      %650 = vmatpush1.bf16.msra.mxu0 %v397
      %651 = vmatprep.subr.bf16.mxu0 0
      %652 = vmatpush1.bf16.msra.mxu0 %v398
      %653 = vmatprep.subr.bf16.mxu0 0
      %654 = vmatpush1.bf16.msra.mxu0 %v399
      %655 = vmatprep.subr.bf16.mxu0 0
      %656 = vmatpush1.bf16.msra.mxu0 0
      %657 = vmatprep.subr.bf16.mxu0 0
      %658 = vmatpush1.bf16.msra.mxu0 0
      %659 = vmatprep.subr.bf16.mxu0 0
      %660 = vmatpush1.bf16.msra.mxu0 0
      %661 = vmatprep.subr.bf16.mxu0 0
      %662 = vmatpush1.bf16.msra.mxu0 0
      %663 = vmatprep.subr.bf16.mxu0 0
      %664 = vmatpush1.bf16.msra.mxu0 0
      %665 = vmatprep.subr.bf16.mxu0 0
      %666 = vmatpush1.bf16.msra.mxu0 0
      %667 = vmatprep.subr.bf16.mxu0 0
      %668 = vmatpush1.bf16.msra.mxu0 0
      %669 = vmatprep.subr.bf16.mxu0 0
      %670 = vmatpush1.bf16.msra.mxu0 0
      %671 = vmatprep.subr.bf16.mxu0 0
      %672 = vmatpush1.bf16.msra.mxu0 0
      %673 = vmatprep.subr.bf16.mxu0 0
      %674 = vmatpush1.bf16.msra.mxu0 0
      %675 = vmatprep.subr.bf16.mxu0 0
      %676 = vmatpush1.bf16.msra.mxu0 0
      %677 = vmatprep.subr.bf16.mxu0 0
      %678 = vmatpush1.bf16.msra.mxu0 0
      %679 = vmatprep.mubr.bf16.mxu0 0
      %680 = vmatmul.mubr.bf16.gmra.mrb[0].mxu0 %v645
      %v681 = vpop.f32.mrb[0].mxu0
      %v682 = vadd.f32 0.0, %v681
      %v683 = vpop.f32.mrb[0].mxu0
      %v684 = vpop.f32.mrb[0].mxu0
      %v685 = vpop.f32.mrb[0].mxu0
      %686 = vdwg.mxu0
      %v687 = vadd.f32 %v643, %v682
      %688 = vst.msk [vmem:[#allocation3 + $0x28] sm:$0xff] %vm277, %v687
      %v689 = vld [vmem:[%s347] sm:$0xff]
      %v690 = vpack.c.bf16 %v689, %v689
      %v691 = vld [vmem:[#allocation3 + $0x30] sm:$0xff]
      %v693 = vsel %vm277, %v690, 0
      %695 = vmatprep.subr.bf16.mxu0 0
      %696 = vmatpush1.bf16.msra.mxu0 %v396
      %697 = vmatprep.subr.bf16.mxu0 0
      %698 = vmatpush1.bf16.msra.mxu0 %v397
      %699 = vmatprep.subr.bf16.mxu0 0
      %700 = vmatpush1.bf16.msra.mxu0 %v398
      %701 = vmatprep.subr.bf16.mxu0 0
      %702 = vmatpush1.bf16.msra.mxu0 %v399
      %703 = vmatprep.subr.bf16.mxu0 0
      %704 = vmatpush1.bf16.msra.mxu0 0
      %705 = vmatprep.subr.bf16.mxu0 0
      %706 = vmatpush1.bf16.msra.mxu0 0
      %707 = vmatprep.subr.bf16.mxu0 0
      %708 = vmatpush1.bf16.msra.mxu0 0
      %709 = vmatprep.subr.bf16.mxu0 0
      %710 = vmatpush1.bf16.msra.mxu0 0
      %711 = vmatprep.subr.bf16.mxu0 0
      %712 = vmatpush1.bf16.msra.mxu0 0
      %713 = vmatprep.subr.bf16.mxu0 0
      %714 = vmatpush1.bf16.msra.mxu0 0
      %715 = vmatprep.subr.bf16.mxu0 0
      %716 = vmatpush1.bf16.msra.mxu0 0
      %717 = vmatprep.subr.bf16.mxu0 0
      %718 = vmatpush1.bf16.msra.mxu0 0
      %719 = vmatprep.subr.bf16.mxu0 0
      %720 = vmatpush1.bf16.msra.mxu0 0
      %721 = vmatprep.subr.bf16.mxu0 0
      %722 = vmatpush1.bf16.msra.mxu0 0
      %723 = vmatprep.subr.bf16.mxu0 0
      %724 = vmatpush1.bf16.msra.mxu0 0
      %725 = vmatprep.subr.bf16.mxu0 0
      %726 = vmatpush1.bf16.msra.mxu0 0
      %727 = vmatprep.mubr.bf16.mxu0 0
      %728 = vmatmul.mubr.bf16.gmra.mrb[0].mxu0 %v693
      %v729 = vpop.f32.mrb[0].mxu0
      %v730 = vadd.f32 0.0, %v729
      %v731 = vpop.f32.mrb[0].mxu0
      %v732 = vpop.f32.mrb[0].mxu0
      %v733 = vpop.f32.mrb[0].mxu0
      %734 = vdwg.mxu0
      %v735 = vadd.f32 %v691, %v730
      %736 = vst.msk [vmem:[#allocation3 + $0x30] sm:$0xff] %vm277, %v735
      %v737 = vld [vmem:[%s353] sm:$0xff]
      %v738 = vpack.c.bf16 %v737, %v737
      %v739 = vld [vmem:[#allocation3 + $0x38] sm:$0xff]
      %v741 = vsel %vm277, %v738, 0
      %743 = vmatprep.subr.bf16.mxu0 0
      %744 = vmatpush1.bf16.msra.mxu0 %v396
      %745 = vmatprep.subr.bf16.mxu0 0
      %746 = vmatpush1.bf16.msra.mxu0 %v397
      %747 = vmatprep.subr.bf16.mxu0 0
      %748 = vmatpush1.bf16.msra.mxu0 %v398
      %749 = vmatprep.subr.bf16.mxu0 0
      %750 = vmatpush1.bf16.msra.mxu0 %v399
      %751 = vmatprep.subr.bf16.mxu0 0
      %752 = vmatpush1.bf16.msra.mxu0 0
      %753 = vmatprep.subr.bf16.mxu0 0
      %754 = vmatpush1.bf16.msra.mxu0 0
      %755 = vmatprep.subr.bf16.mxu0 0
      %756 = vmatpush1.bf16.msra.mxu0 0
      %757 = vmatprep.subr.bf16.mxu0 0
      %758 = vmatpush1.bf16.msra.mxu0 0
      %759 = vmatprep.subr.bf16.mxu0 0
      %760 = vmatpush1.bf16.msra.mxu0 0
      %761 = vmatprep.subr.bf16.mxu0 0
      %762 = vmatpush1.bf16.msra.mxu0 0
      %763 = vmatprep.subr.bf16.mxu0 0
      %764 = vmatpush1.bf16.msra.mxu0 0
      %765 = vmatprep.subr.bf16.mxu0 0
      %766 = vmatpush1.bf16.msra.mxu0 0
      %767 = vmatprep.subr.bf16.mxu0 0
      %768 = vmatpush1.bf16.msra.mxu0 0
      %769 = vmatprep.subr.bf16.mxu0 0
      %770 = vmatpush1.bf16.msra.mxu0 0
      %771 = vmatprep.subr.bf16.mxu0 0
      %772 = vmatpush1.bf16.msra.mxu0 0
      %773 = vmatprep.subr.bf16.mxu0 0
      %774 = vmatpush1.bf16.msra.mxu0 0
      %775 = vmatprep.mubr.bf16.mxu0 0
      %776 = vmatmul.mubr.bf16.gmra.mrb[0].mxu0 %v741
      %v777 = vpop.f32.mrb[0].mxu0
      %v778 = vadd.f32 0.0, %v777
      %v779 = vpop.f32.mrb[0].mxu0
      %v780 = vpop.f32.mrb[0].mxu0
      %v781 = vpop.f32.mrb[0].mxu0
      %782 = vdwg.mxu0
      %v783 = vadd.f32 %v739, %v778
      %784 = vst.msk [vmem:[#allocation3 + $0x38] sm:$0xff] %vm277, %v783
      %v785 = vld [vmem:[%s3 + $0x20] sm:$0xf]
      %v786 = vld [vmem:[%s3 + $0x24] sm:$0xf]
      %v787 = vld [vmem:[%s3 + $0x28] sm:$0xf]
      %v788 = vld [vmem:[%s3 + $0x2c] sm:$0xf]
      %v789 = vld [vmem:[%s3 + $0x30] sm:$0xf]
      %v790 = vld [vmem:[%s3 + $0x34] sm:$0xf]
      %v791 = vld [vmem:[%s3 + $0x38] sm:$0xf]
      %v792 = vld [vmem:[%s3 + $0x3c] sm:$0xf]
      %v793 = vld [vmem:[#allocation2 + $0x1] sm:$0xff]
      %v794 = vpack.c.bf16 %v793, %v793
      %v795 = vld [vmem:[#allocation3] sm:$0xff]
      %v804 = vunpack.c.l.b16 %v785
      %v805 = vunpack.c.l.b16 %v786
      %v806 = vunpack.c.l.b16 %v787
      %v807 = vunpack.c.l.b16 %v788
      %v808 = vunpack.c.l.b16 %v789
      %v809 = vunpack.c.l.b16 %v790
      %v810 = vunpack.c.l.b16 %v791
      %v811 = vunpack.c.l.b16 %v792
      %v812 = vpack.c.b16 %v805, %v804
      %v813 = vpack.c.b16 %v807, %v806
      %v814 = vpack.c.b16 %v809, %v808
      %v815 = vpack.c.b16 %v811, %v810
      %v821 = vsel %vm277, %v794, 0
      %823 = vmatprep.subr.bf16.mxu0 0
      %824 = vmatpush1.bf16.msra.mxu0 %v812
      %825 = vmatprep.subr.bf16.mxu0 0
      %826 = vmatpush1.bf16.msra.mxu0 %v813
      %827 = vmatprep.subr.bf16.mxu0 0
      %828 = vmatpush1.bf16.msra.mxu0 %v814
      %829 = vmatprep.subr.bf16.mxu0 0
      %830 = vmatpush1.bf16.msra.mxu0 %v815
      %831 = vmatprep.subr.bf16.mxu0 0
      %832 = vmatpush1.bf16.msra.mxu0 0
      %833 = vmatprep.subr.bf16.mxu0 0
      %834 = vmatpush1.bf16.msra.mxu0 0
      %835 = vmatprep.subr.bf16.mxu0 0
      %836 = vmatpush1.bf16.msra.mxu0 0
      %837 = vmatprep.subr.bf16.mxu0 0
      %838 = vmatpush1.bf16.msra.mxu0 0
      %839 = vmatprep.subr.bf16.mxu0 0
      %840 = vmatpush1.bf16.msra.mxu0 0
      %841 = vmatprep.subr.bf16.mxu0 0
      %842 = vmatpush1.bf16.msra.mxu0 0
      %843 = vmatprep.subr.bf16.mxu0 0
      %844 = vmatpush1.bf16.msra.mxu0 0
      %845 = vmatprep.subr.bf16.mxu0 0
      %846 = vmatpush1.bf16.msra.mxu0 0
      %847 = vmatprep.subr.bf16.mxu0 0
      %848 = vmatpush1.bf16.msra.mxu0 0
      %849 = vmatprep.subr.bf16.mxu0 0
      %850 = vmatpush1.bf16.msra.mxu0 0
      %851 = vmatprep.subr.bf16.mxu0 0
      %852 = vmatpush1.bf16.msra.mxu0 0
      %853 = vmatprep.subr.bf16.mxu0 0
      %854 = vmatpush1.bf16.msra.mxu0 0
      %855 = vmatprep.mubr.bf16.mxu0 0
      %856 = vmatmul.mubr.bf16.gmra.mrb[0].mxu0 %v821
      %v857 = vpop.f32.mrb[0].mxu0
      %v858 = vadd.f32 0.0, %v857
      %v859 = vpop.f32.mrb[0].mxu0
      %v860 = vpop.f32.mrb[0].mxu0
      %v861 = vpop.f32.mrb[0].mxu0
      %862 = vdwg.mxu0
      %v863 = vadd.f32 %v795, %v858
      %864 = vst.msk [vmem:[#allocation3] sm:$0xff] %vm277, %v863
      %v865 = vld [vmem:[%s317 + $0x1] sm:$0xff]
      %v866 = vpack.c.bf16 %v865, %v865
      %v867 = vld [vmem:[#allocation3 + $0x8] sm:$0xff]
      %v869 = vsel %vm277, %v866, 0
      %871 = vmatprep.subr.bf16.mxu0 0
      %872 = vmatpush1.bf16.msra.mxu0 %v812
      %873 = vmatprep.subr.bf16.mxu0 0
      %874 = vmatpush1.bf16.msra.mxu0 %v813
      %875 = vmatprep.subr.bf16.mxu0 0
      %876 = vmatpush1.bf16.msra.mxu0 %v814
      %877 = vmatprep.subr.bf16.mxu0 0
      %878 = vmatpush1.bf16.msra.mxu0 %v815
      %879 = vmatprep.subr.bf16.mxu0 0
      %880 = vmatpush1.bf16.msra.mxu0 0
      %881 = vmatprep.subr.bf16.mxu0 0
      %882 = vmatpush1.bf16.msra.mxu0 0
      %883 = vmatprep.subr.bf16.mxu0 0
      %884 = vmatpush1.bf16.msra.mxu0 0
      %885 = vmatprep.subr.bf16.mxu0 0
      %886 = vmatpush1.bf16.msra.mxu0 0
      %887 = vmatprep.subr.bf16.mxu0 0
      %888 = vmatpush1.bf16.msra.mxu0 0
      %889 = vmatprep.subr.bf16.mxu0 0
      %890 = vmatpush1.bf16.msra.mxu0 0
      %891 = vmatprep.subr.bf16.mxu0 0
      %892 = vmatpush1.bf16.msra.mxu0 0
      %893 = vmatprep.subr.bf16.mxu0 0
      %894 = vmatpush1.bf16.msra.mxu0 0
      %895 = vmatprep.subr.bf16.mxu0 0
      %896 = vmatpush1.bf16.msra.mxu0 0
      %897 = vmatprep.subr.bf16.mxu0 0
      %898 = vmatpush1.bf16.msra.mxu0 0
      %899 = vmatprep.subr.bf16.mxu0 0
      %900 = vmatpush1.bf16.msra.mxu0 0
      %901 = vmatprep.subr.bf16.mxu0 0
      %902 = vmatpush1.bf16.msra.mxu0 0
      %903 = vmatprep.mubr.bf16.mxu0 0
      %904 = vmatmul.mubr.bf16.gmra.mrb[0].mxu0 %v869
      %v905 = vpop.f32.mrb[0].mxu0
      %v906 = vadd.f32 0.0, %v905
      %v907 = vpop.f32.mrb[0].mxu0
      %v908 = vpop.f32.mrb[0].mxu0
      %v909 = vpop.f32.mrb[0].mxu0
      %910 = vdwg.mxu0
      %v911 = vadd.f32 %v867, %v906
      %912 = vst.msk [vmem:[#allocation3 + $0x8] sm:$0xff] %vm277, %v911
      %v913 = vld [vmem:[%s323 + $0x1] sm:$0xff]
      %v914 = vpack.c.bf16 %v913, %v913
      %v915 = vld [vmem:[#allocation3 + $0x10] sm:$0xff]
      %v917 = vsel %vm277, %v914, 0
      %919 = vmatprep.subr.bf16.mxu0 0
      %920 = vmatpush1.bf16.msra.mxu0 %v812
      %921 = vmatprep.subr.bf16.mxu0 0
      %922 = vmatpush1.bf16.msra.mxu0 %v813
      %923 = vmatprep.subr.bf16.mxu0 0
      %924 = vmatpush1.bf16.msra.mxu0 %v814
      %925 = vmatprep.subr.bf16.mxu0 0
      %926 = vmatpush1.bf16.msra.mxu0 %v815
      %927 = vmatprep.subr.bf16.mxu0 0
      %928 = vmatpush1.bf16.msra.mxu0 0
      %929 = vmatprep.subr.bf16.mxu0 0
      %930 = vmatpush1.bf16.msra.mxu0 0
      %931 = vmatprep.subr.bf16.mxu0 0
      %932 = vmatpush1.bf16.msra.mxu0 0
      %933 = vmatprep.subr.bf16.mxu0 0
      %934 = vmatpush1.bf16.msra.mxu0 0
      %935 = vmatprep.subr.bf16.mxu0 0
      %936 = vmatpush1.bf16.msra.mxu0 0
      %937 = vmatprep.subr.bf16.mxu0 0
      %938 = vmatpush1.bf16.msra.mxu0 0
      %939 = vmatprep.subr.bf16.mxu0 0
      %940 = vmatpush1.bf16.msra.mxu0 0
      %941 = vmatprep.subr.bf16.mxu0 0
      %942 = vmatpush1.bf16.msra.mxu0 0
      %943 = vmatprep.subr.bf16.mxu0 0
      %944 = vmatpush1.bf16.msra.mxu0 0
      %945 = vmatprep.subr.bf16.mxu0 0
      %946 = vmatpush1.bf16.msra.mxu0 0
      %947 = vmatprep.subr.bf16.mxu0 0
      %948 = vmatpush1.bf16.msra.mxu0 0
      %949 = vmatprep.subr.bf16.mxu0 0
      %950 = vmatpush1.bf16.msra.mxu0 0
      %951 = vmatprep.mubr.bf16.mxu0 0
      %952 = vmatmul.mubr.bf16.gmra.mrb[0].mxu0 %v917
      %v953 = vpop.f32.mrb[0].mxu0
      %v954 = vadd.f32 0.0, %v953
      %v955 = vpop.f32.mrb[0].mxu0
      %v956 = vpop.f32.mrb[0].mxu0
      %v957 = vpop.f32.mrb[0].mxu0
      %958 = vdwg.mxu0
      %v959 = vadd.f32 %v915, %v954
      %960 = vst.msk [vmem:[#allocation3 + $0x10] sm:$0xff] %vm277, %v959
      %v961 = vld [vmem:[%s329 + $0x1] sm:$0xff]
      %v962 = vpack.c.bf16 %v961, %v961
      %v963 = vld [vmem:[#allocation3 + $0x18] sm:$0xff]
      %v965 = vsel %vm277, %v962, 0
      %967 = vmatprep.subr.bf16.mxu0 0
      %968 = vmatpush1.bf16.msra.mxu0 %v812
      %969 = vmatprep.subr.bf16.mxu0 0
      %970 = vmatpush1.bf16.msra.mxu0 %v813
      %971 = vmatprep.subr.bf16.mxu0 0
      %972 = vmatpush1.bf16.msra.mxu0 %v814
      %973 = vmatprep.subr.bf16.mxu0 0
      %974 = vmatpush1.bf16.msra.mxu0 %v815
      %975 = vmatprep.subr.bf16.mxu0 0
      %976 = vmatpush1.bf16.msra.mxu0 0
      %977 = vmatprep.subr.bf16.mxu0 0
      %978 = vmatpush1.bf16.msra.mxu0 0
      %979 = vmatprep.subr.bf16.mxu0 0
      %980 = vmatpush1.bf16.msra.mxu0 0
      %981 = vmatprep.subr.bf16.mxu0 0
      %982 = vmatpush1.bf16.msra.mxu0 0
      %983 = vmatprep.subr.bf16.mxu0 0
      %984 = vmatpush1.bf16.msra.mxu0 0
      %985 = vmatprep.subr.bf16.mxu0 0
      %986 = vmatpush1.bf16.msra.mxu0 0
      %987 = vmatprep.subr.bf16.mxu0 0
      %988 = vmatpush1.bf16.msra.mxu0 0
      %989 = vmatprep.subr.bf16.mxu0 0
      %990 = vmatpush1.bf16.msra.mxu0 0
      %991 = vmatprep.subr.bf16.mxu0 0
      %992 = vmatpush1.bf16.msra.mxu0 0
      %993 = vmatprep.subr.bf16.mxu0 0
      %994 = vmatpush1.bf16.msra.mxu0 0
      %995 = vmatprep.subr.bf16.mxu0 0
      %996 = vmatpush1.bf16.msra.mxu0 0
      %997 = vmatprep.subr.bf16.mxu0 0
      %998 = vmatpush1.bf16.msra.mxu0 0
      %999 = vmatprep.mubr.bf16.mxu0 0
      %1000 = vmatmul.mubr.bf16.gmra.mrb[0].mxu0 %v965
      %v1001 = vpop.f32.mrb[0].mxu0
      %v1002 = vadd.f32 0.0, %v1001
      %v1003 = vpop.f32.mrb[0].mxu0
      %v1004 = vpop.f32.mrb[0].mxu0
      %v1005 = vpop.f32.mrb[0].mxu0
      %1006 = vdwg.mxu0
      %v1007 = vadd.f32 %v963, %v1002
      %1008 = vst.msk [vmem:[#allocation3 + $0x18] sm:$0xff] %vm277, %v1007
      %v1009 = vld [vmem:[%s335 + $0x1] sm:$0xff]
      %v1010 = vpack.c.bf16 %v1009, %v1009
      %v1011 = vld [vmem:[#allocation3 + $0x20] sm:$0xff]
      %v1013 = vsel %vm277, %v1010, 0
      %1015 = vmatprep.subr.bf16.mxu0 0
      %1016 = vmatpush1.bf16.msra.mxu0 %v812
      %1017 = vmatprep.subr.bf16.mxu0 0
      %1018 = vmatpush1.bf16.msra.mxu0 %v813
      %1019 = vmatprep.subr.bf16.mxu0 0
      %1020 = vmatpush1.bf16.msra.mxu0 %v814
      %1021 = vmatprep.subr.bf16.mxu0 0
      %1022 = vmatpush1.bf16.msra.mxu0 %v815
      %1023 = vmatprep.subr.bf16.mxu0 0
      %1024 = vmatpush1.bf16.msra.mxu0 0
      %1025 = vmatprep.subr.bf16.mxu0 0
      %1026 = vmatpush1.bf16.msra.mxu0 0
      %1027 = vmatprep.subr.bf16.mxu0 0
      %1028 = vmatpush1.bf16.msra.mxu0 0
      %1029 = vmatprep.subr.bf16.mxu0 0
      %1030 = vmatpush1.bf16.msra.mxu0 0
      %1031 = vmatprep.subr.bf16.mxu0 0
      %1032 = vmatpush1.bf16.msra.mxu0 0
      %1033 = vmatprep.subr.bf16.mxu0 0
      %1034 = vmatpush1.bf16.msra.mxu0 0
      %1035 = vmatprep.subr.bf16.mxu0 0
      %1036 = vmatpush1.bf16.msra.mxu0 0
      %1037 = vmatprep.subr.bf16.mxu0 0
      %1038 = vmatpush1.bf16.msra.mxu0 0
      %1039 = vmatprep.subr.bf16.mxu0 0
      %1040 = vmatpush1.bf16.msra.mxu0 0
      %1041 = vmatprep.subr.bf16.mxu0 0
      %1042 = vmatpush1.bf16.msra.mxu0 0
      %1043 = vmatprep.subr.bf16.mxu0 0
      %1044 = vmatpush1.bf16.msra.mxu0 0
      %1045 = vmatprep.subr.bf16.mxu0 0
      %1046 = vmatpush1.bf16.msra.mxu0 0
      %1047 = vmatprep.mubr.bf16.mxu0 0
      %1048 = vmatmul.mubr.bf16.gmra.mrb[0].mxu0 %v1013
      %v1049 = vpop.f32.mrb[0].mxu0
      %v1050 = vadd.f32 0.0, %v1049
      %v1051 = vpop.f32.mrb[0].mxu0
      %v1052 = vpop.f32.mrb[0].mxu0
      %v1053 = vpop.f32.mrb[0].mxu0
      %1054 = vdwg.mxu0
      %v1055 = vadd.f32 %v1011, %v1050
      %1056 = vst.msk [vmem:[#allocation3 + $0x20] sm:$0xff] %vm277, %v1055
      %v1057 = vld [vmem:[%s341 + $0x1] sm:$0xff]
      %v1058 = vpack.c.bf16 %v1057, %v1057
      %v1059 = vld [vmem:[#allocation3 + $0x28] sm:$0xff]
      %v1061 = vsel %vm277, %v1058, 0
      %1063 = vmatprep.subr.bf16.mxu0 0
      %1064 = vmatpush1.bf16.msra.mxu0 %v812
      %1065 = vmatprep.subr.bf16.mxu0 0
      %1066 = vmatpush1.bf16.msra.mxu0 %v813
      %1067 = vmatprep.subr.bf16.mxu0 0
      %1068 = vmatpush1.bf16.msra.mxu0 %v814
      %1069 = vmatprep.subr.bf16.mxu0 0
      %1070 = vmatpush1.bf16.msra.mxu0 %v815
      %1071 = vmatprep.subr.bf16.mxu0 0
      %1072 = vmatpush1.bf16.msra.mxu0 0
      %1073 = vmatprep.subr.bf16.mxu0 0
      %1074 = vmatpush1.bf16.msra.mxu0 0
      %1075 = vmatprep.subr.bf16.mxu0 0
      %1076 = vmatpush1.bf16.msra.mxu0 0
      %1077 = vmatprep.subr.bf16.mxu0 0
      %1078 = vmatpush1.bf16.msra.mxu0 0
      %1079 = vmatprep.subr.bf16.mxu0 0
      %1080 = vmatpush1.bf16.msra.mxu0 0
      %1081 = vmatprep.subr.bf16.mxu0 0
      %1082 = vmatpush1.bf16.msra.mxu0 0
      %1083 = vmatprep.subr.bf16.mxu0 0
      %1084 = vmatpush1.bf16.msra.mxu0 0
      %1085 = vmatprep.subr.bf16.mxu0 0
      %1086 = vmatpush1.bf16.msra.mxu0 0
      %1087 = vmatprep.subr.bf16.mxu0 0
      %1088 = vmatpush1.bf16.msra.mxu0 0
      %1089 = vmatprep.subr.bf16.mxu0 0
      %1090 = vmatpush1.bf16.msra.mxu0 0
      %1091 = vmatprep.subr.bf16.mxu0 0
      %1092 = vmatpush1.bf16.msra.mxu0 0
      %1093 = vmatprep.subr.bf16.mxu0 0
      %1094 = vmatpush1.bf16.msra.mxu0 0
      %1095 = vmatprep.mubr.bf16.mxu0 0
      %1096 = vmatmul.mubr.bf16.gmra.mrb[0].mxu0 %v1061
      %v1097 = vpop.f32.mrb[0].mxu0
      %v1098 = vadd.f32 0.0, %v1097
      %v1099 = vpop.f32.mrb[0].mxu0
      %v1100 = vpop.f32.mrb[0].mxu0
      %v1101 = vpop.f32.mrb[0].mxu0
      %1102 = vdwg.mxu0
      %v1103 = vadd.f32 %v1059, %v1098
      %1104 = vst.msk [vmem:[#allocation3 + $0x28] sm:$0xff] %vm277, %v1103
      %v1105 = vld [vmem:[%s347 + $0x1] sm:$0xff]
      %v1106 = vpack.c.bf16 %v1105, %v1105
      %v1107 = vld [vmem:[#allocation3 + $0x30] sm:$0xff]
      %v1109 = vsel %vm277, %v1106, 0
      %1111 = vmatprep.subr.bf16.mxu0 0
      %1112 = vmatpush1.bf16.msra.mxu0 %v812
      %1113 = vmatprep.subr.bf16.mxu0 0
      %1114 = vmatpush1.bf16.msra.mxu0 %v813
      %1115 = vmatprep.subr.bf16.mxu0 0
      %1116 = vmatpush1.bf16.msra.mxu0 %v814
      %1117 = vmatprep.subr.bf16.mxu0 0
      %1118 = vmatpush1.bf16.msra.mxu0 %v815
      %1119 = vmatprep.subr.bf16.mxu0 0
      %1120 = vmatpush1.bf16.msra.mxu0 0
      %1121 = vmatprep.subr.bf16.mxu0 0
      %1122 = vmatpush1.bf16.msra.mxu0 0
      %1123 = vmatprep.subr.bf16.mxu0 0
      %1124 = vmatpush1.bf16.msra.mxu0 0
      %1125 = vmatprep.subr.bf16.mxu0 0
      %1126 = vmatpush1.bf16.msra.mxu0 0
      %1127 = vmatprep.subr.bf16.mxu0 0
      %1128 = vmatpush1.bf16.msra.mxu0 0
      %1129 = vmatprep.subr.bf16.mxu0 0
      %1130 = vmatpush1.bf16.msra.mxu0 0
      %1131 = vmatprep.subr.bf16.mxu0 0
      %1132 = vmatpush1.bf16.msra.mxu0 0
      %1133 = vmatprep.subr.bf16.mxu0 0
      %1134 = vmatpush1.bf16.msra.mxu0 0
      %1135 = vmatprep.subr.bf16.mxu0 0
      %1136 = vmatpush1.bf16.msra.mxu0 0
      %1137 = vmatprep.subr.bf16.mxu0 0
      %1138 = vmatpush1.bf16.msra.mxu0 0
      %1139 = vmatprep.subr.bf16.mxu0 0
      %1140 = vmatpush1.bf16.msra.mxu0 0
      %1141 = vmatprep.subr.bf16.mxu0 0
      %1142 = vmatpush1.bf16.msra.mxu0 0
      %1143 = vmatprep.mubr.bf16.mxu0 0
      %1144 = vmatmul.mubr.bf16.gmra.mrb[0].mxu0 %v1109
      %v1145 = vpop.f32.mrb[0].mxu0
      %v1146 = vadd.f32 0.0, %v1145
      %v1147 = vpop.f32.mrb[0].mxu0
      %v1148 = vpop.f32.mrb[0].mxu0
      %v1149 = vpop.f32.mrb[0].mxu0
      %1150 = vdwg.mxu0
      %v1151 = vadd.f32 %v1107, %v1146
      %1152 = vst.msk [vmem:[#allocation3 + $0x30] sm:$0xff] %vm277, %v1151
      %v1153 = vld [vmem:[%s353 + $0x1] sm:$0xff]
      %v1154 = vpack.c.bf16 %v1153, %v1153
      %v1155 = vld [vmem:[#allocation3 + $0x38] sm:$0xff]
      %v1157 = vsel %vm277, %v1154, 0
      %1159 = vmatprep.subr.bf16.mxu0 0
      %1160 = vmatpush1.bf16.msra.mxu0 %v812
      %1161 = vmatprep.subr.bf16.mxu0 0
      %1162 = vmatpush1.bf16.msra.mxu0 %v813
      %1163 = vmatprep.subr.bf16.mxu0 0
      %1164 = vmatpush1.bf16.msra.mxu0 %v814
      %1165 = vmatprep.subr.bf16.mxu0 0
      %1166 = vmatpush1.bf16.msra.mxu0 %v815
      %1167 = vmatprep.subr.bf16.mxu0 0
      %1168 = vmatpush1.bf16.msra.mxu0 0
      %1169 = vmatprep.subr.bf16.mxu0 0
      %1170 = vmatpush1.bf16.msra.mxu0 0
      %1171 = vmatprep.subr.bf16.mxu0 0
      %1172 = vmatpush1.bf16.msra.mxu0 0
      %1173 = vmatprep.subr.bf16.mxu0 0
      %1174 = vmatpush1.bf16.msra.mxu0 0
      %1175 = vmatprep.subr.bf16.mxu0 0
      %1176 = vmatpush1.bf16.msra.mxu0 0
      %1177 = vmatprep.subr.bf16.mxu0 0
      %1178 = vmatpush1.bf16.msra.mxu0 0
      %1179 = vmatprep.subr.bf16.mxu0 0
      %1180 = vmatpush1.bf16.msra.mxu0 0
      %1181 = vmatprep.subr.bf16.mxu0 0
      %1182 = vmatpush1.bf16.msra.mxu0 0
      %1183 = vmatprep.subr.bf16.mxu0 0
      %1184 = vmatpush1.bf16.msra.mxu0 0
      %1185 = vmatprep.subr.bf16.mxu0 0
      %1186 = vmatpush1.bf16.msra.mxu0 0
      %1187 = vmatprep.subr.bf16.mxu0 0
      %1188 = vmatpush1.bf16.msra.mxu0 0
      %1189 = vmatprep.subr.bf16.mxu0 0
      %1190 = vmatpush1.bf16.msra.mxu0 0
      %1191 = vmatprep.mubr.bf16.mxu0 0
      %1192 = vmatmul.mubr.bf16.gmra.mrb[0].mxu0 %v1157
      %v1193 = vpop.f32.mrb[0].mxu0
      %v1194 = vadd.f32 0.0, %v1193
      %v1195 = vpop.f32.mrb[0].mxu0
      %v1196 = vpop.f32.mrb[0].mxu0
      %v1197 = vpop.f32.mrb[0].mxu0
      %1198 = vdwg.mxu0
      %v1199 = vadd.f32 %v1155, %v1194
      %1200 = vst.msk [vmem:[#allocation3 + $0x38] sm:$0xff] %vm277, %v1199
      %v1201 = vld [vmem:[%s3 + $0x40] sm:$0xf]
      %v1202 = vld [vmem:[%s3 + $0x44] sm:$0xf]
      %v1203 = vld [vmem:[%s3 + $0x48] sm:$0xf]
      %v1204 = vld [vmem:[%s3 + $0x4c] sm:$0xf]
      %v1205 = vld [vmem:[%s3 + $0x50] sm:$0xf]
      %v1206 = vld [vmem:[%s3 + $0x54] sm:$0xf]
      %v1207 = vld [vmem:[%s3 + $0x58] sm:$0xf]
      %v1208 = vld [vmem:[%s3 + $0x5c] sm:$0xf]
      %v1209 = vld [vmem:[#allocation2 + $0x2] sm:$0xff]
      %v1210 = vpack.c.bf16 %v1209, %v1209
      %v1211 = vld [vmem:[#allocation3] sm:$0xff]
      %v1220 = vunpack.c.l.b16 %v1201
      %v1221 = vunpack.c.l.b16 %v1202
      %v1222 = vunpack.c.l.b16 %v1203
      %v1223 = vunpack.c.l.b16 %v1204
      %v1224 = vunpack.c.l.b16 %v1205
      %v1225 = vunpack.c.l.b16 %v1206
      %v1226 = vunpack.c.l.b16 %v1207
      %v1227 = vunpack.c.l.b16 %v1208
      %v1228 = vpack.c.b16 %v1221, %v1220
      %v1229 = vpack.c.b16 %v1223, %v1222
      %v1230 = vpack.c.b16 %v1225, %v1224
      %v1231 = vpack.c.b16 %v1227, %v1226
      %v1237 = vsel %vm277, %v1210, 0
      %1239 = vmatprep.subr.bf16.mxu0 0
      %1240 = vmatpush1.bf16.msra.mxu0 %v1228
      %1241 = vmatprep.subr.bf16.mxu0 0
      %1242 = vmatpush1.bf16.msra.mxu0 %v1229
      %1243 = vmatprep.subr.bf16.mxu0 0
      %1244 = vmatpush1.bf16.msra.mxu0 %v1230
      %1245 = vmatprep.subr.bf16.mxu0 0
      %1246 = vmatpush1.bf16.msra.mxu0 %v1231
      %1247 = vmatprep.subr.bf16.mxu0 0
      %1248 = vmatpush1.bf16.msra.mxu0 0
      %1249 = vmatprep.subr.bf16.mxu0 0
      %1250 = vmatpush1.bf16.msra.mxu0 0
      %1251 = vmatprep.subr.bf16.mxu0 0
      %1252 = vmatpush1.bf16.msra.mxu0 0
      %1253 = vmatprep.subr.bf16.mxu0 0
      %1254 = vmatpush1.bf16.msra.mxu0 0
      %1255 = vmatprep.subr.bf16.mxu0 0
      %1256 = vmatpush1.bf16.msra.mxu0 0
      %1257 = vmatprep.subr.bf16.mxu0 0
      %1258 = vmatpush1.bf16.msra.mxu0 0
      %1259 = vmatprep.subr.bf16.mxu0 0
      %1260 = vmatpush1.bf16.msra.mxu0 0
      %1261 = vmatprep.subr.bf16.mxu0 0
      %1262 = vmatpush1.bf16.msra.mxu0 0
      %1263 = vmatprep.subr.bf16.mxu0 0
      %1264 = vmatpush1.bf16.msra.mxu0 0
      %1265 = vmatprep.subr.bf16.mxu0 0
      %1266 = vmatpush1.bf16.msra.mxu0 0
      %1267 = vmatprep.subr.bf16.mxu0 0
      %1268 = vmatpush1.bf16.msra.mxu0 0
      %1269 = vmatprep.subr.bf16.mxu0 0
      %1270 = vmatpush1.bf16.msra.mxu0 0
      %1271 = vmatprep.mubr.bf16.mxu0 0
      %1272 = vmatmul.mubr.bf16.gmra.mrb[0].mxu0 %v1237
      %v1273 = vpop.f32.mrb[0].mxu0
      %v1274 = vadd.f32 0.0, %v1273
      %v1275 = vpop.f32.mrb[0].mxu0
      %v1276 = vpop.f32.mrb[0].mxu0
      %v1277 = vpop.f32.mrb[0].mxu0
      %1278 = vdwg.mxu0
      %v1279 = vadd.f32 %v1211, %v1274
      %1280 = vst.msk [vmem:[#allocation3] sm:$0xff] %vm277, %v1279
      %v1281 = vld [vmem:[%s317 + $0x2] sm:$0xff]
      %v1282 = vpack.c.bf16 %v1281, %v1281
      %v1283 = vld [vmem:[#allocation3 + $0x8] sm:$0xff]
      %v1285 = vsel %vm277, %v1282, 0
      %1287 = vmatprep.subr.bf16.mxu0 0
      %1288 = vmatpush1.bf16.msra.mxu0 %v1228
      %1289 = vmatprep.subr.bf16.mxu0 0
      %1290 = vmatpush1.bf16.msra.mxu0 %v1229
      %1291 = vmatprep.subr.bf16.mxu0 0
      %1292 = vmatpush1.bf16.msra.mxu0 %v1230
      %1293 = vmatprep.subr.bf16.mxu0 0
      %1294 = vmatpush1.bf16.msra.mxu0 %v1231
      %1295 = vmatprep.subr.bf16.mxu0 0
      %1296 = vmatpush1.bf16.msra.mxu0 0
      %1297 = vmatprep.subr.bf16.mxu0 0
      %1298 = vmatpush1.bf16.msra.mxu0 0
      %1299 = vmatprep.subr.bf16.mxu0 0
      %1300 = vmatpush1.bf16.msra.mxu0 0
      %1301 = vmatprep.subr.bf16.mxu0 0
      %1302 = vmatpush1.bf16.msra.mxu0 0
      %1303 = vmatprep.subr.bf16.mxu0 0
      %1304 = vmatpush1.bf16.msra.mxu0 0
      %1305 = vmatprep.subr.bf16.mxu0 0
      %1306 = vmatpush1.bf16.msra.mxu0 0
      %1307 = vmatprep.subr.bf16.mxu0 0
      %1308 = vmatpush1.bf16.msra.mxu0 0
      %1309 = vmatprep.subr.bf16.mxu0 0
      %1310 = vmatpush1.bf16.msra.mxu0 0
      %1311 = vmatprep.subr.bf16.mxu0 0
      %1312 = vmatpush1.bf16.msra.mxu0 0
      %1313 = vmatprep.subr.bf16.mxu0 0
      %1314 = vmatpush1.bf16.msra.mxu0 0
      %1315 = vmatprep.subr.bf16.mxu0 0
      %1316 = vmatpush1.bf16.msra.mxu0 0
      %1317 = vmatprep.subr.bf16.mxu0 0
      %1318 = vmatpush1.bf16.msra.mxu0 0
      %1319 = vmatprep.mubr.bf16.mxu0 0
      %1320 = vmatmul.mubr.bf16.gmra.mrb[0].mxu0 %v1285
      %v1321 = vpop.f32.mrb[0].mxu0
      %v1322 = vadd.f32 0.0, %v1321
      %v1323 = vpop.f32.mrb[0].mxu0
      %v1324 = vpop.f32.mrb[0].mxu0
      %v1325 = vpop.f32.mrb[0].mxu0
      %1326 = vdwg.mxu0
      %v1327 = vadd.f32 %v1283, %v1322
      %1328 = vst.msk [vmem:[#allocation3 + $0x8] sm:$0xff] %vm277, %v1327
      %v1329 = vld [vmem:[%s323 + $0x2] sm:$0xff]
      %v1330 = vpack.c.bf16 %v1329, %v1329
      %v1331 = vld [vmem:[#allocation3 + $0x10] sm:$0xff]
      %v1333 = vsel %vm277, %v1330, 0
      %1335 = vmatprep.subr.bf16.mxu0 0
      %1336 = vmatpush1.bf16.msra.mxu0 %v1228
      %1337 = vmatprep.subr.bf16.mxu0 0
      %1338 = vmatpush1.bf16.msra.mxu0 %v1229
      %1339 = vmatprep.subr.bf16.mxu0 0
      %1340 = vmatpush1.bf16.msra.mxu0 %v1230
      %1341 = vmatprep.subr.bf16.mxu0 0
      %1342 = vmatpush1.bf16.msra.mxu0 %v1231
      %1343 = vmatprep.subr.bf16.mxu0 0
      %1344 = vmatpush1.bf16.msra.mxu0 0
      %1345 = vmatprep.subr.bf16.mxu0 0
      %1346 = vmatpush1.bf16.msra.mxu0 0
      %1347 = vmatprep.subr.bf16.mxu0 0
      %1348 = vmatpush1.bf16.msra.mxu0 0
      %1349 = vmatprep.subr.bf16.mxu0 0
      %1350 = vmatpush1.bf16.msra.mxu0 0
      %1351 = vmatprep.subr.bf16.mxu0 0
      %1352 = vmatpush1.bf16.msra.mxu0 0
      %1353 = vmatprep.subr.bf16.mxu0 0
      %1354 = vmatpush1.bf16.msra.mxu0 0
      %1355 = vmatprep.subr.bf16.mxu0 0
      %1356 = vmatpush1.bf16.msra.mxu0 0
      %1357 = vmatprep.subr.bf16.mxu0 0
      %1358 = vmatpush1.bf16.msra.mxu0 0
      %1359 = vmatprep.subr.bf16.mxu0 0
      %1360 = vmatpush1.bf16.msra.mxu0 0
      %1361 = vmatprep.subr.bf16.mxu0 0
      %1362 = vmatpush1.bf16.msra.mxu0 0
      %1363 = vmatprep.subr.bf16.mxu0 0
      %1364 = vmatpush1.bf16.msra.mxu0 0
      %1365 = vmatprep.subr.bf16.mxu0 0
      %1366 = vmatpush1.bf16.msra.mxu0 0
      %1367 = vmatprep.mubr.bf16.mxu0 0
      %1368 = vmatmul.mubr.bf16.gmra.mrb[0].mxu0 %v1333
      %v1369 = vpop.f32.mrb[0].mxu0
      %v1370 = vadd.f32 0.0, %v1369
      %v1371 = vpop.f32.mrb[0].mxu0
      %v1372 = vpop.f32.mrb[0].mxu0
      %v1373 = vpop.f32.mrb[0].mxu0
      %1374 = vdwg.mxu0
      %v1375 = vadd.f32 %v1331, %v1370
      %1376 = vst.msk [vmem:[#allocation3 + $0x10] sm:$0xff] %vm277, %v1375
      %v1377 = vld [vmem:[%s329 + $0x2] sm:$0xff]
      %v1378 = vpack.c.bf16 %v1377, %v1377
      %v1379 = vld [vmem:[#allocation3 + $0x18] sm:$0xff]
      %v1381 = vsel %vm277, %v1378, 0
      %1383 = vmatprep.subr.bf16.mxu0 0
      %1384 = vmatpush1.bf16.msra.mxu0 %v1228
      %1385 = vmatprep.subr.bf16.mxu0 0
      %1386 = vmatpush1.bf16.msra.mxu0 %v1229
      %1387 = vmatprep.subr.bf16.mxu0 0
      %1388 = vmatpush1.bf16.msra.mxu0 %v1230
      %1389 = vmatprep.subr.bf16.mxu0 0
      %1390 = vmatpush1.bf16.msra.mxu0 %v1231
      %1391 = vmatprep.subr.bf16.mxu0 0
      %1392 = vmatpush1.bf16.msra.mxu0 0
      %1393 = vmatprep.subr.bf16.mxu0 0
      %1394 = vmatpush1.bf16.msra.mxu0 0
      %1395 = vmatprep.subr.bf16.mxu0 0
      %1396 = vmatpush1.bf16.msra.mxu0 0
      %1397 = vmatprep.subr.bf16.mxu0 0
      %1398 = vmatpush1.bf16.msra.mxu0 0
      %1399 = vmatprep.subr.bf16.mxu0 0
      %1400 = vmatpush1.bf16.msra.mxu0 0
      %1401 = vmatprep.subr.bf16.mxu0 0
      %1402 = vmatpush1.bf16.msra.mxu0 0
      %1403 = vmatprep.subr.bf16.mxu0 0
      %1404 = vmatpush1.bf16.msra.mxu0 0
      %1405 = vmatprep.subr.bf16.mxu0 0
      %1406 = vmatpush1.bf16.msra.mxu0 0
      %1407 = vmatprep.subr.bf16.mxu0 0
      %1408 = vmatpush1.bf16.msra.mxu0 0
      %1409 = vmatprep.subr.bf16.mxu0 0
      %1410 = vmatpush1.bf16.msra.mxu0 0
      %1411 = vmatprep.subr.bf16.mxu0 0
      %1412 = vmatpush1.bf16.msra.mxu0 0
      %1413 = vmatprep.subr.bf16.mxu0 0
      %1414 = vmatpush1.bf16.msra.mxu0 0
      %1415 = vmatprep.mubr.bf16.mxu0 0
      %1416 = vmatmul.mubr.bf16.gmra.mrb[0].mxu0 %v1381
      %v1417 = vpop.f32.mrb[0].mxu0
      %v1418 = vadd.f32 0.0, %v1417
      %v1419 = vpop.f32.mrb[0].mxu0
      %v1420 = vpop.f32.mrb[0].mxu0
      %v1421 = vpop.f32.mrb[0].mxu0
      %1422 = vdwg.mxu0
      %v1423 = vadd.f32 %v1379, %v1418
      %1424 = vst.msk [vmem:[#allocation3 + $0x18] sm:$0xff] %vm277, %v1423
      %v1425 = vld [vmem:[%s335 + $0x2] sm:$0xff]
      %v1426 = vpack.c.bf16 %v1425, %v1425
      %v1427 = vld [vmem:[#allocation3 + $0x20] sm:$0xff]
      %v1429 = vsel %vm277, %v1426, 0
      %1431 = vmatprep.subr.bf16.mxu0 0
      %1432 = vmatpush1.bf16.msra.mxu0 %v1228
      %1433 = vmatprep.subr.bf16.mxu0 0
      %1434 = vmatpush1.bf16.msra.mxu0 %v1229
      %1435 = vmatprep.subr.bf16.mxu0 0
      %1436 = vmatpush1.bf16.msra.mxu0 %v1230
      %1437 = vmatprep.subr.bf16.mxu0 0
      %1438 = vmatpush1.bf16.msra.mxu0 %v1231
      %1439 = vmatprep.subr.bf16.mxu0 0
      %1440 = vmatpush1.bf16.msra.mxu0 0
      %1441 = vmatprep.subr.bf16.mxu0 0
      %1442 = vmatpush1.bf16.msra.mxu0 0
      %1443 = vmatprep.subr.bf16.mxu0 0
      %1444 = vmatpush1.bf16.msra.mxu0 0
      %1445 = vmatprep.subr.bf16.mxu0 0
      %1446 = vmatpush1.bf16.msra.mxu0 0
      %1447 = vmatprep.subr.bf16.mxu0 0
      %1448 = vmatpush1.bf16.msra.mxu0 0
      %1449 = vmatprep.subr.bf16.mxu0 0
      %1450 = vmatpush1.bf16.msra.mxu0 0
      %1451 = vmatprep.subr.bf16.mxu0 0
      %1452 = vmatpush1.bf16.msra.mxu0 0
      %1453 = vmatprep.subr.bf16.mxu0 0
      %1454 = vmatpush1.bf16.msra.mxu0 0
      %1455 = vmatprep.subr.bf16.mxu0 0
      %1456 = vmatpush1.bf16.msra.mxu0 0
      %1457 = vmatprep.subr.bf16.mxu0 0
      %1458 = vmatpush1.bf16.msra.mxu0 0
      %1459 = vmatprep.subr.bf16.mxu0 0
      %1460 = vmatpush1.bf16.msra.mxu0 0
      %1461 = vmatprep.subr.bf16.mxu0 0
      %1462 = vmatpush1.bf16.msra.mxu0 0
      %1463 = vmatprep.mubr.bf16.mxu0 0
      %1464 = vmatmul.mubr.bf16.gmra.mrb[0].mxu0 %v1429
      %v1465 = vpop.f32.mrb[0].mxu0
      %v1466 = vadd.f32 0.0, %v1465
      %v1467 = vpop.f32.mrb[0].mxu0
      %v1468 = vpop.f32.mrb[0].mxu0
      %v1469 = vpop.f32.mrb[0].mxu0
      %1470 = vdwg.mxu0
      %v1471 = vadd.f32 %v1427, %v1466
      %1472 = vst.msk [vmem:[#allocation3 + $0x20] sm:$0xff] %vm277, %v1471
      %v1473 = vld [vmem:[%s341 + $0x2] sm:$0xff]
      %v1474 = vpack.c.bf16 %v1473, %v1473
      %v1475 = vld [vmem:[#allocation3 + $0x28] sm:$0xff]
      %v1477 = vsel %vm277, %v1474, 0
      %1479 = vmatprep.subr.bf16.mxu0 0
      %1480 = vmatpush1.bf16.msra.mxu0 %v1228
      %1481 = vmatprep.subr.bf16.mxu0 0
      %1482 = vmatpush1.bf16.msra.mxu0 %v1229
      %1483 = vmatprep.subr.bf16.mxu0 0
      %1484 = vmatpush1.bf16.msra.mxu0 %v1230
      %1485 = vmatprep.subr.bf16.mxu0 0
      %1486 = vmatpush1.bf16.msra.mxu0 %v1231
      %1487 = vmatprep.subr.bf16.mxu0 0
      %1488 = vmatpush1.bf16.msra.mxu0 0
      %1489 = vmatprep.subr.bf16.mxu0 0
      %1490 = vmatpush1.bf16.msra.mxu0 0
      %1491 = vmatprep.subr.bf16.mxu0 0
      %1492 = vmatpush1.bf16.msra.mxu0 0
      %1493 = vmatprep.subr.bf16.mxu0 0
      %1494 = vmatpush1.bf16.msra.mxu0 0
      %1495 = vmatprep.subr.bf16.mxu0 0
      %1496 = vmatpush1.bf16.msra.mxu0 0
      %1497 = vmatprep.subr.bf16.mxu0 0
      %1498 = vmatpush1.bf16.msra.mxu0 0
      %1499 = vmatprep.subr.bf16.mxu0 0
      %1500 = vmatpush1.bf16.msra.mxu0 0
      %1501 = vmatprep.subr.bf16.mxu0 0
      %1502 = vmatpush1.bf16.msra.mxu0 0
      %1503 = vmatprep.subr.bf16.mxu0 0
      %1504 = vmatpush1.bf16.msra.mxu0 0
      %1505 = vmatprep.subr.bf16.mxu0 0
      %1506 = vmatpush1.bf16.msra.mxu0 0
      %1507 = vmatprep.subr.bf16.mxu0 0
      %1508 = vmatpush1.bf16.msra.mxu0 0
      %1509 = vmatprep.subr.bf16.mxu0 0
      %1510 = vmatpush1.bf16.msra.mxu0 0
      %1511 = vmatprep.mubr.bf16.mxu0 0
      %1512 = vmatmul.mubr.bf16.gmra.mrb[0].mxu0 %v1477
      %v1513 = vpop.f32.mrb[0].mxu0
      %v1514 = vadd.f32 0.0, %v1513
      %v1515 = vpop.f32.mrb[0].mxu0
      %v1516 = vpop.f32.mrb[0].mxu0
      %v1517 = vpop.f32.mrb[0].mxu0
      %1518 = vdwg.mxu0
      %v1519 = vadd.f32 %v1475, %v1514
      %1520 = vst.msk [vmem:[#allocation3 + $0x28] sm:$0xff] %vm277, %v1519
      %v1521 = vld [vmem:[%s347 + $0x2] sm:$0xff]
      %v1522 = vpack.c.bf16 %v1521, %v1521
      %v1523 = vld [vmem:[#allocation3 + $0x30] sm:$0xff]
      %v1525 = vsel %vm277, %v1522, 0
      %1527 = vmatprep.subr.bf16.mxu0 0
      %1528 = vmatpush1.bf16.msra.mxu0 %v1228
      %1529 = vmatprep.subr.bf16.mxu0 0
      %1530 = vmatpush1.bf16.msra.mxu0 %v1229
      %1531 = vmatprep.subr.bf16.mxu0 0
      %1532 = vmatpush1.bf16.msra.mxu0 %v1230
      %1533 = vmatprep.subr.bf16.mxu0 0
      %1534 = vmatpush1.bf16.msra.mxu0 %v1231
      %1535 = vmatprep.subr.bf16.mxu0 0
      %1536 = vmatpush1.bf16.msra.mxu0 0
      %1537 = vmatprep.subr.bf16.mxu0 0
      %1538 = vmatpush1.bf16.msra.mxu0 0
      %1539 = vmatprep.subr.bf16.mxu0 0
      %1540 = vmatpush1.bf16.msra.mxu0 0
      %1541 = vmatprep.subr.bf16.mxu0 0
      %1542 = vmatpush1.bf16.msra.mxu0 0
      %1543 = vmatprep.subr.bf16.mxu0 0
      %1544 = vmatpush1.bf16.msra.mxu0 0
      %1545 = vmatprep.subr.bf16.mxu0 0
      %1546 = vmatpush1.bf16.msra.mxu0 0
      %1547 = vmatprep.subr.bf16.mxu0 0
      %1548 = vmatpush1.bf16.msra.mxu0 0
      %1549 = vmatprep.subr.bf16.mxu0 0
      %1550 = vmatpush1.bf16.msra.mxu0 0
      %1551 = vmatprep.subr.bf16.mxu0 0
      %1552 = vmatpush1.bf16.msra.mxu0 0
      %1553 = vmatprep.subr.bf16.mxu0 0
      %1554 = vmatpush1.bf16.msra.mxu0 0
      %1555 = vmatprep.subr.bf16.mxu0 0
      %1556 = vmatpush1.bf16.msra.mxu0 0
      %1557 = vmatprep.subr.bf16.mxu0 0
      %1558 = vmatpush1.bf16.msra.mxu0 0
      %1559 = vmatprep.mubr.bf16.mxu0 0
      %1560 = vmatmul.mubr.bf16.gmra.mrb[0].mxu0 %v1525
      %v1561 = vpop.f32.mrb[0].mxu0
      %v1562 = vadd.f32 0.0, %v1561
      %v1563 = vpop.f32.mrb[0].mxu0
      %v1564 = vpop.f32.mrb[0].mxu0
      %v1565 = vpop.f32.mrb[0].mxu0
      %1566 = vdwg.mxu0
      %v1567 = vadd.f32 %v1523, %v1562
      %1568 = vst.msk [vmem:[#allocation3 + $0x30] sm:$0xff] %vm277, %v1567
      %v1569 = vld [vmem:[%s353 + $0x2] sm:$0xff]
      %v1570 = vpack.c.bf16 %v1569, %v1569
      %v1571 = vld [vmem:[#allocation3 + $0x38] sm:$0xff]
      %v1573 = vsel %vm277, %v1570, 0
      %1575 = vmatprep.subr.bf16.mxu0 0
      %1576 = vmatpush1.bf16.msra.mxu0 %v1228
      %1577 = vmatprep.subr.bf16.mxu0 0
      %1578 = vmatpush1.bf16.msra.mxu0 %v1229
      %1579 = vmatprep.subr.bf16.mxu0 0
      %1580 = vmatpush1.bf16.msra.mxu0 %v1230
      %1581 = vmatprep.subr.bf16.mxu0 0
      %1582 = vmatpush1.bf16.msra.mxu0 %v1231
      %1583 = vmatprep.subr.bf16.mxu0 0
      %1584 = vmatpush1.bf16.msra.mxu0 0
      %1585 = vmatprep.subr.bf16.mxu0 0
      %1586 = vmatpush1.bf16.msra.mxu0 0
      %1587 = vmatprep.subr.bf16.mxu0 0
      %1588 = vmatpush1.bf16.msra.mxu0 0
      %1589 = vmatprep.subr.bf16.mxu0 0
      %1590 = vmatpush1.bf16.msra.mxu0 0
      %1591 = vmatprep.subr.bf16.mxu0 0
      %1592 = vmatpush1.bf16.msra.mxu0 0
      %1593 = vmatprep.subr.bf16.mxu0 0
      %1594 = vmatpush1.bf16.msra.mxu0 0
      %1595 = vmatprep.subr.bf16.mxu0 0
      %1596 = vmatpush1.bf16.msra.mxu0 0
      %1597 = vmatprep.subr.bf16.mxu0 0
      %1598 = vmatpush1.bf16.msra.mxu0 0
      %1599 = vmatprep.subr.bf16.mxu0 0
      %1600 = vmatpush1.bf16.msra.mxu0 0
      %1601 = vmatprep.subr.bf16.mxu0 0
      %1602 = vmatpush1.bf16.msra.mxu0 0
      %1603 = vmatprep.subr.bf16.mxu0 0
      %1604 = vmatpush1.bf16.msra.mxu0 0
      %1605 = vmatprep.subr.bf16.mxu0 0
      %1606 = vmatpush1.bf16.msra.mxu0 0
      %1607 = vmatprep.mubr.bf16.mxu0 0
      %1608 = vmatmul.mubr.bf16.gmra.mrb[0].mxu0 %v1573
      %v1609 = vpop.f32.mrb[0].mxu0
      %v1610 = vadd.f32 0.0, %v1609
      %v1611 = vpop.f32.mrb[0].mxu0
      %v1612 = vpop.f32.mrb[0].mxu0
      %v1613 = vpop.f32.mrb[0].mxu0
      %1614 = vdwg.mxu0
      %v1615 = vadd.f32 %v1571, %v1610
      %1616 = vst.msk [vmem:[#allocation3 + $0x38] sm:$0xff] %vm277, %v1615
      %v1617 = vld [vmem:[%s3 + $0x60] sm:$0xf]
      %v1618 = vld [vmem:[%s3 + $0x64] sm:$0xf]
      %v1619 = vld [vmem:[%s3 + $0x68] sm:$0xf]
      %v1620 = vld [vmem:[%s3 + $0x6c] sm:$0xf]
      %v1621 = vld [vmem:[%s3 + $0x70] sm:$0xf]
      %v1622 = vld [vmem:[%s3 + $0x74] sm:$0xf]
      %v1623 = vld [vmem:[%s3 + $0x78] sm:$0xf]
      %v1624 = vld [vmem:[%s3 + $0x7c] sm:$0xf]
      %v1625 = vld [vmem:[%s317] sm:$0xff]
      %v1626 = vpack.c.bf16 %v1625, %v1625
      %v1627 = vld [vmem:[#allocation3] sm:$0xff]
      %v1636 = vunpack.c.l.b16 %v1617
      %v1637 = vunpack.c.l.b16 %v1618
      %v1638 = vunpack.c.l.b16 %v1619
      %v1639 = vunpack.c.l.b16 %v1620
      %v1640 = vunpack.c.l.b16 %v1621
      %v1641 = vunpack.c.l.b16 %v1622
      %v1642 = vunpack.c.l.b16 %v1623
      %v1643 = vunpack.c.l.b16 %v1624
      %v1644 = vpack.c.b16 %v1637, %v1636
      %v1645 = vpack.c.b16 %v1639, %v1638
      %v1646 = vpack.c.b16 %v1641, %v1640
      %v1647 = vpack.c.b16 %v1643, %v1642
      %v1653 = vsel %vm277, %v1626, 0
      %1655 = vmatprep.subr.bf16.mxu0 0
      %1656 = vmatpush1.bf16.msra.mxu0 %v1644
      %1657 = vmatprep.subr.bf16.mxu0 0
      %1658 = vmatpush1.bf16.msra.mxu0 %v1645
      %1659 = vmatprep.subr.bf16.mxu0 0
      %1660 = vmatpush1.bf16.msra.mxu0 %v1646
      %1661 = vmatprep.subr.bf16.mxu0 0
      %1662 = vmatpush1.bf16.msra.mxu0 %v1647
      %1663 = vmatprep.subr.bf16.mxu0 0
      %1664 = vmatpush1.bf16.msra.mxu0 0
      %1665 = vmatprep.subr.bf16.mxu0 0
      %1666 = vmatpush1.bf16.msra.mxu0 0
      %1667 = vmatprep.subr.bf16.mxu0 0
      %1668 = vmatpush1.bf16.msra.mxu0 0
      %1669 = vmatprep.subr.bf16.mxu0 0
      %1670 = vmatpush1.bf16.msra.mxu0 0
      %1671 = vmatprep.subr.bf16.mxu0 0
      %1672 = vmatpush1.bf16.msra.mxu0 0
      %1673 = vmatprep.subr.bf16.mxu0 0
      %1674 = vmatpush1.bf16.msra.mxu0 0
      %1675 = vmatprep.subr.bf16.mxu0 0
      %1676 = vmatpush1.bf16.msra.mxu0 0
      %1677 = vmatprep.subr.bf16.mxu0 0
      %1678 = vmatpush1.bf16.msra.mxu0 0
      %1679 = vmatprep.subr.bf16.mxu0 0
      %1680 = vmatpush1.bf16.msra.mxu0 0
      %1681 = vmatprep.subr.bf16.mxu0 0
      %1682 = vmatpush1.bf16.msra.mxu0 0
      %1683 = vmatprep.subr.bf16.mxu0 0
      %1684 = vmatpush1.bf16.msra.mxu0 0
      %1685 = vmatprep.subr.bf16.mxu0 0
      %1686 = vmatpush1.bf16.msra.mxu0 0
      %1687 = vmatprep.mubr.bf16.mxu0 0
      %1688 = vmatmul.mubr.bf16.gmra.mrb[0].mxu0 %v1653
      %v1689 = vpop.f32.mrb[0].mxu0
      %v1690 = vadd.f32 0.0, %v1689
      %v1691 = vpop.f32.mrb[0].mxu0
      %v1692 = vpop.f32.mrb[0].mxu0
      %v1693 = vpop.f32.mrb[0].mxu0
      %1694 = vdwg.mxu0
      %v1695 = vadd.f32 %v1627, %v1690
      %1696 = vst.msk [vmem:[#allocation3] sm:$0xff] %vm277, %v1695
      %v1697 = vld [vmem:[%s323] sm:$0xff]
      %v1698 = vpack.c.bf16 %v1697, %v1697
      %v1699 = vld [vmem:[#allocation3 + $0x8] sm:$0xff]
      %v1701 = vsel %vm277, %v1698, 0
      %1703 = vmatprep.subr.bf16.mxu0 0
      %1704 = vmatpush1.bf16.msra.mxu0 %v1644
      %1705 = vmatprep.subr.bf16.mxu0 0
      %1706 = vmatpush1.bf16.msra.mxu0 %v1645
      %1707 = vmatprep.subr.bf16.mxu0 0
      %1708 = vmatpush1.bf16.msra.mxu0 %v1646
      %1709 = vmatprep.subr.bf16.mxu0 0
      %1710 = vmatpush1.bf16.msra.mxu0 %v1647
      %1711 = vmatprep.subr.bf16.mxu0 0
      %1712 = vmatpush1.bf16.msra.mxu0 0
      %1713 = vmatprep.subr.bf16.mxu0 0
      %1714 = vmatpush1.bf16.msra.mxu0 0
      %1715 = vmatprep.subr.bf16.mxu0 0
      %1716 = vmatpush1.bf16.msra.mxu0 0
      %1717 = vmatprep.subr.bf16.mxu0 0
      %1718 = vmatpush1.bf16.msra.mxu0 0
      %1719 = vmatprep.subr.bf16.mxu0 0
      %1720 = vmatpush1.bf16.msra.mxu0 0
      %1721 = vmatprep.subr.bf16.mxu0 0
      %1722 = vmatpush1.bf16.msra.mxu0 0
      %1723 = vmatprep.subr.bf16.mxu0 0
      %1724 = vmatpush1.bf16.msra.mxu0 0
      %1725 = vmatprep.subr.bf16.mxu0 0
      %1726 = vmatpush1.bf16.msra.mxu0 0
      %1727 = vmatprep.subr.bf16.mxu0 0
      %1728 = vmatpush1.bf16.msra.mxu0 0
      %1729 = vmatprep.subr.bf16.mxu0 0
      %1730 = vmatpush1.bf16.msra.mxu0 0
      %1731 = vmatprep.subr.bf16.mxu0 0
      %1732 = vmatpush1.bf16.msra.mxu0 0
      %1733 = vmatprep.subr.bf16.mxu0 0
      %1734 = vmatpush1.bf16.msra.mxu0 0
      %1735 = vmatprep.mubr.bf16.mxu0 0
      %1736 = vmatmul.mubr.bf16.gmra.mrb[0].mxu0 %v1701
      %v1737 = vpop.f32.mrb[0].mxu0
      %v1738 = vadd.f32 0.0, %v1737
      %v1739 = vpop.f32.mrb[0].mxu0
      %v1740 = vpop.f32.mrb[0].mxu0
      %v1741 = vpop.f32.mrb[0].mxu0
      %1742 = vdwg.mxu0
      %v1743 = vadd.f32 %v1699, %v1738
      %1744 = vst.msk [vmem:[#allocation3 + $0x8] sm:$0xff] %vm277, %v1743
      %v1745 = vld [vmem:[%s329] sm:$0xff]
      %v1746 = vpack.c.bf16 %v1745, %v1745
      %v1747 = vld [vmem:[#allocation3 + $0x10] sm:$0xff]
      %v1749 = vsel %vm277, %v1746, 0
      %1751 = vmatprep.subr.bf16.mxu0 0
      %1752 = vmatpush1.bf16.msra.mxu0 %v1644
      %1753 = vmatprep.subr.bf16.mxu0 0
      %1754 = vmatpush1.bf16.msra.mxu0 %v1645
      %1755 = vmatprep.subr.bf16.mxu0 0
      %1756 = vmatpush1.bf16.msra.mxu0 %v1646
      %1757 = vmatprep.subr.bf16.mxu0 0
      %1758 = vmatpush1.bf16.msra.mxu0 %v1647
      %1759 = vmatprep.subr.bf16.mxu0 0
      %1760 = vmatpush1.bf16.msra.mxu0 0
      %1761 = vmatprep.subr.bf16.mxu0 0
      %1762 = vmatpush1.bf16.msra.mxu0 0
      %1763 = vmatprep.subr.bf16.mxu0 0
      %1764 = vmatpush1.bf16.msra.mxu0 0
      %1765 = vmatprep.subr.bf16.mxu0 0
      %1766 = vmatpush1.bf16.msra.mxu0 0
      %1767 = vmatprep.subr.bf16.mxu0 0
      %1768 = vmatpush1.bf16.msra.mxu0 0
      %1769 = vmatprep.subr.bf16.mxu0 0
      %1770 = vmatpush1.bf16.msra.mxu0 0
      %1771 = vmatprep.subr.bf16.mxu0 0
      %1772 = vmatpush1.bf16.msra.mxu0 0
      %1773 = vmatprep.subr.bf16.mxu0 0
      %1774 = vmatpush1.bf16.msra.mxu0 0
      %1775 = vmatprep.subr.bf16.mxu0 0
      %1776 = vmatpush1.bf16.msra.mxu0 0
      %1777 = vmatprep.subr.bf16.mxu0 0
      %1778 = vmatpush1.bf16.msra.mxu0 0
      %1779 = vmatprep.subr.bf16.mxu0 0
      %1780 = vmatpush1.bf16.msra.mxu0 0
      %1781 = vmatprep.subr.bf16.mxu0 0
      %1782 = vmatpush1.bf16.msra.mxu0 0
      %1783 = vmatprep.mubr.bf16.mxu0 0
      %1784 = vmatmul.mubr.bf16.gmra.mrb[0].mxu0 %v1749
      %v1785 = vpop.f32.mrb[0].mxu0
      %v1786 = vadd.f32 0.0, %v1785
      %v1787 = vpop.f32.mrb[0].mxu0
      %v1788 = vpop.f32.mrb[0].mxu0
      %v1789 = vpop.f32.mrb[0].mxu0
      %1790 = vdwg.mxu0
      %v1791 = vadd.f32 %v1747, %v1786
      %1792 = vst.msk [vmem:[#allocation3 + $0x10] sm:$0xff] %vm277, %v1791
      %v1793 = vld [vmem:[%s335] sm:$0xff]
      %v1794 = vpack.c.bf16 %v1793, %v1793
      %v1795 = vld [vmem:[#allocation3 + $0x18] sm:$0xff]
      %v1797 = vsel %vm277, %v1794, 0
      %1799 = vmatprep.subr.bf16.mxu0 0
      %1800 = vmatpush1.bf16.msra.mxu0 %v1644
      %1801 = vmatprep.subr.bf16.mxu0 0
      %1802 = vmatpush1.bf16.msra.mxu0 %v1645
      %1803 = vmatprep.subr.bf16.mxu0 0
      %1804 = vmatpush1.bf16.msra.mxu0 %v1646
      %1805 = vmatprep.subr.bf16.mxu0 0
      %1806 = vmatpush1.bf16.msra.mxu0 %v1647
      %1807 = vmatprep.subr.bf16.mxu0 0
      %1808 = vmatpush1.bf16.msra.mxu0 0
      %1809 = vmatprep.subr.bf16.mxu0 0
      %1810 = vmatpush1.bf16.msra.mxu0 0
      %1811 = vmatprep.subr.bf16.mxu0 0
      %1812 = vmatpush1.bf16.msra.mxu0 0
      %1813 = vmatprep.subr.bf16.mxu0 0
      %1814 = vmatpush1.bf16.msra.mxu0 0
      %1815 = vmatprep.subr.bf16.mxu0 0
      %1816 = vmatpush1.bf16.msra.mxu0 0
      %1817 = vmatprep.subr.bf16.mxu0 0
      %1818 = vmatpush1.bf16.msra.mxu0 0
      %1819 = vmatprep.subr.bf16.mxu0 0
      %1820 = vmatpush1.bf16.msra.mxu0 0
      %1821 = vmatprep.subr.bf16.mxu0 0
      %1822 = vmatpush1.bf16.msra.mxu0 0
      %1823 = vmatprep.subr.bf16.mxu0 0
      %1824 = vmatpush1.bf16.msra.mxu0 0
      %1825 = vmatprep.subr.bf16.mxu0 0
      %1826 = vmatpush1.bf16.msra.mxu0 0
      %1827 = vmatprep.subr.bf16.mxu0 0
      %1828 = vmatpush1.bf16.msra.mxu0 0
      %1829 = vmatprep.subr.bf16.mxu0 0
      %1830 = vmatpush1.bf16.msra.mxu0 0
      %1831 = vmatprep.mubr.bf16.mxu0 0
      %1832 = vmatmul.mubr.bf16.gmra.mrb[0].mxu0 %v1797
      %v1833 = vpop.f32.mrb[0].mxu0
      %v1834 = vadd.f32 0.0, %v1833
      %v1835 = vpop.f32.mrb[0].mxu0
      %v1836 = vpop.f32.mrb[0].mxu0
      %v1837 = vpop.f32.mrb[0].mxu0
      %1838 = vdwg.mxu0
      %v1839 = vadd.f32 %v1795, %v1834
      %1840 = vst.msk [vmem:[#allocation3 + $0x18] sm:$0xff] %vm277, %v1839
      %v1841 = vld [vmem:[%s341] sm:$0xff]
      %v1842 = vpack.c.bf16 %v1841, %v1841
      %v1843 = vld [vmem:[#allocation3 + $0x20] sm:$0xff]
      %v1845 = vsel %vm277, %v1842, 0
      %1847 = vmatprep.subr.bf16.mxu0 0
      %1848 = vmatpush1.bf16.msra.mxu0 %v1644
      %1849 = vmatprep.subr.bf16.mxu0 0
      %1850 = vmatpush1.bf16.msra.mxu0 %v1645
      %1851 = vmatprep.subr.bf16.mxu0 0
      %1852 = vmatpush1.bf16.msra.mxu0 %v1646
      %1853 = vmatprep.subr.bf16.mxu0 0
      %1854 = vmatpush1.bf16.msra.mxu0 %v1647
      %1855 = vmatprep.subr.bf16.mxu0 0
      %1856 = vmatpush1.bf16.msra.mxu0 0
      %1857 = vmatprep.subr.bf16.mxu0 0
      %1858 = vmatpush1.bf16.msra.mxu0 0
      %1859 = vmatprep.subr.bf16.mxu0 0
      %1860 = vmatpush1.bf16.msra.mxu0 0
      %1861 = vmatprep.subr.bf16.mxu0 0
      %1862 = vmatpush1.bf16.msra.mxu0 0
      %1863 = vmatprep.subr.bf16.mxu0 0
      %1864 = vmatpush1.bf16.msra.mxu0 0
      %1865 = vmatprep.subr.bf16.mxu0 0
      %1866 = vmatpush1.bf16.msra.mxu0 0
      %1867 = vmatprep.subr.bf16.mxu0 0
      %1868 = vmatpush1.bf16.msra.mxu0 0
      %1869 = vmatprep.subr.bf16.mxu0 0
      %1870 = vmatpush1.bf16.msra.mxu0 0
      %1871 = vmatprep.subr.bf16.mxu0 0
      %1872 = vmatpush1.bf16.msra.mxu0 0
      %1873 = vmatprep.subr.bf16.mxu0 0
      %1874 = vmatpush1.bf16.msra.mxu0 0
      %1875 = vmatprep.subr.bf16.mxu0 0
      %1876 = vmatpush1.bf16.msra.mxu0 0
      %1877 = vmatprep.subr.bf16.mxu0 0
      %1878 = vmatpush1.bf16.msra.mxu0 0
      %1879 = vmatprep.mubr.bf16.mxu0 0
      %1880 = vmatmul.mubr.bf16.gmra.mrb[0].mxu0 %v1845
      %v1881 = vpop.f32.mrb[0].mxu0
      %v1882 = vadd.f32 0.0, %v1881
      %v1883 = vpop.f32.mrb[0].mxu0
      %v1884 = vpop.f32.mrb[0].mxu0
      %v1885 = vpop.f32.mrb[0].mxu0
      %1886 = vdwg.mxu0
      %v1887 = vadd.f32 %v1843, %v1882
      %1888 = vst.msk [vmem:[#allocation3 + $0x20] sm:$0xff] %vm277, %v1887
      %v1889 = vld [vmem:[%s347] sm:$0xff]
      %v1890 = vpack.c.bf16 %v1889, %v1889
      %v1891 = vld [vmem:[#allocation3 + $0x28] sm:$0xff]
      %v1893 = vsel %vm277, %v1890, 0
      %1895 = vmatprep.subr.bf16.mxu0 0
      %1896 = vmatpush1.bf16.msra.mxu0 %v1644
      %1897 = vmatprep.subr.bf16.mxu0 0
      %1898 = vmatpush1.bf16.msra.mxu0 %v1645
      %1899 = vmatprep.subr.bf16.mxu0 0
      %1900 = vmatpush1.bf16.msra.mxu0 %v1646
      %1901 = vmatprep.subr.bf16.mxu0 0
      %1902 = vmatpush1.bf16.msra.mxu0 %v1647
      %1903 = vmatprep.subr.bf16.mxu0 0
      %1904 = vmatpush1.bf16.msra.mxu0 0
      %1905 = vmatprep.subr.bf16.mxu0 0
      %1906 = vmatpush1.bf16.msra.mxu0 0
      %1907 = vmatprep.subr.bf16.mxu0 0
      %1908 = vmatpush1.bf16.msra.mxu0 0
      %1909 = vmatprep.subr.bf16.mxu0 0
      %1910 = vmatpush1.bf16.msra.mxu0 0
      %1911 = vmatprep.subr.bf16.mxu0 0
      %1912 = vmatpush1.bf16.msra.mxu0 0
      %1913 = vmatprep.subr.bf16.mxu0 0
      %1914 = vmatpush1.bf16.msra.mxu0 0
      %1915 = vmatprep.subr.bf16.mxu0 0
      %1916 = vmatpush1.bf16.msra.mxu0 0
      %1917 = vmatprep.subr.bf16.mxu0 0
      %1918 = vmatpush1.bf16.msra.mxu0 0
      %1919 = vmatprep.subr.bf16.mxu0 0
      %1920 = vmatpush1.bf16.msra.mxu0 0
      %1921 = vmatprep.subr.bf16.mxu0 0
      %1922 = vmatpush1.bf16.msra.mxu0 0
      %1923 = vmatprep.subr.bf16.mxu0 0
      %1924 = vmatpush1.bf16.msra.mxu0 0
      %1925 = vmatprep.subr.bf16.mxu0 0
      %1926 = vmatpush1.bf16.msra.mxu0 0
      %1927 = vmatprep.mubr.bf16.mxu0 0
      %1928 = vmatmul.mubr.bf16.gmra.mrb[0].mxu0 %v1893
      %v1929 = vpop.f32.mrb[0].mxu0
      %v1930 = vadd.f32 0.0, %v1929
      %v1931 = vpop.f32.mrb[0].mxu0
      %v1932 = vpop.f32.mrb[0].mxu0
      %v1933 = vpop.f32.mrb[0].mxu0
      %1934 = vdwg.mxu0
      %v1935 = vadd.f32 %v1891, %v1930
      %1936 = vst.msk [vmem:[#allocation3 + $0x28] sm:$0xff] %vm277, %v1935
      %v1937 = vld [vmem:[%s353] sm:$0xff]
      %v1938 = vpack.c.bf16 %v1937, %v1937
      %v1939 = vld [vmem:[#allocation3 + $0x30] sm:$0xff]
      %v1941 = vsel %vm277, %v1938, 0
      %1943 = vmatprep.subr.bf16.mxu0 0
      %1944 = vmatpush1.bf16.msra.mxu0 %v1644
      %1945 = vmatprep.subr.bf16.mxu0 0
      %1946 = vmatpush1.bf16.msra.mxu0 %v1645
      %1947 = vmatprep.subr.bf16.mxu0 0
      %1948 = vmatpush1.bf16.msra.mxu0 %v1646
      %1949 = vmatprep.subr.bf16.mxu0 0
      %1950 = vmatpush1.bf16.msra.mxu0 %v1647
      %1951 = vmatprep.subr.bf16.mxu0 0
      %1952 = vmatpush1.bf16.msra.mxu0 0
      %1953 = vmatprep.subr.bf16.mxu0 0
      %1954 = vmatpush1.bf16.msra.mxu0 0
      %1955 = vmatprep.subr.bf16.mxu0 0
      %1956 = vmatpush1.bf16.msra.mxu0 0
      %1957 = vmatprep.subr.bf16.mxu0 0
      %1958 = vmatpush1.bf16.msra.mxu0 0
      %1959 = vmatprep.subr.bf16.mxu0 0
      %1960 = vmatpush1.bf16.msra.mxu0 0
      %1961 = vmatprep.subr.bf16.mxu0 0
      %1962 = vmatpush1.bf16.msra.mxu0 0
      %1963 = vmatprep.subr.bf16.mxu0 0
      %1964 = vmatpush1.bf16.msra.mxu0 0
      %1965 = vmatprep.subr.bf16.mxu0 0
      %1966 = vmatpush1.bf16.msra.mxu0 0
      %1967 = vmatprep.subr.bf16.mxu0 0
      %1968 = vmatpush1.bf16.msra.mxu0 0
      %1969 = vmatprep.subr.bf16.mxu0 0
      %1970 = vmatpush1.bf16.msra.mxu0 0
      %1971 = vmatprep.subr.bf16.mxu0 0
      %1972 = vmatpush1.bf16.msra.mxu0 0
      %1973 = vmatprep.subr.bf16.mxu0 0
      %1974 = vmatpush1.bf16.msra.mxu0 0
      %1975 = vmatprep.mubr.bf16.mxu0 0
      %1976 = vmatmul.mubr.bf16.gmra.mrb[0].mxu0 %v1941
      %v1977 = vpop.f32.mrb[0].mxu0
      %v1978 = vadd.f32 0.0, %v1977
      %v1979 = vpop.f32.mrb[0].mxu0
      %v1980 = vpop.f32.mrb[0].mxu0
      %v1981 = vpop.f32.mrb[0].mxu0
      %1982 = vdwg.mxu0
      %v1983 = vadd.f32 %v1939, %v1978
      %1984 = vst.msk [vmem:[#allocation3 + $0x30] sm:$0xff] %vm277, %v1983
      %v1985 = vld [vmem:[%s359] sm:$0xff]
      %v1986 = vpack.c.bf16 %v1985, %v1985
      %v1987 = vld [vmem:[#allocation3 + $0x38] sm:$0xff]
      %v1989 = vsel %vm277, %v1986, 0
      %1991 = vmatprep.subr.bf16.mxu0 0
      %1992 = vmatpush1.bf16.msra.mxu0 %v1644
      %1993 = vmatprep.subr.bf16.mxu0 0
      %1994 = vmatpush1.bf16.msra.mxu0 %v1645
      %1995 = vmatprep.subr.bf16.mxu0 0
      %1996 = vmatpush1.bf16.msra.mxu0 %v1646
      %1997 = vmatprep.subr.bf16.mxu0 0
      %1998 = vmatpush1.bf16.msra.mxu0 %v1647
      %1999 = vmatprep.subr.bf16.mxu0 0
      %2000 = vmatpush1.bf16.msra.mxu0 0
      %2001 = vmatprep.subr.bf16.mxu0 0
      %2002 = vmatpush1.bf16.msra.mxu0 0
      %2003 = vmatprep.subr.bf16.mxu0 0
      %2004 = vmatpush1.bf16.msra.mxu0 0
      %2005 = vmatprep.subr.bf16.mxu0 0
      %2006 = vmatpush1.bf16.msra.mxu0 0
      %2007 = vmatprep.subr.bf16.mxu0 0
      %2008 = vmatpush1.bf16.msra.mxu0 0
      %2009 = vmatprep.subr.bf16.mxu0 0
      %2010 = vmatpush1.bf16.msra.mxu0 0
      %2011 = vmatprep.subr.bf16.mxu0 0
      %2012 = vmatpush1.bf16.msra.mxu0 0
      %2013 = vmatprep.subr.bf16.mxu0 0
      %2014 = vmatpush1.bf16.msra.mxu0 0
      %2015 = vmatprep.subr.bf16.mxu0 0
      %2016 = vmatpush1.bf16.msra.mxu0 0
      %2017 = vmatprep.subr.bf16.mxu0 0
      %2018 = vmatpush1.bf16.msra.mxu0 0
      %2019 = vmatprep.subr.bf16.mxu0 0
      %2020 = vmatpush1.bf16.msra.mxu0 0
      %2021 = vmatprep.subr.bf16.mxu0 0
      %2022 = vmatpush1.bf16.msra.mxu0 0
      %2023 = vmatprep.mubr.bf16.mxu0 0
      %2024 = vmatmul.mubr.bf16.gmra.mrb[0].mxu0 %v1989
      %v2025 = vpop.f32.mrb[0].mxu0
      %v2026 = vadd.f32 0.0, %v2025
      %v2027 = vpop.f32.mrb[0].mxu0
      %v2028 = vpop.f32.mrb[0].mxu0
      %v2029 = vpop.f32.mrb[0].mxu0
      %2030 = vdwg.mxu0
      %v2031 = vadd.f32 %v1987, %v2026
      %2032 = vst.msk [vmem:[#allocation3 + $0x38] sm:$0xff] %vm277, %v2031
      %v2033 = vld [vmem:[%s3 + $0x80] sm:$0xf]
      %v2034 = vld [vmem:[%s3 + $0x84] sm:$0xf]
      %v2035 = vld [vmem:[%s3 + $0x88] sm:$0xf]
      %v2036 = vld [vmem:[%s3 + $0x8c] sm:$0xf]
      %v2037 = vld [vmem:[%s3 + $0x90] sm:$0xf]
      %v2038 = vld [vmem:[%s3 + $0x94] sm:$0xf]
      %v2039 = vld [vmem:[%s3 + $0x98] sm:$0xf]
      %v2040 = vld [vmem:[%s3 + $0x9c] sm:$0xf]
      %v2041 = vld [vmem:[%s317 + $0x1] sm:$0xff]
      %v2042 = vpack.c.bf16 %v2041, %v2041
      %v2043 = vld [vmem:[#allocation3] sm:$0xff]
      %v2052 = vunpack.c.l.b16 %v2033
      %v2053 = vunpack.c.l.b16 %v2034
      %v2054 = vunpack.c.l.b16 %v2035
      %v2055 = vunpack.c.l.b16 %v2036
      %v2056 = vunpack.c.l.b16 %v2037
      %v2057 = vunpack.c.l.b16 %v2038
      %v2058 = vunpack.c.l.b16 %v2039
      %v2059 = vunpack.c.l.b16 %v2040
      %v2060 = vpack.c.b16 %v2053, %v2052
      %v2061 = vpack.c.b16 %v2055, %v2054
      %v2062 = vpack.c.b16 %v2057, %v2056
      %v2063 = vpack.c.b16 %v2059, %v2058
      %v2069 = vsel %vm277, %v2042, 0
      %2071 = vmatprep.subr.bf16.mxu0 0
      %2072 = vmatpush1.bf16.msra.mxu0 %v2060
      %2073 = vmatprep.subr.bf16.mxu0 0
      %2074 = vmatpush1.bf16.msra.mxu0 %v2061
      %2075 = vmatprep.subr.bf16.mxu0 0
      %2076 = vmatpush1.bf16.msra.mxu0 %v2062
      %2077 = vmatprep.subr.bf16.mxu0 0
      %2078 = vmatpush1.bf16.msra.mxu0 %v2063
      %2079 = vmatprep.subr.bf16.mxu0 0
      %2080 = vmatpush1.bf16.msra.mxu0 0
      %2081 = vmatprep.subr.bf16.mxu0 0
      %2082 = vmatpush1.bf16.msra.mxu0 0
      %2083 = vmatprep.subr.bf16.mxu0 0
      %2084 = vmatpush1.bf16.msra.mxu0 0
      %2085 = vmatprep.subr.bf16.mxu0 0
      %2086 = vmatpush1.bf16.msra.mxu0 0
      %2087 = vmatprep.subr.bf16.mxu0 0
      %2088 = vmatpush1.bf16.msra.mxu0 0
      %2089 = vmatprep.subr.bf16.mxu0 0
      %2090 = vmatpush1.bf16.msra.mxu0 0
      %2091 = vmatprep.subr.bf16.mxu0 0
      %2092 = vmatpush1.bf16.msra.mxu0 0
      %2093 = vmatprep.subr.bf16.mxu0 0
      %2094 = vmatpush1.bf16.msra.mxu0 0
      %2095 = vmatprep.subr.bf16.mxu0 0
      %2096 = vmatpush1.bf16.msra.mxu0 0
      %2097 = vmatprep.subr.bf16.mxu0 0
      %2098 = vmatpush1.bf16.msra.mxu0 0
      %2099 = vmatprep.subr.bf16.mxu0 0
      %2100 = vmatpush1.bf16.msra.mxu0 0
      %2101 = vmatprep.subr.bf16.mxu0 0
      %2102 = vmatpush1.bf16.msra.mxu0 0
      %2103 = vmatprep.mubr.bf16.mxu0 0
      %2104 = vmatmul.mubr.bf16.gmra.mrb[0].mxu0 %v2069
      %v2105 = vpop.f32.mrb[0].mxu0
      %v2106 = vadd.f32 0.0, %v2105
      %v2107 = vpop.f32.mrb[0].mxu0
      %v2108 = vpop.f32.mrb[0].mxu0
      %v2109 = vpop.f32.mrb[0].mxu0
      %2110 = vdwg.mxu0
      %v2111 = vadd.f32 %v2043, %v2106
      %2112 = vst.msk [vmem:[#allocation3] sm:$0xff] %vm277, %v2111
      %v2113 = vld [vmem:[%s323 + $0x1] sm:$0xff]
      %v2114 = vpack.c.bf16 %v2113, %v2113
      %v2115 = vld [vmem:[#allocation3 + $0x8] sm:$0xff]
      %v2117 = vsel %vm277, %v2114, 0
      %2119 = vmatprep.subr.bf16.mxu0 0
      %2120 = vmatpush1.bf16.msra.mxu0 %v2060
      %2121 = vmatprep.subr.bf16.mxu0 0
      %2122 = vmatpush1.bf16.msra.mxu0 %v2061
      %2123 = vmatprep.subr.bf16.mxu0 0
      %2124 = vmatpush1.bf16.msra.mxu0 %v2062
      %2125 = vmatprep.subr.bf16.mxu0 0
      %2126 = vmatpush1.bf16.msra.mxu0 %v2063
      %2127 = vmatprep.subr.bf16.mxu0 0
      %2128 = vmatpush1.bf16.msra.mxu0 0
      %2129 = vmatprep.subr.bf16.mxu0 0
      %2130 = vmatpush1.bf16.msra.mxu0 0
      %2131 = vmatprep.subr.bf16.mxu0 0
      %2132 = vmatpush1.bf16.msra.mxu0 0
      %2133 = vmatprep.subr.bf16.mxu0 0
      %2134 = vmatpush1.bf16.msra.mxu0 0
      %2135 = vmatprep.subr.bf16.mxu0 0
      %2136 = vmatpush1.bf16.msra.mxu0 0
      %2137 = vmatprep.subr.bf16.mxu0 0
      %2138 = vmatpush1.bf16.msra.mxu0 0
      %2139 = vmatprep.subr.bf16.mxu0 0
      %2140 = vmatpush1.bf16.msra.mxu0 0
      %2141 = vmatprep.subr.bf16.mxu0 0
      %2142 = vmatpush1.bf16.msra.mxu0 0
      %2143 = vmatprep.subr.bf16.mxu0 0
      %2144 = vmatpush1.bf16.msra.mxu0 0
      %2145 = vmatprep.subr.bf16.mxu0 0
      %2146 = vmatpush1.bf16.msra.mxu0 0
      %2147 = vmatprep.subr.bf16.mxu0 0
      %2148 = vmatpush1.bf16.msra.mxu0 0
      %2149 = vmatprep.subr.bf16.mxu0 0
      %2150 = vmatpush1.bf16.msra.mxu0 0
      %2151 = vmatprep.mubr.bf16.mxu0 0
      %2152 = vmatmul.mubr.bf16.gmra.mrb[0].mxu0 %v2117
      %v2153 = vpop.f32.mrb[0].mxu0
      %v2154 = vadd.f32 0.0, %v2153
      %v2155 = vpop.f32.mrb[0].mxu0
      %v2156 = vpop.f32.mrb[0].mxu0
      %v2157 = vpop.f32.mrb[0].mxu0
      %2158 = vdwg.mxu0
      %v2159 = vadd.f32 %v2115, %v2154
      %2160 = vst.msk [vmem:[#allocation3 + $0x8] sm:$0xff] %vm277, %v2159
      %v2161 = vld [vmem:[%s329 + $0x1] sm:$0xff]
      %v2162 = vpack.c.bf16 %v2161, %v2161
      %v2163 = vld [vmem:[#allocation3 + $0x10] sm:$0xff]
      %v2165 = vsel %vm277, %v2162, 0
      %2167 = vmatprep.subr.bf16.mxu0 0
      %2168 = vmatpush1.bf16.msra.mxu0 %v2060
      %2169 = vmatprep.subr.bf16.mxu0 0
      %2170 = vmatpush1.bf16.msra.mxu0 %v2061
      %2171 = vmatprep.subr.bf16.mxu0 0
      %2172 = vmatpush1.bf16.msra.mxu0 %v2062
      %2173 = vmatprep.subr.bf16.mxu0 0
      %2174 = vmatpush1.bf16.msra.mxu0 %v2063
      %2175 = vmatprep.subr.bf16.mxu0 0
      %2176 = vmatpush1.bf16.msra.mxu0 0
      %2177 = vmatprep.subr.bf16.mxu0 0
      %2178 = vmatpush1.bf16.msra.mxu0 0
      %2179 = vmatprep.subr.bf16.mxu0 0
      %2180 = vmatpush1.bf16.msra.mxu0 0
      %2181 = vmatprep.subr.bf16.mxu0 0
      %2182 = vmatpush1.bf16.msra.mxu0 0
      %2183 = vmatprep.subr.bf16.mxu0 0
      %2184 = vmatpush1.bf16.msra.mxu0 0
      %2185 = vmatprep.subr.bf16.mxu0 0
      %2186 = vmatpush1.bf16.msra.mxu0 0
      %2187 = vmatprep.subr.bf16.mxu0 0
      %2188 = vmatpush1.bf16.msra.mxu0 0
      %2189 = vmatprep.subr.bf16.mxu0 0
      %2190 = vmatpush1.bf16.msra.mxu0 0
      %2191 = vmatprep.subr.bf16.mxu0 0
      %2192 = vmatpush1.bf16.msra.mxu0 0
      %2193 = vmatprep.subr.bf16.mxu0 0
      %2194 = vmatpush1.bf16.msra.mxu0 0
      %2195 = vmatprep.subr.bf16.mxu0 0
      %2196 = vmatpush1.bf16.msra.mxu0 0
      %2197 = vmatprep.subr.bf16.mxu0 0
      %2198 = vmatpush1.bf16.msra.mxu0 0
      %2199 = vmatprep.mubr.bf16.mxu0 0
      %2200 = vmatmul.mubr.bf16.gmra.mrb[0].mxu0 %v2165
      %v2201 = vpop.f32.mrb[0].mxu0
      %v2202 = vadd.f32 0.0, %v2201
      %v2203 = vpop.f32.mrb[0].mxu0
      %v2204 = vpop.f32.mrb[0].mxu0
      %v2205 = vpop.f32.mrb[0].mxu0
      %2206 = vdwg.mxu0
      %v2207 = vadd.f32 %v2163, %v2202
      %2208 = vst.msk [vmem:[#allocation3 + $0x10] sm:$0xff] %vm277, %v2207
      %v2209 = vld [vmem:[%s335 + $0x1] sm:$0xff]
      %v2210 = vpack.c.bf16 %v2209, %v2209
      %v2211 = vld [vmem:[#allocation3 + $0x18] sm:$0xff]
      %v2213 = vsel %vm277, %v2210, 0
      %2215 = vmatprep.subr.bf16.mxu0 0
      %2216 = vmatpush1.bf16.msra.mxu0 %v2060
      %2217 = vmatprep.subr.bf16.mxu0 0
      %2218 = vmatpush1.bf16.msra.mxu0 %v2061
      %2219 = vmatprep.subr.bf16.mxu0 0
      %2220 = vmatpush1.bf16.msra.mxu0 %v2062
      %2221 = vmatprep.subr.bf16.mxu0 0
      %2222 = vmatpush1.bf16.msra.mxu0 %v2063
      %2223 = vmatprep.subr.bf16.mxu0 0
      %2224 = vmatpush1.bf16.msra.mxu0 0
      %2225 = vmatprep.subr.bf16.mxu0 0
      %2226 = vmatpush1.bf16.msra.mxu0 0
      %2227 = vmatprep.subr.bf16.mxu0 0
      %2228 = vmatpush1.bf16.msra.mxu0 0
      %2229 = vmatprep.subr.bf16.mxu0 0
      %2230 = vmatpush1.bf16.msra.mxu0 0
      %2231 = vmatprep.subr.bf16.mxu0 0
      %2232 = vmatpush1.bf16.msra.mxu0 0
      %2233 = vmatprep.subr.bf16.mxu0 0
      %2234 = vmatpush1.bf16.msra.mxu0 0
      %2235 = vmatprep.subr.bf16.mxu0 0
      %2236 = vmatpush1.bf16.msra.mxu0 0
      %2237 = vmatprep.subr.bf16.mxu0 0
      %2238 = vmatpush1.bf16.msra.mxu0 0
      %2239 = vmatprep.subr.bf16.mxu0 0
      %2240 = vmatpush1.bf16.msra.mxu0 0
      %2241 = vmatprep.subr.bf16.mxu0 0
      %2242 = vmatpush1.bf16.msra.mxu0 0
      %2243 = vmatprep.subr.bf16.mxu0 0
      %2244 = vmatpush1.bf16.msra.mxu0 0
      %2245 = vmatprep.subr.bf16.mxu0 0
      %2246 = vmatpush1.bf16.msra.mxu0 0
      %2247 = vmatprep.mubr.bf16.mxu0 0
      %2248 = vmatmul.mubr.bf16.gmra.mrb[0].mxu0 %v2213
      %v2249 = vpop.f32.mrb[0].mxu0
      %v2250 = vadd.f32 0.0, %v2249
      %v2251 = vpop.f32.mrb[0].mxu0
      %v2252 = vpop.f32.mrb[0].mxu0
      %v2253 = vpop.f32.mrb[0].mxu0
      %2254 = vdwg.mxu0
      %v2255 = vadd.f32 %v2211, %v2250
      %2256 = vst.msk [vmem:[#allocation3 + $0x18] sm:$0xff] %vm277, %v2255
      %v2257 = vld [vmem:[%s341 + $0x1] sm:$0xff]
      %v2258 = vpack.c.bf16 %v2257, %v2257
      %v2259 = vld [vmem:[#allocation3 + $0x20] sm:$0xff]
      %v2261 = vsel %vm277, %v2258, 0
      %2263 = vmatprep.subr.bf16.mxu0 0
      %2264 = vmatpush1.bf16.msra.mxu0 %v2060
      %2265 = vmatprep.subr.bf16.mxu0 0
      %2266 = vmatpush1.bf16.msra.mxu0 %v2061
      %2267 = vmatprep.subr.bf16.mxu0 0
      %2268 = vmatpush1.bf16.msra.mxu0 %v2062
      %2269 = vmatprep.subr.bf16.mxu0 0
      %2270 = vmatpush1.bf16.msra.mxu0 %v2063
      %2271 = vmatprep.subr.bf16.mxu0 0
      %2272 = vmatpush1.bf16.msra.mxu0 0
      %2273 = vmatprep.subr.bf16.mxu0 0
      %2274 = vmatpush1.bf16.msra.mxu0 0
      %2275 = vmatprep.subr.bf16.mxu0 0
      %2276 = vmatpush1.bf16.msra.mxu0 0
      %2277 = vmatprep.subr.bf16.mxu0 0
      %2278 = vmatpush1.bf16.msra.mxu0 0
      %2279 = vmatprep.subr.bf16.mxu0 0
      %2280 = vmatpush1.bf16.msra.mxu0 0
      %2281 = vmatprep.subr.bf16.mxu0 0
      %2282 = vmatpush1.bf16.msra.mxu0 0
      %2283 = vmatprep.subr.bf16.mxu0 0
      %2284 = vmatpush1.bf16.msra.mxu0 0
      %2285 = vmatprep.subr.bf16.mxu0 0
      %2286 = vmatpush1.bf16.msra.mxu0 0
      %2287 = vmatprep.subr.bf16.mxu0 0
      %2288 = vmatpush1.bf16.msra.mxu0 0
      %2289 = vmatprep.subr.bf16.mxu0 0
      %2290 = vmatpush1.bf16.msra.mxu0 0
      %2291 = vmatprep.subr.bf16.mxu0 0
      %2292 = vmatpush1.bf16.msra.mxu0 0
      %2293 = vmatprep.subr.bf16.mxu0 0
      %2294 = vmatpush1.bf16.msra.mxu0 0
      %2295 = vmatprep.mubr.bf16.mxu0 0
      %2296 = vmatmul.mubr.bf16.gmra.mrb[0].mxu0 %v2261
      %v2297 = vpop.f32.mrb[0].mxu0
      %v2298 = vadd.f32 0.0, %v2297
      %v2299 = vpop.f32.mrb[0].mxu0
      %v2300 = vpop.f32.mrb[0].mxu0
      %v2301 = vpop.f32.mrb[0].mxu0
      %2302 = vdwg.mxu0
      %v2303 = vadd.f32 %v2259, %v2298
      %2304 = vst.msk [vmem:[#allocation3 + $0x20] sm:$0xff] %vm277, %v2303
      %v2305 = vld [vmem:[%s347 + $0x1] sm:$0xff]
      %v2306 = vpack.c.bf16 %v2305, %v2305
      %v2307 = vld [vmem:[#allocation3 + $0x28] sm:$0xff]
      %v2309 = vsel %vm277, %v2306, 0
      %2311 = vmatprep.subr.bf16.mxu0 0
      %2312 = vmatpush1.bf16.msra.mxu0 %v2060
      %2313 = vmatprep.subr.bf16.mxu0 0
      %2314 = vmatpush1.bf16.msra.mxu0 %v2061
      %2315 = vmatprep.subr.bf16.mxu0 0
      %2316 = vmatpush1.bf16.msra.mxu0 %v2062
      %2317 = vmatprep.subr.bf16.mxu0 0
      %2318 = vmatpush1.bf16.msra.mxu0 %v2063
      %2319 = vmatprep.subr.bf16.mxu0 0
      %2320 = vmatpush1.bf16.msra.mxu0 0
      %2321 = vmatprep.subr.bf16.mxu0 0
      %2322 = vmatpush1.bf16.msra.mxu0 0
      %2323 = vmatprep.subr.bf16.mxu0 0
      %2324 = vmatpush1.bf16.msra.mxu0 0
      %2325 = vmatprep.subr.bf16.mxu0 0
      %2326 = vmatpush1.bf16.msra.mxu0 0
      %2327 = vmatprep.subr.bf16.mxu0 0
      %2328 = vmatpush1.bf16.msra.mxu0 0
      %2329 = vmatprep.subr.bf16.mxu0 0
      %2330 = vmatpush1.bf16.msra.mxu0 0
      %2331 = vmatprep.subr.bf16.mxu0 0
      %2332 = vmatpush1.bf16.msra.mxu0 0
      %2333 = vmatprep.subr.bf16.mxu0 0
      %2334 = vmatpush1.bf16.msra.mxu0 0
      %2335 = vmatprep.subr.bf16.mxu0 0
      %2336 = vmatpush1.bf16.msra.mxu0 0
      %2337 = vmatprep.subr.bf16.mxu0 0
      %2338 = vmatpush1.bf16.msra.mxu0 0
      %2339 = vmatprep.subr.bf16.mxu0 0
      %2340 = vmatpush1.bf16.msra.mxu0 0
      %2341 = vmatprep.subr.bf16.mxu0 0
      %2342 = vmatpush1.bf16.msra.mxu0 0
      %2343 = vmatprep.mubr.bf16.mxu0 0
      %2344 = vmatmul.mubr.bf16.gmra.mrb[0].mxu0 %v2309
      %v2345 = vpop.f32.mrb[0].mxu0
      %v2346 = vadd.f32 0.0, %v2345
      %v2347 = vpop.f32.mrb[0].mxu0
      %v2348 = vpop.f32.mrb[0].mxu0
      %v2349 = vpop.f32.mrb[0].mxu0
      %2350 = vdwg.mxu0
      %v2351 = vadd.f32 %v2307, %v2346
      %2352 = vst.msk [vmem:[#allocation3 + $0x28] sm:$0xff] %vm277, %v2351
      %v2353 = vld [vmem:[%s353 + $0x1] sm:$0xff]
      %v2354 = vpack.c.bf16 %v2353, %v2353
      %v2355 = vld [vmem:[#allocation3 + $0x30] sm:$0xff]
      %v2357 = vsel %vm277, %v2354, 0
      %2359 = vmatprep.subr.bf16.mxu0 0
      %2360 = vmatpush1.bf16.msra.mxu0 %v2060
      %2361 = vmatprep.subr.bf16.mxu0 0
      %2362 = vmatpush1.bf16.msra.mxu0 %v2061
      %2363 = vmatprep.subr.bf16.mxu0 0
      %2364 = vmatpush1.bf16.msra.mxu0 %v2062
      %2365 = vmatprep.subr.bf16.mxu0 0
      %2366 = vmatpush1.bf16.msra.mxu0 %v2063
      %2367 = vmatprep.subr.bf16.mxu0 0
      %2368 = vmatpush1.bf16.msra.mxu0 0
      %2369 = vmatprep.subr.bf16.mxu0 0
      %2370 = vmatpush1.bf16.msra.mxu0 0
      %2371 = vmatprep.subr.bf16.mxu0 0
      %2372 = vmatpush1.bf16.msra.mxu0 0
      %2373 = vmatprep.subr.bf16.mxu0 0
      %2374 = vmatpush1.bf16.msra.mxu0 0
      %2375 = vmatprep.subr.bf16.mxu0 0
      %2376 = vmatpush1.bf16.msra.mxu0 0
      %2377 = vmatprep.subr.bf16.mxu0 0
      %2378 = vmatpush1.bf16.msra.mxu0 0
      %2379 = vmatprep.subr.bf16.mxu0 0
      %2380 = vmatpush1.bf16.msra.mxu0 0
      %2381 = vmatprep.subr.bf16.mxu0 0
      %2382 = vmatpush1.bf16.msra.mxu0 0
      %2383 = vmatprep.subr.bf16.mxu0 0
      %2384 = vmatpush1.bf16.msra.mxu0 0
      %2385 = vmatprep.subr.bf16.mxu0 0
      %2386 = vmatpush1.bf16.msra.mxu0 0
      %2387 = vmatprep.subr.bf16.mxu0 0
      %2388 = vmatpush1.bf16.msra.mxu0 0
      %2389 = vmatprep.subr.bf16.mxu0 0
      %2390 = vmatpush1.bf16.msra.mxu0 0
      %2391 = vmatprep.mubr.bf16.mxu0 0
      %2392 = vmatmul.mubr.bf16.gmra.mrb[0].mxu0 %v2357
      %v2393 = vpop.f32.mrb[0].mxu0
      %v2394 = vadd.f32 0.0, %v2393
      %v2395 = vpop.f32.mrb[0].mxu0
      %v2396 = vpop.f32.mrb[0].mxu0
      %v2397 = vpop.f32.mrb[0].mxu0
      %2398 = vdwg.mxu0
      %v2399 = vadd.f32 %v2355, %v2394
      %2400 = vst.msk [vmem:[#allocation3 + $0x30] sm:$0xff] %vm277, %v2399
      %v2401 = vld [vmem:[%s359 + $0x1] sm:$0xff]
      %v2402 = vpack.c.bf16 %v2401, %v2401
      %v2403 = vld [vmem:[#allocation3 + $0x38] sm:$0xff]
      %v2405 = vsel %vm277, %v2402, 0
      %2407 = vmatprep.subr.bf16.mxu0 0
      %2408 = vmatpush1.bf16.msra.mxu0 %v2060
      %2409 = vmatprep.subr.bf16.mxu0 0
      %2410 = vmatpush1.bf16.msra.mxu0 %v2061
      %2411 = vmatprep.subr.bf16.mxu0 0
      %2412 = vmatpush1.bf16.msra.mxu0 %v2062
      %2413 = vmatprep.subr.bf16.mxu0 0
      %2414 = vmatpush1.bf16.msra.mxu0 %v2063
      %2415 = vmatprep.subr.bf16.mxu0 0
      %2416 = vmatpush1.bf16.msra.mxu0 0
      %2417 = vmatprep.subr.bf16.mxu0 0
      %2418 = vmatpush1.bf16.msra.mxu0 0
      %2419 = vmatprep.subr.bf16.mxu0 0
      %2420 = vmatpush1.bf16.msra.mxu0 0
      %2421 = vmatprep.subr.bf16.mxu0 0
      %2422 = vmatpush1.bf16.msra.mxu0 0
      %2423 = vmatprep.subr.bf16.mxu0 0
      %2424 = vmatpush1.bf16.msra.mxu0 0
      %2425 = vmatprep.subr.bf16.mxu0 0
      %2426 = vmatpush1.bf16.msra.mxu0 0
      %2427 = vmatprep.subr.bf16.mxu0 0
      %2428 = vmatpush1.bf16.msra.mxu0 0
      %2429 = vmatprep.subr.bf16.mxu0 0
      %2430 = vmatpush1.bf16.msra.mxu0 0
      %2431 = vmatprep.subr.bf16.mxu0 0
      %2432 = vmatpush1.bf16.msra.mxu0 0
      %2433 = vmatprep.subr.bf16.mxu0 0
      %2434 = vmatpush1.bf16.msra.mxu0 0
      %2435 = vmatprep.subr.bf16.mxu0 0
      %2436 = vmatpush1.bf16.msra.mxu0 0
      %2437 = vmatprep.subr.bf16.mxu0 0
      %2438 = vmatpush1.bf16.msra.mxu0 0
      %2439 = vmatprep.mubr.bf16.mxu0 0
      %2440 = vmatmul.mubr.bf16.gmra.mrb[0].mxu0 %v2405
      %v2441 = vpop.f32.mrb[0].mxu0
      %v2442 = vadd.f32 0.0, %v2441
      %v2443 = vpop.f32.mrb[0].mxu0
      %v2444 = vpop.f32.mrb[0].mxu0
      %v2445 = vpop.f32.mrb[0].mxu0
      %2446 = vdwg.mxu0
      %v2447 = vadd.f32 %v2403, %v2442
      %2448 = vst.msk [vmem:[#allocation3 + $0x38] sm:$0xff] %vm277, %v2447
      %v2449 = vld [vmem:[%s3 + $0xa0] sm:$0xf]
      %v2450 = vld [vmem:[%s3 + $0xa4] sm:$0xf]
      %v2451 = vld [vmem:[%s3 + $0xa8] sm:$0xf]
      %v2452 = vld [vmem:[%s3 + $0xac] sm:$0xf]
      %v2453 = vld [vmem:[%s3 + $0xb0] sm:$0xf]
      %v2454 = vld [vmem:[%s3 + $0xb4] sm:$0xf]
      %v2455 = vld [vmem:[%s3 + $0xb8] sm:$0xf]
      %v2456 = vld [vmem:[%s3 + $0xbc] sm:$0xf]
      %v2457 = vld [vmem:[%s317 + $0x2] sm:$0xff]
      %v2458 = vpack.c.bf16 %v2457, %v2457
      %v2459 = vld [vmem:[#allocation3] sm:$0xff]
      %v2468 = vunpack.c.l.b16 %v2449
      %v2469 = vunpack.c.l.b16 %v2450
      %v2470 = vunpack.c.l.b16 %v2451
      %v2471 = vunpack.c.l.b16 %v2452
      %v2472 = vunpack.c.l.b16 %v2453
      %v2473 = vunpack.c.l.b16 %v2454
      %v2474 = vunpack.c.l.b16 %v2455
      %v2475 = vunpack.c.l.b16 %v2456
      %v2476 = vpack.c.b16 %v2469, %v2468
      %v2477 = vpack.c.b16 %v2471, %v2470
      %v2478 = vpack.c.b16 %v2473, %v2472
      %v2479 = vpack.c.b16 %v2475, %v2474
      %v2485 = vsel %vm277, %v2458, 0
      %2487 = vmatprep.subr.bf16.mxu0 0
      %2488 = vmatpush1.bf16.msra.mxu0 %v2476
      %2489 = vmatprep.subr.bf16.mxu0 0
      %2490 = vmatpush1.bf16.msra.mxu0 %v2477
      %2491 = vmatprep.subr.bf16.mxu0 0
      %2492 = vmatpush1.bf16.msra.mxu0 %v2478
      %2493 = vmatprep.subr.bf16.mxu0 0
      %2494 = vmatpush1.bf16.msra.mxu0 %v2479
      %2495 = vmatprep.subr.bf16.mxu0 0
      %2496 = vmatpush1.bf16.msra.mxu0 0
      %2497 = vmatprep.subr.bf16.mxu0 0
      %2498 = vmatpush1.bf16.msra.mxu0 0
      %2499 = vmatprep.subr.bf16.mxu0 0
      %2500 = vmatpush1.bf16.msra.mxu0 0
      %2501 = vmatprep.subr.bf16.mxu0 0
      %2502 = vmatpush1.bf16.msra.mxu0 0
      %2503 = vmatprep.subr.bf16.mxu0 0
      %2504 = vmatpush1.bf16.msra.mxu0 0
      %2505 = vmatprep.subr.bf16.mxu0 0
      %2506 = vmatpush1.bf16.msra.mxu0 0
      %2507 = vmatprep.subr.bf16.mxu0 0
      %2508 = vmatpush1.bf16.msra.mxu0 0
      %2509 = vmatprep.subr.bf16.mxu0 0
      %2510 = vmatpush1.bf16.msra.mxu0 0
      %2511 = vmatprep.subr.bf16.mxu0 0
      %2512 = vmatpush1.bf16.msra.mxu0 0
      %2513 = vmatprep.subr.bf16.mxu0 0
      %2514 = vmatpush1.bf16.msra.mxu0 0
      %2515 = vmatprep.subr.bf16.mxu0 0
      %2516 = vmatpush1.bf16.msra.mxu0 0
      %2517 = vmatprep.subr.bf16.mxu0 0
      %2518 = vmatpush1.bf16.msra.mxu0 0
      %2519 = vmatprep.mubr.bf16.mxu0 0
      %2520 = vmatmul.mubr.bf16.gmra.mrb[0].mxu0 %v2485
      %v2521 = vpop.f32.mrb[0].mxu0
      %v2522 = vadd.f32 0.0, %v2521
      %v2523 = vpop.f32.mrb[0].mxu0
      %v2524 = vpop.f32.mrb[0].mxu0
      %v2525 = vpop.f32.mrb[0].mxu0
      %2526 = vdwg.mxu0
      %v2527 = vadd.f32 %v2459, %v2522
      %2528 = vst.msk [vmem:[#allocation3] sm:$0xff] %vm277, %v2527
      %v2529 = vld [vmem:[%s323 + $0x2] sm:$0xff]
      %v2530 = vpack.c.bf16 %v2529, %v2529
      %v2531 = vld [vmem:[#allocation3 + $0x8] sm:$0xff]
      %v2533 = vsel %vm277, %v2530, 0
      %2535 = vmatprep.subr.bf16.mxu0 0
      %2536 = vmatpush1.bf16.msra.mxu0 %v2476
      %2537 = vmatprep.subr.bf16.mxu0 0
      %2538 = vmatpush1.bf16.msra.mxu0 %v2477
      %2539 = vmatprep.subr.bf16.mxu0 0
      %2540 = vmatpush1.bf16.msra.mxu0 %v2478
      %2541 = vmatprep.subr.bf16.mxu0 0
      %2542 = vmatpush1.bf16.msra.mxu0 %v2479
      %2543 = vmatprep.subr.bf16.mxu0 0
      %2544 = vmatpush1.bf16.msra.mxu0 0
      %2545 = vmatprep.subr.bf16.mxu0 0
      %2546 = vmatpush1.bf16.msra.mxu0 0
      %2547 = vmatprep.subr.bf16.mxu0 0
      %2548 = vmatpush1.bf16.msra.mxu0 0
      %2549 = vmatprep.subr.bf16.mxu0 0
      %2550 = vmatpush1.bf16.msra.mxu0 0
      %2551 = vmatprep.subr.bf16.mxu0 0
      %2552 = vmatpush1.bf16.msra.mxu0 0
      %2553 = vmatprep.subr.bf16.mxu0 0
      %2554 = vmatpush1.bf16.msra.mxu0 0
      %2555 = vmatprep.subr.bf16.mxu0 0
      %2556 = vmatpush1.bf16.msra.mxu0 0
      %2557 = vmatprep.subr.bf16.mxu0 0
      %2558 = vmatpush1.bf16.msra.mxu0 0
      %2559 = vmatprep.subr.bf16.mxu0 0
      %2560 = vmatpush1.bf16.msra.mxu0 0
      %2561 = vmatprep.subr.bf16.mxu0 0
      %2562 = vmatpush1.bf16.msra.mxu0 0
      %2563 = vmatprep.subr.bf16.mxu0 0
      %2564 = vmatpush1.bf16.msra.mxu0 0
      %2565 = vmatprep.subr.bf16.mxu0 0
      %2566 = vmatpush1.bf16.msra.mxu0 0
      %2567 = vmatprep.mubr.bf16.mxu0 0
      %2568 = vmatmul.mubr.bf16.gmra.mrb[0].mxu0 %v2533
      %v2569 = vpop.f32.mrb[0].mxu0
      %v2570 = vadd.f32 0.0, %v2569
      %v2571 = vpop.f32.mrb[0].mxu0
      %v2572 = vpop.f32.mrb[0].mxu0
      %v2573 = vpop.f32.mrb[0].mxu0
      %2574 = vdwg.mxu0
      %v2575 = vadd.f32 %v2531, %v2570
      %2576 = vst.msk [vmem:[#allocation3 + $0x8] sm:$0xff] %vm277, %v2575
      %v2577 = vld [vmem:[%s329 + $0x2] sm:$0xff]
      %v2578 = vpack.c.bf16 %v2577, %v2577
      %v2579 = vld [vmem:[#allocation3 + $0x10] sm:$0xff]
      %v2581 = vsel %vm277, %v2578, 0
      %2583 = vmatprep.subr.bf16.mxu0 0
      %2584 = vmatpush1.bf16.msra.mxu0 %v2476
      %2585 = vmatprep.subr.bf16.mxu0 0
      %2586 = vmatpush1.bf16.msra.mxu0 %v2477
      %2587 = vmatprep.subr.bf16.mxu0 0
      %2588 = vmatpush1.bf16.msra.mxu0 %v2478
      %2589 = vmatprep.subr.bf16.mxu0 0
      %2590 = vmatpush1.bf16.msra.mxu0 %v2479
      %2591 = vmatprep.subr.bf16.mxu0 0
      %2592 = vmatpush1.bf16.msra.mxu0 0
      %2593 = vmatprep.subr.bf16.mxu0 0
      %2594 = vmatpush1.bf16.msra.mxu0 0
      %2595 = vmatprep.subr.bf16.mxu0 0
      %2596 = vmatpush1.bf16.msra.mxu0 0
      %2597 = vmatprep.subr.bf16.mxu0 0
      %2598 = vmatpush1.bf16.msra.mxu0 0
      %2599 = vmatprep.subr.bf16.mxu0 0
      %2600 = vmatpush1.bf16.msra.mxu0 0
      %2601 = vmatprep.subr.bf16.mxu0 0
      %2602 = vmatpush1.bf16.msra.mxu0 0
      %2603 = vmatprep.subr.bf16.mxu0 0
      %2604 = vmatpush1.bf16.msra.mxu0 0
      %2605 = vmatprep.subr.bf16.mxu0 0
      %2606 = vmatpush1.bf16.msra.mxu0 0
      %2607 = vmatprep.subr.bf16.mxu0 0
      %2608 = vmatpush1.bf16.msra.mxu0 0
      %2609 = vmatprep.subr.bf16.mxu0 0
      %2610 = vmatpush1.bf16.msra.mxu0 0
      %2611 = vmatprep.subr.bf16.mxu0 0
      %2612 = vmatpush1.bf16.msra.mxu0 0
      %2613 = vmatprep.subr.bf16.mxu0 0
      %2614 = vmatpush1.bf16.msra.mxu0 0
      %2615 = vmatprep.mubr.bf16.mxu0 0
      %2616 = vmatmul.mubr.bf16.gmra.mrb[0].mxu0 %v2581
      %v2617 = vpop.f32.mrb[0].mxu0
      %v2618 = vadd.f32 0.0, %v2617
      %v2619 = vpop.f32.mrb[0].mxu0
      %v2620 = vpop.f32.mrb[0].mxu0
      %v2621 = vpop.f32.mrb[0].mxu0
      %2622 = vdwg.mxu0
      %v2623 = vadd.f32 %v2579, %v2618
      %2624 = vst.msk [vmem:[#allocation3 + $0x10] sm:$0xff] %vm277, %v2623
      %v2625 = vld [vmem:[%s335 + $0x2] sm:$0xff]
      %v2626 = vpack.c.bf16 %v2625, %v2625
      %v2627 = vld [vmem:[#allocation3 + $0x18] sm:$0xff]
      %v2629 = vsel %vm277, %v2626, 0
      %2631 = vmatprep.subr.bf16.mxu0 0
      %2632 = vmatpush1.bf16.msra.mxu0 %v2476
      %2633 = vmatprep.subr.bf16.mxu0 0
      %2634 = vmatpush1.bf16.msra.mxu0 %v2477
      %2635 = vmatprep.subr.bf16.mxu0 0
      %2636 = vmatpush1.bf16.msra.mxu0 %v2478
      %2637 = vmatprep.subr.bf16.mxu0 0
      %2638 = vmatpush1.bf16.msra.mxu0 %v2479
      %2639 = vmatprep.subr.bf16.mxu0 0
      %2640 = vmatpush1.bf16.msra.mxu0 0
      %2641 = vmatprep.subr.bf16.mxu0 0
      %2642 = vmatpush1.bf16.msra.mxu0 0
      %2643 = vmatprep.subr.bf16.mxu0 0
      %2644 = vmatpush1.bf16.msra.mxu0 0
      %2645 = vmatprep.subr.bf16.mxu0 0
      %2646 = vmatpush1.bf16.msra.mxu0 0
      %2647 = vmatprep.subr.bf16.mxu0 0
      %2648 = vmatpush1.bf16.msra.mxu0 0
      %2649 = vmatprep.subr.bf16.mxu0 0
      %2650 = vmatpush1.bf16.msra.mxu0 0
      %2651 = vmatprep.subr.bf16.mxu0 0
      %2652 = vmatpush1.bf16.msra.mxu0 0
      %2653 = vmatprep.subr.bf16.mxu0 0
      %2654 = vmatpush1.bf16.msra.mxu0 0
      %2655 = vmatprep.subr.bf16.mxu0 0
      %2656 = vmatpush1.bf16.msra.mxu0 0
      %2657 = vmatprep.subr.bf16.mxu0 0
      %2658 = vmatpush1.bf16.msra.mxu0 0
      %2659 = vmatprep.subr.bf16.mxu0 0
      %2660 = vmatpush1.bf16.msra.mxu0 0
      %2661 = vmatprep.subr.bf16.mxu0 0
      %2662 = vmatpush1.bf16.msra.mxu0 0
      %2663 = vmatprep.mubr.bf16.mxu0 0
      %2664 = vmatmul.mubr.bf16.gmra.mrb[0].mxu0 %v2629
      %v2665 = vpop.f32.mrb[0].mxu0
      %v2666 = vadd.f32 0.0, %v2665
      %v2667 = vpop.f32.mrb[0].mxu0
      %v2668 = vpop.f32.mrb[0].mxu0
      %v2669 = vpop.f32.mrb[0].mxu0
      %2670 = vdwg.mxu0
      %v2671 = vadd.f32 %v2627, %v2666
      %2672 = vst.msk [vmem:[#allocation3 + $0x18] sm:$0xff] %vm277, %v2671
      %v2673 = vld [vmem:[%s341 + $0x2] sm:$0xff]
      %v2674 = vpack.c.bf16 %v2673, %v2673
      %v2675 = vld [vmem:[#allocation3 + $0x20] sm:$0xff]
      %v2677 = vsel %vm277, %v2674, 0
      %2679 = vmatprep.subr.bf16.mxu0 0
      %2680 = vmatpush1.bf16.msra.mxu0 %v2476
      %2681 = vmatprep.subr.bf16.mxu0 0
      %2682 = vmatpush1.bf16.msra.mxu0 %v2477
      %2683 = vmatprep.subr.bf16.mxu0 0
      %2684 = vmatpush1.bf16.msra.mxu0 %v2478
      %2685 = vmatprep.subr.bf16.mxu0 0
      %2686 = vmatpush1.bf16.msra.mxu0 %v2479
      %2687 = vmatprep.subr.bf16.mxu0 0
      %2688 = vmatpush1.bf16.msra.mxu0 0
      %2689 = vmatprep.subr.bf16.mxu0 0
      %2690 = vmatpush1.bf16.msra.mxu0 0
      %2691 = vmatprep.subr.bf16.mxu0 0
      %2692 = vmatpush1.bf16.msra.mxu0 0
      %2693 = vmatprep.subr.bf16.mxu0 0
      %2694 = vmatpush1.bf16.msra.mxu0 0
      %2695 = vmatprep.subr.bf16.mxu0 0
      %2696 = vmatpush1.bf16.msra.mxu0 0
      %2697 = vmatprep.subr.bf16.mxu0 0
      %2698 = vmatpush1.bf16.msra.mxu0 0
      %2699 = vmatprep.subr.bf16.mxu0 0
      %2700 = vmatpush1.bf16.msra.mxu0 0
      %2701 = vmatprep.subr.bf16.mxu0 0
      %2702 = vmatpush1.bf16.msra.mxu0 0
      %2703 = vmatprep.subr.bf16.mxu0 0
      %2704 = vmatpush1.bf16.msra.mxu0 0
      %2705 = vmatprep.subr.bf16.mxu0 0
      %2706 = vmatpush1.bf16.msra.mxu0 0
      %2707 = vmatprep.subr.bf16.mxu0 0
      %2708 = vmatpush1.bf16.msra.mxu0 0
      %2709 = vmatprep.subr.bf16.mxu0 0
      %2710 = vmatpush1.bf16.msra.mxu0 0
      %2711 = vmatprep.mubr.bf16.mxu0 0
      %2712 = vmatmul.mubr.bf16.gmra.mrb[0].mxu0 %v2677
      %v2713 = vpop.f32.mrb[0].mxu0
      %v2714 = vadd.f32 0.0, %v2713
      %v2715 = vpop.f32.mrb[0].mxu0
      %v2716 = vpop.f32.mrb[0].mxu0
      %v2717 = vpop.f32.mrb[0].mxu0
      %2718 = vdwg.mxu0
      %v2719 = vadd.f32 %v2675, %v2714
      %2720 = vst.msk [vmem:[#allocation3 + $0x20] sm:$0xff] %vm277, %v2719
      %v2721 = vld [vmem:[%s347 + $0x2] sm:$0xff]
      %v2722 = vpack.c.bf16 %v2721, %v2721
      %v2723 = vld [vmem:[#allocation3 + $0x28] sm:$0xff]
      %v2725 = vsel %vm277, %v2722, 0
      %2727 = vmatprep.subr.bf16.mxu0 0
      %2728 = vmatpush1.bf16.msra.mxu0 %v2476
      %2729 = vmatprep.subr.bf16.mxu0 0
      %2730 = vmatpush1.bf16.msra.mxu0 %v2477
      %2731 = vmatprep.subr.bf16.mxu0 0
      %2732 = vmatpush1.bf16.msra.mxu0 %v2478
      %2733 = vmatprep.subr.bf16.mxu0 0
      %2734 = vmatpush1.bf16.msra.mxu0 %v2479
      %2735 = vmatprep.subr.bf16.mxu0 0
      %2736 = vmatpush1.bf16.msra.mxu0 0
      %2737 = vmatprep.subr.bf16.mxu0 0
      %2738 = vmatpush1.bf16.msra.mxu0 0
      %2739 = vmatprep.subr.bf16.mxu0 0
      %2740 = vmatpush1.bf16.msra.mxu0 0
      %2741 = vmatprep.subr.bf16.mxu0 0
      %2742 = vmatpush1.bf16.msra.mxu0 0
      %2743 = vmatprep.subr.bf16.mxu0 0
      %2744 = vmatpush1.bf16.msra.mxu0 0
      %2745 = vmatprep.subr.bf16.mxu0 0
      %2746 = vmatpush1.bf16.msra.mxu0 0
      %2747 = vmatprep.subr.bf16.mxu0 0
      %2748 = vmatpush1.bf16.msra.mxu0 0
      %2749 = vmatprep.subr.bf16.mxu0 0
      %2750 = vmatpush1.bf16.msra.mxu0 0
      %2751 = vmatprep.subr.bf16.mxu0 0
      %2752 = vmatpush1.bf16.msra.mxu0 0
      %2753 = vmatprep.subr.bf16.mxu0 0
      %2754 = vmatpush1.bf16.msra.mxu0 0
      %2755 = vmatprep.subr.bf16.mxu0 0
      %2756 = vmatpush1.bf16.msra.mxu0 0
      %2757 = vmatprep.subr.bf16.mxu0 0
      %2758 = vmatpush1.bf16.msra.mxu0 0
      %2759 = vmatprep.mubr.bf16.mxu0 0
      %2760 = vmatmul.mubr.bf16.gmra.mrb[0].mxu0 %v2725
      %v2761 = vpop.f32.mrb[0].mxu0
      %v2762 = vadd.f32 0.0, %v2761
      %v2763 = vpop.f32.mrb[0].mxu0
      %v2764 = vpop.f32.mrb[0].mxu0
      %v2765 = vpop.f32.mrb[0].mxu0
      %2766 = vdwg.mxu0
      %v2767 = vadd.f32 %v2723, %v2762
      %2768 = vst.msk [vmem:[#allocation3 + $0x28] sm:$0xff] %vm277, %v2767
      %v2769 = vld [vmem:[%s353 + $0x2] sm:$0xff]
      %v2770 = vpack.c.bf16 %v2769, %v2769
      %v2771 = vld [vmem:[#allocation3 + $0x30] sm:$0xff]
      %v2773 = vsel %vm277, %v2770, 0
      %2775 = vmatprep.subr.bf16.mxu0 0
      %2776 = vmatpush1.bf16.msra.mxu0 %v2476
      %2777 = vmatprep.subr.bf16.mxu0 0
      %2778 = vmatpush1.bf16.msra.mxu0 %v2477
      %2779 = vmatprep.subr.bf16.mxu0 0
      %2780 = vmatpush1.bf16.msra.mxu0 %v2478
      %2781 = vmatprep.subr.bf16.mxu0 0
      %2782 = vmatpush1.bf16.msra.mxu0 %v2479
      %2783 = vmatprep.subr.bf16.mxu0 0
      %2784 = vmatpush1.bf16.msra.mxu0 0
      %2785 = vmatprep.subr.bf16.mxu0 0
      %2786 = vmatpush1.bf16.msra.mxu0 0
      %2787 = vmatprep.subr.bf16.mxu0 0
      %2788 = vmatpush1.bf16.msra.mxu0 0
      %2789 = vmatprep.subr.bf16.mxu0 0
      %2790 = vmatpush1.bf16.msra.mxu0 0
      %2791 = vmatprep.subr.bf16.mxu0 0
      %2792 = vmatpush1.bf16.msra.mxu0 0
      %2793 = vmatprep.subr.bf16.mxu0 0
      %2794 = vmatpush1.bf16.msra.mxu0 0
      %2795 = vmatprep.subr.bf16.mxu0 0
      %2796 = vmatpush1.bf16.msra.mxu0 0
      %2797 = vmatprep.subr.bf16.mxu0 0
      %2798 = vmatpush1.bf16.msra.mxu0 0
      %2799 = vmatprep.subr.bf16.mxu0 0
      %2800 = vmatpush1.bf16.msra.mxu0 0
      %2801 = vmatprep.subr.bf16.mxu0 0
      %2802 = vmatpush1.bf16.msra.mxu0 0
      %2803 = vmatprep.subr.bf16.mxu0 0
      %2804 = vmatpush1.bf16.msra.mxu0 0
      %2805 = vmatprep.subr.bf16.mxu0 0
      %2806 = vmatpush1.bf16.msra.mxu0 0
      %2807 = vmatprep.mubr.bf16.mxu0 0
      %2808 = vmatmul.mubr.bf16.gmra.mrb[0].mxu0 %v2773
      %v2809 = vpop.f32.mrb[0].mxu0
      %v2810 = vadd.f32 0.0, %v2809
      %v2811 = vpop.f32.mrb[0].mxu0
      %v2812 = vpop.f32.mrb[0].mxu0
      %v2813 = vpop.f32.mrb[0].mxu0
      %2814 = vdwg.mxu0
      %v2815 = vadd.f32 %v2771, %v2810
      %2816 = vst.msk [vmem:[#allocation3 + $0x30] sm:$0xff] %vm277, %v2815
      %v2817 = vld [vmem:[%s359 + $0x2] sm:$0xff]
      %v2818 = vpack.c.bf16 %v2817, %v2817
      %v2819 = vld [vmem:[#allocation3 + $0x38] sm:$0xff]
      %v2821 = vsel %vm277, %v2818, 0
      %2823 = vmatprep.subr.bf16.mxu0 0
      %2824 = vmatpush1.bf16.msra.mxu0 %v2476
      %2825 = vmatprep.subr.bf16.mxu0 0
      %2826 = vmatpush1.bf16.msra.mxu0 %v2477
      %2827 = vmatprep.subr.bf16.mxu0 0
      %2828 = vmatpush1.bf16.msra.mxu0 %v2478
      %2829 = vmatprep.subr.bf16.mxu0 0
      %2830 = vmatpush1.bf16.msra.mxu0 %v2479
      %2831 = vmatprep.subr.bf16.mxu0 0
      %2832 = vmatpush1.bf16.msra.mxu0 0
      %2833 = vmatprep.subr.bf16.mxu0 0
      %2834 = vmatpush1.bf16.msra.mxu0 0
      %2835 = vmatprep.subr.bf16.mxu0 0
      %2836 = vmatpush1.bf16.msra.mxu0 0
      %2837 = vmatprep.subr.bf16.mxu0 0
      %2838 = vmatpush1.bf16.msra.mxu0 0
      %2839 = vmatprep.subr.bf16.mxu0 0
      %2840 = vmatpush1.bf16.msra.mxu0 0
      %2841 = vmatprep.subr.bf16.mxu0 0
      %2842 = vmatpush1.bf16.msra.mxu0 0
      %2843 = vmatprep.subr.bf16.mxu0 0
      %2844 = vmatpush1.bf16.msra.mxu0 0
      %2845 = vmatprep.subr.bf16.mxu0 0
      %2846 = vmatpush1.bf16.msra.mxu0 0
      %2847 = vmatprep.subr.bf16.mxu0 0
      %2848 = vmatpush1.bf16.msra.mxu0 0
      %2849 = vmatprep.subr.bf16.mxu0 0
      %2850 = vmatpush1.bf16.msra.mxu0 0
      %2851 = vmatprep.subr.bf16.mxu0 0
      %2852 = vmatpush1.bf16.msra.mxu0 0
      %2853 = vmatprep.subr.bf16.mxu0 0
      %2854 = vmatpush1.bf16.msra.mxu0 0
      %2855 = vmatprep.mubr.bf16.mxu0 0
      %2856 = vmatmul.mubr.bf16.gmra.mrb[0].mxu0 %v2821
      %v2857 = vpop.f32.mrb[0].mxu0
      %v2858 = vadd.f32 0.0, %v2857
      %v2859 = vpop.f32.mrb[0].mxu0
      %v2860 = vpop.f32.mrb[0].mxu0
      %v2861 = vpop.f32.mrb[0].mxu0
      %2862 = vdwg.mxu0
      %v2863 = vadd.f32 %v2819, %v2858
      %2864 = vst.msk [vmem:[#allocation3 + $0x38] sm:$0xff] %vm277, %v2863
      %v2865 = vld [vmem:[%s3 + $0xc0] sm:$0xf]
      %v2866 = vld [vmem:[%s3 + $0xc4] sm:$0xf]
      %v2867 = vld [vmem:[%s3 + $0xc8] sm:$0xf]
      %v2868 = vld [vmem:[%s3 + $0xcc] sm:$0xf]
      %v2869 = vld [vmem:[%s3 + $0xd0] sm:$0xf]
      %v2870 = vld [vmem:[%s3 + $0xd4] sm:$0xf]
      %v2871 = vld [vmem:[%s3 + $0xd8] sm:$0xf]
      %v2872 = vld [vmem:[%s3 + $0xdc] sm:$0xf]
      %v2873 = vld [vmem:[%s323] sm:$0xff]
      %v2874 = vpack.c.bf16 %v2873, %v2873
      %v2875 = vld [vmem:[#allocation3] sm:$0xff]
      %v2884 = vunpack.c.l.b16 %v2865
      %v2885 = vunpack.c.l.b16 %v2866
      %v2886 = vunpack.c.l.b16 %v2867
      %v2887 = vunpack.c.l.b16 %v2868
      %v2888 = vunpack.c.l.b16 %v2869
      %v2889 = vunpack.c.l.b16 %v2870
      %v2890 = vunpack.c.l.b16 %v2871
      %v2891 = vunpack.c.l.b16 %v2872
      %v2892 = vpack.c.b16 %v2885, %v2884
      %v2893 = vpack.c.b16 %v2887, %v2886
      %v2894 = vpack.c.b16 %v2889, %v2888
      %v2895 = vpack.c.b16 %v2891, %v2890
      %v2901 = vsel %vm277, %v2874, 0
      %2903 = vmatprep.subr.bf16.mxu0 0
      %2904 = vmatpush1.bf16.msra.mxu0 %v2892
      %2905 = vmatprep.subr.bf16.mxu0 0
      %2906 = vmatpush1.bf16.msra.mxu0 %v2893
      %2907 = vmatprep.subr.bf16.mxu0 0
      %2908 = vmatpush1.bf16.msra.mxu0 %v2894
      %2909 = vmatprep.subr.bf16.mxu0 0
      %2910 = vmatpush1.bf16.msra.mxu0 %v2895
      %2911 = vmatprep.subr.bf16.mxu0 0
      %2912 = vmatpush1.bf16.msra.mxu0 0
      %2913 = vmatprep.subr.bf16.mxu0 0
      %2914 = vmatpush1.bf16.msra.mxu0 0
      %2915 = vmatprep.subr.bf16.mxu0 0
      %2916 = vmatpush1.bf16.msra.mxu0 0
      %2917 = vmatprep.subr.bf16.mxu0 0
      %2918 = vmatpush1.bf16.msra.mxu0 0
      %2919 = vmatprep.subr.bf16.mxu0 0
      %2920 = vmatpush1.bf16.msra.mxu0 0
      %2921 = vmatprep.subr.bf16.mxu0 0
      %2922 = vmatpush1.bf16.msra.mxu0 0
      %2923 = vmatprep.subr.bf16.mxu0 0
      %2924 = vmatpush1.bf16.msra.mxu0 0
      %2925 = vmatprep.subr.bf16.mxu0 0
      %2926 = vmatpush1.bf16.msra.mxu0 0
      %2927 = vmatprep.subr.bf16.mxu0 0
      %2928 = vmatpush1.bf16.msra.mxu0 0
      %2929 = vmatprep.subr.bf16.mxu0 0
      %2930 = vmatpush1.bf16.msra.mxu0 0
      %2931 = vmatprep.subr.bf16.mxu0 0
      %2932 = vmatpush1.bf16.msra.mxu0 0
      %2933 = vmatprep.subr.bf16.mxu0 0
      %2934 = vmatpush1.bf16.msra.mxu0 0
      %2935 = vmatprep.mubr.bf16.mxu0 0
      %2936 = vmatmul.mubr.bf16.gmra.mrb[0].mxu0 %v2901
      %v2937 = vpop.f32.mrb[0].mxu0
      %v2938 = vadd.f32 0.0, %v2937
      %v2939 = vpop.f32.mrb[0].mxu0
      %v2940 = vpop.f32.mrb[0].mxu0
      %v2941 = vpop.f32.mrb[0].mxu0
      %2942 = vdwg.mxu0
      %v2943 = vadd.f32 %v2875, %v2938
      %2944 = vst.msk [vmem:[#allocation3] sm:$0xff] %vm277, %v2943
      %v2945 = vld [vmem:[%s329] sm:$0xff]
      %v2946 = vpack.c.bf16 %v2945, %v2945
      %v2947 = vld [vmem:[#allocation3 + $0x8] sm:$0xff]
      %v2949 = vsel %vm277, %v2946, 0
      %2951 = vmatprep.subr.bf16.mxu0 0
      %2952 = vmatpush1.bf16.msra.mxu0 %v2892
      %2953 = vmatprep.subr.bf16.mxu0 0
      %2954 = vmatpush1.bf16.msra.mxu0 %v2893
      %2955 = vmatprep.subr.bf16.mxu0 0
      %2956 = vmatpush1.bf16.msra.mxu0 %v2894
      %2957 = vmatprep.subr.bf16.mxu0 0
      %2958 = vmatpush1.bf16.msra.mxu0 %v2895
      %2959 = vmatprep.subr.bf16.mxu0 0
      %2960 = vmatpush1.bf16.msra.mxu0 0
      %2961 = vmatprep.subr.bf16.mxu0 0
      %2962 = vmatpush1.bf16.msra.mxu0 0
      %2963 = vmatprep.subr.bf16.mxu0 0
      %2964 = vmatpush1.bf16.msra.mxu0 0
      %2965 = vmatprep.subr.bf16.mxu0 0
      %2966 = vmatpush1.bf16.msra.mxu0 0
      %2967 = vmatprep.subr.bf16.mxu0 0
      %2968 = vmatpush1.bf16.msra.mxu0 0
      %2969 = vmatprep.subr.bf16.mxu0 0
      %2970 = vmatpush1.bf16.msra.mxu0 0
      %2971 = vmatprep.subr.bf16.mxu0 0
      %2972 = vmatpush1.bf16.msra.mxu0 0
      %2973 = vmatprep.subr.bf16.mxu0 0
      %2974 = vmatpush1.bf16.msra.mxu0 0
      %2975 = vmatprep.subr.bf16.mxu0 0
      %2976 = vmatpush1.bf16.msra.mxu0 0
      %2977 = vmatprep.subr.bf16.mxu0 0
      %2978 = vmatpush1.bf16.msra.mxu0 0
      %2979 = vmatprep.subr.bf16.mxu0 0
      %2980 = vmatpush1.bf16.msra.mxu0 0
      %2981 = vmatprep.subr.bf16.mxu0 0
      %2982 = vmatpush1.bf16.msra.mxu0 0
      %2983 = vmatprep.mubr.bf16.mxu0 0
      %2984 = vmatmul.mubr.bf16.gmra.mrb[0].mxu0 %v2949
      %v2985 = vpop.f32.mrb[0].mxu0
      %v2986 = vadd.f32 0.0, %v2985
      %v2987 = vpop.f32.mrb[0].mxu0
      %v2988 = vpop.f32.mrb[0].mxu0
      %v2989 = vpop.f32.mrb[0].mxu0
      %2990 = vdwg.mxu0
      %v2991 = vadd.f32 %v2947, %v2986
      %2992 = vst.msk [vmem:[#allocation3 + $0x8] sm:$0xff] %vm277, %v2991
      %v2993 = vld [vmem:[%s335] sm:$0xff]
      %v2994 = vpack.c.bf16 %v2993, %v2993
      %v2995 = vld [vmem:[#allocation3 + $0x10] sm:$0xff]
      %v2997 = vsel %vm277, %v2994, 0
      %2999 = vmatprep.subr.bf16.mxu0 0
      %3000 = vmatpush1.bf16.msra.mxu0 %v2892
      %3001 = vmatprep.subr.bf16.mxu0 0
      %3002 = vmatpush1.bf16.msra.mxu0 %v2893
      %3003 = vmatprep.subr.bf16.mxu0 0
      %3004 = vmatpush1.bf16.msra.mxu0 %v2894
      %3005 = vmatprep.subr.bf16.mxu0 0
      %3006 = vmatpush1.bf16.msra.mxu0 %v2895
      %3007 = vmatprep.subr.bf16.mxu0 0
      %3008 = vmatpush1.bf16.msra.mxu0 0
      %3009 = vmatprep.subr.bf16.mxu0 0
      %3010 = vmatpush1.bf16.msra.mxu0 0
      %3011 = vmatprep.subr.bf16.mxu0 0
      %3012 = vmatpush1.bf16.msra.mxu0 0
      %3013 = vmatprep.subr.bf16.mxu0 0
      %3014 = vmatpush1.bf16.msra.mxu0 0
      %3015 = vmatprep.subr.bf16.mxu0 0
      %3016 = vmatpush1.bf16.msra.mxu0 0
      %3017 = vmatprep.subr.bf16.mxu0 0
      %3018 = vmatpush1.bf16.msra.mxu0 0
      %3019 = vmatprep.subr.bf16.mxu0 0
      %3020 = vmatpush1.bf16.msra.mxu0 0
      %3021 = vmatprep.subr.bf16.mxu0 0
      %3022 = vmatpush1.bf16.msra.mxu0 0
      %3023 = vmatprep.subr.bf16.mxu0 0
      %3024 = vmatpush1.bf16.msra.mxu0 0
      %3025 = vmatprep.subr.bf16.mxu0 0
      %3026 = vmatpush1.bf16.msra.mxu0 0
      %3027 = vmatprep.subr.bf16.mxu0 0
      %3028 = vmatpush1.bf16.msra.mxu0 0
      %3029 = vmatprep.subr.bf16.mxu0 0
      %3030 = vmatpush1.bf16.msra.mxu0 0
      %3031 = vmatprep.mubr.bf16.mxu0 0
      %3032 = vmatmul.mubr.bf16.gmra.mrb[0].mxu0 %v2997
      %v3033 = vpop.f32.mrb[0].mxu0
      %v3034 = vadd.f32 0.0, %v3033
      %v3035 = vpop.f32.mrb[0].mxu0
      %v3036 = vpop.f32.mrb[0].mxu0
      %v3037 = vpop.f32.mrb[0].mxu0
      %3038 = vdwg.mxu0
      %v3039 = vadd.f32 %v2995, %v3034
      %3040 = vst.msk [vmem:[#allocation3 + $0x10] sm:$0xff] %vm277, %v3039
      %v3041 = vld [vmem:[%s341] sm:$0xff]
      %v3042 = vpack.c.bf16 %v3041, %v3041
      %v3043 = vld [vmem:[#allocation3 + $0x18] sm:$0xff]
      %v3045 = vsel %vm277, %v3042, 0
      %3047 = vmatprep.subr.bf16.mxu0 0
      %3048 = vmatpush1.bf16.msra.mxu0 %v2892
      %3049 = vmatprep.subr.bf16.mxu0 0
      %3050 = vmatpush1.bf16.msra.mxu0 %v2893
      %3051 = vmatprep.subr.bf16.mxu0 0
      %3052 = vmatpush1.bf16.msra.mxu0 %v2894
      %3053 = vmatprep.subr.bf16.mxu0 0
      %3054 = vmatpush1.bf16.msra.mxu0 %v2895
      %3055 = vmatprep.subr.bf16.mxu0 0
      %3056 = vmatpush1.bf16.msra.mxu0 0
      %3057 = vmatprep.subr.bf16.mxu0 0
      %3058 = vmatpush1.bf16.msra.mxu0 0
      %3059 = vmatprep.subr.bf16.mxu0 0
      %3060 = vmatpush1.bf16.msra.mxu0 0
      %3061 = vmatprep.subr.bf16.mxu0 0
      %3062 = vmatpush1.bf16.msra.mxu0 0
      %3063 = vmatprep.subr.bf16.mxu0 0
      %3064 = vmatpush1.bf16.msra.mxu0 0
      %3065 = vmatprep.subr.bf16.mxu0 0
      %3066 = vmatpush1.bf16.msra.mxu0 0
      %3067 = vmatprep.subr.bf16.mxu0 0
      %3068 = vmatpush1.bf16.msra.mxu0 0
      %3069 = vmatprep.subr.bf16.mxu0 0
      %3070 = vmatpush1.bf16.msra.mxu0 0
      %3071 = vmatprep.subr.bf16.mxu0 0
      %3072 = vmatpush1.bf16.msra.mxu0 0
      %3073 = vmatprep.subr.bf16.mxu0 0
      %3074 = vmatpush1.bf16.msra.mxu0 0
      %3075 = vmatprep.subr.bf16.mxu0 0
      %3076 = vmatpush1.bf16.msra.mxu0 0
      %3077 = vmatprep.subr.bf16.mxu0 0
      %3078 = vmatpush1.bf16.msra.mxu0 0
      %3079 = vmatprep.mubr.bf16.mxu0 0
      %3080 = vmatmul.mubr.bf16.gmra.mrb[0].mxu0 %v3045
      %v3081 = vpop.f32.mrb[0].mxu0
      %v3082 = vadd.f32 0.0, %v3081
      %v3083 = vpop.f32.mrb[0].mxu0
      %v3084 = vpop.f32.mrb[0].mxu0
      %v3085 = vpop.f32.mrb[0].mxu0
      %3086 = vdwg.mxu0
      %v3087 = vadd.f32 %v3043, %v3082
      %3088 = vst.msk [vmem:[#allocation3 + $0x18] sm:$0xff] %vm277, %v3087
      %v3089 = vld [vmem:[%s347] sm:$0xff]
      %v3090 = vpack.c.bf16 %v3089, %v3089
      %v3091 = vld [vmem:[#allocation3 + $0x20] sm:$0xff]
      %v3093 = vsel %vm277, %v3090, 0
      %3095 = vmatprep.subr.bf16.mxu0 0
      %3096 = vmatpush1.bf16.msra.mxu0 %v2892
      %3097 = vmatprep.subr.bf16.mxu0 0
      %3098 = vmatpush1.bf16.msra.mxu0 %v2893
      %3099 = vmatprep.subr.bf16.mxu0 0
      %3100 = vmatpush1.bf16.msra.mxu0 %v2894
      %3101 = vmatprep.subr.bf16.mxu0 0
      %3102 = vmatpush1.bf16.msra.mxu0 %v2895
      %3103 = vmatprep.subr.bf16.mxu0 0
      %3104 = vmatpush1.bf16.msra.mxu0 0
      %3105 = vmatprep.subr.bf16.mxu0 0
      %3106 = vmatpush1.bf16.msra.mxu0 0
      %3107 = vmatprep.subr.bf16.mxu0 0
      %3108 = vmatpush1.bf16.msra.mxu0 0
      %3109 = vmatprep.subr.bf16.mxu0 0
      %3110 = vmatpush1.bf16.msra.mxu0 0
      %3111 = vmatprep.subr.bf16.mxu0 0
      %3112 = vmatpush1.bf16.msra.mxu0 0
      %3113 = vmatprep.subr.bf16.mxu0 0
      %3114 = vmatpush1.bf16.msra.mxu0 0
      %3115 = vmatprep.subr.bf16.mxu0 0
      %3116 = vmatpush1.bf16.msra.mxu0 0
      %3117 = vmatprep.subr.bf16.mxu0 0
      %3118 = vmatpush1.bf16.msra.mxu0 0
      %3119 = vmatprep.subr.bf16.mxu0 0
      %3120 = vmatpush1.bf16.msra.mxu0 0
      %3121 = vmatprep.subr.bf16.mxu0 0
      %3122 = vmatpush1.bf16.msra.mxu0 0
      %3123 = vmatprep.subr.bf16.mxu0 0
      %3124 = vmatpush1.bf16.msra.mxu0 0
      %3125 = vmatprep.subr.bf16.mxu0 0
      %3126 = vmatpush1.bf16.msra.mxu0 0
      %3127 = vmatprep.mubr.bf16.mxu0 0
      %3128 = vmatmul.mubr.bf16.gmra.mrb[0].mxu0 %v3093
      %v3129 = vpop.f32.mrb[0].mxu0
      %v3130 = vadd.f32 0.0, %v3129
      %v3131 = vpop.f32.mrb[0].mxu0
      %v3132 = vpop.f32.mrb[0].mxu0
      %v3133 = vpop.f32.mrb[0].mxu0
      %3134 = vdwg.mxu0
      %v3135 = vadd.f32 %v3091, %v3130
      %3136 = vst.msk [vmem:[#allocation3 + $0x20] sm:$0xff] %vm277, %v3135
      %v3137 = vld [vmem:[%s353] sm:$0xff]
      %v3138 = vpack.c.bf16 %v3137, %v3137
      %v3139 = vld [vmem:[#allocation3 + $0x28] sm:$0xff]
      %v3141 = vsel %vm277, %v3138, 0
      %3143 = vmatprep.subr.bf16.mxu0 0
      %3144 = vmatpush1.bf16.msra.mxu0 %v2892
      %3145 = vmatprep.subr.bf16.mxu0 0
      %3146 = vmatpush1.bf16.msra.mxu0 %v2893
      %3147 = vmatprep.subr.bf16.mxu0 0
      %3148 = vmatpush1.bf16.msra.mxu0 %v2894
      %3149 = vmatprep.subr.bf16.mxu0 0
      %3150 = vmatpush1.bf16.msra.mxu0 %v2895
      %3151 = vmatprep.subr.bf16.mxu0 0
      %3152 = vmatpush1.bf16.msra.mxu0 0
      %3153 = vmatprep.subr.bf16.mxu0 0
      %3154 = vmatpush1.bf16.msra.mxu0 0
      %3155 = vmatprep.subr.bf16.mxu0 0
      %3156 = vmatpush1.bf16.msra.mxu0 0
      %3157 = vmatprep.subr.bf16.mxu0 0
      %3158 = vmatpush1.bf16.msra.mxu0 0
      %3159 = vmatprep.subr.bf16.mxu0 0
      %3160 = vmatpush1.bf16.msra.mxu0 0
      %3161 = vmatprep.subr.bf16.mxu0 0
      %3162 = vmatpush1.bf16.msra.mxu0 0
      %3163 = vmatprep.subr.bf16.mxu0 0
      %3164 = vmatpush1.bf16.msra.mxu0 0
      %3165 = vmatprep.subr.bf16.mxu0 0
      %3166 = vmatpush1.bf16.msra.mxu0 0
      %3167 = vmatprep.subr.bf16.mxu0 0
      %3168 = vmatpush1.bf16.msra.mxu0 0
      %3169 = vmatprep.subr.bf16.mxu0 0
      %3170 = vmatpush1.bf16.msra.mxu0 0
      %3171 = vmatprep.subr.bf16.mxu0 0
      %3172 = vmatpush1.bf16.msra.mxu0 0
      %3173 = vmatprep.subr.bf16.mxu0 0
      %3174 = vmatpush1.bf16.msra.mxu0 0
      %3175 = vmatprep.mubr.bf16.mxu0 0
      %3176 = vmatmul.mubr.bf16.gmra.mrb[0].mxu0 %v3141
      %v3177 = vpop.f32.mrb[0].mxu0
      %v3178 = vadd.f32 0.0, %v3177
      %v3179 = vpop.f32.mrb[0].mxu0
      %v3180 = vpop.f32.mrb[0].mxu0
      %v3181 = vpop.f32.mrb[0].mxu0
      %3182 = vdwg.mxu0
      %v3183 = vadd.f32 %v3139, %v3178
      %3184 = vst.msk [vmem:[#allocation3 + $0x28] sm:$0xff] %vm277, %v3183
      %v3185 = vld [vmem:[%s359] sm:$0xff]
      %v3186 = vpack.c.bf16 %v3185, %v3185
      %v3187 = vld [vmem:[#allocation3 + $0x30] sm:$0xff]
      %v3189 = vsel %vm277, %v3186, 0
      %3191 = vmatprep.subr.bf16.mxu0 0
      %3192 = vmatpush1.bf16.msra.mxu0 %v2892
      %3193 = vmatprep.subr.bf16.mxu0 0
      %3194 = vmatpush1.bf16.msra.mxu0 %v2893
      %3195 = vmatprep.subr.bf16.mxu0 0
      %3196 = vmatpush1.bf16.msra.mxu0 %v2894
      %3197 = vmatprep.subr.bf16.mxu0 0
      %3198 = vmatpush1.bf16.msra.mxu0 %v2895
      %3199 = vmatprep.subr.bf16.mxu0 0
      %3200 = vmatpush1.bf16.msra.mxu0 0
      %3201 = vmatprep.subr.bf16.mxu0 0
      %3202 = vmatpush1.bf16.msra.mxu0 0
      %3203 = vmatprep.subr.bf16.mxu0 0
      %3204 = vmatpush1.bf16.msra.mxu0 0
      %3205 = vmatprep.subr.bf16.mxu0 0
      %3206 = vmatpush1.bf16.msra.mxu0 0
      %3207 = vmatprep.subr.bf16.mxu0 0
      %3208 = vmatpush1.bf16.msra.mxu0 0
      %3209 = vmatprep.subr.bf16.mxu0 0
      %3210 = vmatpush1.bf16.msra.mxu0 0
      %3211 = vmatprep.subr.bf16.mxu0 0
      %3212 = vmatpush1.bf16.msra.mxu0 0
      %3213 = vmatprep.subr.bf16.mxu0 0
      %3214 = vmatpush1.bf16.msra.mxu0 0
      %3215 = vmatprep.subr.bf16.mxu0 0
      %3216 = vmatpush1.bf16.msra.mxu0 0
      %3217 = vmatprep.subr.bf16.mxu0 0
      %3218 = vmatpush1.bf16.msra.mxu0 0
      %3219 = vmatprep.subr.bf16.mxu0 0
      %3220 = vmatpush1.bf16.msra.mxu0 0
      %3221 = vmatprep.subr.bf16.mxu0 0
      %3222 = vmatpush1.bf16.msra.mxu0 0
      %3223 = vmatprep.mubr.bf16.mxu0 0
      %3224 = vmatmul.mubr.bf16.gmra.mrb[0].mxu0 %v3189
      %v3225 = vpop.f32.mrb[0].mxu0
      %v3226 = vadd.f32 0.0, %v3225
      %v3227 = vpop.f32.mrb[0].mxu0
      %v3228 = vpop.f32.mrb[0].mxu0
      %v3229 = vpop.f32.mrb[0].mxu0
      %3230 = vdwg.mxu0
      %v3231 = vadd.f32 %v3187, %v3226
      %3232 = vst.msk [vmem:[#allocation3 + $0x30] sm:$0xff] %vm277, %v3231
      %s3233 = scalar_lea.vmem [#allocation2], 144
      %v3234 = vld [vmem:[%s3233] sm:$0xff]
      %v3235 = vpack.c.bf16 %v3234, %v3234
      %v3236 = vld [vmem:[#allocation3 + $0x38] sm:$0xff]
      %v3238 = vsel %vm277, %v3235, 0
      %3240 = vmatprep.subr.bf16.mxu0 0
      %3241 = vmatpush1.bf16.msra.mxu0 %v2892
      %3242 = vmatprep.subr.bf16.mxu0 0
      %3243 = vmatpush1.bf16.msra.mxu0 %v2893
      %3244 = vmatprep.subr.bf16.mxu0 0
      %3245 = vmatpush1.bf16.msra.mxu0 %v2894
      %3246 = vmatprep.subr.bf16.mxu0 0
      %3247 = vmatpush1.bf16.msra.mxu0 %v2895
      %3248 = vmatprep.subr.bf16.mxu0 0
      %3249 = vmatpush1.bf16.msra.mxu0 0
      %3250 = vmatprep.subr.bf16.mxu0 0
      %3251 = vmatpush1.bf16.msra.mxu0 0
      %3252 = vmatprep.subr.bf16.mxu0 0
      %3253 = vmatpush1.bf16.msra.mxu0 0
      %3254 = vmatprep.subr.bf16.mxu0 0
      %3255 = vmatpush1.bf16.msra.mxu0 0
      %3256 = vmatprep.subr.bf16.mxu0 0
      %3257 = vmatpush1.bf16.msra.mxu0 0
      %3258 = vmatprep.subr.bf16.mxu0 0
      %3259 = vmatpush1.bf16.msra.mxu0 0
      %3260 = vmatprep.subr.bf16.mxu0 0
      %3261 = vmatpush1.bf16.msra.mxu0 0
      %3262 = vmatprep.subr.bf16.mxu0 0
      %3263 = vmatpush1.bf16.msra.mxu0 0
      %3264 = vmatprep.subr.bf16.mxu0 0
      %3265 = vmatpush1.bf16.msra.mxu0 0
      %3266 = vmatprep.subr.bf16.mxu0 0
      %3267 = vmatpush1.bf16.msra.mxu0 0
      %3268 = vmatprep.subr.bf16.mxu0 0
      %3269 = vmatpush1.bf16.msra.mxu0 0
      %3270 = vmatprep.subr.bf16.mxu0 0
      %3271 = vmatpush1.bf16.msra.mxu0 0
      %3272 = vmatprep.mubr.bf16.mxu0 0
      %3273 = vmatmul.mubr.bf16.gmra.mrb[0].mxu0 %v3238
      %v3274 = vpop.f32.mrb[0].mxu0
      %v3275 = vadd.f32 0.0, %v3274
      %v3276 = vpop.f32.mrb[0].mxu0
      %v3277 = vpop.f32.mrb[0].mxu0
      %v3278 = vpop.f32.mrb[0].mxu0
      %3279 = vdwg.mxu0
      %v3280 = vadd.f32 %v3236, %v3275
      %3281 = vst.msk [vmem:[#allocation3 + $0x38] sm:$0xff] %vm277, %v3280
      %v3282 = vld [vmem:[%s3 + $0xe0] sm:$0xf]
      %v3283 = vld [vmem:[%s3 + $0xe4] sm:$0xf]
      %v3284 = vld [vmem:[%s3 + $0xe8] sm:$0xf]
      %v3285 = vld [vmem:[%s3 + $0xec] sm:$0xf]
      %v3286 = vld [vmem:[%s3 + $0xf0] sm:$0xf]
      %v3287 = vld [vmem:[%s3 + $0xf4] sm:$0xf]
      %v3288 = vld [vmem:[%s3 + $0xf8] sm:$0xf]
      %v3289 = vld [vmem:[%s3 + $0xfc] sm:$0xf]
      %v3290 = vld [vmem:[%s323 + $0x1] sm:$0xff]
      %v3291 = vpack.c.bf16 %v3290, %v3290
      %v3292 = vld [vmem:[#allocation3] sm:$0xff]
      %v3301 = vunpack.c.l.b16 %v3282
      %v3302 = vunpack.c.l.b16 %v3283
      %v3303 = vunpack.c.l.b16 %v3284
      %v3304 = vunpack.c.l.b16 %v3285
      %v3305 = vunpack.c.l.b16 %v3286
      %v3306 = vunpack.c.l.b16 %v3287
      %v3307 = vunpack.c.l.b16 %v3288
      %v3308 = vunpack.c.l.b16 %v3289
      %v3309 = vpack.c.b16 %v3302, %v3301
      %v3310 = vpack.c.b16 %v3304, %v3303
      %v3311 = vpack.c.b16 %v3306, %v3305
      %v3312 = vpack.c.b16 %v3308, %v3307
      %v3318 = vsel %vm277, %v3291, 0
      %3320 = vmatprep.subr.bf16.mxu0 0
      %3321 = vmatpush1.bf16.msra.mxu0 %v3309
      %3322 = vmatprep.subr.bf16.mxu0 0
      %3323 = vmatpush1.bf16.msra.mxu0 %v3310
      %3324 = vmatprep.subr.bf16.mxu0 0
      %3325 = vmatpush1.bf16.msra.mxu0 %v3311
      %3326 = vmatprep.subr.bf16.mxu0 0
      %3327 = vmatpush1.bf16.msra.mxu0 %v3312
      %3328 = vmatprep.subr.bf16.mxu0 0
      %3329 = vmatpush1.bf16.msra.mxu0 0
      %3330 = vmatprep.subr.bf16.mxu0 0
      %3331 = vmatpush1.bf16.msra.mxu0 0
      %3332 = vmatprep.subr.bf16.mxu0 0
      %3333 = vmatpush1.bf16.msra.mxu0 0
      %3334 = vmatprep.subr.bf16.mxu0 0
      %3335 = vmatpush1.bf16.msra.mxu0 0
      %3336 = vmatprep.subr.bf16.mxu0 0
      %3337 = vmatpush1.bf16.msra.mxu0 0
      %3338 = vmatprep.subr.bf16.mxu0 0
      %3339 = vmatpush1.bf16.msra.mxu0 0
      %3340 = vmatprep.subr.bf16.mxu0 0
      %3341 = vmatpush1.bf16.msra.mxu0 0
      %3342 = vmatprep.subr.bf16.mxu0 0
      %3343 = vmatpush1.bf16.msra.mxu0 0
      %3344 = vmatprep.subr.bf16.mxu0 0
      %3345 = vmatpush1.bf16.msra.mxu0 0
      %3346 = vmatprep.subr.bf16.mxu0 0
      %3347 = vmatpush1.bf16.msra.mxu0 0
      %3348 = vmatprep.subr.bf16.mxu0 0
      %3349 = vmatpush1.bf16.msra.mxu0 0
      %3350 = vmatprep.subr.bf16.mxu0 0
      %3351 = vmatpush1.bf16.msra.mxu0 0
      %3352 = vmatprep.mubr.bf16.mxu0 0
      %3353 = vmatmul.mubr.bf16.gmra.mrb[0].mxu0 %v3318
      %v3354 = vpop.f32.mrb[0].mxu0
      %v3355 = vadd.f32 0.0, %v3354
      %v3356 = vpop.f32.mrb[0].mxu0
      %v3357 = vpop.f32.mrb[0].mxu0
      %v3358 = vpop.f32.mrb[0].mxu0
      %3359 = vdwg.mxu0
      %v3360 = vadd.f32 %v3292, %v3355
      %3361 = vst.msk [vmem:[#allocation3] sm:$0xff] %vm277, %v3360
      %v3362 = vld [vmem:[%s329 + $0x1] sm:$0xff]
      %v3363 = vpack.c.bf16 %v3362, %v3362
      %v3364 = vld [vmem:[#allocation3 + $0x8] sm:$0xff]
      %v3366 = vsel %vm277, %v3363, 0
      %3368 = vmatprep.subr.bf16.mxu0 0
      %3369 = vmatpush1.bf16.msra.mxu0 %v3309
      %3370 = vmatprep.subr.bf16.mxu0 0
      %3371 = vmatpush1.bf16.msra.mxu0 %v3310
      %3372 = vmatprep.subr.bf16.mxu0 0
      %3373 = vmatpush1.bf16.msra.mxu0 %v3311
      %3374 = vmatprep.subr.bf16.mxu0 0
      %3375 = vmatpush1.bf16.msra.mxu0 %v3312
      %3376 = vmatprep.subr.bf16.mxu0 0
      %3377 = vmatpush1.bf16.msra.mxu0 0
      %3378 = vmatprep.subr.bf16.mxu0 0
      %3379 = vmatpush1.bf16.msra.mxu0 0
      %3380 = vmatprep.subr.bf16.mxu0 0
      %3381 = vmatpush1.bf16.msra.mxu0 0
      %3382 = vmatprep.subr.bf16.mxu0 0
      %3383 = vmatpush1.bf16.msra.mxu0 0
      %3384 = vmatprep.subr.bf16.mxu0 0
      %3385 = vmatpush1.bf16.msra.mxu0 0
      %3386 = vmatprep.subr.bf16.mxu0 0
      %3387 = vmatpush1.bf16.msra.mxu0 0
      %3388 = vmatprep.subr.bf16.mxu0 0
      %3389 = vmatpush1.bf16.msra.mxu0 0
      %3390 = vmatprep.subr.bf16.mxu0 0
      %3391 = vmatpush1.bf16.msra.mxu0 0
      %3392 = vmatprep.subr.bf16.mxu0 0
      %3393 = vmatpush1.bf16.msra.mxu0 0
      %3394 = vmatprep.subr.bf16.mxu0 0
      %3395 = vmatpush1.bf16.msra.mxu0 0
      %3396 = vmatprep.subr.bf16.mxu0 0
      %3397 = vmatpush1.bf16.msra.mxu0 0
      %3398 = vmatprep.subr.bf16.mxu0 0
      %3399 = vmatpush1.bf16.msra.mxu0 0
      %3400 = vmatprep.mubr.bf16.mxu0 0
      %3401 = vmatmul.mubr.bf16.gmra.mrb[0].mxu0 %v3366
      %v3402 = vpop.f32.mrb[0].mxu0
      %v3403 = vadd.f32 0.0, %v3402
      %v3404 = vpop.f32.mrb[0].mxu0
      %v3405 = vpop.f32.mrb[0].mxu0
      %v3406 = vpop.f32.mrb[0].mxu0
      %3407 = vdwg.mxu0
      %v3408 = vadd.f32 %v3364, %v3403
      %3409 = vst.msk [vmem:[#allocation3 + $0x8] sm:$0xff] %vm277, %v3408
      %v3410 = vld [vmem:[%s335 + $0x1] sm:$0xff]
      %v3411 = vpack.c.bf16 %v3410, %v3410
      %v3412 = vld [vmem:[#allocation3 + $0x10] sm:$0xff]
      %v3414 = vsel %vm277, %v3411, 0
      %3416 = vmatprep.subr.bf16.mxu0 0
      %3417 = vmatpush1.bf16.msra.mxu0 %v3309
      %3418 = vmatprep.subr.bf16.mxu0 0
      %3419 = vmatpush1.bf16.msra.mxu0 %v3310
      %3420 = vmatprep.subr.bf16.mxu0 0
      %3421 = vmatpush1.bf16.msra.mxu0 %v3311
      %3422 = vmatprep.subr.bf16.mxu0 0
      %3423 = vmatpush1.bf16.msra.mxu0 %v3312
      %3424 = vmatprep.subr.bf16.mxu0 0
      %3425 = vmatpush1.bf16.msra.mxu0 0
      %3426 = vmatprep.subr.bf16.mxu0 0
      %3427 = vmatpush1.bf16.msra.mxu0 0
      %3428 = vmatprep.subr.bf16.mxu0 0
      %3429 = vmatpush1.bf16.msra.mxu0 0
      %3430 = vmatprep.subr.bf16.mxu0 0
      %3431 = vmatpush1.bf16.msra.mxu0 0
      %3432 = vmatprep.subr.bf16.mxu0 0
      %3433 = vmatpush1.bf16.msra.mxu0 0
      %3434 = vmatprep.subr.bf16.mxu0 0
      %3435 = vmatpush1.bf16.msra.mxu0 0
      %3436 = vmatprep.subr.bf16.mxu0 0
      %3437 = vmatpush1.bf16.msra.mxu0 0
      %3438 = vmatprep.subr.bf16.mxu0 0
      %3439 = vmatpush1.bf16.msra.mxu0 0
      %3440 = vmatprep.subr.bf16.mxu0 0
      %3441 = vmatpush1.bf16.msra.mxu0 0
      %3442 = vmatprep.subr.bf16.mxu0 0
      %3443 = vmatpush1.bf16.msra.mxu0 0
      %3444 = vmatprep.subr.bf16.mxu0 0
      %3445 = vmatpush1.bf16.msra.mxu0 0
      %3446 = vmatprep.subr.bf16.mxu0 0
      %3447 = vmatpush1.bf16.msra.mxu0 0
      %3448 = vmatprep.mubr.bf16.mxu0 0
      %3449 = vmatmul.mubr.bf16.gmra.mrb[0].mxu0 %v3414
      %v3450 = vpop.f32.mrb[0].mxu0
      %v3451 = vadd.f32 0.0, %v3450
      %v3452 = vpop.f32.mrb[0].mxu0
      %v3453 = vpop.f32.mrb[0].mxu0
      %v3454 = vpop.f32.mrb[0].mxu0
      %3455 = vdwg.mxu0
      %v3456 = vadd.f32 %v3412, %v3451
      %3457 = vst.msk [vmem:[#allocation3 + $0x10] sm:$0xff] %vm277, %v3456
      %v3458 = vld [vmem:[%s341 + $0x1] sm:$0xff]
      %v3459 = vpack.c.bf16 %v3458, %v3458
      %v3460 = vld [vmem:[#allocation3 + $0x18] sm:$0xff]
      %v3462 = vsel %vm277, %v3459, 0
      %3464 = vmatprep.subr.bf16.mxu0 0
      %3465 = vmatpush1.bf16.msra.mxu0 %v3309
      %3466 = vmatprep.subr.bf16.mxu0 0
      %3467 = vmatpush1.bf16.msra.mxu0 %v3310
      %3468 = vmatprep.subr.bf16.mxu0 0
      %3469 = vmatpush1.bf16.msra.mxu0 %v3311
      %3470 = vmatprep.subr.bf16.mxu0 0
      %3471 = vmatpush1.bf16.msra.mxu0 %v3312
      %3472 = vmatprep.subr.bf16.mxu0 0
      %3473 = vmatpush1.bf16.msra.mxu0 0
      %3474 = vmatprep.subr.bf16.mxu0 0
      %3475 = vmatpush1.bf16.msra.mxu0 0
      %3476 = vmatprep.subr.bf16.mxu0 0
      %3477 = vmatpush1.bf16.msra.mxu0 0
      %3478 = vmatprep.subr.bf16.mxu0 0
      %3479 = vmatpush1.bf16.msra.mxu0 0
      %3480 = vmatprep.subr.bf16.mxu0 0
      %3481 = vmatpush1.bf16.msra.mxu0 0
      %3482 = vmatprep.subr.bf16.mxu0 0
      %3483 = vmatpush1.bf16.msra.mxu0 0
      %3484 = vmatprep.subr.bf16.mxu0 0
      %3485 = vmatpush1.bf16.msra.mxu0 0
      %3486 = vmatprep.subr.bf16.mxu0 0
      %3487 = vmatpush1.bf16.msra.mxu0 0
      %3488 = vmatprep.subr.bf16.mxu0 0
      %3489 = vmatpush1.bf16.msra.mxu0 0
      %3490 = vmatprep.subr.bf16.mxu0 0
      %3491 = vmatpush1.bf16.msra.mxu0 0
      %3492 = vmatprep.subr.bf16.mxu0 0
      %3493 = vmatpush1.bf16.msra.mxu0 0
      %3494 = vmatprep.subr.bf16.mxu0 0
      %3495 = vmatpush1.bf16.msra.mxu0 0
      %3496 = vmatprep.mubr.bf16.mxu0 0
      %3497 = vmatmul.mubr.bf16.gmra.mrb[0].mxu0 %v3462
      %v3498 = vpop.f32.mrb[0].mxu0
      %v3499 = vadd.f32 0.0, %v3498
      %v3500 = vpop.f32.mrb[0].mxu0
      %v3501 = vpop.f32.mrb[0].mxu0
      %v3502 = vpop.f32.mrb[0].mxu0
      %3503 = vdwg.mxu0
      %v3504 = vadd.f32 %v3460, %v3499
      %3505 = vst.msk [vmem:[#allocation3 + $0x18] sm:$0xff] %vm277, %v3504
      %v3506 = vld [vmem:[%s347 + $0x1] sm:$0xff]
      %v3507 = vpack.c.bf16 %v3506, %v3506
      %v3508 = vld [vmem:[#allocation3 + $0x20] sm:$0xff]
      %v3510 = vsel %vm277, %v3507, 0
      %3512 = vmatprep.subr.bf16.mxu0 0
      %3513 = vmatpush1.bf16.msra.mxu0 %v3309
      %3514 = vmatprep.subr.bf16.mxu0 0
      %3515 = vmatpush1.bf16.msra.mxu0 %v3310
      %3516 = vmatprep.subr.bf16.mxu0 0
      %3517 = vmatpush1.bf16.msra.mxu0 %v3311
      %3518 = vmatprep.subr.bf16.mxu0 0
      %3519 = vmatpush1.bf16.msra.mxu0 %v3312
      %3520 = vmatprep.subr.bf16.mxu0 0
      %3521 = vmatpush1.bf16.msra.mxu0 0
      %3522 = vmatprep.subr.bf16.mxu0 0
      %3523 = vmatpush1.bf16.msra.mxu0 0
      %3524 = vmatprep.subr.bf16.mxu0 0
      %3525 = vmatpush1.bf16.msra.mxu0 0
      %3526 = vmatprep.subr.bf16.mxu0 0
      %3527 = vmatpush1.bf16.msra.mxu0 0
      %3528 = vmatprep.subr.bf16.mxu0 0
      %3529 = vmatpush1.bf16.msra.mxu0 0
      %3530 = vmatprep.subr.bf16.mxu0 0
      %3531 = vmatpush1.bf16.msra.mxu0 0
      %3532 = vmatprep.subr.bf16.mxu0 0
      %3533 = vmatpush1.bf16.msra.mxu0 0
      %3534 = vmatprep.subr.bf16.mxu0 0
      %3535 = vmatpush1.bf16.msra.mxu0 0
      %3536 = vmatprep.subr.bf16.mxu0 0
      %3537 = vmatpush1.bf16.msra.mxu0 0
      %3538 = vmatprep.subr.bf16.mxu0 0
      %3539 = vmatpush1.bf16.msra.mxu0 0
      %3540 = vmatprep.subr.bf16.mxu0 0
      %3541 = vmatpush1.bf16.msra.mxu0 0
      %3542 = vmatprep.subr.bf16.mxu0 0
      %3543 = vmatpush1.bf16.msra.mxu0 0
      %3544 = vmatprep.mubr.bf16.mxu0 0
      %3545 = vmatmul.mubr.bf16.gmra.mrb[0].mxu0 %v3510
      %v3546 = vpop.f32.mrb[0].mxu0
      %v3547 = vadd.f32 0.0, %v3546
      %v3548 = vpop.f32.mrb[0].mxu0
      %v3549 = vpop.f32.mrb[0].mxu0
      %v3550 = vpop.f32.mrb[0].mxu0
      %3551 = vdwg.mxu0
      %v3552 = vadd.f32 %v3508, %v3547
      %3553 = vst.msk [vmem:[#allocation3 + $0x20] sm:$0xff] %vm277, %v3552
      %v3554 = vld [vmem:[%s353 + $0x1] sm:$0xff]
      %v3555 = vpack.c.bf16 %v3554, %v3554
      %v3556 = vld [vmem:[#allocation3 + $0x28] sm:$0xff]
      %v3558 = vsel %vm277, %v3555, 0
      %3560 = vmatprep.subr.bf16.mxu0 0
      %3561 = vmatpush1.bf16.msra.mxu0 %v3309
      %3562 = vmatprep.subr.bf16.mxu0 0
      %3563 = vmatpush1.bf16.msra.mxu0 %v3310
      %3564 = vmatprep.subr.bf16.mxu0 0
      %3565 = vmatpush1.bf16.msra.mxu0 %v3311
      %3566 = vmatprep.subr.bf16.mxu0 0
      %3567 = vmatpush1.bf16.msra.mxu0 %v3312
      %3568 = vmatprep.subr.bf16.mxu0 0
      %3569 = vmatpush1.bf16.msra.mxu0 0
      %3570 = vmatprep.subr.bf16.mxu0 0
      %3571 = vmatpush1.bf16.msra.mxu0 0
      %3572 = vmatprep.subr.bf16.mxu0 0
      %3573 = vmatpush1.bf16.msra.mxu0 0
      %3574 = vmatprep.subr.bf16.mxu0 0
      %3575 = vmatpush1.bf16.msra.mxu0 0
      %3576 = vmatprep.subr.bf16.mxu0 0
      %3577 = vmatpush1.bf16.msra.mxu0 0
      %3578 = vmatprep.subr.bf16.mxu0 0
      %3579 = vmatpush1.bf16.msra.mxu0 0
      %3580 = vmatprep.subr.bf16.mxu0 0
      %3581 = vmatpush1.bf16.msra.mxu0 0
      %3582 = vmatprep.subr.bf16.mxu0 0
      %3583 = vmatpush1.bf16.msra.mxu0 0
      %3584 = vmatprep.subr.bf16.mxu0 0
      %3585 = vmatpush1.bf16.msra.mxu0 0
      %3586 = vmatprep.subr.bf16.mxu0 0
      %3587 = vmatpush1.bf16.msra.mxu0 0
      %3588 = vmatprep.subr.bf16.mxu0 0
      %3589 = vmatpush1.bf16.msra.mxu0 0
      %3590 = vmatprep.subr.bf16.mxu0 0
      %3591 = vmatpush1.bf16.msra.mxu0 0
      %3592 = vmatprep.mubr.bf16.mxu0 0
      %3593 = vmatmul.mubr.bf16.gmra.mrb[0].mxu0 %v3558
      %v3594 = vpop.f32.mrb[0].mxu0
      %v3595 = vadd.f32 0.0, %v3594
      %v3596 = vpop.f32.mrb[0].mxu0
      %v3597 = vpop.f32.mrb[0].mxu0
      %v3598 = vpop.f32.mrb[0].mxu0
      %3599 = vdwg.mxu0
      %v3600 = vadd.f32 %v3556, %v3595
      %3601 = vst.msk [vmem:[#allocation3 + $0x28] sm:$0xff] %vm277, %v3600
      %v3602 = vld [vmem:[%s359 + $0x1] sm:$0xff]
      %v3603 = vpack.c.bf16 %v3602, %v3602
      %v3604 = vld [vmem:[#allocation3 + $0x30] sm:$0xff]
      %v3606 = vsel %vm277, %v3603, 0
      %3608 = vmatprep.subr.bf16.mxu0 0
      %3609 = vmatpush1.bf16.msra.mxu0 %v3309
      %3610 = vmatprep.subr.bf16.mxu0 0
      %3611 = vmatpush1.bf16.msra.mxu0 %v3310
      %3612 = vmatprep.subr.bf16.mxu0 0
      %3613 = vmatpush1.bf16.msra.mxu0 %v3311
      %3614 = vmatprep.subr.bf16.mxu0 0
      %3615 = vmatpush1.bf16.msra.mxu0 %v3312
      %3616 = vmatprep.subr.bf16.mxu0 0
      %3617 = vmatpush1.bf16.msra.mxu0 0
      %3618 = vmatprep.subr.bf16.mxu0 0
      %3619 = vmatpush1.bf16.msra.mxu0 0
      %3620 = vmatprep.subr.bf16.mxu0 0
      %3621 = vmatpush1.bf16.msra.mxu0 0
      %3622 = vmatprep.subr.bf16.mxu0 0
      %3623 = vmatpush1.bf16.msra.mxu0 0
      %3624 = vmatprep.subr.bf16.mxu0 0
      %3625 = vmatpush1.bf16.msra.mxu0 0
      %3626 = vmatprep.subr.bf16.mxu0 0
      %3627 = vmatpush1.bf16.msra.mxu0 0
      %3628 = vmatprep.subr.bf16.mxu0 0
      %3629 = vmatpush1.bf16.msra.mxu0 0
      %3630 = vmatprep.subr.bf16.mxu0 0
      %3631 = vmatpush1.bf16.msra.mxu0 0
      %3632 = vmatprep.subr.bf16.mxu0 0
      %3633 = vmatpush1.bf16.msra.mxu0 0
      %3634 = vmatprep.subr.bf16.mxu0 0
      %3635 = vmatpush1.bf16.msra.mxu0 0
      %3636 = vmatprep.subr.bf16.mxu0 0
      %3637 = vmatpush1.bf16.msra.mxu0 0
      %3638 = vmatprep.subr.bf16.mxu0 0
      %3639 = vmatpush1.bf16.msra.mxu0 0
      %3640 = vmatprep.mubr.bf16.mxu0 0
      %3641 = vmatmul.mubr.bf16.gmra.mrb[0].mxu0 %v3606
      %v3642 = vpop.f32.mrb[0].mxu0
      %v3643 = vadd.f32 0.0, %v3642
      %v3644 = vpop.f32.mrb[0].mxu0
      %v3645 = vpop.f32.mrb[0].mxu0
      %v3646 = vpop.f32.mrb[0].mxu0
      %3647 = vdwg.mxu0
      %v3648 = vadd.f32 %v3604, %v3643
      %3649 = vst.msk [vmem:[#allocation3 + $0x30] sm:$0xff] %vm277, %v3648
      %v3650 = vld [vmem:[%s3233 + $0x1] sm:$0xff]
      %v3651 = vpack.c.bf16 %v3650, %v3650
      %v3652 = vld [vmem:[#allocation3 + $0x38] sm:$0xff]
      %v3654 = vsel %vm277, %v3651, 0
      %3656 = vmatprep.subr.bf16.mxu0 0
      %3657 = vmatpush1.bf16.msra.mxu0 %v3309
      %3658 = vmatprep.subr.bf16.mxu0 0
      %3659 = vmatpush1.bf16.msra.mxu0 %v3310
      %3660 = vmatprep.subr.bf16.mxu0 0
      %3661 = vmatpush1.bf16.msra.mxu0 %v3311
      %3662 = vmatprep.subr.bf16.mxu0 0
      %3663 = vmatpush1.bf16.msra.mxu0 %v3312
      %3664 = vmatprep.subr.bf16.mxu0 0
      %3665 = vmatpush1.bf16.msra.mxu0 0
      %3666 = vmatprep.subr.bf16.mxu0 0
      %3667 = vmatpush1.bf16.msra.mxu0 0
      %3668 = vmatprep.subr.bf16.mxu0 0
      %3669 = vmatpush1.bf16.msra.mxu0 0
      %3670 = vmatprep.subr.bf16.mxu0 0
      %3671 = vmatpush1.bf16.msra.mxu0 0
      %3672 = vmatprep.subr.bf16.mxu0 0
      %3673 = vmatpush1.bf16.msra.mxu0 0
      %3674 = vmatprep.subr.bf16.mxu0 0
      %3675 = vmatpush1.bf16.msra.mxu0 0
      %3676 = vmatprep.subr.bf16.mxu0 0
      %3677 = vmatpush1.bf16.msra.mxu0 0
      %3678 = vmatprep.subr.bf16.mxu0 0
      %3679 = vmatpush1.bf16.msra.mxu0 0
      %3680 = vmatprep.subr.bf16.mxu0 0
      %3681 = vmatpush1.bf16.msra.mxu0 0
      %3682 = vmatprep.subr.bf16.mxu0 0
      %3683 = vmatpush1.bf16.msra.mxu0 0
      %3684 = vmatprep.subr.bf16.mxu0 0
      %3685 = vmatpush1.bf16.msra.mxu0 0
      %3686 = vmatprep.subr.bf16.mxu0 0
      %3687 = vmatpush1.bf16.msra.mxu0 0
      %3688 = vmatprep.mubr.bf16.mxu0 0
      %3689 = vmatmul.mubr.bf16.gmra.mrb[0].mxu0 %v3654
      %v3690 = vpop.f32.mrb[0].mxu0
      %v3691 = vadd.f32 0.0, %v3690
      %v3692 = vpop.f32.mrb[0].mxu0
      %v3693 = vpop.f32.mrb[0].mxu0
      %v3694 = vpop.f32.mrb[0].mxu0
      %3695 = vdwg.mxu0
      %v3696 = vadd.f32 %v3652, %v3691
      %3697 = vst.msk [vmem:[#allocation3 + $0x38] sm:$0xff] %vm277, %v3696
      %v3698 = vld [vmem:[%s3 + $0x100] sm:$0xf]
      %v3699 = vld [vmem:[%s3 + $0x104] sm:$0xf]
      %v3700 = vld [vmem:[%s3 + $0x108] sm:$0xf]
      %v3701 = vld [vmem:[%s3 + $0x10c] sm:$0xf]
      %v3702 = vld [vmem:[%s3 + $0x110] sm:$0xf]
      %v3703 = vld [vmem:[%s3 + $0x114] sm:$0xf]
      %v3704 = vld [vmem:[%s3 + $0x118] sm:$0xf]
      %v3705 = vld [vmem:[%s3 + $0x11c] sm:$0xf]
      %v3706 = vld [vmem:[%s323 + $0x2] sm:$0xff]
      %v3707 = vpack.c.bf16 %v3706, %v3706
      %v3708 = vld [vmem:[#allocation3] sm:$0xff]
      %v3717 = vunpack.c.l.b16 %v3698
      %v3718 = vunpack.c.l.b16 %v3699
      %v3719 = vunpack.c.l.b16 %v3700
      %v3720 = vunpack.c.l.b16 %v3701
      %v3721 = vunpack.c.l.b16 %v3702
      %v3722 = vunpack.c.l.b16 %v3703
      %v3723 = vunpack.c.l.b16 %v3704
      %v3724 = vunpack.c.l.b16 %v3705
      %v3725 = vpack.c.b16 %v3718, %v3717
      %v3726 = vpack.c.b16 %v3720, %v3719
      %v3727 = vpack.c.b16 %v3722, %v3721
      %v3728 = vpack.c.b16 %v3724, %v3723
      %v3734 = vsel %vm277, %v3707, 0
      %3736 = vmatprep.subr.bf16.mxu0 0
      %3737 = vmatpush1.bf16.msra.mxu0 %v3725
      %3738 = vmatprep.subr.bf16.mxu0 0
      %3739 = vmatpush1.bf16.msra.mxu0 %v3726
      %3740 = vmatprep.subr.bf16.mxu0 0
      %3741 = vmatpush1.bf16.msra.mxu0 %v3727
      %3742 = vmatprep.subr.bf16.mxu0 0
      %3743 = vmatpush1.bf16.msra.mxu0 %v3728
      %3744 = vmatprep.subr.bf16.mxu0 0
      %3745 = vmatpush1.bf16.msra.mxu0 0
      %3746 = vmatprep.subr.bf16.mxu0 0
      %3747 = vmatpush1.bf16.msra.mxu0 0
      %3748 = vmatprep.subr.bf16.mxu0 0
      %3749 = vmatpush1.bf16.msra.mxu0 0
      %3750 = vmatprep.subr.bf16.mxu0 0
      %3751 = vmatpush1.bf16.msra.mxu0 0
      %3752 = vmatprep.subr.bf16.mxu0 0
      %3753 = vmatpush1.bf16.msra.mxu0 0
      %3754 = vmatprep.subr.bf16.mxu0 0
      %3755 = vmatpush1.bf16.msra.mxu0 0
      %3756 = vmatprep.subr.bf16.mxu0 0
      %3757 = vmatpush1.bf16.msra.mxu0 0
      %3758 = vmatprep.subr.bf16.mxu0 0
      %3759 = vmatpush1.bf16.msra.mxu0 0
      %3760 = vmatprep.subr.bf16.mxu0 0
      %3761 = vmatpush1.bf16.msra.mxu0 0
      %3762 = vmatprep.subr.bf16.mxu0 0
      %3763 = vmatpush1.bf16.msra.mxu0 0
      %3764 = vmatprep.subr.bf16.mxu0 0
      %3765 = vmatpush1.bf16.msra.mxu0 0
      %3766 = vmatprep.subr.bf16.mxu0 0
      %3767 = vmatpush1.bf16.msra.mxu0 0
      %3768 = vmatprep.mubr.bf16.mxu0 0
      %3769 = vmatmul.mubr.bf16.gmra.mrb[0].mxu0 %v3734
      %v3770 = vpop.f32.mrb[0].mxu0
      %v3771 = vadd.f32 0.0, %v3770
      %v3772 = vpop.f32.mrb[0].mxu0
      %v3773 = vpop.f32.mrb[0].mxu0
      %v3774 = vpop.f32.mrb[0].mxu0
      %3775 = vdwg.mxu0
      %v3776 = vadd.f32 %v3708, %v3771
      %3777 = vst.msk [vmem:[#allocation3] sm:$0xff] %vm277, %v3776
      %v3778 = vld [vmem:[%s329 + $0x2] sm:$0xff]
      %v3779 = vpack.c.bf16 %v3778, %v3778
      %v3780 = vld [vmem:[#allocation3 + $0x8] sm:$0xff]
      %v3782 = vsel %vm277, %v3779, 0
      %3784 = vmatprep.subr.bf16.mxu0 0
      %3785 = vmatpush1.bf16.msra.mxu0 %v3725
      %3786 = vmatprep.subr.bf16.mxu0 0
      %3787 = vmatpush1.bf16.msra.mxu0 %v3726
      %3788 = vmatprep.subr.bf16.mxu0 0
      %3789 = vmatpush1.bf16.msra.mxu0 %v3727
      %3790 = vmatprep.subr.bf16.mxu0 0
      %3791 = vmatpush1.bf16.msra.mxu0 %v3728
      %3792 = vmatprep.subr.bf16.mxu0 0
      %3793 = vmatpush1.bf16.msra.mxu0 0
      %3794 = vmatprep.subr.bf16.mxu0 0
      %3795 = vmatpush1.bf16.msra.mxu0 0
      %3796 = vmatprep.subr.bf16.mxu0 0
      %3797 = vmatpush1.bf16.msra.mxu0 0
      %3798 = vmatprep.subr.bf16.mxu0 0
      %3799 = vmatpush1.bf16.msra.mxu0 0
      %3800 = vmatprep.subr.bf16.mxu0 0
      %3801 = vmatpush1.bf16.msra.mxu0 0
      %3802 = vmatprep.subr.bf16.mxu0 0
      %3803 = vmatpush1.bf16.msra.mxu0 0
      %3804 = vmatprep.subr.bf16.mxu0 0
      %3805 = vmatpush1.bf16.msra.mxu0 0
      %3806 = vmatprep.subr.bf16.mxu0 0
      %3807 = vmatpush1.bf16.msra.mxu0 0
      %3808 = vmatprep.subr.bf16.mxu0 0
      %3809 = vmatpush1.bf16.msra.mxu0 0
      %3810 = vmatprep.subr.bf16.mxu0 0
      %3811 = vmatpush1.bf16.msra.mxu0 0
      %3812 = vmatprep.subr.bf16.mxu0 0
      %3813 = vmatpush1.bf16.msra.mxu0 0
      %3814 = vmatprep.subr.bf16.mxu0 0
      %3815 = vmatpush1.bf16.msra.mxu0 0
      %3816 = vmatprep.mubr.bf16.mxu0 0
      %3817 = vmatmul.mubr.bf16.gmra.mrb[0].mxu0 %v3782
      %v3818 = vpop.f32.mrb[0].mxu0
      %v3819 = vadd.f32 0.0, %v3818
      %v3820 = vpop.f32.mrb[0].mxu0
      %v3821 = vpop.f32.mrb[0].mxu0
      %v3822 = vpop.f32.mrb[0].mxu0
      %3823 = vdwg.mxu0
      %v3824 = vadd.f32 %v3780, %v3819
      %3825 = vst.msk [vmem:[#allocation3 + $0x8] sm:$0xff] %vm277, %v3824
      %v3826 = vld [vmem:[%s335 + $0x2] sm:$0xff]
      %v3827 = vpack.c.bf16 %v3826, %v3826
      %v3828 = vld [vmem:[#allocation3 + $0x10] sm:$0xff]
      %v3830 = vsel %vm277, %v3827, 0
      %3832 = vmatprep.subr.bf16.mxu0 0
      %3833 = vmatpush1.bf16.msra.mxu0 %v3725
      %3834 = vmatprep.subr.bf16.mxu0 0
      %3835 = vmatpush1.bf16.msra.mxu0 %v3726
      %3836 = vmatprep.subr.bf16.mxu0 0
      %3837 = vmatpush1.bf16.msra.mxu0 %v3727
      %3838 = vmatprep.subr.bf16.mxu0 0
      %3839 = vmatpush1.bf16.msra.mxu0 %v3728
      %3840 = vmatprep.subr.bf16.mxu0 0
      %3841 = vmatpush1.bf16.msra.mxu0 0
      %3842 = vmatprep.subr.bf16.mxu0 0
      %3843 = vmatpush1.bf16.msra.mxu0 0
      %3844 = vmatprep.subr.bf16.mxu0 0
      %3845 = vmatpush1.bf16.msra.mxu0 0
      %3846 = vmatprep.subr.bf16.mxu0 0
      %3847 = vmatpush1.bf16.msra.mxu0 0
      %3848 = vmatprep.subr.bf16.mxu0 0
      %3849 = vmatpush1.bf16.msra.mxu0 0
      %3850 = vmatprep.subr.bf16.mxu0 0
      %3851 = vmatpush1.bf16.msra.mxu0 0
      %3852 = vmatprep.subr.bf16.mxu0 0
      %3853 = vmatpush1.bf16.msra.mxu0 0
      %3854 = vmatprep.subr.bf16.mxu0 0
      %3855 = vmatpush1.bf16.msra.mxu0 0
      %3856 = vmatprep.subr.bf16.mxu0 0
      %3857 = vmatpush1.bf16.msra.mxu0 0
      %3858 = vmatprep.subr.bf16.mxu0 0
      %3859 = vmatpush1.bf16.msra.mxu0 0
      %3860 = vmatprep.subr.bf16.mxu0 0
      %3861 = vmatpush1.bf16.msra.mxu0 0
      %3862 = vmatprep.subr.bf16.mxu0 0
      %3863 = vmatpush1.bf16.msra.mxu0 0
      %3864 = vmatprep.mubr.bf16.mxu0 0
      %3865 = vmatmul.mubr.bf16.gmra.mrb[0].mxu0 %v3830
      %v3866 = vpop.f32.mrb[0].mxu0
      %v3867 = vadd.f32 0.0, %v3866
      %v3868 = vpop.f32.mrb[0].mxu0
      %v3869 = vpop.f32.mrb[0].mxu0
      %v3870 = vpop.f32.mrb[0].mxu0
      %3871 = vdwg.mxu0
      %v3872 = vadd.f32 %v3828, %v3867
      %3873 = vst.msk [vmem:[#allocation3 + $0x10] sm:$0xff] %vm277, %v3872
      %v3874 = vld [vmem:[%s341 + $0x2] sm:$0xff]
      %v3875 = vpack.c.bf16 %v3874, %v3874
      %v3876 = vld [vmem:[#allocation3 + $0x18] sm:$0xff]
      %v3878 = vsel %vm277, %v3875, 0
      %3880 = vmatprep.subr.bf16.mxu0 0
      %3881 = vmatpush1.bf16.msra.mxu0 %v3725
      %3882 = vmatprep.subr.bf16.mxu0 0
      %3883 = vmatpush1.bf16.msra.mxu0 %v3726
      %3884 = vmatprep.subr.bf16.mxu0 0
      %3885 = vmatpush1.bf16.msra.mxu0 %v3727
      %3886 = vmatprep.subr.bf16.mxu0 0
      %3887 = vmatpush1.bf16.msra.mxu0 %v3728
      %3888 = vmatprep.subr.bf16.mxu0 0
      %3889 = vmatpush1.bf16.msra.mxu0 0
      %3890 = vmatprep.subr.bf16.mxu0 0
      %3891 = vmatpush1.bf16.msra.mxu0 0
      %3892 = vmatprep.subr.bf16.mxu0 0
      %3893 = vmatpush1.bf16.msra.mxu0 0
      %3894 = vmatprep.subr.bf16.mxu0 0
      %3895 = vmatpush1.bf16.msra.mxu0 0
      %3896 = vmatprep.subr.bf16.mxu0 0
      %3897 = vmatpush1.bf16.msra.mxu0 0
      %3898 = vmatprep.subr.bf16.mxu0 0
      %3899 = vmatpush1.bf16.msra.mxu0 0
      %3900 = vmatprep.subr.bf16.mxu0 0
      %3901 = vmatpush1.bf16.msra.mxu0 0
      %3902 = vmatprep.subr.bf16.mxu0 0
      %3903 = vmatpush1.bf16.msra.mxu0 0
      %3904 = vmatprep.subr.bf16.mxu0 0
      %3905 = vmatpush1.bf16.msra.mxu0 0
      %3906 = vmatprep.subr.bf16.mxu0 0
      %3907 = vmatpush1.bf16.msra.mxu0 0
      %3908 = vmatprep.subr.bf16.mxu0 0
      %3909 = vmatpush1.bf16.msra.mxu0 0
      %3910 = vmatprep.subr.bf16.mxu0 0
      %3911 = vmatpush1.bf16.msra.mxu0 0
      %3912 = vmatprep.mubr.bf16.mxu0 0
      %3913 = vmatmul.mubr.bf16.gmra.mrb[0].mxu0 %v3878
      %v3914 = vpop.f32.mrb[0].mxu0
      %v3915 = vadd.f32 0.0, %v3914
      %v3916 = vpop.f32.mrb[0].mxu0
      %v3917 = vpop.f32.mrb[0].mxu0
      %v3918 = vpop.f32.mrb[0].mxu0
      %3919 = vdwg.mxu0
      %v3920 = vadd.f32 %v3876, %v3915
      %3921 = vst.msk [vmem:[#allocation3 + $0x18] sm:$0xff] %vm277, %v3920
      %v3922 = vld [vmem:[%s347 + $0x2] sm:$0xff]
      %v3923 = vpack.c.bf16 %v3922, %v3922
      %v3924 = vld [vmem:[#allocation3 + $0x20] sm:$0xff]
      %v3926 = vsel %vm277, %v3923, 0
      %3928 = vmatprep.subr.bf16.mxu0 0
      %3929 = vmatpush1.bf16.msra.mxu0 %v3725
      %3930 = vmatprep.subr.bf16.mxu0 0
      %3931 = vmatpush1.bf16.msra.mxu0 %v3726
      %3932 = vmatprep.subr.bf16.mxu0 0
      %3933 = vmatpush1.bf16.msra.mxu0 %v3727
      %3934 = vmatprep.subr.bf16.mxu0 0
      %3935 = vmatpush1.bf16.msra.mxu0 %v3728
      %3936 = vmatprep.subr.bf16.mxu0 0
      %3937 = vmatpush1.bf16.msra.mxu0 0
      %3938 = vmatprep.subr.bf16.mxu0 0
      %3939 = vmatpush1.bf16.msra.mxu0 0
      %3940 = vmatprep.subr.bf16.mxu0 0
      %3941 = vmatpush1.bf16.msra.mxu0 0
      %3942 = vmatprep.subr.bf16.mxu0 0
      %3943 = vmatpush1.bf16.msra.mxu0 0
      %3944 = vmatprep.subr.bf16.mxu0 0
      %3945 = vmatpush1.bf16.msra.mxu0 0
      %3946 = vmatprep.subr.bf16.mxu0 0
      %3947 = vmatpush1.bf16.msra.mxu0 0
      %3948 = vmatprep.subr.bf16.mxu0 0
      %3949 = vmatpush1.bf16.msra.mxu0 0
      %3950 = vmatprep.subr.bf16.mxu0 0
      %3951 = vmatpush1.bf16.msra.mxu0 0
      %3952 = vmatprep.subr.bf16.mxu0 0
      %3953 = vmatpush1.bf16.msra.mxu0 0
      %3954 = vmatprep.subr.bf16.mxu0 0
      %3955 = vmatpush1.bf16.msra.mxu0 0
      %3956 = vmatprep.subr.bf16.mxu0 0
      %3957 = vmatpush1.bf16.msra.mxu0 0
      %3958 = vmatprep.subr.bf16.mxu0 0
      %3959 = vmatpush1.bf16.msra.mxu0 0
      %3960 = vmatprep.mubr.bf16.mxu0 0
      %3961 = vmatmul.mubr.bf16.gmra.mrb[0].mxu0 %v3926
      %v3962 = vpop.f32.mrb[0].mxu0
      %v3963 = vadd.f32 0.0, %v3962
      %v3964 = vpop.f32.mrb[0].mxu0
      %v3965 = vpop.f32.mrb[0].mxu0
      %v3966 = vpop.f32.mrb[0].mxu0
      %3967 = vdwg.mxu0
      %v3968 = vadd.f32 %v3924, %v3963
      %3969 = vst.msk [vmem:[#allocation3 + $0x20] sm:$0xff] %vm277, %v3968
      %v3970 = vld [vmem:[%s353 + $0x2] sm:$0xff]
      %v3971 = vpack.c.bf16 %v3970, %v3970
      %v3972 = vld [vmem:[#allocation3 + $0x28] sm:$0xff]
      %v3974 = vsel %vm277, %v3971, 0
      %3976 = vmatprep.subr.bf16.mxu0 0
      %3977 = vmatpush1.bf16.msra.mxu0 %v3725
      %3978 = vmatprep.subr.bf16.mxu0 0
      %3979 = vmatpush1.bf16.msra.mxu0 %v3726
      %3980 = vmatprep.subr.bf16.mxu0 0
      %3981 = vmatpush1.bf16.msra.mxu0 %v3727
      %3982 = vmatprep.subr.bf16.mxu0 0
      %3983 = vmatpush1.bf16.msra.mxu0 %v3728
      %3984 = vmatprep.subr.bf16.mxu0 0
      %3985 = vmatpush1.bf16.msra.mxu0 0
      %3986 = vmatprep.subr.bf16.mxu0 0
      %3987 = vmatpush1.bf16.msra.mxu0 0
      %3988 = vmatprep.subr.bf16.mxu0 0
      %3989 = vmatpush1.bf16.msra.mxu0 0
      %3990 = vmatprep.subr.bf16.mxu0 0
      %3991 = vmatpush1.bf16.msra.mxu0 0
      %3992 = vmatprep.subr.bf16.mxu0 0
      %3993 = vmatpush1.bf16.msra.mxu0 0
      %3994 = vmatprep.subr.bf16.mxu0 0
      %3995 = vmatpush1.bf16.msra.mxu0 0
      %3996 = vmatprep.subr.bf16.mxu0 0
      %3997 = vmatpush1.bf16.msra.mxu0 0
      %3998 = vmatprep.subr.bf16.mxu0 0
      %3999 = vmatpush1.bf16.msra.mxu0 0
      %4000 = vmatprep.subr.bf16.mxu0 0
      %4001 = vmatpush1.bf16.msra.mxu0 0
      %4002 = vmatprep.subr.bf16.mxu0 0
      %4003 = vmatpush1.bf16.msra.mxu0 0
      %4004 = vmatprep.subr.bf16.mxu0 0
      %4005 = vmatpush1.bf16.msra.mxu0 0
      %4006 = vmatprep.subr.bf16.mxu0 0
      %4007 = vmatpush1.bf16.msra.mxu0 0
      %4008 = vmatprep.mubr.bf16.mxu0 0
      %4009 = vmatmul.mubr.bf16.gmra.mrb[0].mxu0 %v3974
      %v4010 = vpop.f32.mrb[0].mxu0
      %v4011 = vadd.f32 0.0, %v4010
      %v4012 = vpop.f32.mrb[0].mxu0
      %v4013 = vpop.f32.mrb[0].mxu0
      %v4014 = vpop.f32.mrb[0].mxu0
      %4015 = vdwg.mxu0
      %v4016 = vadd.f32 %v3972, %v4011
      %4017 = vst.msk [vmem:[#allocation3 + $0x28] sm:$0xff] %vm277, %v4016
      %v4018 = vld [vmem:[%s359 + $0x2] sm:$0xff]
      %v4019 = vpack.c.bf16 %v4018, %v4018
      %v4020 = vld [vmem:[#allocation3 + $0x30] sm:$0xff]
      %v4022 = vsel %vm277, %v4019, 0
      %4024 = vmatprep.subr.bf16.mxu0 0
      %4025 = vmatpush1.bf16.msra.mxu0 %v3725
      %4026 = vmatprep.subr.bf16.mxu0 0
      %4027 = vmatpush1.bf16.msra.mxu0 %v3726
      %4028 = vmatprep.subr.bf16.mxu0 0
      %4029 = vmatpush1.bf16.msra.mxu0 %v3727
      %4030 = vmatprep.subr.bf16.mxu0 0
      %4031 = vmatpush1.bf16.msra.mxu0 %v3728
      %4032 = vmatprep.subr.bf16.mxu0 0
      %4033 = vmatpush1.bf16.msra.mxu0 0
      %4034 = vmatprep.subr.bf16.mxu0 0
      %4035 = vmatpush1.bf16.msra.mxu0 0
      %4036 = vmatprep.subr.bf16.mxu0 0
      %4037 = vmatpush1.bf16.msra.mxu0 0
      %4038 = vmatprep.subr.bf16.mxu0 0
      %4039 = vmatpush1.bf16.msra.mxu0 0
      %4040 = vmatprep.subr.bf16.mxu0 0
      %4041 = vmatpush1.bf16.msra.mxu0 0
      %4042 = vmatprep.subr.bf16.mxu0 0
      %4043 = vmatpush1.bf16.msra.mxu0 0
      %4044 = vmatprep.subr.bf16.mxu0 0
      %4045 = vmatpush1.bf16.msra.mxu0 0
      %4046 = vmatprep.subr.bf16.mxu0 0
      %4047 = vmatpush1.bf16.msra.mxu0 0
      %4048 = vmatprep.subr.bf16.mxu0 0
      %4049 = vmatpush1.bf16.msra.mxu0 0
      %4050 = vmatprep.subr.bf16.mxu0 0
      %4051 = vmatpush1.bf16.msra.mxu0 0
      %4052 = vmatprep.subr.bf16.mxu0 0
      %4053 = vmatpush1.bf16.msra.mxu0 0
      %4054 = vmatprep.subr.bf16.mxu0 0
      %4055 = vmatpush1.bf16.msra.mxu0 0
      %4056 = vmatprep.mubr.bf16.mxu0 0
      %4057 = vmatmul.mubr.bf16.gmra.mrb[0].mxu0 %v4022
      %v4058 = vpop.f32.mrb[0].mxu0
      %v4059 = vadd.f32 0.0, %v4058
      %v4060 = vpop.f32.mrb[0].mxu0
      %v4061 = vpop.f32.mrb[0].mxu0
      %v4062 = vpop.f32.mrb[0].mxu0
      %4063 = vdwg.mxu0
      %v4064 = vadd.f32 %v4020, %v4059
      %4065 = vst.msk [vmem:[#allocation3 + $0x30] sm:$0xff] %vm277, %v4064
      %v4066 = vld [vmem:[%s3233 + $0x2] sm:$0xff]
      %v4067 = vpack.c.bf16 %v4066, %v4066
      %v4068 = vld [vmem:[#allocation3 + $0x38] sm:$0xff]
      %v4070 = vsel %vm277, %v4067, 0
      %4072 = vmatprep.subr.bf16.mxu0 0
      %4073 = vmatpush1.bf16.msra.mxu0 %v3725
      %4074 = vmatprep.subr.bf16.mxu0 0
      %4075 = vmatpush1.bf16.msra.mxu0 %v3726
      %4076 = vmatprep.subr.bf16.mxu0 0
      %4077 = vmatpush1.bf16.msra.mxu0 %v3727
      %4078 = vmatprep.subr.bf16.mxu0 0
      %4079 = vmatpush1.bf16.msra.mxu0 %v3728
      %4080 = vmatprep.subr.bf16.mxu0 0
      %4081 = vmatpush1.bf16.msra.mxu0 0
      %4082 = vmatprep.subr.bf16.mxu0 0
      %4083 = vmatpush1.bf16.msra.mxu0 0
      %4084 = vmatprep.subr.bf16.mxu0 0
      %4085 = vmatpush1.bf16.msra.mxu0 0
      %4086 = vmatprep.subr.bf16.mxu0 0
      %4087 = vmatpush1.bf16.msra.mxu0 0
      %4088 = vmatprep.subr.bf16.mxu0 0
      %4089 = vmatpush1.bf16.msra.mxu0 0
      %4090 = vmatprep.subr.bf16.mxu0 0
      %4091 = vmatpush1.bf16.msra.mxu0 0
      %4092 = vmatprep.subr.bf16.mxu0 0
      %4093 = vmatpush1.bf16.msra.mxu0 0
      %4094 = vmatprep.subr.bf16.mxu0 0
      %4095 = vmatpush1.bf16.msra.mxu0 0
      %4096 = vmatprep.subr.bf16.mxu0 0
      %4097 = vmatpush1.bf16.msra.mxu0 0
      %4098 = vmatprep.subr.bf16.mxu0 0
      %4099 = vmatpush1.bf16.msra.mxu0 0
      %4100 = vmatprep.subr.bf16.mxu0 0
      %4101 = vmatpush1.bf16.msra.mxu0 0
      %4102 = vmatprep.subr.bf16.mxu0 0
      %4103 = vmatpush1.bf16.msra.mxu0 0
      %4104 = vmatprep.mubr.bf16.mxu0 0
      %4105 = vmatmul.mubr.bf16.gmra.mrb[0].mxu0 %v4070
      %v4106 = vpop.f32.mrb[0].mxu0
      %v4107 = vadd.f32 0.0, %v4106
      %v4108 = vpop.f32.mrb[0].mxu0
      %v4109 = vpop.f32.mrb[0].mxu0
      %v4110 = vpop.f32.mrb[0].mxu0
      %4111 = vdwg.mxu0
      %v4112 = vadd.f32 %v4068, %v4107
      %4113 = vst.msk [vmem:[#allocation3 + $0x38] sm:$0xff] %vm277, %v4112
      %v4114 = vld [vmem:[#allocation3] sm:$0xff]
      %v4115 = vld [vmem:[#allocation3 + $0x8] sm:$0xff]
      %v4116 = vld [vmem:[#allocation3 + $0x10] sm:$0xff]
      %v4117 = vld [vmem:[#allocation3 + $0x18] sm:$0xff]
      %v4118 = vld [vmem:[#allocation3 + $0x20] sm:$0xff]
      %v4119 = vld [vmem:[#allocation3 + $0x28] sm:$0xff]
      %v4120 = vld [vmem:[#allocation3 + $0x30] sm:$0xff]
      %v4121 = vld [vmem:[#allocation3 + $0x38] sm:$0xff]
      %v4122 = vmax.f32 %v4114, 0.0
      %v4123 = vmax.f32 %v4115, 0.0
      %v4124 = vmax.f32 %v4116, 0.0
      %v4125 = vmax.f32 %v4117, 0.0
      %v4126 = vmax.f32 %v4118, 0.0
      %v4127 = vmax.f32 %v4119, 0.0
      %v4128 = vmax.f32 %v4120, 0.0
      %v4129 = vmax.f32 %v4121, 0.0
      %v4130 = vpack.c.bf16 %v4123, %v4122
      %v4131 = vpack.c.bf16 %v4125, %v4124
      %v4132 = vpack.c.bf16 %v4127, %v4126
      %v4133 = vpack.c.bf16 %v4129, %v4128
      %v4138 = vunpack.c.l.b16 %v4130
      %v4139 = vunpack.c.h.b16 %v4130
      %v4140 = vunpack.c.l.b16 %v4131
      %v4141 = vunpack.c.h.b16 %v4131
      %v4142 = vunpack.c.l.b16 %v4132
      %v4143 = vunpack.c.h.b16 %v4132
      %v4144 = vunpack.c.l.b16 %v4133
      %v4145 = vunpack.c.h.b16 %v4133
      %v4146 = vpack.c.b16 %v4138, %v4138
      %v4147 = vpack.c.b16 %v4139, %v4139
      %v4148 = vpack.c.b16 %v4140, %v4140
      %v4149 = vpack.c.b16 %v4141, %v4141
      %v4150 = vpack.c.b16 %v4142, %v4142
      %v4151 = vpack.c.b16 %v4143, %v4143
      %v4152 = vpack.c.b16 %v4144, %v4144
      %v4153 = vpack.c.b16 %v4145, %v4145
      %vm4162 = vcmask 519168
      %4163 = vst.msk [vmem:[%s266] sm:$0xf] %vm4162, %v4146
      %4164 = vst.msk [vmem:[%s266 + $0x4] sm:$0xf] %vm4162, %v4147
      %4165 = vst.msk [vmem:[%s266 + $0x8] sm:$0xf] %vm4162, %v4148
      %4166 = vst.msk [vmem:[%s266 + $0xc] sm:$0xf] %vm4162, %v4149
      %4167 = vst.msk [vmem:[%s266 + $0x10] sm:$0xf] %vm4162, %v4150
      %4168 = vst.msk [vmem:[%s266 + $0x14] sm:$0xf] %vm4162, %v4151
      %4169 = vst.msk [vmem:[%s266 + $0x18] sm:$0xf] %vm4162, %v4152
      %4170 = vst.msk [vmem:[%s266 + $0x1c] sm:$0xf] %vm4162, %v4153
      %v4171 = vadd.f32 %v4122, %v4123
      %v4172 = vadd.f32 %v4171, %v4124
      %v4173 = vadd.f32 %v4172, %v4125
      %v4174 = vadd.f32 %v4173, %v4126
      %v4175 = vadd.f32 %v4174, %v4127
      %v4176 = vadd.f32 %v4175, %v4128
      %v4177 = vadd.f32 %v4176, %v4129
      %4178 = vst.msk [vmem:[%s271] sm:$0xff] %vm277, %v4177
      %v4179 = vmul.f32 %v4122, %v4122
      %v4180 = vmul.f32 %v4123, %v4123
      %v4181 = vmul.f32 %v4124, %v4124
      %v4182 = vmul.f32 %v4125, %v4125
      %v4183 = vmul.f32 %v4126, %v4126
      %v4184 = vmul.f32 %v4127, %v4127
      %v4185 = vmul.f32 %v4128, %v4128
      %v4186 = vmul.f32 %v4129, %v4129
      %v4187 = vadd.f32 %v4179, %v4180
      %v4188 = vadd.f32 %v4187, %v4181
      %v4189 = vadd.f32 %v4188, %v4182
      %v4190 = vadd.f32 %v4189, %v4183
      %v4191 = vadd.f32 %v4190, %v4184
      %v4192 = vadd.f32 %v4191, %v4185
      %v4193 = vadd.f32 %v4192, %v4186
      %4194 = vst.msk [vmem:[%s275] sm:$0xff] %vm277, %v4193
      %s4195 = smul.u32 8, %s18
      %p4196 = scmp.lt.s32.totalorder %s4195, 15
      %s4197 = scalar_select %p4196, %s4195, 15
      %s4198 = smul.addr %s4197, 4
      %s4199 = scalar_lea.vmem %s4, %s4198
      %p4200 = scmp.lt.s32.totalorder %s18, 1
      %s4201 = scalar_select %p4200, %s18, 1
      %s4202 = smul.addr %s4201, 8
      %s4203 = scalar_lea.vmem %s5, %s4202
      %p4204 = scmp.lt.s32.totalorder %s18, 1
      %s4205 = scalar_select %p4204, %s18, 1
      %s4206 = smul.addr %s4205, 8
      %s4207 = scalar_lea.vmem %s6, %s4206
      // Predicated region
      $region37: #{bottleneck_t_forward.6} parent=35 // pred_check
        %p4208 = pneg %p125
      $region38: #{bottleneck_t_forward.6} parent=35 // pred_check_branch
        %4210 = sbr.rel (%p4208) target = $region40
      $region39: #{bottleneck_t_forward.6} parent=35 // pred_region
        %s4211 = smul.u32 8, %s18
      $region40: #{bottleneck_t_forward.6} parent=35 // pred_fallthru
        _
      // Predicated region
      $region41: #{bottleneck_t_forward.6} parent=35 // pred_check
        %p4212 = pneg %p151
      $region42: #{bottleneck_t_forward.6} parent=35 // pred_check_branch
        %4214 = sbr.rel (%p4212) target = $region44
      $region43: #{bottleneck_t_forward.6} parent=35 // pred_region
        _
      $region44: #{bottleneck_t_forward.6} parent=35 // pred_fallthru
        _
      // Predicated region
      $region45: #{bottleneck_t_forward.6} parent=35 // pred_check
        %p4215 = pneg %p177
      $region46: #{bottleneck_t_forward.6} parent=35 // pred_check_branch
        %4217 = sbr.rel (%p4215) target = $region48
      $region47: #{bottleneck_t_forward.6} parent=35 // pred_region
        _
      $region48: #{bottleneck_t_forward.6} parent=35 // pred_fallthru
        _
    $region36: #{bottleneck_t_forward.6} parent=5 // pred_fallthru
      _
    %p4218 = scmp.le.s32.totalorder 2, %s13
    // Predicated region
    $region49: #{bottleneck_t_forward.6} parent=5 // pred_check
      %p4219 = pneg %p4218
    $region50: #{bottleneck_t_forward.6} parent=5 // pred_check_branch
      %4221 = sbr.rel (%p4219) target = $region52
    $region51: #{bottleneck_t_forward.6} parent=5 // pred_region
      %s4222 = ssub.s32 %s13, 2
      // Predicated region
      $region53: #{bottleneck_t_forward.6} parent=51 // pred_check
        %p4223 = pneg %p131
      $region54: #{bottleneck_t_forward.6} parent=51 // pred_check_branch
        %4225 = sbr.rel (%p4223) target = $region56
      $region55: #{bottleneck_t_forward.6} parent=51 // pred_region
        %s4226 = smul.u32 8, %s19
        %p4227 = scmp.lt.s32.totalorder %s4226, 15
        %s4228 = scalar_select %p4227, %s4226, 15
        %s4229 = smul.addr %s4228, 4
        %s4230 = scalar_lea.vmem %s4, %s4229
      $region56: #{bottleneck_t_forward.6} parent=51 // pred_fallthru
        _
      // Predicated region
      $region57: #{bottleneck_t_forward.6} parent=51 // pred_check
        %p4231 = pneg %p157
      $region58: #{bottleneck_t_forward.6} parent=51 // pred_check_branch
        %4233 = sbr.rel (%p4231) target = $region60
      $region59: #{bottleneck_t_forward.6} parent=51 // pred_region
        %p4234 = scmp.lt.s32.totalorder %s19, 1
        %s4235 = scalar_select %p4234, %s19, 1
        %s4236 = smul.addr %s4235, 8
        %s4237 = scalar_lea.vmem %s5, %s4236
      $region60: #{bottleneck_t_forward.6} parent=51 // pred_fallthru
        _
      // Predicated region
      $region61: #{bottleneck_t_forward.6} parent=51 // pred_check
        %p4238 = pneg %p183
      $region62: #{bottleneck_t_forward.6} parent=51 // pred_check_branch
        %4240 = sbr.rel (%p4238) target = $region64
      $region63: #{bottleneck_t_forward.6} parent=51 // pred_region
        %p4241 = scmp.lt.s32.totalorder %s19, 1
        %s4242 = scalar_select %p4241, %s19, 1
        %s4243 = smul.addr %s4242, 8
        %s4244 = scalar_lea.vmem %s6, %s4243
      $region64: #{bottleneck_t_forward.6} parent=51 // pred_fallthru
        _
    $region52: #{bottleneck_t_forward.6} parent=5 // pred_fallthru
      _
  $region6: #{bottleneck_t_forward.6} parent=0 // loop_footer
    %s17 = sadd.s32 1, %s13
  $region7: #{bottleneck_t_forward.6} parent=0 // loop_footer_branch
    %12 = sbr.rel target = $region3
  $region8: #{bottleneck_t_forward.6} parent=0 // loop_exit
    _

</llo_original>
